<compile_context>
chip_gen: v7x
topology: tpu7x:2x2x1
jax: 0.10.0
libtpu: 0.0.40
codegen_flags: <defaults>
</compile_context>

<pallas_src>
import functools

import jax
import jax.numpy as jnp
from jax.experimental import pallas as pl
from jax.experimental.pallas import tpu as pltpu

MAP_FEAT_SIZE = 4 * 7 * 7          # 196
Y1_FRAME = 4 * 34 * 34             # deconv1 output (4,32,32) in a zero-padded 34x34 frame
Q2 = 33                            # deconv2 phase-block spatial size (output 198 = 6*33)


def _round_up(x, m):
    return ((x + m - 1) // m) * m


# ----------------------------------------------------------------------------
# Kernel 1: GRU recurrence + fused (fc ∘ hidden_to_feat ∘ upsample ∘ deconv1) output
# ----------------------------------------------------------------------------
def _gru_deconv1_kernel(seq_len, bp, gp,
                        zx_ref, mf_ref,
                        w_dh_ref, b_dh_ref, w_m2e_ref, b_m2e_ref,
                        w_ih_zx_ref, w_ih_a_ref, b_ih_ref,
                        w_step_ref, b_hh_ref, gi_bias_ref,
                        w_big_ref, b_big_ref,
                        y1_ref, h_store):
    zx = zx_ref[...]                                                       # (BP, mlp+z)
    # decoder_h = dec_hidden(zx)
    h = jnp.dot(zx, w_dh_ref[...], preferred_element_type=jnp.float32) + b_dh_ref[...]
    # a0 = map_feat_to_emb(last_past_map_feat)
    a0 = jnp.dot(mf_ref[...], w_m2e_ref[...], preferred_element_type=jnp.float32) + b_m2e_ref[...]
    # zx is constant over time -> its gate contribution is computed once
    gi_zx = jnp.dot(zx, w_ih_zx_ref[...], preferred_element_type=jnp.float32) + b_ih_ref[...]
    gi_first = gi_zx + jnp.dot(a0, w_ih_a_ref[...], preferred_element_type=jnp.float32)
    gi_fused = gi_zx + gi_bias_ref[...]              # + b_h2f @ W_ih_a (hidden-fed path)
    b_hh = b_hh_ref[...]
    w_step = w_step_ref[...]                         # (GP, 6*GP) = [W_h2f@W_ih_a | W_hh]

    # seq_len is small -> static unroll; all slices below are 128-lane aligned (gp=128k)
    for t in range(seq_len):
        hh = jnp.dot(h, w_step, preferred_element_type=jnp.float32)       # one MXU op / step
        gi = gi_first if t == 0 else gi_fused + hh[:, :3 * gp]
        gh = hh[:, 3 * gp:] + b_hh
        r = jax.nn.sigmoid(gi[:, :gp] + gh[:, :gp])
        u = jax.nn.sigmoid(gi[:, gp:2 * gp] + gh[:, gp:2 * gp])
        n = jnp.tanh(gi[:, 2 * gp:] + r * gh[:, 2 * gp:])
        h = (1.0 - u) * n + u * h                                          # GRUCell update
        h_store[pl.ds(t * bp, bp), :] = h            # sublane-aligned store (bp % 8 == 0)

    # map_feat -> fc -> view(-1,4,7,7) -> Upsample(14) -> ConvTranspose2d(4,4,6,2) -> ReLU
    # all folded into one bf16 matmul producing the padded 34x34 spatial frame directly.
    h_all = h_store[...].astype(jnp.bfloat16)                              # (seq*BP, GP)
    y1 = jnp.dot(h_all, w_big_ref[...], preferred_element_type=jnp.float32) + b_big_ref[...]
    y1_ref[...] = jnp.maximum(y1, 0.0)                                     # ReLU, lane-dense store


# ----------------------------------------------------------------------------
# Kernel 2: effective ConvTranspose2d(4,1,12,stride=6) (= Upsample(2x) + deconv2)
#   one (36,16) x (16, nb*1089) matmul + sigmoid per grid step
# ----------------------------------------------------------------------------
def _deconv2_kernel(w_ref, p_ref, o_ref):
    y = jnp.dot(w_ref[...], p_ref[0], preferred_element_type=jnp.float32)
    o_ref[0] = jax.nn.sigmoid(y)


def _pick_block(n, cap=16):
    """Samples per deconv2 grid step: prefer the largest nb giving an even grid (v7x)."""
    best = None
    for nb in range(1, min(n, cap) + 1):
        if n % nb == 0 and (n // nb) % 2 == 0:
            best = nb
    if best is None:
        best = max(nb for nb in range(1, min(n, cap) + 1) if n % nb == 0)
    return best, n // best


# ----------------------------------------------------------------------------
# One-time parameter preparation (weight fusion / padding) — call outside jit.
# ----------------------------------------------------------------------------
def prepare_params(params, dec_h_dim):
    (w_dh, b_dh, w_m2e, b_m2e, w_ih_zx, w_ih_a, b_ih,
     w_hh, b_hh, w_h2f, b_h2f, w_fc, b_fc) = params["gru"]
    w1 = params["w_deconv1"]   # (Cin=4, Cout=4, 6, 6)  PyTorch layout
    w2 = params["w_deconv2"]   # (Cin=4, Cout=1, 9, 9)

    hdim = dec_h_dim
    gp = _round_up(hdim, 128)

    def pad_gate_cols(w):      # (..., 3H) -> (..., 3GP), per-gate 128-lane groups
        parts = [w[..., g * hdim:(g + 1) * hdim] for g in range(3)]
        parts = [jnp.pad(p, [(0, 0)] * (p.ndim - 1) + [(0, gp - hdim)]) for p in parts]
        return jnp.concatenate(parts, axis=-1)

    def pad_rows(w):           # (H, X) -> (GP, X)
        return jnp.pad(w, ((0, gp - hdim), (0, 0)))

    # ---- GRU weights (gate-aligned / hidden padded to GP) ----
    w_dh_p = jnp.pad(w_dh, ((0, 0), (0, gp - hdim)))
    b_dh_p = jnp.pad(b_dh, ((0, 0), (0, gp - hdim)))
    w_ih_zx_p = pad_gate_cols(w_ih_zx)
    w_ih_a_p = pad_gate_cols(w_ih_a)
    b_ih_p = pad_gate_cols(b_ih)
    b_hh_p = pad_gate_cols(b_hh)
    # a_t = hidden_to_feat(h_t) is linear -> fold into the gate matmul
    w_comb = w_h2f @ w_ih_a                                   # (H, 3H)
    w_step = jnp.concatenate([pad_rows(pad_gate_cols(w_comb)),
                              pad_rows(pad_gate_cols(w_hh))], axis=1)      # (GP, 6GP)
    gi_bias = pad_gate_cols(b_h2f @ w_ih_a)                   # (1, 3GP)

    # ---- fc ∘ hidden_to_feat fused ----
    w_out = w_h2f @ w_fc                                      # (H, 196)
    b_out = b_h2f @ w_fc + b_fc                               # (1, 196)

    # ---- Fold Upsample(14) + ConvTranspose2d(4,4,6,s=2) (both linear, bias=False) into
    #      the output matmul by pushing the 196 basis vectors through the reference op.
    #      Columns are laid out as the zero-bordered (4,34,34) frame deconv2 slices from.
    basis = jnp.eye(MAP_FEAT_SIZE, dtype=jnp.float32).reshape(MAP_FEAT_SIZE, 4, 7, 7)
    ups = jnp.repeat(jnp.repeat(basis, 2, axis=2), 2, axis=3)              # nearest 2x -> 14x14
    w1_conv = jnp.flip(w1, (-2, -1)).transpose(1, 0, 2, 3)                 # (Cout,Cin,kh,kw)
    y1_basis = jax.lax.conv_general_dilated(                               # ConvTranspose2d
        ups, w1_conv, window_strides=(1, 1), padding=[(5, 5), (5, 5)],
        lhs_dilation=(2, 2), dimension_numbers=("NCHW", "OIHW", "NCHW"),
        precision=jax.lax.Precision.HIGHEST)                               # (196, 4, 32, 32)
    a1t = jnp.pad(y1_basis, ((0, 0), (0, 0), (1, 1), (1, 1))).reshape(MAP_FEAT_SIZE, Y1_FRAME)
    w_big = pad_rows(w_out @ a1t).astype(jnp.bfloat16)                     # (GP, 4624) bf16
    b_big = b_out @ a1t                                                    # (1, 4624) f32

    # ---- Fold Upsample(64 = 2x) into ConvTranspose2d(4,1,9,s=3): effective k=12, s=6 ----
    k2 = jnp.zeros((4, 1, 12, 12), jnp.float32)
    for dh in (0, 1):
        for dw in (0, 1):
            k2 = k2.at[:, :, 3 * dh:3 * dh + 9, 3 * dw:3 * dw + 9].add(w2)
    # stride-phase split: W2mat[(ph,pw), (ci,mh,mw)] = Keff[ci,0,ph+6mh, pw+6mw]
    w2mat = (k2[:, 0].reshape(4, 2, 6, 2, 6)      # (ci, mh, ph, mw, pw)
             .transpose(2, 4, 0, 1, 3)            # (ph, pw, ci, mh, mw)
             .reshape(36, 16)).astype(jnp.bfloat16)

    return {"w_dh": w_dh_p, "b_dh": b_dh_p, "w_m2e": w_m2e, "b_m2e": b_m2e,
            "w_ih_zx": w_ih_zx_p, "w_ih_a": w_ih_a_p, "b_ih": b_ih_p,
            "w_step": w_step, "b_hh": b_hh_p, "gi_bias": gi_bias,
            "w_big": w_big, "b_big": b_big, "w2mat": w2mat}


# ----------------------------------------------------------------------------
# Forward pass
# ----------------------------------------------------------------------------
def decoder_forward(prep, last_past_map_feat, enc_h_feat, z, *, seq_len):
    # TODO(synk): fut_map_emb teacher-forcing branch not implemented (inference path only).
    batch = enc_h_feat.shape[0]
    gp = prep["w_step"].shape[0]
    bp = _round_up(batch, 8)                        # sublane-aligned batch for the GRU

    zx = jnp.concatenate([enc_h_feat, z], axis=1)
    zx_p = jnp.pad(zx, ((0, bp - batch), (0, 0)))
    mf_p = jnp.pad(last_past_map_feat, ((0, bp - batch), (0, 0)))

    # --- Kernel 1: GRU loop + fused fc/hidden_to_feat/Upsample(14)/deconv1/ReLU ---
    y1 = pl.pallas_call(
        functools.partial(_gru_deconv1_kernel, seq_len, bp, gp),
        out_shape=jax.ShapeDtypeStruct((seq_len * bp, Y1_FRAME), jnp.float32),
        scratch_shapes=[pltpu.VMEM((seq_len * bp, gp), jnp.float32)],
    )(zx_p, mf_p,
      prep["w_dh"], prep["b_dh"], prep["w_m2e"], prep["b_m2e"],
      prep["w_ih_zx"], prep["w_ih_a"], prep["b_ih"],
      prep["w_step"], prep["b_hh"], prep["gi_bias"],
      prep["w_big"], prep["b_big"])

    # --- stride-phase patches for the effective deconv2 (16 taps, 32x32 source) ---
    # TODO(synk): this small shifted-window gather stays as XLA layout plumbing.
    n = seq_len * batch
    y1p = y1.reshape(seq_len, bp, 4, 34, 34)[:, :batch].reshape(n, 4, 34, 34)
    slabs = [y1p[:, :, 1 - mh:34 - mh, 1 - mw:34 - mw]          # (n, 4, 33, 33) each
             for mh in range(2) for mw in range(2)]
    p2 = jnp.stack(slabs, axis=2)                               # (n, ci, shift, 33, 33)
    nb, grid = _pick_block(n)
    p2 = (p2.reshape(grid, nb, 4, 4, Q2, Q2)
            .transpose(0, 2, 3, 1, 4, 5)                        # samples onto the lane axis
            .reshape(grid, 16, nb * Q2 * Q2)
            .astype(jnp.bfloat16))

    # --- Kernel 2: (36,16) x (16, nb*1089) matmul + sigmoid per grid step ---
    y2 = pl.pallas_call(
        _deconv2_kernel,
        grid=(grid,),
        in_specs=[pl.BlockSpec((36, 16), lambda i: (0, 0)),                 # weights in VMEM
                  pl.BlockSpec((1, 16, nb * Q2 * Q2), lambda i: (i, 0, 0))],
        out_specs=pl.BlockSpec((1, 36, nb * Q2 * Q2), lambda i: (i, 0, 0)),
        out_shape=jax.ShapeDtypeStruct((grid, 36, nb * Q2 * Q2), jnp.float32),
        compiler_params=pltpu.CompilerParams(dimension_semantics=("parallel",)),
    )(prep["w2mat"], p2)

    # phase interleave back to NCHW: y[n,0,6qh+ph,6qw+pw] = Y2[(ph,pw),(qh,qw)]
    out = (y2.reshape(grid, 6, 6, nb, Q2, Q2)
             .transpose(0, 3, 4, 1, 5, 2)
             .reshape(n, 1, 198, 198))
    return out


# ----------------------------------------------------------------------------
# Deterministic parameter initialization (synthetic; shapes from __init__)
# ----------------------------------------------------------------------------
def init_params(key, mlp_dim, z_dim, emb_dim, dec_h_dim):
    dzx = mlp_dim + z_dim
    ks = jax.random.split(key, 15)

    def rnd(k, shape, scale=0.1):
        return scale * jax.random.normal(k, shape, jnp.float32)

    # Linear weights stored transposed (in_features, out_features); biases as (1, out).
    # GRUCell W_ih (3H, mlp+z+emb) is split column-wise into the zx part and the a part.
    gru = (
        rnd(ks[0], (dzx, dec_h_dim)),            rnd(ks[1], (1, dec_h_dim)),        # dec_hidden
        rnd(ks[2], (MAP_FEAT_SIZE, emb_dim)),    rnd(ks[3], (1, emb_dim)),          # map_feat_to_emb
        rnd(ks[4], (dzx, 3 * dec_h_dim)),        rnd(ks[5], (emb_dim, 3 * dec_h_dim)),
        rnd(ks[6], (1, 3 * dec_h_dim)),                                             # W_ih (split), b_ih
        rnd(ks[7], (dec_h_dim, 3 * dec_h_dim)),  rnd(ks[8], (1, 3 * dec_h_dim)),    # W_hh, b_hh
        rnd(ks[9], (dec_h_dim, emb_dim)),        rnd(ks[10], (1, emb_dim)),         # hidden_to_feat
        rnd(ks[11], (emb_dim, MAP_FEAT_SIZE)),   rnd(ks[12], (1, MAP_FEAT_SIZE)),   # fc
    )
    # ConvTranspose2d weights, PyTorch layout (Cin, Cout, kH, kW), bias=False.
    w_deconv1 = rnd(ks[13], (4, 4, 6, 6))
    w_deconv2 = rnd(ks[14], (4, 1, 9, 9))
    return {"gru": gru, "w_deconv1": w_deconv1, "w_deconv2": w_deconv2}


if __name__ == "__main__":
    # small shapes consistent with the module
    seq_len, batch = 4, 2
    mlp_dim, z_dim, emb_dim, dec_h_dim = 64, 8, 16, 32

    key = jax.random.PRNGKey(0)
    kp, kx = jax.random.split(key)
    params = init_params(kp, mlp_dim, z_dim, emb_dim, dec_h_dim)
    prep = prepare_params(params, dec_h_dim)      # one-time weight fusion, outside jit

    k1, k2, k3 = jax.random.split(kx, 3)
    last_past_map_feat = jax.random.normal(k1, (batch, MAP_FEAT_SIZE), jnp.float32)
    enc_h_feat = jax.random.normal(k2, (batch, mlp_dim), jnp.float32)
    z = jax.random.normal(k3, (batch, z_dim), jnp.float32)

    fwd = jax.jit(functools.partial(decoder_forward, seq_len=seq_len))
    out = fwd(prep, last_past_map_feat, enc_h_feat, z)
    jax.block_until_ready(out)

    assert out.shape == (seq_len * batch, 1, 198, 198), out.shape
    assert bool(jnp.all(jnp.isfinite(out))) and bool(jnp.all((out >= 0) & (out <= 1)))
    print("KERNEL_OK")
</pallas_src>

<mosaic_0001>
module attributes {stable_mosaic.version = 11 : i64} {
  func.func @_gru_deconv1_kernel(%arg0: memref<8x72xf32, #tpu.memory_space<vmem>>, %arg1: memref<8x196xf32, #tpu.memory_space<vmem>>, %arg2: memref<72x128xf32, #tpu.memory_space<vmem>>, %arg3: memref<1x128xf32, #tpu.memory_space<vmem>>, %arg4: memref<196x16xf32, #tpu.memory_space<vmem>>, %arg5: memref<1x16xf32, #tpu.memory_space<vmem>>, %arg6: memref<72x384xf32, #tpu.memory_space<vmem>>, %arg7: memref<16x384xf32, #tpu.memory_space<vmem>>, %arg8: memref<1x384xf32, #tpu.memory_space<vmem>>, %arg9: memref<128x768xf32, #tpu.memory_space<vmem>>, %arg10: memref<1x384xf32, #tpu.memory_space<vmem>>, %arg11: memref<1x384xf32, #tpu.memory_space<vmem>>, %arg12: memref<128x4624xbf16, #tpu.memory_space<vmem>>, %arg13: memref<1x4624xf32, #tpu.memory_space<vmem>>, %arg14: memref<32x4624xf32, #tpu.memory_space<vmem>>, %arg15: memref<32x128xf32, #tpu.memory_space<vmem>>) attributes {dimension_semantics = [], scalar_prefetch = 0 : i64, scratch_operands = 1 : i64, tpu.core_type = #tpu.core_type<tc>} {
    %c0 = arith.constant 0 : index
    %c0_0 = arith.constant 0 : index
    %0 = vector.load %arg0[%c0, %c0_0] : memref<8x72xf32, #tpu.memory_space<vmem>>, vector<8x72xf32>
    %c0_1 = arith.constant 0 : index
    %c0_2 = arith.constant 0 : index
    %1 = vector.load %arg2[%c0_1, %c0_2] : memref<72x128xf32, #tpu.memory_space<vmem>>, vector<72x128xf32>
    %cst = arith.constant dense<0.000000e+00> : vector<8x128xf32>
    %2 = tpu.matmul %0, %1, %cst {dimension_numbers = #tpu.dot_dimension_numbers<[1], [0], [0], [1], [0, 0, 1, 1], [], []>} : vector<8x72xf32>, vector<72x128xf32>, vector<8x128xf32> -> vector<8x128xf32>
    %c0_3 = arith.constant 0 : index
    %c0_4 = arith.constant 0 : index
    %3 = vector.load %arg3[%c0_3, %c0_4] : memref<1x128xf32, #tpu.memory_space<vmem>>, vector<1x128xf32>
    %4 = vector.broadcast %3 : vector<1x128xf32> to vector<8x128xf32>
    %5 = arith.addf %2, %4 : vector<8x128xf32>
    %c0_5 = arith.constant 0 : index
    %c0_6 = arith.constant 0 : index
    %6 = vector.load %arg1[%c0_5, %c0_6] : memref<8x196xf32, #tpu.memory_space<vmem>>, vector<8x196xf32>
    %c0_7 = arith.constant 0 : index
    %c0_8 = arith.constant 0 : index
    %7 = vector.load %arg4[%c0_7, %c0_8] : memref<196x16xf32, #tpu.memory_space<vmem>>, vector<196x16xf32>
    %cst_9 = arith.constant dense<0.000000e+00> : vector<8x16xf32>
    %8 = tpu.matmul %6, %7, %cst_9 {dimension_numbers = #tpu.dot_dimension_numbers<[1], [0], [0], [1], [0, 0, 1, 1], [], []>} : vector<8x196xf32>, vector<196x16xf32>, vector<8x16xf32> -> vector<8x16xf32>
    %c0_10 = arith.constant 0 : index
    %c0_11 = arith.constant 0 : index
    %9 = vector.load %arg5[%c0_10, %c0_11] : memref<1x16xf32, #tpu.memory_space<vmem>>, vector<1x16xf32>
    %10 = vector.broadcast %9 : vector<1x16xf32> to vector<8x16xf32>
    %11 = arith.addf %8, %10 : vector<8x16xf32>
    %c0_12 = arith.constant 0 : index
    %c0_13 = arith.constant 0 : index
    %12 = vector.load %arg6[%c0_12, %c0_13] : memref<72x384xf32, #tpu.memory_space<vmem>>, vector<72x384xf32>
    %cst_14 = arith.constant dense<0.000000e+00> : vector<8x384xf32>
    %13 = tpu.matmul %0, %12, %cst_14 {dimension_numbers = #tpu.dot_dimension_numbers<[1], [0], [0], [1], [0, 0, 1, 1], [], []>} : vector<8x72xf32>, vector<72x384xf32>, vector<8x384xf32> -> vector<8x384xf32>
    %c0_15 = arith.constant 0 : index
    %c0_16 = arith.constant 0 : index
    %14 = vector.load %arg8[%c0_15, %c0_16] : memref<1x384xf32, #tpu.memory_space<vmem>>, vector<1x384xf32>
    %15 = vector.broadcast %14 : vector<1x384xf32> to vector<8x384xf32>
    %16 = arith.addf %13, %15 : vector<8x384xf32>
    %c0_17 = arith.constant 0 : index
    %c0_18 = arith.constant 0 : index
    %17 = vector.load %arg7[%c0_17, %c0_18] : memref<16x384xf32, #tpu.memory_space<vmem>>, vector<16x384xf32>
    %cst_19 = arith.constant dense<0.000000e+00> : vector<8x384xf32>
    %18 = tpu.matmul %11, %17, %cst_19 {dimension_numbers = #tpu.dot_dimension_numbers<[1], [0], [0], [1], [0, 0, 1, 1], [], []>} : vector<8x16xf32>, vector<16x384xf32>, vector<8x384xf32> -> vector<8x384xf32>
    %19 = arith.addf %16, %18 : vector<8x384xf32>
    %c0_20 = arith.constant 0 : index
    %c0_21 = arith.constant 0 : index
    %20 = vector.load %arg11[%c0_20, %c0_21] : memref<1x384xf32, #tpu.memory_space<vmem>>, vector<1x384xf32>
    %21 = vector.broadcast %20 : vector<1x384xf32> to vector<8x384xf32>
    %22 = arith.addf %16, %21 : vector<8x384xf32>
    %c0_22 = arith.constant 0 : index
    %c0_23 = arith.constant 0 : index
    %23 = vector.load %arg10[%c0_22, %c0_23] : memref<1x384xf32, #tpu.memory_space<vmem>>, vector<1x384xf32>
    %c0_24 = arith.constant 0 : index
    %c0_25 = arith.constant 0 : index
    %24 = vector.load %arg9[%c0_24, %c0_25] : memref<128x768xf32, #tpu.memory_space<vmem>>, vector<128x768xf32>
    %cst_26 = arith.constant dense<0.000000e+00> : vector<8x768xf32>
    %25 = tpu.matmul %5, %24, %cst_26 {dimension_numbers = #tpu.dot_dimension_numbers<[1], [0], [0], [1], [0, 0, 1, 1], [], []>} : vector<8x128xf32>, vector<128x768xf32>, vector<8x768xf32> -> vector<8x768xf32>
    %26 = vector.extract_strided_slice %25 {offsets = [0, 384], sizes = [8, 384], strides = [1, 1]} : vector<8x768xf32> to vector<8x384xf32>
    %27 = vector.broadcast %23 : vector<1x384xf32> to vector<8x384xf32>
    %28 = arith.addf %26, %27 : vector<8x384xf32>
    %29 = vector.extract_strided_slice %19 {offsets = [0, 0], sizes = [8, 128], strides = [1, 1]} : vector<8x384xf32> to vector<8x128xf32>
    %30 = vector.extract_strided_slice %28 {offsets = [0, 0], sizes = [8, 128], strides = [1, 1]} : vector<8x384xf32> to vector<8x128xf32>
    %31 = arith.addf %29, %30 : vector<8x128xf32>
    %32 = arith.negf %31 : vector<8x128xf32>
    %33 = math.exp %32 : vector<8x128xf32>
    %cst_27 = arith.constant 1.000000e+00 : f32
    %34 = vector.broadcast %cst_27 : f32 to vector<8x128xf32>
    %35 = arith.addf %34, %33 : vector<8x128xf32>
    %36 = arith.divf %34, %35 : vector<8x128xf32>
    %37 = vector.extract_strided_slice %19 {offsets = [0, 128], sizes = [8, 128], strides = [1, 1]} : vector<8x384xf32> to vector<8x128xf32>
    %38 = vector.extract_strided_slice %28 {offsets = [0, 128], sizes = [8, 128], strides = [1, 1]} : vector<8x384xf32> to vector<8x128xf32>
    %39 = arith.addf %37, %38 : vector<8x128xf32>
    %40 = arith.negf %39 : vector<8x128xf32>
    %41 = math.exp %40 : vector<8x128xf32>
    %cst_28 = arith.constant 1.000000e+00 : f32
    %42 = vector.broadcast %cst_28 : f32 to vector<8x128xf32>
    %43 = arith.addf %42, %41 : vector<8x128xf32>
    %44 = arith.divf %42, %43 : vector<8x128xf32>
    %45 = vector.extract_strided_slice %19 {offsets = [0, 256], sizes = [8, 128], strides = [1, 1]} : vector<8x384xf32> to vector<8x128xf32>
    %46 = vector.extract_strided_slice %28 {offsets = [0, 256], sizes = [8, 128], strides = [1, 1]} : vector<8x384xf32> to vector<8x128xf32>
    %47 = arith.mulf %36, %46 : vector<8x128xf32>
    %48 = arith.addf %45, %47 : vector<8x128xf32>
    %49 = math.tanh %48 : vector<8x128xf32>
    %cst_29 = arith.constant 1.000000e+00 : f32
    %50 = vector.broadcast %cst_29 : f32 to vector<8x128xf32>
    %51 = arith.subf %50, %44 : vector<8x128xf32>
    %52 = arith.mulf %51, %49 : vector<8x128xf32>
    %53 = arith.mulf %44, %5 : vector<8x128xf32>
    %54 = arith.addf %52, %53 : vector<8x128xf32>
    %c0_30 = arith.constant 0 : index
    %c0_31 = arith.constant 0 : index
    %55 = vector.load %arg15[%c0_30, %c0_31] : memref<32x128xf32, #tpu.memory_space<vmem>>, vector<8x128xf32>
    tpu.vector_store %arg15[%c0_30, %c0_31], %54 {strides = array<i32>} : memref<32x128xf32, #tpu.memory_space<vmem>>, vector<8x128xf32>,
    %cst_32 = arith.constant dense<0.000000e+00> : vector<8x768xf32>
    %56 = tpu.matmul %54, %24, %cst_32 {dimension_numbers = #tpu.dot_dimension_numbers<[1], [0], [0], [1], [0, 0, 1, 1], [], []>} : vector<8x128xf32>, vector<128x768xf32>, vector<8x768xf32> -> vector<8x768xf32>
    %57 = vector.extract_strided_slice %56 {offsets = [0, 0], sizes = [8, 384], strides = [1, 1]} : vector<8x768xf32> to vector<8x384xf32>
    %58 = arith.addf %22, %57 : vector<8x384xf32>
    %59 = vector.extract_strided_slice %56 {offsets = [0, 384], sizes = [8, 384], strides = [1, 1]} : vector<8x768xf32> to vector<8x384xf32>
    %60 = vector.broadcast %23 : vector<1x384xf32> to vector<8x384xf32>
    %61 = arith.addf %59, %60 : vector<8x384xf32>
    %62 = vector.extract_strided_slice %58 {offsets = [0, 0], sizes = [8, 128], strides = [1, 1]} : vector<8x384xf32> to vector<8x128xf32>
    %63 = vector.extract_strided_slice %61 {offsets = [0, 0], sizes = [8, 128], strides = [1, 1]} : vector<8x384xf32> to vector<8x128xf32>
    %64 = arith.addf %62, %63 : vector<8x128xf32>
    %65 = arith.negf %64 : vector<8x128xf32>
    %66 = math.exp %65 : vector<8x128xf32>
    %cst_33 = arith.constant 1.000000e+00 : f32
    %67 = vector.broadcast %cst_33 : f32 to vector<8x128xf32>
    %68 = arith.addf %67, %66 : vector<8x128xf32>
    %69 = arith.divf %67, %68 : vector<8x128xf32>
    %70 = vector.extract_strided_slice %58 {offsets = [0, 128], sizes = [8, 128], strides = [1, 1]} : vector<8x384xf32> to vector<8x128xf32>
    %71 = vector.extract_strided_slice %61 {offsets = [0, 128], sizes = [8, 128], strides = [1, 1]} : vector<8x384xf32> to vector<8x128xf32>
    %72 = arith.addf %70, %71 : vector<8x128xf32>
    %73 = arith.negf %72 : vector<8x128xf32>
    %74 = math.exp %73 : vector<8x128xf32>
    %cst_34 = arith.constant 1.000000e+00 : f32
    %75 = vector.broadcast %cst_34 : f32 to vector<8x128xf32>
    %76 = arith.addf %75, %74 : vector<8x128xf32>
    %77 = arith.divf %75, %76 : vector<8x128xf32>
    %78 = vector.extract_strided_slice %58 {offsets = [0, 256], sizes = [8, 128], strides = [1, 1]} : vector<8x384xf32> to vector<8x128xf32>
    %79 = vector.extract_strided_slice %61 {offsets = [0, 256], sizes = [8, 128], strides = [1, 1]} : vector<8x384xf32> to vector<8x128xf32>
    %80 = arith.mulf %69, %79 : vector<8x128xf32>
    %81 = arith.addf %78, %80 : vector<8x128xf32>
    %82 = math.tanh %81 : vector<8x128xf32>
    %cst_35 = arith.constant 1.000000e+00 : f32
    %83 = vector.broadcast %cst_35 : f32 to vector<8x128xf32>
    %84 = arith.subf %83, %77 : vector<8x128xf32>
    %85 = arith.mulf %84, %82 : vector<8x128xf32>
    %86 = arith.mulf %77, %54 : vector<8x128xf32>
    %87 = arith.addf %85, %86 : vector<8x128xf32>
    %c8 = arith.constant 8 : index
    %c0_36 = arith.constant 0 : index
    %88 = vector.load %arg15[%c8, %c0_36] : memref<32x128xf32, #tpu.memory_space<vmem>>, vector<8x128xf32>
    tpu.vector_store %arg15[%c8, %c0_36], %87 {strides = array<i32>} : memref<32x128xf32, #tpu.memory_space<vmem>>, vector<8x128xf32>,
    %cst_37 = arith.constant dense<0.000000e+00> : vector<8x768xf32>
    %89 = tpu.matmul %87, %24, %cst_37 {dimension_numbers = #tpu.dot_dimension_numbers<[1], [0], [0], [1], [0, 0, 1, 1], [], []>} : vector<8x128xf32>, vector<128x768xf32>, vector<8x768xf32> -> vector<8x768xf32>
    %90 = vector.extract_strided_slice %89 {offsets = [0, 0], sizes = [8, 384], strides = [1, 1]} : vector<8x768xf32> to vector<8x384xf32>
    %91 = arith.addf %22, %90 : vector<8x384xf32>
    %92 = vector.extract_strided_slice %89 {offsets = [0, 384], sizes = [8, 384], strides = [1, 1]} : vector<8x768xf32> to vector<8x384xf32>
    %93 = vector.broadcast %23 : vector<1x384xf32> to vector<8x384xf32>
    %94 = arith.addf %92, %93 : vector<8x384xf32>
    %95 = vector.extract_strided_slice %91 {offsets = [0, 0], sizes = [8, 128], strides = [1, 1]} : vector<8x384xf32> to vector<8x128xf32>
    %96 = vector.extract_strided_slice %94 {offsets = [0, 0], sizes = [8, 128], strides = [1, 1]} : vector<8x384xf32> to vector<8x128xf32>
    %97 = arith.addf %95, %96 : vector<8x128xf32>
    %98 = arith.negf %97 : vector<8x128xf32>
    %99 = math.exp %98 : vector<8x128xf32>
    %cst_38 = arith.constant 1.000000e+00 : f32
    %100 = vector.broadcast %cst_38 : f32 to vector<8x128xf32>
    %101 = arith.addf %100, %99 : vector<8x128xf32>
    %102 = arith.divf %100, %101 : vector<8x128xf32>
    %103 = vector.extract_strided_slice %91 {offsets = [0, 128], sizes = [8, 128], strides = [1, 1]} : vector<8x384xf32> to vector<8x128xf32>
    %104 = vector.extract_strided_slice %94 {offsets = [0, 128], sizes = [8, 128], strides = [1, 1]} : vector<8x384xf32> to vector<8x128xf32>
    %105 = arith.addf %103, %104 : vector<8x128xf32>
    %106 = arith.negf %105 : vector<8x128xf32>
    %107 = math.exp %106 : vector<8x128xf32>
    %cst_39 = arith.constant 1.000000e+00 : f32
    %108 = vector.broadcast %cst_39 : f32 to vector<8x128xf32>
    %109 = arith.addf %108, %107 : vector<8x128xf32>
    %110 = arith.divf %108, %109 : vector<8x128xf32>
    %111 = vector.extract_strided_slice %91 {offsets = [0, 256], sizes = [8, 128], strides = [1, 1]} : vector<8x384xf32> to vector<8x128xf32>
    %112 = vector.extract_strided_slice %94 {offsets = [0, 256], sizes = [8, 128], strides = [1, 1]} : vector<8x384xf32> to vector<8x128xf32>
    %113 = arith.mulf %102, %112 : vector<8x128xf32>
    %114 = arith.addf %111, %113 : vector<8x128xf32>
    %115 = math.tanh %114 : vector<8x128xf32>
    %cst_40 = arith.constant 1.000000e+00 : f32
    %116 = vector.broadcast %cst_40 : f32 to vector<8x128xf32>
    %117 = arith.subf %116, %110 : vector<8x128xf32>
    %118 = arith.mulf %117, %115 : vector<8x128xf32>
    %119 = arith.mulf %110, %87 : vector<8x128xf32>
    %120 = arith.addf %118, %119 : vector<8x128xf32>
    %c16 = arith.constant 16 : index
    %c0_41 = arith.constant 0 : index
    %121 = vector.load %arg15[%c16, %c0_41] : memref<32x128xf32, #tpu.memory_space<vmem>>, vector<8x128xf32>
    tpu.vector_store %arg15[%c16, %c0_41], %120 {strides = array<i32>} : memref<32x128xf32, #tpu.memory_space<vmem>>, vector<8x128xf32>,
    %cst_42 = arith.constant dense<0.000000e+00> : vector<8x768xf32>
    %122 = tpu.matmul %120, %24, %cst_42 {dimension_numbers = #tpu.dot_dimension_numbers<[1], [0], [0], [1], [0, 0, 1, 1], [], []>} : vector<8x128xf32>, vector<128x768xf32>, vector<8x768xf32> -> vector<8x768xf32>
    %123 = vector.extract_strided_slice %122 {offsets = [0, 0], sizes = [8, 384], strides = [1, 1]} : vector<8x768xf32> to vector<8x384xf32>
    %124 = arith.addf %22, %123 : vector<8x384xf32>
    %125 = vector.extract_strided_slice %122 {offsets = [0, 384], sizes = [8, 384], strides = [1, 1]} : vector<8x768xf32> to vector<8x384xf32>
    %126 = vector.broadcast %23 : vector<1x384xf32> to vector<8x384xf32>
    %127 = arith.addf %125, %126 : vector<8x384xf32>
    %128 = vector.extract_strided_slice %124 {offsets = [0, 0], sizes = [8, 128], strides = [1, 1]} : vector<8x384xf32> to vector<8x128xf32>
    %129 = vector.extract_strided_slice %127 {offsets = [0, 0], sizes = [8, 128], strides = [1, 1]} : vector<8x384xf32> to vector<8x128xf32>
    %130 = arith.addf %128, %129 : vector<8x128xf32>
    %131 = arith.negf %130 : vector<8x128xf32>
    %132 = math.exp %131 : vector<8x128xf32>
    %cst_43 = arith.constant 1.000000e+00 : f32
    %133 = vector.broadcast %cst_43 : f32 to vector<8x128xf32>
    %134 = arith.addf %133, %132 : vector<8x128xf32>
    %135 = arith.divf %133, %134 : vector<8x128xf32>
    %136 = vector.extract_strided_slice %124 {offsets = [0, 128], sizes = [8, 128], strides = [1, 1]} : vector<8x384xf32> to vector<8x128xf32>
    %137 = vector.extract_strided_slice %127 {offsets = [0, 128], sizes = [8, 128], strides = [1, 1]} : vector<8x384xf32> to vector<8x128xf32>
    %138 = arith.addf %136, %137 : vector<8x128xf32>
    %139 = arith.negf %138 : vector<8x128xf32>
    %140 = math.exp %139 : vector<8x128xf32>
    %cst_44 = arith.constant 1.000000e+00 : f32
    %141 = vector.broadcast %cst_44 : f32 to vector<8x128xf32>
    %142 = arith.addf %141, %140 : vector<8x128xf32>
    %143 = arith.divf %141, %142 : vector<8x128xf32>
    %144 = vector.extract_strided_slice %124 {offsets = [0, 256], sizes = [8, 128], strides = [1, 1]} : vector<8x384xf32> to vector<8x128xf32>
    %145 = vector.extract_strided_slice %127 {offsets = [0, 256], sizes = [8, 128], strides = [1, 1]} : vector<8x384xf32> to vector<8x128xf32>
    %146 = arith.mulf %135, %145 : vector<8x128xf32>
    %147 = arith.addf %144, %146 : vector<8x128xf32>
    %148 = math.tanh %147 : vector<8x128xf32>
    %cst_45 = arith.constant 1.000000e+00 : f32
    %149 = vector.broadcast %cst_45 : f32 to vector<8x128xf32>
    %150 = arith.subf %149, %143 : vector<8x128xf32>
    %151 = arith.mulf %150, %148 : vector<8x128xf32>
    %152 = arith.mulf %143, %120 : vector<8x128xf32>
    %153 = arith.addf %151, %152 : vector<8x128xf32>
    %c24 = arith.constant 24 : index
    %c0_46 = arith.constant 0 : index
    %154 = vector.load %arg15[%c24, %c0_46] : memref<32x128xf32, #tpu.memory_space<vmem>>, vector<8x128xf32>
    tpu.vector_store %arg15[%c24, %c0_46], %153 {strides = array<i32>} : memref<32x128xf32, #tpu.memory_space<vmem>>, vector<8x128xf32>,
    %c0_47 = arith.constant 0 : index
    %c0_48 = arith.constant 0 : index
    %155 = vector.load %arg15[%c0_47, %c0_48] : memref<32x128xf32, #tpu.memory_space<vmem>>, vector<32x128xf32>
    %156 = arith.truncf %155 : vector<32x128xf32> to vector<32x128xbf16>
    %c0_49 = arith.constant 0 : index
    %c0_50 = arith.constant 0 : index
    %157 = vector.load %arg12[%c0_49, %c0_50] : memref<128x4624xbf16, #tpu.memory_space<vmem>>, vector<128x4624xbf16>
    %cst_51 = arith.constant dense<0.000000e+00> : vector<32x4624xf32>
    %158 = tpu.matmul %156, %157, %cst_51 {dimension_numbers = #tpu.dot_dimension_numbers<[1], [0], [0], [1], [0, 0, 1, 1], [], []>} : vector<32x128xbf16>, vector<128x4624xbf16>, vector<32x4624xf32> -> vector<32x4624xf32>
    %c0_52 = arith.constant 0 : index
    %c0_53 = arith.constant 0 : index
    %159 = vector.load %arg13[%c0_52, %c0_53] : memref<1x4624xf32, #tpu.memory_space<vmem>>, vector<1x4624xf32>
    %160 = vector.broadcast %159 : vector<1x4624xf32> to vector<32x4624xf32>
    %161 = arith.addf %158, %160 : vector<32x4624xf32>
    %cst_54 = arith.constant 0.000000e+00 : f32
    %162 = vector.broadcast %cst_54 : f32 to vector<32x4624xf32>
    %163 = arith.maximumf %161, %162 : vector<32x4624xf32>
    %c0_55 = arith.constant 0 : index
    %c0_56 = arith.constant 0 : index
    %164 = vector.load %arg14[%c0_55, %c0_56] : memref<32x4624xf32, #tpu.memory_space<vmem>>, vector<32x4624xf32>
    tpu.vector_store %arg14[%c0_55, %c0_56], %163 {strides = array<i32>} : memref<32x4624xf32, #tpu.memory_space<vmem>>, vector<32x4624xf32>,
    return
  }
}

module attributes {stable_mosaic.version = 11 : i64} {
  func.func @_deconv2_kernel(%arg0: i32, %arg1: memref<36x16xbf16, #tpu.memory_space<vmem>>, %arg2: memref<1x16x4356xbf16, #tpu.memory_space<vmem>>, %arg3: memref<1x36x4356xf32, #tpu.memory_space<vmem>>) attributes {dimension_semantics = [#tpu.dimension_semantics<parallel>], iteration_bounds = array<i64: 2>, scalar_prefetch = 0 : i64, scratch_operands = 0 : i64, tpu.core_type = #tpu.core_type<tc>, window_params = [{pipeline_mode = #tpu.pipeline_mode<synchronous>, transform_indices = @transform_0, window_bounds = array<i64: 36, 16>}, {transform_indices = @transform_1, window_bounds = array<i64: 1, 16, 4356>}, {transform_indices = @transform_2, window_bounds = array<i64: 1, 36, 4356>}]} {
    %c0 = arith.constant 0 : index
    %c0_0 = arith.constant 0 : index
    %0 = vector.load %arg1[%c0, %c0_0] : memref<36x16xbf16, #tpu.memory_space<vmem>>, vector<36x16xbf16>
    %c0_1 = arith.constant 0 : index
    %c0_2 = arith.constant 0 : index
    %c0_3 = arith.constant 0 : index
    %1 = vector.load %arg2[%c0_1, %c0_2, %c0_3] : memref<1x16x4356xbf16, #tpu.memory_space<vmem>>, vector<1x16x4356xbf16>
    %2 = vector.shape_cast %1 : vector<1x16x4356xbf16> to vector<16x4356xbf16>
    %cst = arith.constant dense<0.000000e+00> : vector<36x4356xf32>
    %3 = tpu.matmul %0, %2, %cst {dimension_numbers = #tpu.dot_dimension_numbers<[1], [0], [0], [1], [0, 0, 1, 1], [], []>} : vector<36x16xbf16>, vector<16x4356xbf16>, vector<36x4356xf32> -> vector<36x4356xf32>
    %4 = arith.negf %3 : vector<36x4356xf32>
    %5 = math.exp %4 : vector<36x4356xf32>
    %cst_4 = arith.constant 1.000000e+00 : f32
    %6 = vector.broadcast %cst_4 : f32 to vector<36x4356xf32>
    %7 = arith.addf %6, %5 : vector<36x4356xf32>
    %8 = arith.divf %6, %7 : vector<36x4356xf32>
    %c0_5 = arith.constant 0 : index
    %c0_6 = arith.constant 0 : index
    %c0_7 = arith.constant 0 : index
    %9 = vector.load %arg3[%c0_5, %c0_6, %c0_7] : memref<1x36x4356xf32, #tpu.memory_space<vmem>>, vector<1x36x4356xf32>
    %10 = vector.shape_cast %9 : vector<1x36x4356xf32> to vector<36x4356xf32>
    %11 = vector.shape_cast %8 : vector<36x4356xf32> to vector<1x36x4356xf32>
    tpu.vector_store %arg3[%c0_5, %c0_6, %c0_7], %11 {strides = array<i32>} : memref<1x36x4356xf32, #tpu.memory_space<vmem>>, vector<1x36x4356xf32>,
    return
  }
  func.func @transform_0(%arg0: i32) -> (i32, i32) {
    %c0_i32 = arith.constant 0 : i32
    %c0_i32_0 = arith.constant 0 : i32
    %c0_i32_1 = arith.constant 0 : i32
    return %c0_i32, %c0_i32_0 : i32, i32
  }
  func.func @transform_1(%arg0: i32) -> (i32, i32, i32) {
    %c0_i32 = arith.constant 0 : i32
    %c0_i32_0 = arith.constant 0 : i32
    %c0_i32_1 = arith.constant 0 : i32
    return %arg0, %c0_i32, %c0_i32_0 : i32, i32, i32
  }
  func.func @transform_2(%arg0: i32) -> (i32, i32, i32) {
    %c0_i32 = arith.constant 0 : i32
    %c0_i32_0 = arith.constant 0 : i32
    %c0_i32_1 = arith.constant 0 : i32
    return %arg0, %c0_i32, %c0_i32_0 : i32, i32, i32
  }
}

</mosaic_0001>

<llo_original>
// kernel: decoder_forward.2
$region0: #{decoder_forward.2}
  #allocation0 [shape = 'u32[]', space=smem, size = 0x4, offset = 0x4, fixed_abs, tag = 'smem constant byte address 0x4 - core index']
  #allocation1 [shape = 'u32[144,128]{1,0:T(1,128)}', space=vmem, size = 0x12000, scoped, tag = 'internal scratch']
  #allocation2 [shape = 'f32[32,128]{1,0:T(8,128)}', space=vmem, size = 0x4000, scoped, tag = 'scratch operand']
  %s0 = inlined_call_operand.vmem [shape: f32[8,72], index: 0, kind: input, shape index: {}]
  %s1 = inlined_call_operand.vmem [shape: f32[8,196], index: 1, kind: input, shape index: {}]
  %s2 = inlined_call_operand.vmem [shape: f32[72,128], index: 2, kind: input, shape index: {}]
  %s3 = inlined_call_operand.vmem [shape: f32[1,128], index: 3, kind: input, shape index: {}]
  %s4 = inlined_call_operand.vmem [shape: f32[196,16], index: 4, kind: input, shape index: {}]
  %s5 = inlined_call_operand.vmem [shape: f32[1,16], index: 5, kind: input, shape index: {}]
  %s6 = inlined_call_operand.vmem [shape: f32[72,384], index: 6, kind: input, shape index: {}]
  %s7 = inlined_call_operand.vmem [shape: f32[16,384], index: 7, kind: input, shape index: {}]
  %s8 = inlined_call_operand.vmem [shape: f32[1,384], index: 8, kind: input, shape index: {}]
  %s9 = inlined_call_operand.vmem [shape: f32[128,768], index: 9, kind: input, shape index: {}]
  %s10 = inlined_call_operand.vmem [shape: f32[1,384], index: 10, kind: input, shape index: {}]
  %s11 = inlined_call_operand.vmem [shape: f32[1,384], index: 11, kind: input, shape index: {}]
  %s12 = inlined_call_operand.vmem [shape: bf16[128,4624], index: 12, kind: input, shape index: {}]
  %s13 = inlined_call_operand.vmem [shape: f32[1,4624], index: 13, kind: input, shape index: {}]
  %s14 = inlined_call_operand.vmem [shape: f32[32,4624], index: 14, kind: output, shape index: {}]
  %s15 = sld [smem:[#allocation0]]
  $region66: #{decoder_forward.2} parent=0
    _
  %s17 = ssub.s32 1, %s15
  %s18 = scalar_select 0, %s17, %s15
  // Predicated region
  $region2: #{decoder_forward.2} parent=0 // pred_check
    _
  $region3: #{decoder_forward.2} parent=0 // pred_check_branch
    %20 = sbr.rel (0) target = $region5
  $region4: #{decoder_forward.2} parent=0 // pred_region
    _
  $region5: #{decoder_forward.2} parent=0 // pred_fallthru
    _
  // Predicated region
  $region6: #{decoder_forward.2} parent=0 // pred_check
    _
  $region7: #{decoder_forward.2} parent=0 // pred_check_branch
    %22 = sbr.rel (0) target = $region9
  $region8: #{decoder_forward.2} parent=0 // pred_region
    _
  $region9: #{decoder_forward.2} parent=0 // pred_fallthru
    _
  // Predicated region
  $region10: #{decoder_forward.2} parent=0 // pred_check
    _
  $region11: #{decoder_forward.2} parent=0 // pred_check_branch
    %24 = sbr.rel (0) target = $region13
  $region12: #{decoder_forward.2} parent=0 // pred_region
    _
  $region13: #{decoder_forward.2} parent=0 // pred_fallthru
    _
  // Predicated region
  $region14: #{decoder_forward.2} parent=0 // pred_check
    _
  $region15: #{decoder_forward.2} parent=0 // pred_check_branch
    %26 = sbr.rel (0) target = $region17
  $region16: #{decoder_forward.2} parent=0 // pred_region
    _
  $region17: #{decoder_forward.2} parent=0 // pred_fallthru
    _
  // Predicated region
  $region18: #{decoder_forward.2} parent=0 // pred_check
    _
  $region19: #{decoder_forward.2} parent=0 // pred_check_branch
    %28 = sbr.rel (0) target = $region21
  $region20: #{decoder_forward.2} parent=0 // pred_region
    _
  $region21: #{decoder_forward.2} parent=0 // pred_fallthru
    _
  // Predicated region
  $region22: #{decoder_forward.2} parent=0 // pred_check
    _
  $region23: #{decoder_forward.2} parent=0 // pred_check_branch
    %30 = sbr.rel (0) target = $region25
  $region24: #{decoder_forward.2} parent=0 // pred_region
    _
  $region25: #{decoder_forward.2} parent=0 // pred_fallthru
    _
  // Predicated region
  $region26: #{decoder_forward.2} parent=0 // pred_check
    _
  $region27: #{decoder_forward.2} parent=0 // pred_check_branch
    %32 = sbr.rel (0) target = $region29
  $region28: #{decoder_forward.2} parent=0 // pred_region
    _
  $region29: #{decoder_forward.2} parent=0 // pred_fallthru
    _
  // Predicated region
  $region30: #{decoder_forward.2} parent=0 // pred_check
    _
  $region31: #{decoder_forward.2} parent=0 // pred_check_branch
    %34 = sbr.rel (0) target = $region33
  $region32: #{decoder_forward.2} parent=0 // pred_region
    _
  $region33: #{decoder_forward.2} parent=0 // pred_fallthru
    _
  // Predicated region
  $region34: #{decoder_forward.2} parent=0 // pred_check
    _
  $region35: #{decoder_forward.2} parent=0 // pred_check_branch
    %36 = sbr.rel (0) target = $region37
  $region36: #{decoder_forward.2} parent=0 // pred_region
    _
  $region37: #{decoder_forward.2} parent=0 // pred_fallthru
    _
  // Predicated region
  $region38: #{decoder_forward.2} parent=0 // pred_check
    _
  $region39: #{decoder_forward.2} parent=0 // pred_check_branch
    %38 = sbr.rel (0) target = $region41
  $region40: #{decoder_forward.2} parent=0 // pred_region
    _
  $region41: #{decoder_forward.2} parent=0 // pred_fallthru
    _
  // Predicated region
  $region42: #{decoder_forward.2} parent=0 // pred_check
    _
  $region43: #{decoder_forward.2} parent=0 // pred_check_branch
    %40 = sbr.rel (0) target = $region45
  $region44: #{decoder_forward.2} parent=0 // pred_region
    _
  $region45: #{decoder_forward.2} parent=0 // pred_fallthru
    _
  // Predicated region
  $region46: #{decoder_forward.2} parent=0 // pred_check
    _
  $region47: #{decoder_forward.2} parent=0 // pred_check_branch
    %42 = sbr.rel (0) target = $region49
  $region48: #{decoder_forward.2} parent=0 // pred_region
    _
  $region49: #{decoder_forward.2} parent=0 // pred_fallthru
    _
  // Predicated region
  $region50: #{decoder_forward.2} parent=0 // pred_check
    _
  $region51: #{decoder_forward.2} parent=0 // pred_check_branch
    %44 = sbr.rel (0) target = $region53
  $region52: #{decoder_forward.2} parent=0 // pred_region
    _
  $region53: #{decoder_forward.2} parent=0 // pred_fallthru
    _
  // Predicated region
  $region54: #{decoder_forward.2} parent=0 // pred_check
    _
  $region55: #{decoder_forward.2} parent=0 // pred_check_branch
    %46 = sbr.rel (0) target = $region57
  $region56: #{decoder_forward.2} parent=0 // pred_region
    _
  $region57: #{decoder_forward.2} parent=0 // pred_fallthru
    _
  %v48 = vld [vmem:[%s0] sm:$0xff]
  %v49 = vld [vmem:[%s2] sm:$0xff]
  %v50 = vld [vmem:[%s2 + $0x8] sm:$0xff]
  %v51 = vld [vmem:[%s2 + $0x10] sm:$0xff]
  %v52 = vld [vmem:[%s2 + $0x18] sm:$0xff]
  %v53 = vld [vmem:[%s2 + $0x20] sm:$0xff]
  %v54 = vld [vmem:[%s2 + $0x28] sm:$0xff]
  %v55 = vld [vmem:[%s2 + $0x30] sm:$0xff]
  %v56 = vld [vmem:[%s2 + $0x38] sm:$0xff]
  %v57 = vld [vmem:[%s2 + $0x40] sm:$0xff]
  %v58 = vld [vmem:[%s3] sm:$0x1]
  %v60 = vlaneseq
  %v61 = vshrl.u32 %v60, 7
  %v62 = vsub.s32 0, %v61
  %v63 = vrot.slane %v58, %v62
  %vm65 = vcmask 588800
  %v67 = vsel %vm65, %v48, 0
  %69 = vmatprep.subr.mxu0 0.0
  %70 = vmatpush1.msra.mxu0 %v49
  %71 = vmatprep.subr.mxu0 0.0
  %72 = vmatpush1.msra.mxu0 %v50
  %73 = vmatprep.subr.mxu0 0.0
  %74 = vmatpush1.msra.mxu0 %v51
  %75 = vmatprep.subr.mxu0 0.0
  %76 = vmatpush1.msra.mxu0 %v52
  %77 = vmatprep.subr.mxu0 0.0
  %78 = vmatpush1.msra.mxu0 %v53
  %79 = vmatprep.subr.mxu0 0.0
  %80 = vmatpush1.msra.mxu0 %v54
  %81 = vmatprep.subr.mxu0 0.0
  %82 = vmatpush1.msra.mxu0 %v55
  %83 = vmatprep.subr.mxu0 0.0
  %84 = vmatpush1.msra.mxu0 %v56
  %85 = vmatprep.subr.mxu0 0.0
  %86 = vmatpush1.msra.mxu0 %v57
  %87 = vmatprep.subr.mxu0 0.0
  %88 = vmatpush1.msra.mxu0 0.0
  %89 = vmatprep.subr.mxu0 0.0
  %90 = vmatpush1.msra.mxu0 0.0
  %91 = vmatprep.subr.mxu0 0.0
  %92 = vmatpush1.msra.mxu0 0.0
  %93 = vmatprep.subr.mxu0 0.0
  %94 = vmatpush1.msra.mxu0 0.0
  %95 = vmatprep.subr.mxu0 0.0
  %96 = vmatpush1.msra.mxu0 0.0
  %97 = vmatprep.subr.mxu0 0.0
  %98 = vmatpush1.msra.mxu0 0.0
  %99 = vmatprep.subr.mxu0 0.0
  %100 = vmatpush1.msra.mxu0 0.0
  %101 = vmatprep.subr.mxu0 0.0
  %102 = vmatpush1.msra.mxu0 0.0
  %103 = vmatprep.subr.mxu0 0.0
  %104 = vmatpush1.msra.mxu0 0.0
  %105 = vmatprep.subr.mxu0 0.0
  %106 = vmatpush1.msra.mxu0 0.0
  %107 = vmatprep.subr.mxu0 0.0
  %108 = vmatpush1.msra.mxu0 0.0
  %109 = vmatprep.subr.mxu0 0.0
  %110 = vmatpush1.msra.mxu0 0.0
  %111 = vmatprep.subr.mxu0 0.0
  %112 = vmatpush1.msra.mxu0 0.0
  %113 = vmatprep.subr.mxu0 0.0
  %114 = vmatpush1.msra.mxu0 0.0
  %115 = vmatprep.subr.mxu0 0.0
  %116 = vmatpush1.msra.mxu0 0.0
  %117 = vmatprep.subr.mxu0 0.0
  %118 = vmatpush1.msra.mxu0 0.0
  %119 = vmatprep.subr.mxu0 0.0
  %120 = vmatpush1.msra.mxu0 0.0
  %121 = vmatprep.subr.mxu0 0.0
  %122 = vmatpush1.msra.mxu0 0.0
  %123 = vmatprep.subr.mxu0 0.0
  %124 = vmatpush1.msra.mxu0 0.0
  %125 = vmatprep.subr.mxu0 0.0
  %126 = vmatpush1.msra.mxu0 0.0
  %127 = vmatprep.subr.mxu0 0.0
  %128 = vmatpush1.msra.mxu0 0.0
  %129 = vmatprep.subr.mxu0 0.0
  %130 = vmatpush1.msra.mxu0 0.0
  %131 = vmatprep.subr.mxu0 0.0
  %132 = vmatpush1.msra.mxu0 0.0
  %133 = vmatprep.mubr.f32.mxu0 0.0
  %134 = vmatmul.mubr.f32.gmra.mrb[0].mxu0 %v67
  %v135 = vpop.f32.mrb[0].mxu0
  %v136 = vadd.f32 %v63, %v135
  %v137 = vpop.f32.mrb[0].mxu0
  %138 = vdwg.mxu0
  %v139 = vld [vmem:[%s1] sm:$0xff]
  %v140 = vld [vmem:[%s1 + $0x8] sm:$0xff]
  %v141 = vld [vmem:[%s4] sm:$0xff]
  %v142 = vld [vmem:[%s4 + $0x8] sm:$0xff]
  %v143 = vld [vmem:[%s4 + $0x10] sm:$0xff]
  %v144 = vld [vmem:[%s4 + $0x18] sm:$0xff]
  %v145 = vld [vmem:[%s4 + $0x20] sm:$0xff]
  %v146 = vld [vmem:[%s4 + $0x28] sm:$0xff]
  %v147 = vld [vmem:[%s4 + $0x30] sm:$0xff]
  %v148 = vld [vmem:[%s4 + $0x38] sm:$0xff]
  %v149 = vld [vmem:[%s4 + $0x40] sm:$0xff]
  %v150 = vld [vmem:[%s4 + $0x48] sm:$0xff]
  %v151 = vld [vmem:[%s4 + $0x50] sm:$0xff]
  %v152 = vld [vmem:[%s4 + $0x58] sm:$0xff]
  %v153 = vld [vmem:[%s4 + $0x60] sm:$0xff]
  %v154 = vld [vmem:[%s4 + $0x68] sm:$0xff]
  %v155 = vld [vmem:[%s4 + $0x70] sm:$0xff]
  %v156 = vld [vmem:[%s4 + $0x78] sm:$0xff]
  %v157 = vld [vmem:[%s4 + $0x80] sm:$0xff]
  %v158 = vld [vmem:[%s4 + $0x88] sm:$0xff]
  %v159 = vld [vmem:[%s4 + $0x90] sm:$0xff]
  %v160 = vld [vmem:[%s4 + $0x98] sm:$0xff]
  %v161 = vld [vmem:[%s4 + $0xa0] sm:$0xff]
  %v162 = vld [vmem:[%s4 + $0xa8] sm:$0xff]
  %v163 = vld [vmem:[%s4 + $0xb0] sm:$0xff]
  %v164 = vld [vmem:[%s4 + $0xb8] sm:$0xff]
  %v165 = vld [vmem:[%s4 + $0xc0] sm:$0xf]
  %v166 = vld [vmem:[%s5] sm:$0x1]
  %v168 = vlaneseq
  %v169 = vshrl.u32 %v168, 7
  %v170 = vsub.s32 0, %v169
  %v171 = vrot.slane %v166, %v170
  %vm173 = vcmask 556032
  %v175 = vsel %vm173, %v140, 0
  %vm177 = vcmask 1043456
  %v179 = vsel %vm177, %v165, 0
  %181 = vmatprep.subr.mxu0 0.0
  %182 = vmatpush1.msra.mxu0 %v141
  %183 = vmatprep.subr.mxu0 0.0
  %184 = vmatpush1.msra.mxu0 %v142
  %185 = vmatprep.subr.mxu0 0.0
  %186 = vmatpush1.msra.mxu0 %v143
  %187 = vmatprep.subr.mxu0 0.0
  %188 = vmatpush1.msra.mxu0 %v144
  %189 = vmatprep.subr.mxu0 0.0
  %190 = vmatpush1.msra.mxu0 %v145
  %191 = vmatprep.subr.mxu0 0.0
  %192 = vmatpush1.msra.mxu0 %v146
  %193 = vmatprep.subr.mxu0 0.0
  %194 = vmatpush1.msra.mxu0 %v147
  %195 = vmatprep.subr.mxu0 0.0
  %196 = vmatpush1.msra.mxu0 %v148
  %197 = vmatprep.subr.mxu0 0.0
  %198 = vmatpush1.msra.mxu0 %v149
  %199 = vmatprep.subr.mxu0 0.0
  %200 = vmatpush1.msra.mxu0 %v150
  %201 = vmatprep.subr.mxu0 0.0
  %202 = vmatpush1.msra.mxu0 %v151
  %203 = vmatprep.subr.mxu0 0.0
  %204 = vmatpush1.msra.mxu0 %v152
  %205 = vmatprep.subr.mxu0 0.0
  %206 = vmatpush1.msra.mxu0 %v153
  %207 = vmatprep.subr.mxu0 0.0
  %208 = vmatpush1.msra.mxu0 %v154
  %209 = vmatprep.subr.mxu0 0.0
  %210 = vmatpush1.msra.mxu0 %v155
  %211 = vmatprep.subr.mxu0 0.0
  %212 = vmatpush1.msra.mxu0 %v156
  %213 = vmatprep.subr.mxu0 0.0
  %214 = vmatpush1.msra.mxu0 %v157
  %215 = vmatprep.subr.mxu0 0.0
  %216 = vmatpush1.msra.mxu0 %v158
  %217 = vmatprep.subr.mxu0 0.0
  %218 = vmatpush1.msra.mxu0 %v159
  %219 = vmatprep.subr.mxu0 0.0
  %220 = vmatpush1.msra.mxu0 %v160
  %221 = vmatprep.subr.mxu0 0.0
  %222 = vmatpush1.msra.mxu0 %v161
  %223 = vmatprep.subr.mxu0 0.0
  %224 = vmatpush1.msra.mxu0 %v162
  %225 = vmatprep.subr.mxu0 0.0
  %226 = vmatpush1.msra.mxu0 %v163
  %227 = vmatprep.subr.mxu0 0.0
  %228 = vmatpush1.msra.mxu0 %v164
  %229 = vmatprep.subr.mxu0 0.0
  %230 = vmatpush1.msra.mxu0 %v179
  %231 = vmatprep.subr.mxu0 0.0
  %232 = vmatpush1.msra.mxu0 0.0
  %233 = vmatprep.subr.mxu0 0.0
  %234 = vmatpush1.msra.mxu0 0.0
  %235 = vmatprep.subr.mxu0 0.0
  %236 = vmatpush1.msra.mxu0 0.0
  %237 = vmatprep.subr.mxu0 0.0
  %238 = vmatpush1.msra.mxu0 0.0
  %239 = vmatprep.subr.mxu0 0.0
  %240 = vmatpush1.msra.mxu0 0.0
  %241 = vmatprep.subr.mxu0 0.0
  %242 = vmatpush1.msra.mxu0 0.0
  %243 = vmatprep.subr.mxu0 0.0
  %244 = vmatpush1.msra.mxu0 0.0
  %245 = vmatprep.mubr.f32.mxu0 %v175
  %246 = vmatmul.mubr.f32.gmra.mrb[0].mxu0 %v139
  %v247 = vpop.f32.mrb[0].mxu0
  %v248 = vadd.f32 %v171, %v247
  %v249 = vpop.f32.mrb[0].mxu0
  %250 = vdwg.mxu0
  %v251 = vld [vmem:[%s6] sm:$0xff]
  %v252 = vld [vmem:[%s6 + $0x8] sm:$0xff]
  %v253 = vld [vmem:[%s6 + $0x10] sm:$0xff]
  %v254 = vld [vmem:[%s6 + $0x18] sm:$0xff]
  %v255 = vld [vmem:[%s6 + $0x20] sm:$0xff]
  %v256 = vld [vmem:[%s6 + $0x28] sm:$0xff]
  %v257 = vld [vmem:[%s6 + $0x30] sm:$0xff]
  %v258 = vld [vmem:[%s6 + $0x38] sm:$0xff]
  %v259 = vld [vmem:[%s6 + $0x40] sm:$0xff]
  %v260 = vld [vmem:[%s6 + $0x48] sm:$0xff]
  %v261 = vld [vmem:[%s6 + $0x50] sm:$0xff]
  %v262 = vld [vmem:[%s6 + $0x58] sm:$0xff]
  %v263 = vld [vmem:[%s6 + $0x60] sm:$0xff]
  %v264 = vld [vmem:[%s6 + $0x68] sm:$0xff]
  %v265 = vld [vmem:[%s6 + $0x70] sm:$0xff]
  %v266 = vld [vmem:[%s6 + $0x78] sm:$0xff]
  %v267 = vld [vmem:[%s6 + $0x80] sm:$0xff]
  %v268 = vld [vmem:[%s6 + $0x88] sm:$0xff]
  %v269 = vld [vmem:[%s6 + $0x90] sm:$0xff]
  %v270 = vld [vmem:[%s6 + $0x98] sm:$0xff]
  %v271 = vld [vmem:[%s6 + $0xa0] sm:$0xff]
  %v272 = vld [vmem:[%s6 + $0xa8] sm:$0xff]
  %v273 = vld [vmem:[%s6 + $0xb0] sm:$0xff]
  %v274 = vld [vmem:[%s6 + $0xb8] sm:$0xff]
  %v275 = vld [vmem:[%s6 + $0xc0] sm:$0xff]
  %v276 = vld [vmem:[%s6 + $0xc8] sm:$0xff]
  %v277 = vld [vmem:[%s6 + $0xd0] sm:$0xff]
  %v278 = vld [vmem:[%s8] sm:$0x7]
  %v280 = vlaneseq
  %v281 = vshrl.u32 %v280, 7
  %v282 = vsub.s32 0, %v281
  %v283 = vrot.slane %v278, %v282
  %v284 = vlaneseq
  %v285 = vshrl.u32 %v284, 7
  %v286 = vsub.s32 1, %v285
  %v287 = vrot.slane %v278, %v286
  %v288 = vlaneseq
  %v289 = vshrl.u32 %v288, 7
  %v290 = vsub.s32 2, %v289
  %v291 = vrot.slane %v278, %v290
  %295 = vmatprep.subr.mxu0 %v252
  %296 = vmatpush1.msra.mxu0 %v251
  %297 = vmatprep.subr.mxu0 %v255
  %298 = vmatpush1.msra.mxu0 %v254
  %299 = vmatprep.subr.mxu0 %v258
  %300 = vmatpush1.msra.mxu0 %v257
  %301 = vmatprep.subr.mxu0 %v261
  %302 = vmatpush1.msra.mxu0 %v260
  %303 = vmatprep.subr.mxu0 %v264
  %304 = vmatpush1.msra.mxu0 %v263
  %305 = vmatprep.subr.mxu0 %v267
  %306 = vmatpush1.msra.mxu0 %v266
  %307 = vmatprep.subr.mxu0 %v270
  %308 = vmatpush1.msra.mxu0 %v269
  %309 = vmatprep.subr.mxu0 %v273
  %310 = vmatpush1.msra.mxu0 %v272
  %311 = vmatprep.subr.mxu0 %v276
  %312 = vmatpush1.msra.mxu0 %v275
  %313 = vmatprep.subr.mxu0 0.0
  %314 = vmatpush1.msra.mxu0 0.0
  %315 = vmatprep.subr.mxu0 0.0
  %316 = vmatpush1.msra.mxu0 0.0
  %317 = vmatprep.subr.mxu0 0.0
  %318 = vmatpush1.msra.mxu0 0.0
  %319 = vmatprep.subr.mxu0 0.0
  %320 = vmatpush1.msra.mxu0 0.0
  %321 = vmatprep.subr.mxu0 0.0
  %322 = vmatpush1.msra.mxu0 0.0
  %323 = vmatprep.subr.mxu0 0.0
  %324 = vmatpush1.msra.mxu0 0.0
  %325 = vmatprep.subr.mxu0 0.0
  %326 = vmatpush1.msra.mxu0 0.0
  %327 = vmatprep.subr.mxu0 0.0
  %328 = vmatpush1.msra.mxu0 0.0
  %329 = vmatprep.subr.mxu0 0.0
  %330 = vmatpush1.msra.mxu0 0.0
  %331 = vmatprep.subr.mxu0 0.0
  %332 = vmatpush1.msra.mxu0 0.0
  %333 = vmatprep.subr.mxu0 0.0
  %334 = vmatpush1.msra.mxu0 0.0
  %335 = vmatprep.subr.mxu0 0.0
  %336 = vmatpush1.msra.mxu0 0.0
  %337 = vmatprep.subr.mxu0 0.0
  %338 = vmatpush1.msra.mxu0 0.0
  %339 = vmatprep.subr.mxu0 0.0
  %340 = vmatpush1.msra.mxu0 0.0
  %341 = vmatprep.subr.mxu0 0.0
  %342 = vmatpush1.msra.mxu0 0.0
  %343 = vmatprep.subr.mxu0 0.0
  %344 = vmatpush1.msra.mxu0 0.0
  %345 = vmatprep.subr.mxu0 0.0
  %346 = vmatpush1.msra.mxu0 0.0
  %347 = vmatprep.subr.mxu0 0.0
  %348 = vmatpush1.msra.mxu0 0.0
  %349 = vmatprep.subr.mxu0 0.0
  %350 = vmatpush1.msra.mxu0 0.0
  %351 = vmatprep.subr.mxu0 0.0
  %352 = vmatpush1.msra.mxu0 0.0
  %353 = vmatprep.subr.mxu0 0.0
  %354 = vmatpush1.msra.mxu0 0.0
  %355 = vmatprep.subr.mxu0 0.0
  %356 = vmatpush1.msra.mxu0 0.0
  %357 = vmatprep.subr.mxu0 0.0
  %358 = vmatpush1.msra.mxu0 0.0
  %359 = vmatprep.mubr.f32.mxu0 0.0
  %360 = vmatmul.mubr.f32.gmra.mrb[0].mxu0 %v67
  %v361 = vpop.f32.mrb[0].mxu0
  %v362 = vadd.f32 %v283, %v361
  %v363 = vpop.f32.mrb[0].mxu0
  %v364 = vadd.f32 %v287, %v363
  %365 = vdwg.mxu0
  %366 = vmatprep.subr.mxu0 0.0
  %367 = vmatpush1.msra.mxu0 %v253
  %368 = vmatprep.subr.mxu0 0.0
  %369 = vmatpush1.msra.mxu0 %v256
  %370 = vmatprep.subr.mxu0 0.0
  %371 = vmatpush1.msra.mxu0 %v259
  %372 = vmatprep.subr.mxu0 0.0
  %373 = vmatpush1.msra.mxu0 %v262
  %374 = vmatprep.subr.mxu0 0.0
  %375 = vmatpush1.msra.mxu0 %v265
  %376 = vmatprep.subr.mxu0 0.0
  %377 = vmatpush1.msra.mxu0 %v268
  %378 = vmatprep.subr.mxu0 0.0
  %379 = vmatpush1.msra.mxu0 %v271
  %380 = vmatprep.subr.mxu0 0.0
  %381 = vmatpush1.msra.mxu0 %v274
  %382 = vmatprep.subr.mxu0 0.0
  %383 = vmatpush1.msra.mxu0 %v277
  %384 = vmatprep.subr.mxu0 0.0
  %385 = vmatpush1.msra.mxu0 0.0
  %386 = vmatprep.subr.mxu0 0.0
  %387 = vmatpush1.msra.mxu0 0.0
  %388 = vmatprep.subr.mxu0 0.0
  %389 = vmatpush1.msra.mxu0 0.0
  %390 = vmatprep.subr.mxu0 0.0
  %391 = vmatpush1.msra.mxu0 0.0
  %392 = vmatprep.subr.mxu0 0.0
  %393 = vmatpush1.msra.mxu0 0.0
  %394 = vmatprep.subr.mxu0 0.0
  %395 = vmatpush1.msra.mxu0 0.0
  %396 = vmatprep.subr.mxu0 0.0
  %397 = vmatpush1.msra.mxu0 0.0
  %398 = vmatprep.subr.mxu0 0.0
  %399 = vmatpush1.msra.mxu0 0.0
  %400 = vmatprep.subr.mxu0 0.0
  %401 = vmatpush1.msra.mxu0 0.0
  %402 = vmatprep.subr.mxu0 0.0
  %403 = vmatpush1.msra.mxu0 0.0
  %404 = vmatprep.subr.mxu0 0.0
  %405 = vmatpush1.msra.mxu0 0.0
  %406 = vmatprep.subr.mxu0 0.0
  %407 = vmatpush1.msra.mxu0 0.0
  %408 = vmatprep.subr.mxu0 0.0
  %409 = vmatpush1.msra.mxu0 0.0
  %410 = vmatprep.subr.mxu0 0.0
  %411 = vmatpush1.msra.mxu0 0.0
  %412 = vmatprep.subr.mxu0 0.0
  %413 = vmatpush1.msra.mxu0 0.0
  %414 = vmatprep.subr.mxu0 0.0
  %415 = vmatpush1.msra.mxu0 0.0
  %416 = vmatprep.subr.mxu0 0.0
  %417 = vmatpush1.msra.mxu0 0.0
  %418 = vmatprep.subr.mxu0 0.0
  %419 = vmatpush1.msra.mxu0 0.0
  %420 = vmatprep.subr.mxu0 0.0
  %421 = vmatpush1.msra.mxu0 0.0
  %422 = vmatprep.subr.mxu0 0.0
  %423 = vmatpush1.msra.mxu0 0.0
  %424 = vmatprep.subr.mxu0 0.0
  %425 = vmatpush1.msra.mxu0 0.0
  %426 = vmatprep.subr.mxu0 0.0
  %427 = vmatpush1.msra.mxu0 0.0
  %428 = vmatprep.subr.mxu0 0.0
  %429 = vmatpush1.msra.mxu0 0.0
  %430 = vmatprep.mubr.f32.mxu0 0.0
  %431 = vmatmul.mubr.f32.gmra.mrb[0].mxu0 %v67
  %v432 = vpop.f32.mrb[0].mxu0
  %v433 = vadd.f32 %v291, %v432
  %v434 = vpop.f32.mrb[0].mxu0
  %435 = vdwg.mxu0
  %v436 = vld [vmem:[%s7] sm:$0xff]
  %v437 = vld [vmem:[%s7 + $0x8] sm:$0xff]
  %v438 = vld [vmem:[%s7 + $0x10] sm:$0xff]
  %v439 = vld [vmem:[%s7 + $0x18] sm:$0xff]
  %v440 = vld [vmem:[%s7 + $0x20] sm:$0xff]
  %v441 = vld [vmem:[%s7 + $0x28] sm:$0xff]
  %vm442 = vcmask 130048
  %v444 = vsel %vm442, %v248, 0
  %446 = vmatprep.subr.mxu0 %v437
  %447 = vmatpush1.msra.mxu0 %v436
  %448 = vmatprep.subr.mxu0 %v440
  %449 = vmatpush1.msra.mxu0 %v439
  %450 = vmatprep.subr.mxu0 0.0
  %451 = vmatpush1.msra.mxu0 0.0
  %452 = vmatprep.subr.mxu0 0.0
  %453 = vmatpush1.msra.mxu0 0.0
  %454 = vmatprep.subr.mxu0 0.0
  %455 = vmatpush1.msra.mxu0 0.0
  %456 = vmatprep.subr.mxu0 0.0
  %457 = vmatpush1.msra.mxu0 0.0
  %458 = vmatprep.subr.mxu0 0.0
  %459 = vmatpush1.msra.mxu0 0.0
  %460 = vmatprep.subr.mxu0 0.0
  %461 = vmatpush1.msra.mxu0 0.0
  %462 = vmatprep.subr.mxu0 0.0
  %463 = vmatpush1.msra.mxu0 0.0
  %464 = vmatprep.subr.mxu0 0.0
  %465 = vmatpush1.msra.mxu0 0.0
  %466 = vmatprep.subr.mxu0 0.0
  %467 = vmatpush1.msra.mxu0 0.0
  %468 = vmatprep.subr.mxu0 0.0
  %469 = vmatpush1.msra.mxu0 0.0
  %470 = vmatprep.subr.mxu0 0.0
  %471 = vmatpush1.msra.mxu0 0.0
  %472 = vmatprep.subr.mxu0 0.0
  %473 = vmatpush1.msra.mxu0 0.0
  %474 = vmatprep.subr.mxu0 0.0
  %475 = vmatpush1.msra.mxu0 0.0
  %476 = vmatprep.subr.mxu0 0.0
  %477 = vmatpush1.msra.mxu0 0.0
  %478 = vmatprep.subr.mxu0 0.0
  %479 = vmatpush1.msra.mxu0 0.0
  %480 = vmatprep.subr.mxu0 0.0
  %481 = vmatpush1.msra.mxu0 0.0
  %482 = vmatprep.subr.mxu0 0.0
  %483 = vmatpush1.msra.mxu0 0.0
  %484 = vmatprep.subr.mxu0 0.0
  %485 = vmatpush1.msra.mxu0 0.0
  %486 = vmatprep.subr.mxu0 0.0
  %487 = vmatpush1.msra.mxu0 0.0
  %488 = vmatprep.subr.mxu0 0.0
  %489 = vmatpush1.msra.mxu0 0.0
  %490 = vmatprep.subr.mxu0 0.0
  %491 = vmatpush1.msra.mxu0 0.0
  %492 = vmatprep.subr.mxu0 0.0
  %493 = vmatpush1.msra.mxu0 0.0
  %494 = vmatprep.subr.mxu0 0.0
  %495 = vmatpush1.msra.mxu0 0.0
  %496 = vmatprep.subr.mxu0 0.0
  %497 = vmatpush1.msra.mxu0 0.0
  %498 = vmatprep.subr.mxu0 0.0
  %499 = vmatpush1.msra.mxu0 0.0
  %500 = vmatprep.subr.mxu0 0.0
  %501 = vmatpush1.msra.mxu0 0.0
  %502 = vmatprep.subr.mxu0 0.0
  %503 = vmatpush1.msra.mxu0 0.0
  %504 = vmatprep.subr.mxu0 0.0
  %505 = vmatpush1.msra.mxu0 0.0
  %506 = vmatprep.subr.mxu0 0.0
  %507 = vmatpush1.msra.mxu0 0.0
  %508 = vmatprep.subr.mxu0 0.0
  %509 = vmatpush1.msra.mxu0 0.0
  %510 = vmatprep.mubr.f32.mxu0 0.0
  %511 = vmatmul.mubr.f32.gmra.mrb[0].mxu0 %v444
  %v512 = vpop.f32.mrb[0].mxu0
  %v513 = vadd.f32 0.0, %v512
  %v514 = vpop.f32.mrb[0].mxu0
  %v515 = vadd.f32 0.0, %v514
  %516 = vdwg.mxu0
  %517 = vmatprep.subr.mxu0 0.0
  %518 = vmatpush1.msra.mxu0 %v438
  %519 = vmatprep.subr.mxu0 0.0
  %520 = vmatpush1.msra.mxu0 %v441
  %521 = vmatprep.subr.mxu0 0.0
  %522 = vmatpush1.msra.mxu0 0.0
  %523 = vmatprep.subr.mxu0 0.0
  %524 = vmatpush1.msra.mxu0 0.0
  %525 = vmatprep.subr.mxu0 0.0
  %526 = vmatpush1.msra.mxu0 0.0
  %527 = vmatprep.subr.mxu0 0.0
  %528 = vmatpush1.msra.mxu0 0.0
  %529 = vmatprep.subr.mxu0 0.0
  %530 = vmatpush1.msra.mxu0 0.0
  %531 = vmatprep.subr.mxu0 0.0
  %532 = vmatpush1.msra.mxu0 0.0
  %533 = vmatprep.subr.mxu0 0.0
  %534 = vmatpush1.msra.mxu0 0.0
  %535 = vmatprep.subr.mxu0 0.0
  %536 = vmatpush1.msra.mxu0 0.0
  %537 = vmatprep.subr.mxu0 0.0
  %538 = vmatpush1.msra.mxu0 0.0
  %539 = vmatprep.subr.mxu0 0.0
  %540 = vmatpush1.msra.mxu0 0.0
  %541 = vmatprep.subr.mxu0 0.0
  %542 = vmatpush1.msra.mxu0 0.0
  %543 = vmatprep.subr.mxu0 0.0
  %544 = vmatpush1.msra.mxu0 0.0
  %545 = vmatprep.subr.mxu0 0.0
  %546 = vmatpush1.msra.mxu0 0.0
  %547 = vmatprep.subr.mxu0 0.0
  %548 = vmatpush1.msra.mxu0 0.0
  %549 = vmatprep.subr.mxu0 0.0
  %550 = vmatpush1.msra.mxu0 0.0
  %551 = vmatprep.subr.mxu0 0.0
  %552 = vmatpush1.msra.mxu0 0.0
  %553 = vmatprep.subr.mxu0 0.0
  %554 = vmatpush1.msra.mxu0 0.0
  %555 = vmatprep.subr.mxu0 0.0
  %556 = vmatpush1.msra.mxu0 0.0
  %557 = vmatprep.subr.mxu0 0.0
  %558 = vmatpush1.msra.mxu0 0.0
  %559 = vmatprep.subr.mxu0 0.0
  %560 = vmatpush1.msra.mxu0 0.0
  %561 = vmatprep.subr.mxu0 0.0
  %562 = vmatpush1.msra.mxu0 0.0
  %563 = vmatprep.subr.mxu0 0.0
  %564 = vmatpush1.msra.mxu0 0.0
  %565 = vmatprep.subr.mxu0 0.0
  %566 = vmatpush1.msra.mxu0 0.0
  %567 = vmatprep.subr.mxu0 0.0
  %568 = vmatpush1.msra.mxu0 0.0
  %569 = vmatprep.subr.mxu0 0.0
  %570 = vmatpush1.msra.mxu0 0.0
  %571 = vmatprep.subr.mxu0 0.0
  %572 = vmatpush1.msra.mxu0 0.0
  %573 = vmatprep.subr.mxu0 0.0
  %574 = vmatpush1.msra.mxu0 0.0
  %575 = vmatprep.subr.mxu0 0.0
  %576 = vmatpush1.msra.mxu0 0.0
  %577 = vmatprep.subr.mxu0 0.0
  %578 = vmatpush1.msra.mxu0 0.0
  %579 = vmatprep.subr.mxu0 0.0
  %580 = vmatpush1.msra.mxu0 0.0
  %581 = vmatprep.mubr.f32.mxu0 0.0
  %582 = vmatmul.mubr.f32.gmra.mrb[0].mxu0 %v444
  %v583 = vpop.f32.mrb[0].mxu0
  %v584 = vadd.f32 0.0, %v583
  %v585 = vpop.f32.mrb[0].mxu0
  %586 = vdwg.mxu0
  %v587 = vadd.f32 %v362, %v513
  %v588 = vadd.f32 %v364, %v515
  %v589 = vadd.f32 %v433, %v584
  %v590 = vld [vmem:[%s11] sm:$0x7]
  %v592 = vlaneseq
  %v593 = vshrl.u32 %v592, 7
  %v594 = vsub.s32 0, %v593
  %v595 = vrot.slane %v590, %v594
  %v596 = vlaneseq
  %v597 = vshrl.u32 %v596, 7
  %v598 = vsub.s32 1, %v597
  %v599 = vrot.slane %v590, %v598
  %v600 = vlaneseq
  %v601 = vshrl.u32 %v600, 7
  %v602 = vsub.s32 2, %v601
  %v603 = vrot.slane %v590, %v602
  %v607 = vadd.f32 %v362, %v595
  %v608 = vadd.f32 %v364, %v599
  %v609 = vadd.f32 %v433, %v603
  %v610 = vld [vmem:[%s10] sm:$0x7]
  %v611 = vld [vmem:[%s9] sm:$0xff]
  %v612 = vld [vmem:[%s9 + $0x8] sm:$0xff]
  %v613 = vld [vmem:[%s9 + $0x10] sm:$0xff]
  %v614 = vld [vmem:[%s9 + $0x18] sm:$0xff]
  %v615 = vld [vmem:[%s9 + $0x20] sm:$0xff]
  %v616 = vld [vmem:[%s9 + $0x28] sm:$0xff]
  %v617 = vld [vmem:[%s9 + $0x30] sm:$0xff]
  %v618 = vld [vmem:[%s9 + $0x38] sm:$0xff]
  %v619 = vld [vmem:[%s9 + $0x40] sm:$0xff]
  %v620 = vld [vmem:[%s9 + $0x48] sm:$0xff]
  %v621 = vld [vmem:[%s9 + $0x50] sm:$0xff]
  %v622 = vld [vmem:[%s9 + $0x58] sm:$0xff]
  %v623 = vld [vmem:[%s9 + $0x60] sm:$0xff]
  %v624 = vld [vmem:[%s9 + $0x68] sm:$0xff]
  %v625 = vld [vmem:[%s9 + $0x70] sm:$0xff]
  %v626 = vld [vmem:[%s9 + $0x78] sm:$0xff]
  %v627 = vld [vmem:[%s9 + $0x80] sm:$0xff]
  %v628 = vld [vmem:[%s9 + $0x88] sm:$0xff]
  %v629 = vld [vmem:[%s9 + $0x90] sm:$0xff]
  %v630 = vld [vmem:[%s9 + $0x98] sm:$0xff]
  %v631 = vld [vmem:[%s9 + $0xa0] sm:$0xff]
  %v632 = vld [vmem:[%s9 + $0xa8] sm:$0xff]
  %v633 = vld [vmem:[%s9 + $0xb0] sm:$0xff]
  %v634 = vld [vmem:[%s9 + $0xb8] sm:$0xff]
  %v635 = vld [vmem:[%s9 + $0xc0] sm:$0xff]
  %v636 = vld [vmem:[%s9 + $0xc8] sm:$0xff]
  %v637 = vld [vmem:[%s9 + $0xd0] sm:$0xff]
  %v638 = vld [vmem:[%s9 + $0xd8] sm:$0xff]
  %v639 = vld [vmem:[%s9 + $0xe0] sm:$0xff]
  %v640 = vld [vmem:[%s9 + $0xe8] sm:$0xff]
  %v641 = vld [vmem:[%s9 + $0xf0] sm:$0xff]
  %v642 = vld [vmem:[%s9 + $0xf8] sm:$0xff]
  %v643 = vld [vmem:[%s9 + $0x100] sm:$0xff]
  %v644 = vld [vmem:[%s9 + $0x108] sm:$0xff]
  %v645 = vld [vmem:[%s9 + $0x110] sm:$0xff]
  %v646 = vld [vmem:[%s9 + $0x118] sm:$0xff]
  %v647 = vld [vmem:[%s9 + $0x120] sm:$0xff]
  %v648 = vld [vmem:[%s9 + $0x128] sm:$0xff]
  %v649 = vld [vmem:[%s9 + $0x130] sm:$0xff]
  %v650 = vld [vmem:[%s9 + $0x138] sm:$0xff]
  %v651 = vld [vmem:[%s9 + $0x140] sm:$0xff]
  %v652 = vld [vmem:[%s9 + $0x148] sm:$0xff]
  %v653 = vld [vmem:[%s9 + $0x150] sm:$0xff]
  %v654 = vld [vmem:[%s9 + $0x158] sm:$0xff]
  %v655 = vld [vmem:[%s9 + $0x160] sm:$0xff]
  %v656 = vld [vmem:[%s9 + $0x168] sm:$0xff]
  %v657 = vld [vmem:[%s9 + $0x170] sm:$0xff]
  %v658 = vld [vmem:[%s9 + $0x178] sm:$0xff]
  %v659 = vld [vmem:[%s9 + $0x180] sm:$0xff]
  %v660 = vld [vmem:[%s9 + $0x188] sm:$0xff]
  %v661 = vld [vmem:[%s9 + $0x190] sm:$0xff]
  %v662 = vld [vmem:[%s9 + $0x198] sm:$0xff]
  %v663 = vld [vmem:[%s9 + $0x1a0] sm:$0xff]
  %v664 = vld [vmem:[%s9 + $0x1a8] sm:$0xff]
  %v665 = vld [vmem:[%s9 + $0x1b0] sm:$0xff]
  %v666 = vld [vmem:[%s9 + $0x1b8] sm:$0xff]
  %v667 = vld [vmem:[%s9 + $0x1c0] sm:$0xff]
  %v668 = vld [vmem:[%s9 + $0x1c8] sm:$0xff]
  %v669 = vld [vmem:[%s9 + $0x1d0] sm:$0xff]
  %v670 = vld [vmem:[%s9 + $0x1d8] sm:$0xff]
  %v671 = vld [vmem:[%s9 + $0x1e0] sm:$0xff]
  %v672 = vld [vmem:[%s9 + $0x1e8] sm:$0xff]
  %v673 = vld [vmem:[%s9 + $0x1f0] sm:$0xff]
  %v674 = vld [vmem:[%s9 + $0x1f8] sm:$0xff]
  %v675 = vld [vmem:[%s9 + $0x200] sm:$0xff]
  %v676 = vld [vmem:[%s9 + $0x208] sm:$0xff]
  %v677 = vld [vmem:[%s9 + $0x210] sm:$0xff]
  %v678 = vld [vmem:[%s9 + $0x218] sm:$0xff]
  %v679 = vld [vmem:[%s9 + $0x220] sm:$0xff]
  %v680 = vld [vmem:[%s9 + $0x228] sm:$0xff]
  %v681 = vld [vmem:[%s9 + $0x230] sm:$0xff]
  %v682 = vld [vmem:[%s9 + $0x238] sm:$0xff]
  %v683 = vld [vmem:[%s9 + $0x240] sm:$0xff]
  %v684 = vld [vmem:[%s9 + $0x248] sm:$0xff]
  %v685 = vld [vmem:[%s9 + $0x250] sm:$0xff]
  %v686 = vld [vmem:[%s9 + $0x258] sm:$0xff]
  %v687 = vld [vmem:[%s9 + $0x260] sm:$0xff]
  %v688 = vld [vmem:[%s9 + $0x268] sm:$0xff]
  %v689 = vld [vmem:[%s9 + $0x270] sm:$0xff]
  %v690 = vld [vmem:[%s9 + $0x278] sm:$0xff]
  %v691 = vld [vmem:[%s9 + $0x280] sm:$0xff]
  %v692 = vld [vmem:[%s9 + $0x288] sm:$0xff]
  %v693 = vld [vmem:[%s9 + $0x290] sm:$0xff]
  %v694 = vld [vmem:[%s9 + $0x298] sm:$0xff]
  %v695 = vld [vmem:[%s9 + $0x2a0] sm:$0xff]
  %v696 = vld [vmem:[%s9 + $0x2a8] sm:$0xff]
  %v697 = vld [vmem:[%s9 + $0x2b0] sm:$0xff]
  %v698 = vld [vmem:[%s9 + $0x2b8] sm:$0xff]
  %v699 = vld [vmem:[%s9 + $0x2c0] sm:$0xff]
  %v700 = vld [vmem:[%s9 + $0x2c8] sm:$0xff]
  %v701 = vld [vmem:[%s9 + $0x2d0] sm:$0xff]
  %v702 = vld [vmem:[%s9 + $0x2d8] sm:$0xff]
  %v703 = vld [vmem:[%s9 + $0x2e0] sm:$0xff]
  %v704 = vld [vmem:[%s9 + $0x2e8] sm:$0xff]
  %v705 = vld [vmem:[%s9 + $0x2f0] sm:$0xff]
  %v706 = vld [vmem:[%s9 + $0x2f8] sm:$0xff]
  %707 = vmatprep.subr.mxu0 %v614
  %708 = vmatpush1.msra.mxu0 %v613
  %709 = vmatprep.subr.mxu0 %v620
  %710 = vmatpush1.msra.mxu0 %v619
  %711 = vmatprep.subr.mxu0 %v626
  %712 = vmatpush1.msra.mxu0 %v625
  %713 = vmatprep.subr.mxu0 %v632
  %714 = vmatpush1.msra.mxu0 %v631
  %715 = vmatprep.subr.mxu0 %v638
  %716 = vmatpush1.msra.mxu0 %v637
  %717 = vmatprep.subr.mxu0 %v644
  %718 = vmatpush1.msra.mxu0 %v643
  %719 = vmatprep.subr.mxu0 %v650
  %720 = vmatpush1.msra.mxu0 %v649
  %721 = vmatprep.subr.mxu0 %v656
  %722 = vmatpush1.msra.mxu0 %v655
  %723 = vmatprep.subr.mxu0 %v662
  %724 = vmatpush1.msra.mxu0 %v661
  %725 = vmatprep.subr.mxu0 %v668
  %726 = vmatpush1.msra.mxu0 %v667
  %727 = vmatprep.subr.mxu0 %v674
  %728 = vmatpush1.msra.mxu0 %v673
  %729 = vmatprep.subr.mxu0 %v680
  %730 = vmatpush1.msra.mxu0 %v679
  %731 = vmatprep.subr.mxu0 %v686
  %732 = vmatpush1.msra.mxu0 %v685
  %733 = vmatprep.subr.mxu0 %v692
  %734 = vmatpush1.msra.mxu0 %v691
  %735 = vmatprep.subr.mxu0 %v698
  %736 = vmatpush1.msra.mxu0 %v697
  %737 = vmatprep.subr.mxu0 %v704
  %738 = vmatpush1.msra.mxu0 %v703
  %739 = vmatprep.subr.mxu0 0.0
  %740 = vmatpush1.msra.mxu0 0.0
  %741 = vmatprep.subr.mxu0 0.0
  %742 = vmatpush1.msra.mxu0 0.0
  %743 = vmatprep.subr.mxu0 0.0
  %744 = vmatpush1.msra.mxu0 0.0
  %745 = vmatprep.subr.mxu0 0.0
  %746 = vmatpush1.msra.mxu0 0.0
  %747 = vmatprep.subr.mxu0 0.0
  %748 = vmatpush1.msra.mxu0 0.0
  %749 = vmatprep.subr.mxu0 0.0
  %750 = vmatpush1.msra.mxu0 0.0
  %751 = vmatprep.subr.mxu0 0.0
  %752 = vmatpush1.msra.mxu0 0.0
  %753 = vmatprep.subr.mxu0 0.0
  %754 = vmatpush1.msra.mxu0 0.0
  %755 = vmatprep.subr.mxu0 0.0
  %756 = vmatpush1.msra.mxu0 0.0
  %757 = vmatprep.subr.mxu0 0.0
  %758 = vmatpush1.msra.mxu0 0.0
  %759 = vmatprep.subr.mxu0 0.0
  %760 = vmatpush1.msra.mxu0 0.0
  %761 = vmatprep.subr.mxu0 0.0
  %762 = vmatpush1.msra.mxu0 0.0
  %763 = vmatprep.subr.mxu0 0.0
  %764 = vmatpush1.msra.mxu0 0.0
  %765 = vmatprep.subr.mxu0 0.0
  %766 = vmatpush1.msra.mxu0 0.0
  %767 = vmatprep.subr.mxu0 0.0
  %768 = vmatpush1.msra.mxu0 0.0
  %769 = vmatprep.subr.mxu0 0.0
  %770 = vmatpush1.msra.mxu0 0.0
  %771 = vmatprep.mubr.f32.mxu0 0.0
  %772 = vmatmul.mubr.f32.gmra.mrb[0].mxu0 %v136
  %v773 = vpop.f32.mrb[0].mxu0
  %v774 = vpop.f32.mrb[0].mxu0
  %v775 = vadd.f32 0.0, %v774
  %776 = vdwg.mxu0
  %777 = vmatprep.subr.mxu0 %v616
  %778 = vmatpush1.msra.mxu0 %v615
  %779 = vmatprep.subr.mxu0 %v622
  %780 = vmatpush1.msra.mxu0 %v621
  %781 = vmatprep.subr.mxu0 %v628
  %782 = vmatpush1.msra.mxu0 %v627
  %783 = vmatprep.subr.mxu0 %v634
  %784 = vmatpush1.msra.mxu0 %v633
  %785 = vmatprep.subr.mxu0 %v640
  %786 = vmatpush1.msra.mxu0 %v639
  %787 = vmatprep.subr.mxu0 %v646
  %788 = vmatpush1.msra.mxu0 %v645
  %789 = vmatprep.subr.mxu0 %v652
  %790 = vmatpush1.msra.mxu0 %v651
  %791 = vmatprep.subr.mxu0 %v658
  %792 = vmatpush1.msra.mxu0 %v657
  %793 = vmatprep.subr.mxu0 %v664
  %794 = vmatpush1.msra.mxu0 %v663
  %795 = vmatprep.subr.mxu0 %v670
  %796 = vmatpush1.msra.mxu0 %v669
  %797 = vmatprep.subr.mxu0 %v676
  %798 = vmatpush1.msra.mxu0 %v675
  %799 = vmatprep.subr.mxu0 %v682
  %800 = vmatpush1.msra.mxu0 %v681
  %801 = vmatprep.subr.mxu0 %v688
  %802 = vmatpush1.msra.mxu0 %v687
  %803 = vmatprep.subr.mxu0 %v694
  %804 = vmatpush1.msra.mxu0 %v693
  %805 = vmatprep.subr.mxu0 %v700
  %806 = vmatpush1.msra.mxu0 %v699
  %807 = vmatprep.subr.mxu0 %v706
  %808 = vmatpush1.msra.mxu0 %v705
  %809 = vmatprep.subr.mxu0 0.0
  %810 = vmatpush1.msra.mxu0 0.0
  %811 = vmatprep.subr.mxu0 0.0
  %812 = vmatpush1.msra.mxu0 0.0
  %813 = vmatprep.subr.mxu0 0.0
  %814 = vmatpush1.msra.mxu0 0.0
  %815 = vmatprep.subr.mxu0 0.0
  %816 = vmatpush1.msra.mxu0 0.0
  %817 = vmatprep.subr.mxu0 0.0
  %818 = vmatpush1.msra.mxu0 0.0
  %819 = vmatprep.subr.mxu0 0.0
  %820 = vmatpush1.msra.mxu0 0.0
  %821 = vmatprep.subr.mxu0 0.0
  %822 = vmatpush1.msra.mxu0 0.0
  %823 = vmatprep.subr.mxu0 0.0
  %824 = vmatpush1.msra.mxu0 0.0
  %825 = vmatprep.subr.mxu0 0.0
  %826 = vmatpush1.msra.mxu0 0.0
  %827 = vmatprep.subr.mxu0 0.0
  %828 = vmatpush1.msra.mxu0 0.0
  %829 = vmatprep.subr.mxu0 0.0
  %830 = vmatpush1.msra.mxu0 0.0
  %831 = vmatprep.subr.mxu0 0.0
  %832 = vmatpush1.msra.mxu0 0.0
  %833 = vmatprep.subr.mxu0 0.0
  %834 = vmatpush1.msra.mxu0 0.0
  %835 = vmatprep.subr.mxu0 0.0
  %836 = vmatpush1.msra.mxu0 0.0
  %837 = vmatprep.subr.mxu0 0.0
  %838 = vmatpush1.msra.mxu0 0.0
  %839 = vmatprep.subr.mxu0 0.0
  %840 = vmatpush1.msra.mxu0 0.0
  %841 = vmatprep.mubr.f32.mxu0 0.0
  %842 = vmatmul.mubr.f32.gmra.mrb[0].mxu0 %v136
  %v843 = vpop.f32.mrb[0].mxu0
  %v844 = vadd.f32 0.0, %v843
  %v845 = vpop.f32.mrb[0].mxu0
  %v846 = vadd.f32 0.0, %v845
  %847 = vdwg.mxu0
  %v849 = vlaneseq
  %v850 = vshrl.u32 %v849, 7
  %v851 = vsub.s32 0, %v850
  %v852 = vrot.slane %v610, %v851
  %v853 = vlaneseq
  %v854 = vshrl.u32 %v853, 7
  %v855 = vsub.s32 1, %v854
  %v856 = vrot.slane %v610, %v855
  %v857 = vlaneseq
  %v858 = vshrl.u32 %v857, 7
  %v859 = vsub.s32 2, %v858
  %v860 = vrot.slane %v610, %v859
  %v864 = vadd.f32 %v775, %v852
  %v865 = vadd.f32 %v844, %v856
  %v866 = vadd.f32 %v846, %v860
  %v867 = vadd.f32 %v587, %v864
  %v868 = vxor.u32 %v867, 2147483648
  %v869 = vmul.f32 %v868, 1.442695
  %v870 = vpow.pop %v869
  %v871 = vadd.f32 %v870, 1.0
  %v872 = vrcp.pop %v871
  %v873 = vmul.f32 1.0, %v872
  %v874 = vadd.f32 %v588, %v865
  %v875 = vxor.u32 %v874, 2147483648
  %v876 = vmul.f32 %v875, 1.442695
  %v877 = vpow.pop %v876
  %v878 = vadd.f32 %v877, 1.0
  %v879 = vrcp.pop %v878
  %v880 = vmul.f32 1.0, %v879
  %v881 = vmul.f32 %v873, %v866
  %v882 = vadd.f32 %v589, %v881
  %v883 = vtanh.pop %v882
  %v884 = vsub.f32 1.0, %v880
  %v885 = vmul.f32 %v884, %v883
  %v886 = vmul.f32 %v880, %v136
  %v887 = vadd.f32 %v885, %v886
  %888 = vst [vmem:[#allocation2] sm:$0xff] %v887
  %889 = vmatprep.subr.mxu0 %v612
  %890 = vmatpush1.msra.mxu0 %v611
  %891 = vmatprep.subr.mxu0 %v618
  %892 = vmatpush1.msra.mxu0 %v617
  %893 = vmatprep.subr.mxu0 %v624
  %894 = vmatpush1.msra.mxu0 %v623
  %895 = vmatprep.subr.mxu0 %v630
  %896 = vmatpush1.msra.mxu0 %v629
  %897 = vmatprep.subr.mxu0 %v636
  %898 = vmatpush1.msra.mxu0 %v635
  %899 = vmatprep.subr.mxu0 %v642
  %900 = vmatpush1.msra.mxu0 %v641
  %901 = vmatprep.subr.mxu0 %v648
  %902 = vmatpush1.msra.mxu0 %v647
  %903 = vmatprep.subr.mxu0 %v654
  %904 = vmatpush1.msra.mxu0 %v653
  %905 = vmatprep.subr.mxu0 %v660
  %906 = vmatpush1.msra.mxu0 %v659
  %907 = vmatprep.subr.mxu0 %v666
  %908 = vmatpush1.msra.mxu0 %v665
  %909 = vmatprep.subr.mxu0 %v672
  %910 = vmatpush1.msra.mxu0 %v671
  %911 = vmatprep.subr.mxu0 %v678
  %912 = vmatpush1.msra.mxu0 %v677
  %913 = vmatprep.subr.mxu0 %v684
  %914 = vmatpush1.msra.mxu0 %v683
  %915 = vmatprep.subr.mxu0 %v690
  %916 = vmatpush1.msra.mxu0 %v689
  %917 = vmatprep.subr.mxu0 %v696
  %918 = vmatpush1.msra.mxu0 %v695
  %919 = vmatprep.subr.mxu0 %v702
  %920 = vmatpush1.msra.mxu0 %v701
  %921 = vmatprep.subr.mxu0 0.0
  %922 = vmatpush1.msra.mxu0 0.0
  %923 = vmatprep.subr.mxu0 0.0
  %924 = vmatpush1.msra.mxu0 0.0
  %925 = vmatprep.subr.mxu0 0.0
  %926 = vmatpush1.msra.mxu0 0.0
  %927 = vmatprep.subr.mxu0 0.0
  %928 = vmatpush1.msra.mxu0 0.0
  %929 = vmatprep.subr.mxu0 0.0
  %930 = vmatpush1.msra.mxu0 0.0
  %931 = vmatprep.subr.mxu0 0.0
  %932 = vmatpush1.msra.mxu0 0.0
  %933 = vmatprep.subr.mxu0 0.0
  %934 = vmatpush1.msra.mxu0 0.0
  %935 = vmatprep.subr.mxu0 0.0
  %936 = vmatpush1.msra.mxu0 0.0
  %937 = vmatprep.subr.mxu0 0.0
  %938 = vmatpush1.msra.mxu0 0.0
  %939 = vmatprep.subr.mxu0 0.0
  %940 = vmatpush1.msra.mxu0 0.0
  %941 = vmatprep.subr.mxu0 0.0
  %942 = vmatpush1.msra.mxu0 0.0
  %943 = vmatprep.subr.mxu0 0.0
  %944 = vmatpush1.msra.mxu0 0.0
  %945 = vmatprep.subr.mxu0 0.0
  %946 = vmatpush1.msra.mxu0 0.0
  %947 = vmatprep.subr.mxu0 0.0
  %948 = vmatpush1.msra.mxu0 0.0
  %949 = vmatprep.subr.mxu0 0.0
  %950 = vmatpush1.msra.mxu0 0.0
  %951 = vmatprep.subr.mxu0 0.0
  %952 = vmatpush1.msra.mxu0 0.0
  %953 = vmatprep.mubr.f32.mxu0 0.0
  %954 = vmatmul.mubr.f32.gmra.mrb[0].mxu0 %v887
  %v955 = vpop.f32.mrb[0].mxu0
  %v956 = vadd.f32 0.0, %v955
  %v957 = vpop.f32.mrb[0].mxu0
  %v958 = vadd.f32 0.0, %v957
  %959 = vdwg.mxu0
  %960 = vmatprep.subr.mxu0 %v614
  %961 = vmatpush1.msra.mxu0 %v613
  %962 = vmatprep.subr.mxu0 %v620
  %963 = vmatpush1.msra.mxu0 %v619
  %964 = vmatprep.subr.mxu0 %v626
  %965 = vmatpush1.msra.mxu0 %v625
  %966 = vmatprep.subr.mxu0 %v632
  %967 = vmatpush1.msra.mxu0 %v631
  %968 = vmatprep.subr.mxu0 %v638
  %969 = vmatpush1.msra.mxu0 %v637
  %970 = vmatprep.subr.mxu0 %v644
  %971 = vmatpush1.msra.mxu0 %v643
  %972 = vmatprep.subr.mxu0 %v650
  %973 = vmatpush1.msra.mxu0 %v649
  %974 = vmatprep.subr.mxu0 %v656
  %975 = vmatpush1.msra.mxu0 %v655
  %976 = vmatprep.subr.mxu0 %v662
  %977 = vmatpush1.msra.mxu0 %v661
  %978 = vmatprep.subr.mxu0 %v668
  %979 = vmatpush1.msra.mxu0 %v667
  %980 = vmatprep.subr.mxu0 %v674
  %981 = vmatpush1.msra.mxu0 %v673
  %982 = vmatprep.subr.mxu0 %v680
  %983 = vmatpush1.msra.mxu0 %v679
  %984 = vmatprep.subr.mxu0 %v686
  %985 = vmatpush1.msra.mxu0 %v685
  %986 = vmatprep.subr.mxu0 %v692
  %987 = vmatpush1.msra.mxu0 %v691
  %988 = vmatprep.subr.mxu0 %v698
  %989 = vmatpush1.msra.mxu0 %v697
  %990 = vmatprep.subr.mxu0 %v704
  %991 = vmatpush1.msra.mxu0 %v703
  %992 = vmatprep.subr.mxu0 0.0
  %993 = vmatpush1.msra.mxu0 0.0
  %994 = vmatprep.subr.mxu0 0.0
  %995 = vmatpush1.msra.mxu0 0.0
  %996 = vmatprep.subr.mxu0 0.0
  %997 = vmatpush1.msra.mxu0 0.0
  %998 = vmatprep.subr.mxu0 0.0
  %999 = vmatpush1.msra.mxu0 0.0
  %1000 = vmatprep.subr.mxu0 0.0
  %1001 = vmatpush1.msra.mxu0 0.0
  %1002 = vmatprep.subr.mxu0 0.0
  %1003 = vmatpush1.msra.mxu0 0.0
  %1004 = vmatprep.subr.mxu0 0.0
  %1005 = vmatpush1.msra.mxu0 0.0
  %1006 = vmatprep.subr.mxu0 0.0
  %1007 = vmatpush1.msra.mxu0 0.0
  %1008 = vmatprep.subr.mxu0 0.0
  %1009 = vmatpush1.msra.mxu0 0.0
  %1010 = vmatprep.subr.mxu0 0.0
  %1011 = vmatpush1.msra.mxu0 0.0
  %1012 = vmatprep.subr.mxu0 0.0
  %1013 = vmatpush1.msra.mxu0 0.0
  %1014 = vmatprep.subr.mxu0 0.0
  %1015 = vmatpush1.msra.mxu0 0.0
  %1016 = vmatprep.subr.mxu0 0.0
  %1017 = vmatpush1.msra.mxu0 0.0
  %1018 = vmatprep.subr.mxu0 0.0
  %1019 = vmatpush1.msra.mxu0 0.0
  %1020 = vmatprep.subr.mxu0 0.0
  %1021 = vmatpush1.msra.mxu0 0.0
  %1022 = vmatprep.subr.mxu0 0.0
  %1023 = vmatpush1.msra.mxu0 0.0
  %1024 = vmatprep.mubr.f32.mxu0 0.0
  %1025 = vmatmul.mubr.f32.gmra.mrb[0].mxu0 %v887
  %v1026 = vpop.f32.mrb[0].mxu0
  %v1027 = vadd.f32 0.0, %v1026
  %v1028 = vpop.f32.mrb[0].mxu0
  %v1029 = vadd.f32 0.0, %v1028
  %1030 = vdwg.mxu0
  %1031 = vmatprep.subr.mxu0 %v616
  %1032 = vmatpush1.msra.mxu0 %v615
  %1033 = vmatprep.subr.mxu0 %v622
  %1034 = vmatpush1.msra.mxu0 %v621
  %1035 = vmatprep.subr.mxu0 %v628
  %1036 = vmatpush1.msra.mxu0 %v627
  %1037 = vmatprep.subr.mxu0 %v634
  %1038 = vmatpush1.msra.mxu0 %v633
  %1039 = vmatprep.subr.mxu0 %v640
  %1040 = vmatpush1.msra.mxu0 %v639
  %1041 = vmatprep.subr.mxu0 %v646
  %1042 = vmatpush1.msra.mxu0 %v645
  %1043 = vmatprep.subr.mxu0 %v652
  %1044 = vmatpush1.msra.mxu0 %v651
  %1045 = vmatprep.subr.mxu0 %v658
  %1046 = vmatpush1.msra.mxu0 %v657
  %1047 = vmatprep.subr.mxu0 %v664
  %1048 = vmatpush1.msra.mxu0 %v663
  %1049 = vmatprep.subr.mxu0 %v670
  %1050 = vmatpush1.msra.mxu0 %v669
  %1051 = vmatprep.subr.mxu0 %v676
  %1052 = vmatpush1.msra.mxu0 %v675
  %1053 = vmatprep.subr.mxu0 %v682
  %1054 = vmatpush1.msra.mxu0 %v681
  %1055 = vmatprep.subr.mxu0 %v688
  %1056 = vmatpush1.msra.mxu0 %v687
  %1057 = vmatprep.subr.mxu0 %v694
  %1058 = vmatpush1.msra.mxu0 %v693
  %1059 = vmatprep.subr.mxu0 %v700
  %1060 = vmatpush1.msra.mxu0 %v699
  %1061 = vmatprep.subr.mxu0 %v706
  %1062 = vmatpush1.msra.mxu0 %v705
  %1063 = vmatprep.subr.mxu0 0.0
  %1064 = vmatpush1.msra.mxu0 0.0
  %1065 = vmatprep.subr.mxu0 0.0
  %1066 = vmatpush1.msra.mxu0 0.0
  %1067 = vmatprep.subr.mxu0 0.0
  %1068 = vmatpush1.msra.mxu0 0.0
  %1069 = vmatprep.subr.mxu0 0.0
  %1070 = vmatpush1.msra.mxu0 0.0
  %1071 = vmatprep.subr.mxu0 0.0
  %1072 = vmatpush1.msra.mxu0 0.0
  %1073 = vmatprep.subr.mxu0 0.0
  %1074 = vmatpush1.msra.mxu0 0.0
  %1075 = vmatprep.subr.mxu0 0.0
  %1076 = vmatpush1.msra.mxu0 0.0
  %1077 = vmatprep.subr.mxu0 0.0
  %1078 = vmatpush1.msra.mxu0 0.0
  %1079 = vmatprep.subr.mxu0 0.0
  %1080 = vmatpush1.msra.mxu0 0.0
  %1081 = vmatprep.subr.mxu0 0.0
  %1082 = vmatpush1.msra.mxu0 0.0
  %1083 = vmatprep.subr.mxu0 0.0
  %1084 = vmatpush1.msra.mxu0 0.0
  %1085 = vmatprep.subr.mxu0 0.0
  %1086 = vmatpush1.msra.mxu0 0.0
  %1087 = vmatprep.subr.mxu0 0.0
  %1088 = vmatpush1.msra.mxu0 0.0
  %1089 = vmatprep.subr.mxu0 0.0
  %1090 = vmatpush1.msra.mxu0 0.0
  %1091 = vmatprep.subr.mxu0 0.0
  %1092 = vmatpush1.msra.mxu0 0.0
  %1093 = vmatprep.subr.mxu0 0.0
  %1094 = vmatpush1.msra.mxu0 0.0
  %1095 = vmatprep.mubr.f32.mxu0 0.0
  %1096 = vmatmul.mubr.f32.gmra.mrb[0].mxu0 %v887
  %v1097 = vpop.f32.mrb[0].mxu0
  %v1098 = vadd.f32 0.0, %v1097
  %v1099 = vpop.f32.mrb[0].mxu0
  %v1100 = vadd.f32 0.0, %v1099
  %1101 = vdwg.mxu0
  %v1102 = vadd.f32 %v607, %v956
  %v1103 = vadd.f32 %v608, %v958
  %v1104 = vadd.f32 %v609, %v1027
  %v1105 = vadd.f32 %v1029, %v852
  %v1106 = vadd.f32 %v1098, %v856
  %v1107 = vadd.f32 %v1100, %v860
  %v1108 = vadd.f32 %v1102, %v1105
  %v1109 = vxor.u32 %v1108, 2147483648
  %v1110 = vmul.f32 %v1109, 1.442695
  %v1111 = vpow.pop %v1110
  %v1112 = vadd.f32 %v1111, 1.0
  %v1113 = vrcp.pop %v1112
  %v1114 = vmul.f32 1.0, %v1113
  %v1115 = vadd.f32 %v1103, %v1106
  %v1116 = vxor.u32 %v1115, 2147483648
  %v1117 = vmul.f32 %v1116, 1.442695
  %v1118 = vpow.pop %v1117
  %v1119 = vadd.f32 %v1118, 1.0
  %v1120 = vrcp.pop %v1119
  %v1121 = vmul.f32 1.0, %v1120
  %v1122 = vmul.f32 %v1114, %v1107
  %v1123 = vadd.f32 %v1104, %v1122
  %v1124 = vtanh.pop %v1123
  %v1125 = vsub.f32 1.0, %v1121
  %v1126 = vmul.f32 %v1125, %v1124
  %v1127 = vmul.f32 %v1121, %v887
  %v1128 = vadd.f32 %v1126, %v1127
  %1129 = vst [vmem:[#allocation2 + $0x8] sm:$0xff] %v1128
  %1130 = vmatprep.subr.mxu0 %v612
  %1131 = vmatpush1.msra.mxu0 %v611
  %1132 = vmatprep.subr.mxu0 %v618
  %1133 = vmatpush1.msra.mxu0 %v617
  %1134 = vmatprep.subr.mxu0 %v624
  %1135 = vmatpush1.msra.mxu0 %v623
  %1136 = vmatprep.subr.mxu0 %v630
  %1137 = vmatpush1.msra.mxu0 %v629
  %1138 = vmatprep.subr.mxu0 %v636
  %1139 = vmatpush1.msra.mxu0 %v635
  %1140 = vmatprep.subr.mxu0 %v642
  %1141 = vmatpush1.msra.mxu0 %v641
  %1142 = vmatprep.subr.mxu0 %v648
  %1143 = vmatpush1.msra.mxu0 %v647
  %1144 = vmatprep.subr.mxu0 %v654
  %1145 = vmatpush1.msra.mxu0 %v653
  %1146 = vmatprep.subr.mxu0 %v660
  %1147 = vmatpush1.msra.mxu0 %v659
  %1148 = vmatprep.subr.mxu0 %v666
  %1149 = vmatpush1.msra.mxu0 %v665
  %1150 = vmatprep.subr.mxu0 %v672
  %1151 = vmatpush1.msra.mxu0 %v671
  %1152 = vmatprep.subr.mxu0 %v678
  %1153 = vmatpush1.msra.mxu0 %v677
  %1154 = vmatprep.subr.mxu0 %v684
  %1155 = vmatpush1.msra.mxu0 %v683
  %1156 = vmatprep.subr.mxu0 %v690
  %1157 = vmatpush1.msra.mxu0 %v689
  %1158 = vmatprep.subr.mxu0 %v696
  %1159 = vmatpush1.msra.mxu0 %v695
  %1160 = vmatprep.subr.mxu0 %v702
  %1161 = vmatpush1.msra.mxu0 %v701
  %1162 = vmatprep.subr.mxu0 0.0
  %1163 = vmatpush1.msra.mxu0 0.0
  %1164 = vmatprep.subr.mxu0 0.0
  %1165 = vmatpush1.msra.mxu0 0.0
  %1166 = vmatprep.subr.mxu0 0.0
  %1167 = vmatpush1.msra.mxu0 0.0
  %1168 = vmatprep.subr.mxu0 0.0
  %1169 = vmatpush1.msra.mxu0 0.0
  %1170 = vmatprep.subr.mxu0 0.0
  %1171 = vmatpush1.msra.mxu0 0.0
  %1172 = vmatprep.subr.mxu0 0.0
  %1173 = vmatpush1.msra.mxu0 0.0
  %1174 = vmatprep.subr.mxu0 0.0
  %1175 = vmatpush1.msra.mxu0 0.0
  %1176 = vmatprep.subr.mxu0 0.0
  %1177 = vmatpush1.msra.mxu0 0.0
  %1178 = vmatprep.subr.mxu0 0.0
  %1179 = vmatpush1.msra.mxu0 0.0
  %1180 = vmatprep.subr.mxu0 0.0
  %1181 = vmatpush1.msra.mxu0 0.0
  %1182 = vmatprep.subr.mxu0 0.0
  %1183 = vmatpush1.msra.mxu0 0.0
  %1184 = vmatprep.subr.mxu0 0.0
  %1185 = vmatpush1.msra.mxu0 0.0
  %1186 = vmatprep.subr.mxu0 0.0
  %1187 = vmatpush1.msra.mxu0 0.0
  %1188 = vmatprep.subr.mxu0 0.0
  %1189 = vmatpush1.msra.mxu0 0.0
  %1190 = vmatprep.subr.mxu0 0.0
  %1191 = vmatpush1.msra.mxu0 0.0
  %1192 = vmatprep.subr.mxu0 0.0
  %1193 = vmatpush1.msra.mxu0 0.0
  %1194 = vmatprep.mubr.f32.mxu0 0.0
  %1195 = vmatmul.mubr.f32.gmra.mrb[0].mxu0 %v1128
  %v1196 = vpop.f32.mrb[0].mxu0
  %v1197 = vadd.f32 0.0, %v1196
  %v1198 = vpop.f32.mrb[0].mxu0
  %v1199 = vadd.f32 0.0, %v1198
  %1200 = vdwg.mxu0
  %1201 = vmatprep.subr.mxu0 %v614
  %1202 = vmatpush1.msra.mxu0 %v613
  %1203 = vmatprep.subr.mxu0 %v620
  %1204 = vmatpush1.msra.mxu0 %v619
  %1205 = vmatprep.subr.mxu0 %v626
  %1206 = vmatpush1.msra.mxu0 %v625
  %1207 = vmatprep.subr.mxu0 %v632
  %1208 = vmatpush1.msra.mxu0 %v631
  %1209 = vmatprep.subr.mxu0 %v638
  %1210 = vmatpush1.msra.mxu0 %v637
  %1211 = vmatprep.subr.mxu0 %v644
  %1212 = vmatpush1.msra.mxu0 %v643
  %1213 = vmatprep.subr.mxu0 %v650
  %1214 = vmatpush1.msra.mxu0 %v649
  %1215 = vmatprep.subr.mxu0 %v656
  %1216 = vmatpush1.msra.mxu0 %v655
  %1217 = vmatprep.subr.mxu0 %v662
  %1218 = vmatpush1.msra.mxu0 %v661
  %1219 = vmatprep.subr.mxu0 %v668
  %1220 = vmatpush1.msra.mxu0 %v667
  %1221 = vmatprep.subr.mxu0 %v674
  %1222 = vmatpush1.msra.mxu0 %v673
  %1223 = vmatprep.subr.mxu0 %v680
  %1224 = vmatpush1.msra.mxu0 %v679
  %1225 = vmatprep.subr.mxu0 %v686
  %1226 = vmatpush1.msra.mxu0 %v685
  %1227 = vmatprep.subr.mxu0 %v692
  %1228 = vmatpush1.msra.mxu0 %v691
  %1229 = vmatprep.subr.mxu0 %v698
  %1230 = vmatpush1.msra.mxu0 %v697
  %1231 = vmatprep.subr.mxu0 %v704
  %1232 = vmatpush1.msra.mxu0 %v703
  %1233 = vmatprep.subr.mxu0 0.0
  %1234 = vmatpush1.msra.mxu0 0.0
  %1235 = vmatprep.subr.mxu0 0.0
  %1236 = vmatpush1.msra.mxu0 0.0
  %1237 = vmatprep.subr.mxu0 0.0
  %1238 = vmatpush1.msra.mxu0 0.0
  %1239 = vmatprep.subr.mxu0 0.0
  %1240 = vmatpush1.msra.mxu0 0.0
  %1241 = vmatprep.subr.mxu0 0.0
  %1242 = vmatpush1.msra.mxu0 0.0
  %1243 = vmatprep.subr.mxu0 0.0
  %1244 = vmatpush1.msra.mxu0 0.0
  %1245 = vmatprep.subr.mxu0 0.0
  %1246 = vmatpush1.msra.mxu0 0.0
  %1247 = vmatprep.subr.mxu0 0.0
  %1248 = vmatpush1.msra.mxu0 0.0
  %1249 = vmatprep.subr.mxu0 0.0
  %1250 = vmatpush1.msra.mxu0 0.0
  %1251 = vmatprep.subr.mxu0 0.0
  %1252 = vmatpush1.msra.mxu0 0.0
  %1253 = vmatprep.subr.mxu0 0.0
  %1254 = vmatpush1.msra.mxu0 0.0
  %1255 = vmatprep.subr.mxu0 0.0
  %1256 = vmatpush1.msra.mxu0 0.0
  %1257 = vmatprep.subr.mxu0 0.0
  %1258 = vmatpush1.msra.mxu0 0.0
  %1259 = vmatprep.subr.mxu0 0.0
  %1260 = vmatpush1.msra.mxu0 0.0
  %1261 = vmatprep.subr.mxu0 0.0
  %1262 = vmatpush1.msra.mxu0 0.0
  %1263 = vmatprep.subr.mxu0 0.0
  %1264 = vmatpush1.msra.mxu0 0.0
  %1265 = vmatprep.mubr.f32.mxu0 0.0
  %1266 = vmatmul.mubr.f32.gmra.mrb[0].mxu0 %v1128
  %v1267 = vpop.f32.mrb[0].mxu0
  %v1268 = vadd.f32 0.0, %v1267
  %v1269 = vpop.f32.mrb[0].mxu0
  %v1270 = vadd.f32 0.0, %v1269
  %1271 = vdwg.mxu0
  %1272 = vmatprep.subr.mxu0 %v616
  %1273 = vmatpush1.msra.mxu0 %v615
  %1274 = vmatprep.subr.mxu0 %v622
  %1275 = vmatpush1.msra.mxu0 %v621
  %1276 = vmatprep.subr.mxu0 %v628
  %1277 = vmatpush1.msra.mxu0 %v627
  %1278 = vmatprep.subr.mxu0 %v634
  %1279 = vmatpush1.msra.mxu0 %v633
  %1280 = vmatprep.subr.mxu0 %v640
  %1281 = vmatpush1.msra.mxu0 %v639
  %1282 = vmatprep.subr.mxu0 %v646
  %1283 = vmatpush1.msra.mxu0 %v645
  %1284 = vmatprep.subr.mxu0 %v652
  %1285 = vmatpush1.msra.mxu0 %v651
  %1286 = vmatprep.subr.mxu0 %v658
  %1287 = vmatpush1.msra.mxu0 %v657
  %1288 = vmatprep.subr.mxu0 %v664
  %1289 = vmatpush1.msra.mxu0 %v663
  %1290 = vmatprep.subr.mxu0 %v670
  %1291 = vmatpush1.msra.mxu0 %v669
  %1292 = vmatprep.subr.mxu0 %v676
  %1293 = vmatpush1.msra.mxu0 %v675
  %1294 = vmatprep.subr.mxu0 %v682
  %1295 = vmatpush1.msra.mxu0 %v681
  %1296 = vmatprep.subr.mxu0 %v688
  %1297 = vmatpush1.msra.mxu0 %v687
  %1298 = vmatprep.subr.mxu0 %v694
  %1299 = vmatpush1.msra.mxu0 %v693
  %1300 = vmatprep.subr.mxu0 %v700
  %1301 = vmatpush1.msra.mxu0 %v699
  %1302 = vmatprep.subr.mxu0 %v706
  %1303 = vmatpush1.msra.mxu0 %v705
  %1304 = vmatprep.subr.mxu0 0.0
  %1305 = vmatpush1.msra.mxu0 0.0
  %1306 = vmatprep.subr.mxu0 0.0
  %1307 = vmatpush1.msra.mxu0 0.0
  %1308 = vmatprep.subr.mxu0 0.0
  %1309 = vmatpush1.msra.mxu0 0.0
  %1310 = vmatprep.subr.mxu0 0.0
  %1311 = vmatpush1.msra.mxu0 0.0
  %1312 = vmatprep.subr.mxu0 0.0
  %1313 = vmatpush1.msra.mxu0 0.0
  %1314 = vmatprep.subr.mxu0 0.0
  %1315 = vmatpush1.msra.mxu0 0.0
  %1316 = vmatprep.subr.mxu0 0.0
  %1317 = vmatpush1.msra.mxu0 0.0
  %1318 = vmatprep.subr.mxu0 0.0
  %1319 = vmatpush1.msra.mxu0 0.0
  %1320 = vmatprep.subr.mxu0 0.0
  %1321 = vmatpush1.msra.mxu0 0.0
  %1322 = vmatprep.subr.mxu0 0.0
  %1323 = vmatpush1.msra.mxu0 0.0
  %1324 = vmatprep.subr.mxu0 0.0
  %1325 = vmatpush1.msra.mxu0 0.0
  %1326 = vmatprep.subr.mxu0 0.0
  %1327 = vmatpush1.msra.mxu0 0.0
  %1328 = vmatprep.subr.mxu0 0.0
  %1329 = vmatpush1.msra.mxu0 0.0
  %1330 = vmatprep.subr.mxu0 0.0
  %1331 = vmatpush1.msra.mxu0 0.0
  %1332 = vmatprep.subr.mxu0 0.0
  %1333 = vmatpush1.msra.mxu0 0.0
  %1334 = vmatprep.subr.mxu0 0.0
  %1335 = vmatpush1.msra.mxu0 0.0
  %1336 = vmatprep.mubr.f32.mxu0 0.0
  %1337 = vmatmul.mubr.f32.gmra.mrb[0].mxu0 %v1128
  %v1338 = vpop.f32.mrb[0].mxu0
  %v1339 = vadd.f32 0.0, %v1338
  %v1340 = vpop.f32.mrb[0].mxu0
  %v1341 = vadd.f32 0.0, %v1340
  %1342 = vdwg.mxu0
  %v1343 = vadd.f32 %v607, %v1197
  %v1344 = vadd.f32 %v608, %v1199
  %v1345 = vadd.f32 %v609, %v1268
  %v1346 = vadd.f32 %v1270, %v852
  %v1347 = vadd.f32 %v1339, %v856
  %v1348 = vadd.f32 %v1341, %v860
  %v1349 = vadd.f32 %v1343, %v1346
  %v1350 = vxor.u32 %v1349, 2147483648
  %v1351 = vmul.f32 %v1350, 1.442695
  %v1352 = vpow.pop %v1351
  %v1353 = vadd.f32 %v1352, 1.0
  %v1354 = vrcp.pop %v1353
  %v1355 = vmul.f32 1.0, %v1354
  %v1356 = vadd.f32 %v1344, %v1347
  %v1357 = vxor.u32 %v1356, 2147483648
  %v1358 = vmul.f32 %v1357, 1.442695
  %v1359 = vpow.pop %v1358
  %v1360 = vadd.f32 %v1359, 1.0
  %v1361 = vrcp.pop %v1360
  %v1362 = vmul.f32 1.0, %v1361
  %v1363 = vmul.f32 %v1355, %v1348
  %v1364 = vadd.f32 %v1345, %v1363
  %v1365 = vtanh.pop %v1364
  %v1366 = vsub.f32 1.0, %v1362
  %v1367 = vmul.f32 %v1366, %v1365
  %v1368 = vmul.f32 %v1362, %v1128
  %v1369 = vadd.f32 %v1367, %v1368
  %1370 = vst [vmem:[#allocation2 + $0x10] sm:$0xff] %v1369
  %1371 = vmatprep.subr.mxu0 %v612
  %1372 = vmatpush1.msra.mxu0 %v611
  %1373 = vmatprep.subr.mxu0 %v618
  %1374 = vmatpush1.msra.mxu0 %v617
  %1375 = vmatprep.subr.mxu0 %v624
  %1376 = vmatpush1.msra.mxu0 %v623
  %1377 = vmatprep.subr.mxu0 %v630
  %1378 = vmatpush1.msra.mxu0 %v629
  %1379 = vmatprep.subr.mxu0 %v636
  %1380 = vmatpush1.msra.mxu0 %v635
  %1381 = vmatprep.subr.mxu0 %v642
  %1382 = vmatpush1.msra.mxu0 %v641
  %1383 = vmatprep.subr.mxu0 %v648
  %1384 = vmatpush1.msra.mxu0 %v647
  %1385 = vmatprep.subr.mxu0 %v654
  %1386 = vmatpush1.msra.mxu0 %v653
  %1387 = vmatprep.subr.mxu0 %v660
  %1388 = vmatpush1.msra.mxu0 %v659
  %1389 = vmatprep.subr.mxu0 %v666
  %1390 = vmatpush1.msra.mxu0 %v665
  %1391 = vmatprep.subr.mxu0 %v672
  %1392 = vmatpush1.msra.mxu0 %v671
  %1393 = vmatprep.subr.mxu0 %v678
  %1394 = vmatpush1.msra.mxu0 %v677
  %1395 = vmatprep.subr.mxu0 %v684
  %1396 = vmatpush1.msra.mxu0 %v683
  %1397 = vmatprep.subr.mxu0 %v690
  %1398 = vmatpush1.msra.mxu0 %v689
  %1399 = vmatprep.subr.mxu0 %v696
  %1400 = vmatpush1.msra.mxu0 %v695
  %1401 = vmatprep.subr.mxu0 %v702
  %1402 = vmatpush1.msra.mxu0 %v701
  %1403 = vmatprep.subr.mxu0 0.0
  %1404 = vmatpush1.msra.mxu0 0.0
  %1405 = vmatprep.subr.mxu0 0.0
  %1406 = vmatpush1.msra.mxu0 0.0
  %1407 = vmatprep.subr.mxu0 0.0
  %1408 = vmatpush1.msra.mxu0 0.0
  %1409 = vmatprep.subr.mxu0 0.0
  %1410 = vmatpush1.msra.mxu0 0.0
  %1411 = vmatprep.subr.mxu0 0.0
  %1412 = vmatpush1.msra.mxu0 0.0
  %1413 = vmatprep.subr.mxu0 0.0
  %1414 = vmatpush1.msra.mxu0 0.0
  %1415 = vmatprep.subr.mxu0 0.0
  %1416 = vmatpush1.msra.mxu0 0.0
  %1417 = vmatprep.subr.mxu0 0.0
  %1418 = vmatpush1.msra.mxu0 0.0
  %1419 = vmatprep.subr.mxu0 0.0
  %1420 = vmatpush1.msra.mxu0 0.0
  %1421 = vmatprep.subr.mxu0 0.0
  %1422 = vmatpush1.msra.mxu0 0.0
  %1423 = vmatprep.subr.mxu0 0.0
  %1424 = vmatpush1.msra.mxu0 0.0
  %1425 = vmatprep.subr.mxu0 0.0
  %1426 = vmatpush1.msra.mxu0 0.0
  %1427 = vmatprep.subr.mxu0 0.0
  %1428 = vmatpush1.msra.mxu0 0.0
  %1429 = vmatprep.subr.mxu0 0.0
  %1430 = vmatpush1.msra.mxu0 0.0
  %1431 = vmatprep.subr.mxu0 0.0
  %1432 = vmatpush1.msra.mxu0 0.0
  %1433 = vmatprep.subr.mxu0 0.0
  %1434 = vmatpush1.msra.mxu0 0.0
  %1435 = vmatprep.mubr.f32.mxu0 0.0
  %1436 = vmatmul.mubr.f32.gmra.mrb[0].mxu0 %v1369
  %v1437 = vpop.f32.mrb[0].mxu0
  %v1438 = vadd.f32 0.0, %v1437
  %v1439 = vpop.f32.mrb[0].mxu0
  %v1440 = vadd.f32 0.0, %v1439
  %1441 = vdwg.mxu0
  %1442 = vmatprep.subr.mxu0 %v614
  %1443 = vmatpush1.msra.mxu0 %v613
  %1444 = vmatprep.subr.mxu0 %v620
  %1445 = vmatpush1.msra.mxu0 %v619
  %1446 = vmatprep.subr.mxu0 %v626
  %1447 = vmatpush1.msra.mxu0 %v625
  %1448 = vmatprep.subr.mxu0 %v632
  %1449 = vmatpush1.msra.mxu0 %v631
  %1450 = vmatprep.subr.mxu0 %v638
  %1451 = vmatpush1.msra.mxu0 %v637
  %1452 = vmatprep.subr.mxu0 %v644
  %1453 = vmatpush1.msra.mxu0 %v643
  %1454 = vmatprep.subr.mxu0 %v650
  %1455 = vmatpush1.msra.mxu0 %v649
  %1456 = vmatprep.subr.mxu0 %v656
  %1457 = vmatpush1.msra.mxu0 %v655
  %1458 = vmatprep.subr.mxu0 %v662
  %1459 = vmatpush1.msra.mxu0 %v661
  %1460 = vmatprep.subr.mxu0 %v668
  %1461 = vmatpush1.msra.mxu0 %v667
  %1462 = vmatprep.subr.mxu0 %v674
  %1463 = vmatpush1.msra.mxu0 %v673
  %1464 = vmatprep.subr.mxu0 %v680
  %1465 = vmatpush1.msra.mxu0 %v679
  %1466 = vmatprep.subr.mxu0 %v686
  %1467 = vmatpush1.msra.mxu0 %v685
  %1468 = vmatprep.subr.mxu0 %v692
  %1469 = vmatpush1.msra.mxu0 %v691
  %1470 = vmatprep.subr.mxu0 %v698
  %1471 = vmatpush1.msra.mxu0 %v697
  %1472 = vmatprep.subr.mxu0 %v704
  %1473 = vmatpush1.msra.mxu0 %v703
  %1474 = vmatprep.subr.mxu0 0.0
  %1475 = vmatpush1.msra.mxu0 0.0
  %1476 = vmatprep.subr.mxu0 0.0
  %1477 = vmatpush1.msra.mxu0 0.0
  %1478 = vmatprep.subr.mxu0 0.0
  %1479 = vmatpush1.msra.mxu0 0.0
  %1480 = vmatprep.subr.mxu0 0.0
  %1481 = vmatpush1.msra.mxu0 0.0
  %1482 = vmatprep.subr.mxu0 0.0
  %1483 = vmatpush1.msra.mxu0 0.0
  %1484 = vmatprep.subr.mxu0 0.0
  %1485 = vmatpush1.msra.mxu0 0.0
  %1486 = vmatprep.subr.mxu0 0.0
  %1487 = vmatpush1.msra.mxu0 0.0
  %1488 = vmatprep.subr.mxu0 0.0
  %1489 = vmatpush1.msra.mxu0 0.0
  %1490 = vmatprep.subr.mxu0 0.0
  %1491 = vmatpush1.msra.mxu0 0.0
  %1492 = vmatprep.subr.mxu0 0.0
  %1493 = vmatpush1.msra.mxu0 0.0
  %1494 = vmatprep.subr.mxu0 0.0
  %1495 = vmatpush1.msra.mxu0 0.0
  %1496 = vmatprep.subr.mxu0 0.0
  %1497 = vmatpush1.msra.mxu0 0.0
  %1498 = vmatprep.subr.mxu0 0.0
  %1499 = vmatpush1.msra.mxu0 0.0
  %1500 = vmatprep.subr.mxu0 0.0
  %1501 = vmatpush1.msra.mxu0 0.0
  %1502 = vmatprep.subr.mxu0 0.0
  %1503 = vmatpush1.msra.mxu0 0.0
  %1504 = vmatprep.subr.mxu0 0.0
  %1505 = vmatpush1.msra.mxu0 0.0
  %1506 = vmatprep.mubr.f32.mxu0 0.0
  %1507 = vmatmul.mubr.f32.gmra.mrb[0].mxu0 %v1369
  %v1508 = vpop.f32.mrb[0].mxu0
  %v1509 = vadd.f32 0.0, %v1508
  %v1510 = vpop.f32.mrb[0].mxu0
  %v1511 = vadd.f32 0.0, %v1510
  %1512 = vdwg.mxu0
  %1513 = vmatprep.subr.mxu0 %v616
  %1514 = vmatpush1.msra.mxu0 %v615
  %1515 = vmatprep.subr.mxu0 %v622
  %1516 = vmatpush1.msra.mxu0 %v621
  %1517 = vmatprep.subr.mxu0 %v628
  %1518 = vmatpush1.msra.mxu0 %v627
  %1519 = vmatprep.subr.mxu0 %v634
  %1520 = vmatpush1.msra.mxu0 %v633
  %1521 = vmatprep.subr.mxu0 %v640
  %1522 = vmatpush1.msra.mxu0 %v639
  %1523 = vmatprep.subr.mxu0 %v646
  %1524 = vmatpush1.msra.mxu0 %v645
  %1525 = vmatprep.subr.mxu0 %v652
  %1526 = vmatpush1.msra.mxu0 %v651
  %1527 = vmatprep.subr.mxu0 %v658
  %1528 = vmatpush1.msra.mxu0 %v657
  %1529 = vmatprep.subr.mxu0 %v664
  %1530 = vmatpush1.msra.mxu0 %v663
  %1531 = vmatprep.subr.mxu0 %v670
  %1532 = vmatpush1.msra.mxu0 %v669
  %1533 = vmatprep.subr.mxu0 %v676
  %1534 = vmatpush1.msra.mxu0 %v675
  %1535 = vmatprep.subr.mxu0 %v682
  %1536 = vmatpush1.msra.mxu0 %v681
  %1537 = vmatprep.subr.mxu0 %v688
  %1538 = vmatpush1.msra.mxu0 %v687
  %1539 = vmatprep.subr.mxu0 %v694
  %1540 = vmatpush1.msra.mxu0 %v693
  %1541 = vmatprep.subr.mxu0 %v700
  %1542 = vmatpush1.msra.mxu0 %v699
  %1543 = vmatprep.subr.mxu0 %v706
  %1544 = vmatpush1.msra.mxu0 %v705
  %1545 = vmatprep.subr.mxu0 0.0
  %1546 = vmatpush1.msra.mxu0 0.0
  %1547 = vmatprep.subr.mxu0 0.0
  %1548 = vmatpush1.msra.mxu0 0.0
  %1549 = vmatprep.subr.mxu0 0.0
  %1550 = vmatpush1.msra.mxu0 0.0
  %1551 = vmatprep.subr.mxu0 0.0
  %1552 = vmatpush1.msra.mxu0 0.0
  %1553 = vmatprep.subr.mxu0 0.0
  %1554 = vmatpush1.msra.mxu0 0.0
  %1555 = vmatprep.subr.mxu0 0.0
  %1556 = vmatpush1.msra.mxu0 0.0
  %1557 = vmatprep.subr.mxu0 0.0
  %1558 = vmatpush1.msra.mxu0 0.0
  %1559 = vmatprep.subr.mxu0 0.0
  %1560 = vmatpush1.msra.mxu0 0.0
  %1561 = vmatprep.subr.mxu0 0.0
  %1562 = vmatpush1.msra.mxu0 0.0
  %1563 = vmatprep.subr.mxu0 0.0
  %1564 = vmatpush1.msra.mxu0 0.0
  %1565 = vmatprep.subr.mxu0 0.0
  %1566 = vmatpush1.msra.mxu0 0.0
  %1567 = vmatprep.subr.mxu0 0.0
  %1568 = vmatpush1.msra.mxu0 0.0
  %1569 = vmatprep.subr.mxu0 0.0
  %1570 = vmatpush1.msra.mxu0 0.0
  %1571 = vmatprep.subr.mxu0 0.0
  %1572 = vmatpush1.msra.mxu0 0.0
  %1573 = vmatprep.subr.mxu0 0.0
  %1574 = vmatpush1.msra.mxu0 0.0
  %1575 = vmatprep.subr.mxu0 0.0
  %1576 = vmatpush1.msra.mxu0 0.0
  %1577 = vmatprep.mubr.f32.mxu0 0.0
  %1578 = vmatmul.mubr.f32.gmra.mrb[0].mxu0 %v1369
  %v1579 = vpop.f32.mrb[0].mxu0
  %v1580 = vadd.f32 0.0, %v1579
  %v1581 = vpop.f32.mrb[0].mxu0
  %v1582 = vadd.f32 0.0, %v1581
  %1583 = vdwg.mxu0
  %v1584 = vadd.f32 %v607, %v1438
  %v1585 = vadd.f32 %v608, %v1440
  %v1586 = vadd.f32 %v609, %v1509
  %v1587 = vadd.f32 %v1511, %v852
  %v1588 = vadd.f32 %v1580, %v856
  %v1589 = vadd.f32 %v1582, %v860
  %v1590 = vadd.f32 %v1584, %v1587
  %v1591 = vxor.u32 %v1590, 2147483648
  %v1592 = vmul.f32 %v1591, 1.442695
  %v1593 = vpow.pop %v1592
  %v1594 = vadd.f32 %v1593, 1.0
  %v1595 = vrcp.pop %v1594
  %v1596 = vmul.f32 1.0, %v1595
  %v1597 = vadd.f32 %v1585, %v1588
  %v1598 = vxor.u32 %v1597, 2147483648
  %v1599 = vmul.f32 %v1598, 1.442695
  %v1600 = vpow.pop %v1599
  %v1601 = vadd.f32 %v1600, 1.0
  %v1602 = vrcp.pop %v1601
  %v1603 = vmul.f32 1.0, %v1602
  %v1604 = vmul.f32 %v1596, %v1589
  %v1605 = vadd.f32 %v1586, %v1604
  %v1606 = vtanh.pop %v1605
  %v1607 = vsub.f32 1.0, %v1603
  %v1608 = vmul.f32 %v1607, %v1606
  %v1609 = vmul.f32 %v1603, %v1369
  %v1610 = vadd.f32 %v1608, %v1609
  %1611 = vst [vmem:[#allocation2 + $0x18] sm:$0xff] %v1610
  %v1612 = vld [vmem:[#allocation2] sm:$0xff]
  %v1613 = vld [vmem:[#allocation2 + $0x8] sm:$0xff]
  %v1614 = vld [vmem:[#allocation2 + $0x10] sm:$0xff]
  %v1615 = vld [vmem:[#allocation2 + $0x18] sm:$0xff]
  %v1616 = vpack.c.bf16 %v1613, %v1612
  %v1617 = vpack.c.bf16 %v1615, %v1614
  %v1618 = vld [vmem:[%s12] sm:$0xff]
  %v1619 = vld [vmem:[%s12 + $0x8] sm:$0xff]
  %v1620 = vld [vmem:[%s12 + $0x10] sm:$0xff]
  %v1621 = vld [vmem:[%s12 + $0x18] sm:$0xff]
  %v1622 = vld [vmem:[%s12 + $0x20] sm:$0xff]
  %v1623 = vld [vmem:[%s12 + $0x28] sm:$0xff]
  %v1624 = vld [vmem:[%s12 + $0x30] sm:$0xff]
  %v1625 = vld [vmem:[%s12 + $0x38] sm:$0xff]
  %v1626 = vld [vmem:[%s12 + $0x40] sm:$0xff]
  %v1627 = vld [vmem:[%s12 + $0x48] sm:$0xff]
  %v1628 = vld [vmem:[%s12 + $0x50] sm:$0xff]
  %v1629 = vld [vmem:[%s12 + $0x58] sm:$0xff]
  %v1630 = vld [vmem:[%s12 + $0x60] sm:$0xff]
  %v1631 = vld [vmem:[%s12 + $0x68] sm:$0xff]
  %v1632 = vld [vmem:[%s12 + $0x70] sm:$0xff]
  %v1633 = vld [vmem:[%s12 + $0x78] sm:$0xff]
  %v1634 = vld [vmem:[%s12 + $0x80] sm:$0xff]
  %v1635 = vld [vmem:[%s12 + $0x88] sm:$0xff]
  %v1636 = vld [vmem:[%s12 + $0x90] sm:$0xf]
  %v1637 = vld [vmem:[%s12 + $0x94] sm:$0xff]
  %v1638 = vld [vmem:[%s12 + $0x9c] sm:$0xff]
  %v1639 = vld [vmem:[%s12 + $0xa4] sm:$0xff]
  %v1640 = vld [vmem:[%s12 + $0xac] sm:$0xff]
  %v1641 = vld [vmem:[%s12 + $0xb4] sm:$0xff]
  %v1642 = vld [vmem:[%s12 + $0xbc] sm:$0xff]
  %v1643 = vld [vmem:[%s12 + $0xc4] sm:$0xff]
  %v1644 = vld [vmem:[%s12 + $0xcc] sm:$0xff]
  %v1645 = vld [vmem:[%s12 + $0xd4] sm:$0xff]
  %v1646 = vld [vmem:[%s12 + $0xdc] sm:$0xff]
  %v1647 = vld [vmem:[%s12 + $0xe4] sm:$0xff]
  %v1648 = vld [vmem:[%s12 + $0xec] sm:$0xff]
  %v1649 = vld [vmem:[%s12 + $0xf4] sm:$0xff]
  %v1650 = vld [vmem:[%s12 + $0xfc] sm:$0xff]
  %v1651 = vld [vmem:[%s12 + $0x104] sm:$0xff]
  %v1652 = vld [vmem:[%s12 + $0x10c] sm:$0xff]
  %v1653 = vld [vmem:[%s12 + $0x114] sm:$0xff]
  %v1654 = vld [vmem:[%s12 + $0x11c] sm:$0xff]
  %v1655 = vld [vmem:[%s12 + $0x124] sm:$0xf]
  %v1656 = vld [vmem:[%s12 + $0x128] sm:$0xff]
  %v1657 = vld [vmem:[%s12 + $0x130] sm:$0xff]
  %v1658 = vld [vmem:[%s12 + $0x138] sm:$0xff]
  %v1659 = vld [vmem:[%s12 + $0x140] sm:$0xff]
  %v1660 = vld [vmem:[%s12 + $0x148] sm:$0xff]
  %v1661 = vld [vmem:[%s12 + $0x150] sm:$0xff]
  %v1662 = vld [vmem:[%s12 + $0x158] sm:$0xff]
  %v1663 = vld [vmem:[%s12 + $0x160] sm:$0xff]
  %v1664 = vld [vmem:[%s12 + $0x168] sm:$0xff]
  %v1665 = vld [vmem:[%s12 + $0x170] sm:$0xff]
  %v1666 = vld [vmem:[%s12 + $0x178] sm:$0xff]
  %v1667 = vld [vmem:[%s12 + $0x180] sm:$0xff]
  %v1668 = vld [vmem:[%s12 + $0x188] sm:$0xff]
  %v1669 = vld [vmem:[%s12 + $0x190] sm:$0xff]
  %v1670 = vld [vmem:[%s12 + $0x198] sm:$0xff]
  %v1671 = vld [vmem:[%s12 + $0x1a0] sm:$0xff]
  %v1672 = vld [vmem:[%s12 + $0x1a8] sm:$0xff]
  %v1673 = vld [vmem:[%s12 + $0x1b0] sm:$0xff]
  %v1674 = vld [vmem:[%s12 + $0x1b8] sm:$0xf]
  %v1675 = vld [vmem:[%s12 + $0x1bc] sm:$0xff]
  %v1676 = vld [vmem:[%s12 + $0x1c4] sm:$0xff]
  %v1677 = vld [vmem:[%s12 + $0x1cc] sm:$0xff]
  %v1678 = vld [vmem:[%s12 + $0x1d4] sm:$0xff]
  %v1679 = vld [vmem:[%s12 + $0x1dc] sm:$0xff]
  %v1680 = vld [vmem:[%s12 + $0x1e4] sm:$0xff]
  %v1681 = vld [vmem:[%s12 + $0x1ec] sm:$0xff]
  %v1682 = vld [vmem:[%s12 + $0x1f4] sm:$0xff]
  %v1683 = vld [vmem:[%s12 + $0x1fc] sm:$0xff]
  %v1684 = vld [vmem:[%s12 + $0x204] sm:$0xff]
  %v1685 = vld [vmem:[%s12 + $0x20c] sm:$0xff]
  %v1686 = vld [vmem:[%s12 + $0x214] sm:$0xff]
  %v1687 = vld [vmem:[%s12 + $0x21c] sm:$0xff]
  %v1688 = vld [vmem:[%s12 + $0x224] sm:$0xff]
  %v1689 = vld [vmem:[%s12 + $0x22c] sm:$0xff]
  %v1690 = vld [vmem:[%s12 + $0x234] sm:$0xff]
  %v1691 = vld [vmem:[%s12 + $0x23c] sm:$0xff]
  %v1692 = vld [vmem:[%s12 + $0x244] sm:$0xff]
  %v1693 = vld [vmem:[%s12 + $0x24c] sm:$0xf]
  %v1694 = vld [vmem:[%s12 + $0x250] sm:$0xff]
  %v1695 = vld [vmem:[%s12 + $0x258] sm:$0xff]
  %v1696 = vld [vmem:[%s12 + $0x260] sm:$0xff]
  %v1697 = vld [vmem:[%s12 + $0x268] sm:$0xff]
  %v1698 = vld [vmem:[%s12 + $0x270] sm:$0xff]
  %v1699 = vld [vmem:[%s12 + $0x278] sm:$0xff]
  %v1700 = vld [vmem:[%s12 + $0x280] sm:$0xff]
  %v1701 = vld [vmem:[%s12 + $0x288] sm:$0xff]
  %v1702 = vld [vmem:[%s12 + $0x290] sm:$0xff]
  %v1703 = vld [vmem:[%s12 + $0x298] sm:$0xff]
  %v1704 = vld [vmem:[%s12 + $0x2a0] sm:$0xff]
  %v1705 = vld [vmem:[%s12 + $0x2a8] sm:$0xff]
  %v1706 = vld [vmem:[%s12 + $0x2b0] sm:$0xff]
  %v1707 = vld [vmem:[%s12 + $0x2b8] sm:$0xff]
  %v1708 = vld [vmem:[%s12 + $0x2c0] sm:$0xff]
  %v1709 = vld [vmem:[%s12 + $0x2c8] sm:$0xff]
  %v1710 = vld [vmem:[%s12 + $0x2d0] sm:$0xff]
  %v1711 = vld [vmem:[%s12 + $0x2d8] sm:$0xff]
  %v1712 = vld [vmem:[%s12 + $0x2e0] sm:$0xf]
  %v1713 = vld [vmem:[%s12 + $0x2e4] sm:$0xff]
  %v1714 = vld [vmem:[%s12 + $0x2ec] sm:$0xff]
  %v1715 = vld [vmem:[%s12 + $0x2f4] sm:$0xff]
  %v1716 = vld [vmem:[%s12 + $0x2fc] sm:$0xff]
  %v1717 = vld [vmem:[%s12 + $0x304] sm:$0xff]
  %v1718 = vld [vmem:[%s12 + $0x30c] sm:$0xff]
  %v1719 = vld [vmem:[%s12 + $0x314] sm:$0xff]
  %v1720 = vld [vmem:[%s12 + $0x31c] sm:$0xff]
  %v1721 = vld [vmem:[%s12 + $0x324] sm:$0xff]
  %v1722 = vld [vmem:[%s12 + $0x32c] sm:$0xff]
  %v1723 = vld [vmem:[%s12 + $0x334] sm:$0xff]
  %v1724 = vld [vmem:[%s12 + $0x33c] sm:$0xff]
  %v1725 = vld [vmem:[%s12 + $0x344] sm:$0xff]
  %v1726 = vld [vmem:[%s12 + $0x34c] sm:$0xff]
  %v1727 = vld [vmem:[%s12 + $0x354] sm:$0xff]
  %v1728 = vld [vmem:[%s12 + $0x35c] sm:$0xff]
  %v1729 = vld [vmem:[%s12 + $0x364] sm:$0xff]
  %v1730 = vld [vmem:[%s12 + $0x36c] sm:$0xff]
  %v1731 = vld [vmem:[%s12 + $0x374] sm:$0xf]
  %v1732 = vld [vmem:[%s12 + $0x378] sm:$0xff]
  %v1733 = vld [vmem:[%s12 + $0x380] sm:$0xff]
  %v1734 = vld [vmem:[%s12 + $0x388] sm:$0xff]
  %v1735 = vld [vmem:[%s12 + $0x390] sm:$0xff]
  %v1736 = vld [vmem:[%s12 + $0x398] sm:$0xff]
  %v1737 = vld [vmem:[%s12 + $0x3a0] sm:$0xff]
  %v1738 = vld [vmem:[%s12 + $0x3a8] sm:$0xff]
  %v1739 = vld [vmem:[%s12 + $0x3b0] sm:$0xff]
  %v1740 = vld [vmem:[%s12 + $0x3b8] sm:$0xff]
  %v1741 = vld [vmem:[%s12 + $0x3c0] sm:$0xff]
  %v1742 = vld [vmem:[%s12 + $0x3c8] sm:$0xff]
  %v1743 = vld [vmem:[%s12 + $0x3d0] sm:$0xff]
  %v1744 = vld [vmem:[%s12 + $0x3d8] sm:$0xff]
  %v1745 = vld [vmem:[%s12 + $0x3e0] sm:$0xff]
  %v1746 = vld [vmem:[%s12 + $0x3e8] sm:$0xff]
  %v1747 = vld [vmem:[%s12 + $0x3f0] sm:$0xff]
  %v1748 = vld [vmem:[%s12 + $0x3f8] sm:$0xff]
  %v1749 = vld [vmem:[%s12 + $0x400] sm:$0xff]
  %v1750 = vld [vmem:[%s12 + $0x408] sm:$0xf]
  %v1751 = vld [vmem:[%s12 + $0x40c] sm:$0xff]
  %v1752 = vld [vmem:[%s12 + $0x414] sm:$0xff]
  %v1753 = vld [vmem:[%s12 + $0x41c] sm:$0xff]
  %v1754 = vld [vmem:[%s12 + $0x424] sm:$0xff]
  %v1755 = vld [vmem:[%s12 + $0x42c] sm:$0xff]
  %v1756 = vld [vmem:[%s12 + $0x434] sm:$0xff]
  %v1757 = vld [vmem:[%s12 + $0x43c] sm:$0xff]
  %v1758 = vld [vmem:[%s12 + $0x444] sm:$0xff]
  %v1759 = vld [vmem:[%s12 + $0x44c] sm:$0xff]
  %v1760 = vld [vmem:[%s12 + $0x454] sm:$0xff]
  %v1761 = vld [vmem:[%s12 + $0x45c] sm:$0xff]
  %v1762 = vld [vmem:[%s12 + $0x464] sm:$0xff]
  %v1763 = vld [vmem:[%s12 + $0x46c] sm:$0xff]
  %v1764 = vld [vmem:[%s12 + $0x474] sm:$0xff]
  %v1765 = vld [vmem:[%s12 + $0x47c] sm:$0xff]
  %v1766 = vld [vmem:[%s12 + $0x484] sm:$0xff]
  %v1767 = vld [vmem:[%s12 + $0x48c] sm:$0xff]
  %v1768 = vld [vmem:[%s12 + $0x494] sm:$0xff]
  %v1769 = vld [vmem:[%s12 + $0x49c] sm:$0xf]
  %v1770 = vld [vmem:[%s12 + $0x4a0] sm:$0xff]
  %v1771 = vld [vmem:[%s12 + $0x4a8] sm:$0xff]
  %v1772 = vld [vmem:[%s12 + $0x4b0] sm:$0xff]
  %v1773 = vld [vmem:[%s12 + $0x4b8] sm:$0xff]
  %v1774 = vld [vmem:[%s12 + $0x4c0] sm:$0xff]
  %v1775 = vld [vmem:[%s12 + $0x4c8] sm:$0xff]
  %v1776 = vld [vmem:[%s12 + $0x4d0] sm:$0xff]
  %v1777 = vld [vmem:[%s12 + $0x4d8] sm:$0xff]
  %v1778 = vld [vmem:[%s12 + $0x4e0] sm:$0xff]
  %v1779 = vld [vmem:[%s12 + $0x4e8] sm:$0xff]
  %v1780 = vld [vmem:[%s12 + $0x4f0] sm:$0xff]
  %v1781 = vld [vmem:[%s12 + $0x4f8] sm:$0xff]
  %v1782 = vld [vmem:[%s12 + $0x500] sm:$0xff]
  %v1783 = vld [vmem:[%s12 + $0x508] sm:$0xff]
  %v1784 = vld [vmem:[%s12 + $0x510] sm:$0xff]
  %v1785 = vld [vmem:[%s12 + $0x518] sm:$0xff]
  %v1786 = vld [vmem:[%s12 + $0x520] sm:$0xff]
  %v1787 = vld [vmem:[%s12 + $0x528] sm:$0xff]
  %v1788 = vld [vmem:[%s12 + $0x530] sm:$0xf]
  %v1789 = vld [vmem:[%s12 + $0x534] sm:$0xff]
  %v1790 = vld [vmem:[%s12 + $0x53c] sm:$0xff]
  %v1791 = vld [vmem:[%s12 + $0x544] sm:$0xff]
  %v1792 = vld [vmem:[%s12 + $0x54c] sm:$0xff]
  %v1793 = vld [vmem:[%s12 + $0x554] sm:$0xff]
  %v1794 = vld [vmem:[%s12 + $0x55c] sm:$0xff]
  %v1795 = vld [vmem:[%s12 + $0x564] sm:$0xff]
  %v1796 = vld [vmem:[%s12 + $0x56c] sm:$0xff]
  %v1797 = vld [vmem:[%s12 + $0x574] sm:$0xff]
  %v1798 = vld [vmem:[%s12 + $0x57c] sm:$0xff]
  %v1799 = vld [vmem:[%s12 + $0x584] sm:$0xff]
  %v1800 = vld [vmem:[%s12 + $0x58c] sm:$0xff]
  %v1801 = vld [vmem:[%s12 + $0x594] sm:$0xff]
  %v1802 = vld [vmem:[%s12 + $0x59c] sm:$0xff]
  %v1803 = vld [vmem:[%s12 + $0x5a4] sm:$0xff]
  %v1804 = vld [vmem:[%s12 + $0x5ac] sm:$0xff]
  %v1805 = vld [vmem:[%s12 + $0x5b4] sm:$0xff]
  %v1806 = vld [vmem:[%s12 + $0x5bc] sm:$0xff]
  %v1807 = vld [vmem:[%s12 + $0x5c4] sm:$0xf]
  %v1808 = vld [vmem:[%s12 + $0x5c8] sm:$0xff]
  %v1809 = vld [vmem:[%s12 + $0x5d0] sm:$0xff]
  %v1810 = vld [vmem:[%s12 + $0x5d8] sm:$0xff]
  %v1811 = vld [vmem:[%s12 + $0x5e0] sm:$0xff]
  %v1812 = vld [vmem:[%s12 + $0x5e8] sm:$0xff]
  %v1813 = vld [vmem:[%s12 + $0x5f0] sm:$0xff]
  %v1814 = vld [vmem:[%s12 + $0x5f8] sm:$0xff]
  %v1815 = vld [vmem:[%s12 + $0x600] sm:$0xff]
  %v1816 = vld [vmem:[%s12 + $0x608] sm:$0xff]
  %v1817 = vld [vmem:[%s12 + $0x610] sm:$0xff]
  %v1818 = vld [vmem:[%s12 + $0x618] sm:$0xff]
  %v1819 = vld [vmem:[%s12 + $0x620] sm:$0xff]
  %v1820 = vld [vmem:[%s12 + $0x628] sm:$0xff]
  %v1821 = vld [vmem:[%s12 + $0x630] sm:$0xff]
  %v1822 = vld [vmem:[%s12 + $0x638] sm:$0xff]
  %v1823 = vld [vmem:[%s12 + $0x640] sm:$0xff]
  %v1824 = vld [vmem:[%s12 + $0x648] sm:$0xff]
  %v1825 = vld [vmem:[%s12 + $0x650] sm:$0xff]
  %v1826 = vld [vmem:[%s12 + $0x658] sm:$0xf]
  %v1827 = vld [vmem:[%s12 + $0x65c] sm:$0xff]
  %v1828 = vld [vmem:[%s12 + $0x664] sm:$0xff]
  %v1829 = vld [vmem:[%s12 + $0x66c] sm:$0xff]
  %v1830 = vld [vmem:[%s12 + $0x674] sm:$0xff]
  %v1831 = vld [vmem:[%s12 + $0x67c] sm:$0xff]
  %v1832 = vld [vmem:[%s12 + $0x684] sm:$0xff]
  %v1833 = vld [vmem:[%s12 + $0x68c] sm:$0xff]
  %v1834 = vld [vmem:[%s12 + $0x694] sm:$0xff]
  %v1835 = vld [vmem:[%s12 + $0x69c] sm:$0xff]
  %v1836 = vld [vmem:[%s12 + $0x6a4] sm:$0xff]
  %v1837 = vld [vmem:[%s12 + $0x6ac] sm:$0xff]
  %v1838 = vld [vmem:[%s12 + $0x6b4] sm:$0xff]
  %v1839 = vld [vmem:[%s12 + $0x6bc] sm:$0xff]
  %v1840 = vld [vmem:[%s12 + $0x6c4] sm:$0xff]
  %v1841 = vld [vmem:[%s12 + $0x6cc] sm:$0xff]
  %v1842 = vld [vmem:[%s12 + $0x6d4] sm:$0xff]
  %v1843 = vld [vmem:[%s12 + $0x6dc] sm:$0xff]
  %v1844 = vld [vmem:[%s12 + $0x6e4] sm:$0xff]
  %v1845 = vld [vmem:[%s12 + $0x6ec] sm:$0xf]
  %v1846 = vld [vmem:[%s12 + $0x6f0] sm:$0xff]
  %v1847 = vld [vmem:[%s12 + $0x6f8] sm:$0xff]
  %v1848 = vld [vmem:[%s12 + $0x700] sm:$0xff]
  %v1849 = vld [vmem:[%s12 + $0x708] sm:$0xff]
  %v1850 = vld [vmem:[%s12 + $0x710] sm:$0xff]
  %v1851 = vld [vmem:[%s12 + $0x718] sm:$0xff]
  %v1852 = vld [vmem:[%s12 + $0x720] sm:$0xff]
  %v1853 = vld [vmem:[%s12 + $0x728] sm:$0xff]
  %v1854 = vld [vmem:[%s12 + $0x730] sm:$0xff]
  %v1855 = vld [vmem:[%s12 + $0x738] sm:$0xff]
  %v1856 = vld [vmem:[%s12 + $0x740] sm:$0xff]
  %v1857 = vld [vmem:[%s12 + $0x748] sm:$0xff]
  %v1858 = vld [vmem:[%s12 + $0x750] sm:$0xff]
  %v1859 = vld [vmem:[%s12 + $0x758] sm:$0xff]
  %v1860 = vld [vmem:[%s12 + $0x760] sm:$0xff]
  %v1861 = vld [vmem:[%s12 + $0x768] sm:$0xff]
  %v1862 = vld [vmem:[%s12 + $0x770] sm:$0xff]
  %v1863 = vld [vmem:[%s12 + $0x778] sm:$0xff]
  %v1864 = vld [vmem:[%s12 + $0x780] sm:$0xf]
  %v1865 = vld [vmem:[%s12 + $0x784] sm:$0xff]
  %v1866 = vld [vmem:[%s12 + $0x78c] sm:$0xff]
  %v1867 = vld [vmem:[%s12 + $0x794] sm:$0xff]
  %v1868 = vld [vmem:[%s12 + $0x79c] sm:$0xff]
  %v1869 = vld [vmem:[%s12 + $0x7a4] sm:$0xff]
  %v1870 = vld [vmem:[%s12 + $0x7ac] sm:$0xff]
  %v1871 = vld [vmem:[%s12 + $0x7b4] sm:$0xff]
  %v1872 = vld [vmem:[%s12 + $0x7bc] sm:$0xff]
  %v1873 = vld [vmem:[%s12 + $0x7c4] sm:$0xff]
  %v1874 = vld [vmem:[%s12 + $0x7cc] sm:$0xff]
  %v1875 = vld [vmem:[%s12 + $0x7d4] sm:$0xff]
  %v1876 = vld [vmem:[%s12 + $0x7dc] sm:$0xff]
  %v1877 = vld [vmem:[%s12 + $0x7e4] sm:$0xff]
  %v1878 = vld [vmem:[%s12 + $0x7ec] sm:$0xff]
  %v1879 = vld [vmem:[%s12 + $0x7f4] sm:$0xff]
  %v1880 = vld [vmem:[%s12 + $0x7fc] sm:$0xff]
  %v1881 = vld [vmem:[%s12 + $0x804] sm:$0xff]
  %v1882 = vld [vmem:[%s12 + $0x80c] sm:$0xff]
  %v1883 = vld [vmem:[%s12 + $0x814] sm:$0xf]
  %v1884 = vld [vmem:[%s12 + $0x818] sm:$0xff]
  %v1885 = vld [vmem:[%s12 + $0x820] sm:$0xff]
  %v1886 = vld [vmem:[%s12 + $0x828] sm:$0xff]
  %v1887 = vld [vmem:[%s12 + $0x830] sm:$0xff]
  %v1888 = vld [vmem:[%s12 + $0x838] sm:$0xff]
  %v1889 = vld [vmem:[%s12 + $0x840] sm:$0xff]
  %v1890 = vld [vmem:[%s12 + $0x848] sm:$0xff]
  %v1891 = vld [vmem:[%s12 + $0x850] sm:$0xff]
  %v1892 = vld [vmem:[%s12 + $0x858] sm:$0xff]
  %v1893 = vld [vmem:[%s12 + $0x860] sm:$0xff]
  %v1894 = vld [vmem:[%s12 + $0x868] sm:$0xff]
  %v1895 = vld [vmem:[%s12 + $0x870] sm:$0xff]
  %v1896 = vld [vmem:[%s12 + $0x878] sm:$0xff]
  %v1897 = vld [vmem:[%s12 + $0x880] sm:$0xff]
  %v1898 = vld [vmem:[%s12 + $0x888] sm:$0xff]
  %v1899 = vld [vmem:[%s12 + $0x890] sm:$0xff]
  %v1900 = vld [vmem:[%s12 + $0x898] sm:$0xff]
  %v1901 = vld [vmem:[%s12 + $0x8a0] sm:$0xff]
  %v1902 = vld [vmem:[%s12 + $0x8a8] sm:$0xf]
  %v1903 = vld [vmem:[%s12 + $0x8ac] sm:$0xff]
  %v1904 = vld [vmem:[%s12 + $0x8b4] sm:$0xff]
  %v1905 = vld [vmem:[%s12 + $0x8bc] sm:$0xff]
  %v1906 = vld [vmem:[%s12 + $0x8c4] sm:$0xff]
  %v1907 = vld [vmem:[%s12 + $0x8cc] sm:$0xff]
  %v1908 = vld [vmem:[%s12 + $0x8d4] sm:$0xff]
  %v1909 = vld [vmem:[%s12 + $0x8dc] sm:$0xff]
  %v1910 = vld [vmem:[%s12 + $0x8e4] sm:$0xff]
  %v1911 = vld [vmem:[%s12 + $0x8ec] sm:$0xff]
  %v1912 = vld [vmem:[%s12 + $0x8f4] sm:$0xff]
  %v1913 = vld [vmem:[%s12 + $0x8fc] sm:$0xff]
  %v1914 = vld [vmem:[%s12 + $0x904] sm:$0xff]
  %v1915 = vld [vmem:[%s12 + $0x90c] sm:$0xff]
  %v1916 = vld [vmem:[%s12 + $0x914] sm:$0xff]
  %v1917 = vld [vmem:[%s12 + $0x91c] sm:$0xff]
  %v1918 = vld [vmem:[%s12 + $0x924] sm:$0xff]
  %v1919 = vld [vmem:[%s12 + $0x92c] sm:$0xff]
  %v1920 = vld [vmem:[%s12 + $0x934] sm:$0xff]
  %v1921 = vld [vmem:[%s12 + $0x93c] sm:$0xf]
  %v1922 = vld [vmem:[%s13] sm:$0xff]
  %v1923 = vld [vmem:[%s13 + $0x8] sm:$0xff]
  %v1924 = vld [vmem:[%s13 + $0x10] sm:$0xff]
  %v1925 = vld [vmem:[%s13 + $0x18] sm:$0xff]
  %v1926 = vld [vmem:[%s13 + $0x20] sm:$0x1f]
  %v1932 = vlaneseq
  %v1933 = vshrl.u32 %v1932, 7
  %v1934 = vsub.s32 0, %v1933
  %v1935 = vrot.slane %v1922, %v1934
  %v1936 = vlaneseq
  %v1937 = vshrl.u32 %v1936, 7
  %v1938 = vsub.s32 1, %v1937
  %v1939 = vrot.slane %v1922, %v1938
  %v1940 = vlaneseq
  %v1941 = vshrl.u32 %v1940, 7
  %v1942 = vsub.s32 2, %v1941
  %v1943 = vrot.slane %v1922, %v1942
  %v1944 = vlaneseq
  %v1945 = vshrl.u32 %v1944, 7
  %v1946 = vsub.s32 3, %v1945
  %v1947 = vrot.slane %v1922, %v1946
  %v1948 = vlaneseq
  %v1949 = vshrl.u32 %v1948, 7
  %v1950 = vsub.s32 4, %v1949
  %v1951 = vrot.slane %v1922, %v1950
  %v1952 = vlaneseq
  %v1953 = vshrl.u32 %v1952, 7
  %v1954 = vsub.s32 5, %v1953
  %v1955 = vrot.slane %v1922, %v1954
  %v1956 = vlaneseq
  %v1957 = vshrl.u32 %v1956, 7
  %v1958 = vsub.s32 6, %v1957
  %v1959 = vrot.slane %v1922, %v1958
  %v1960 = vlaneseq
  %v1961 = vshrl.u32 %v1960, 7
  %v1962 = vsub.s32 7, %v1961
  %v1963 = vrot.slane %v1922, %v1962
  %v1964 = vlaneseq
  %v1965 = vshrl.u32 %v1964, 7
  %v1966 = vsub.s32 0, %v1965
  %v1967 = vrot.slane %v1923, %v1966
  %v1968 = vlaneseq
  %v1969 = vshrl.u32 %v1968, 7
  %v1970 = vsub.s32 1, %v1969
  %v1971 = vrot.slane %v1923, %v1970
  %v1972 = vlaneseq
  %v1973 = vshrl.u32 %v1972, 7
  %v1974 = vsub.s32 2, %v1973
  %v1975 = vrot.slane %v1923, %v1974
  %v1976 = vlaneseq
  %v1977 = vshrl.u32 %v1976, 7
  %v1978 = vsub.s32 3, %v1977
  %v1979 = vrot.slane %v1923, %v1978
  %v1980 = vlaneseq
  %v1981 = vshrl.u32 %v1980, 7
  %v1982 = vsub.s32 4, %v1981
  %v1983 = vrot.slane %v1923, %v1982
  %v1984 = vlaneseq
  %v1985 = vshrl.u32 %v1984, 7
  %v1986 = vsub.s32 5, %v1985
  %v1987 = vrot.slane %v1923, %v1986
  %v1988 = vlaneseq
  %v1989 = vshrl.u32 %v1988, 7
  %v1990 = vsub.s32 6, %v1989
  %v1991 = vrot.slane %v1923, %v1990
  %v1992 = vlaneseq
  %v1993 = vshrl.u32 %v1992, 7
  %v1994 = vsub.s32 7, %v1993
  %v1995 = vrot.slane %v1923, %v1994
  %v1996 = vlaneseq
  %v1997 = vshrl.u32 %v1996, 7
  %v1998 = vsub.s32 0, %v1997
  %v1999 = vrot.slane %v1924, %v1998
  %v2000 = vlaneseq
  %v2001 = vshrl.u32 %v2000, 7
  %v2002 = vsub.s32 1, %v2001
  %v2003 = vrot.slane %v1924, %v2002
  %v2004 = vlaneseq
  %v2005 = vshrl.u32 %v2004, 7
  %v2006 = vsub.s32 2, %v2005
  %v2007 = vrot.slane %v1924, %v2006
  %v2008 = vlaneseq
  %v2009 = vshrl.u32 %v2008, 7
  %v2010 = vsub.s32 3, %v2009
  %v2011 = vrot.slane %v1924, %v2010
  %v2012 = vlaneseq
  %v2013 = vshrl.u32 %v2012, 7
  %v2014 = vsub.s32 4, %v2013
  %v2015 = vrot.slane %v1924, %v2014
  %v2016 = vlaneseq
  %v2017 = vshrl.u32 %v2016, 7
  %v2018 = vsub.s32 5, %v2017
  %v2019 = vrot.slane %v1924, %v2018
  %v2020 = vlaneseq
  %v2021 = vshrl.u32 %v2020, 7
  %v2022 = vsub.s32 6, %v2021
  %v2023 = vrot.slane %v1924, %v2022
  %v2024 = vlaneseq
  %v2025 = vshrl.u32 %v2024, 7
  %v2026 = vsub.s32 7, %v2025
  %v2027 = vrot.slane %v1924, %v2026
  %v2028 = vlaneseq
  %v2029 = vshrl.u32 %v2028, 7
  %v2030 = vsub.s32 0, %v2029
  %v2031 = vrot.slane %v1925, %v2030
  %v2032 = vlaneseq
  %v2033 = vshrl.u32 %v2032, 7
  %v2034 = vsub.s32 1, %v2033
  %v2035 = vrot.slane %v1925, %v2034
  %v2036 = vlaneseq
  %v2037 = vshrl.u32 %v2036, 7
  %v2038 = vsub.s32 2, %v2037
  %v2039 = vrot.slane %v1925, %v2038
  %v2040 = vlaneseq
  %v2041 = vshrl.u32 %v2040, 7
  %v2042 = vsub.s32 3, %v2041
  %v2043 = vrot.slane %v1925, %v2042
  %v2044 = vlaneseq
  %v2045 = vshrl.u32 %v2044, 7
  %v2046 = vsub.s32 4, %v2045
  %v2047 = vrot.slane %v1925, %v2046
  %v2048 = vlaneseq
  %v2049 = vshrl.u32 %v2048, 7
  %v2050 = vsub.s32 5, %v2049
  %v2051 = vrot.slane %v1925, %v2050
  %v2052 = vlaneseq
  %v2053 = vshrl.u32 %v2052, 7
  %v2054 = vsub.s32 6, %v2053
  %v2055 = vrot.slane %v1925, %v2054
  %v2056 = vlaneseq
  %v2057 = vshrl.u32 %v2056, 7
  %v2058 = vsub.s32 7, %v2057
  %v2059 = vrot.slane %v1925, %v2058
  %v2060 = vlaneseq
  %v2061 = vshrl.u32 %v2060, 7
  %v2062 = vsub.s32 0, %v2061
  %v2063 = vrot.slane %v1926, %v2062
  %v2064 = vlaneseq
  %v2065 = vshrl.u32 %v2064, 7
  %v2066 = vsub.s32 1, %v2065
  %v2067 = vrot.slane %v1926, %v2066
  %v2068 = vlaneseq
  %v2069 = vshrl.u32 %v2068, 7
  %v2070 = vsub.s32 2, %v2069
  %v2071 = vrot.slane %v1926, %v2070
  %v2072 = vlaneseq
  %v2073 = vshrl.u32 %v2072, 7
  %v2074 = vsub.s32 3, %v2073
  %v2075 = vrot.slane %v1926, %v2074
  %v2076 = vlaneseq
  %v2077 = vshrl.u32 %v2076, 7
  %v2078 = vsub.s32 4, %v2077
  %v2079 = vrot.slane %v1926, %v2078
  %v2421 = vunpack.c.l.b16 %v1618
  %v2422 = vunpack.c.h.b16 %v1618
  %v2423 = vunpack.c.l.b16 %v1619
  %v2424 = vunpack.c.h.b16 %v1619
  %v2425 = vunpack.c.l.b16 %v1620
  %v2426 = vunpack.c.h.b16 %v1620
  %v2427 = vunpack.c.l.b16 %v1621
  %v2428 = vunpack.c.h.b16 %v1621
  %v2429 = vunpack.c.l.b16 %v1622
  %v2430 = vunpack.c.h.b16 %v1622
  %v2431 = vunpack.c.l.b16 %v1623
  %v2432 = vunpack.c.h.b16 %v1623
  %v2433 = vunpack.c.l.b16 %v1624
  %v2434 = vunpack.c.h.b16 %v1624
  %v2435 = vunpack.c.l.b16 %v1625
  %v2436 = vunpack.c.h.b16 %v1625
  %v2437 = vunpack.c.l.b16 %v1626
  %v2438 = vunpack.c.h.b16 %v1626
  %v2439 = vunpack.c.l.b16 %v1627
  %v2440 = vunpack.c.h.b16 %v1627
  %v2441 = vunpack.c.l.b16 %v1628
  %v2442 = vunpack.c.h.b16 %v1628
  %v2443 = vunpack.c.l.b16 %v1629
  %v2444 = vunpack.c.h.b16 %v1629
  %v2445 = vunpack.c.l.b16 %v1630
  %v2446 = vunpack.c.h.b16 %v1630
  %v2447 = vunpack.c.l.b16 %v1631
  %v2448 = vunpack.c.h.b16 %v1631
  %v2449 = vunpack.c.l.b16 %v1632
  %v2450 = vunpack.c.h.b16 %v1632
  %v2451 = vunpack.c.l.b16 %v1633
  %v2452 = vunpack.c.h.b16 %v1633
  %v2453 = vunpack.c.l.b16 %v1634
  %v2454 = vunpack.c.h.b16 %v1634
  %v2455 = vunpack.c.l.b16 %v1635
  %v2456 = vunpack.c.h.b16 %v1635
  %v2457 = vunpack.c.l.b16 %v1636
  %v2458 = vunpack.c.l.b16 %v1637
  %v2459 = vunpack.c.h.b16 %v1637
  %v2460 = vunpack.c.l.b16 %v1638
  %v2461 = vunpack.c.h.b16 %v1638
  %v2462 = vunpack.c.l.b16 %v1639
  %v2463 = vunpack.c.h.b16 %v1639
  %v2464 = vunpack.c.l.b16 %v1640
  %v2465 = vunpack.c.h.b16 %v1640
  %v2466 = vunpack.c.l.b16 %v1641
  %v2467 = vunpack.c.h.b16 %v1641
  %v2468 = vunpack.c.l.b16 %v1642
  %v2469 = vunpack.c.h.b16 %v1642
  %v2470 = vunpack.c.l.b16 %v1643
  %v2471 = vunpack.c.h.b16 %v1643
  %v2472 = vunpack.c.l.b16 %v1644
  %v2473 = vunpack.c.h.b16 %v1644
  %v2474 = vunpack.c.l.b16 %v1645
  %v2475 = vunpack.c.h.b16 %v1645
  %v2476 = vunpack.c.l.b16 %v1646
  %v2477 = vunpack.c.h.b16 %v1646
  %v2478 = vunpack.c.l.b16 %v1647
  %v2479 = vunpack.c.h.b16 %v1647
  %v2480 = vunpack.c.l.b16 %v1648
  %v2481 = vunpack.c.h.b16 %v1648
  %v2482 = vunpack.c.l.b16 %v1649
  %v2483 = vunpack.c.h.b16 %v1649
  %v2484 = vunpack.c.l.b16 %v1650
  %v2485 = vunpack.c.h.b16 %v1650
  %v2486 = vunpack.c.l.b16 %v1651
  %v2487 = vunpack.c.h.b16 %v1651
  %v2488 = vunpack.c.l.b16 %v1652
  %v2489 = vunpack.c.h.b16 %v1652
  %v2490 = vunpack.c.l.b16 %v1653
  %v2491 = vunpack.c.h.b16 %v1653
  %v2492 = vunpack.c.l.b16 %v1654
  %v2493 = vunpack.c.h.b16 %v1654
  %v2494 = vunpack.c.l.b16 %v1655
  %v2495 = vunpack.c.l.b16 %v1656
  %v2496 = vunpack.c.h.b16 %v1656
  %v2497 = vunpack.c.l.b16 %v1657
  %v2498 = vunpack.c.h.b16 %v1657
  %v2499 = vunpack.c.l.b16 %v1658
  %v2500 = vunpack.c.h.b16 %v1658
  %v2501 = vunpack.c.l.b16 %v1659
  %v2502 = vunpack.c.h.b16 %v1659
  %v2503 = vunpack.c.l.b16 %v1660
  %v2504 = vunpack.c.h.b16 %v1660
  %v2505 = vunpack.c.l.b16 %v1661
  %v2506 = vunpack.c.h.b16 %v1661
  %v2507 = vunpack.c.l.b16 %v1662
  %v2508 = vunpack.c.h.b16 %v1662
  %v2509 = vunpack.c.l.b16 %v1663
  %v2510 = vunpack.c.h.b16 %v1663
  %v2511 = vunpack.c.l.b16 %v1664
  %v2512 = vunpack.c.h.b16 %v1664
  %v2513 = vunpack.c.l.b16 %v1665
  %v2514 = vunpack.c.h.b16 %v1665
  %v2515 = vunpack.c.l.b16 %v1666
  %v2516 = vunpack.c.h.b16 %v1666
  %v2517 = vunpack.c.l.b16 %v1667
  %v2518 = vunpack.c.h.b16 %v1667
  %v2519 = vunpack.c.l.b16 %v1668
  %v2520 = vunpack.c.h.b16 %v1668
  %v2521 = vunpack.c.l.b16 %v1669
  %v2522 = vunpack.c.h.b16 %v1669
  %v2523 = vunpack.c.l.b16 %v1670
  %v2524 = vunpack.c.h.b16 %v1670
  %v2525 = vunpack.c.l.b16 %v1671
  %v2526 = vunpack.c.h.b16 %v1671
  %v2527 = vunpack.c.l.b16 %v1672
  %v2528 = vunpack.c.h.b16 %v1672
  %v2529 = vunpack.c.l.b16 %v1673
  %v2530 = vunpack.c.h.b16 %v1673
  %v2531 = vunpack.c.l.b16 %v1674
  %v2532 = vunpack.c.l.b16 %v1675
  %v2533 = vunpack.c.h.b16 %v1675
  %v2534 = vunpack.c.l.b16 %v1676
  %v2535 = vunpack.c.h.b16 %v1676
  %v2536 = vunpack.c.l.b16 %v1677
  %v2537 = vunpack.c.h.b16 %v1677
  %v2538 = vunpack.c.l.b16 %v1678
  %v2539 = vunpack.c.h.b16 %v1678
  %v2540 = vunpack.c.l.b16 %v1679
  %v2541 = vunpack.c.h.b16 %v1679
  %v2542 = vunpack.c.l.b16 %v1680
  %v2543 = vunpack.c.h.b16 %v1680
  %v2544 = vunpack.c.l.b16 %v1681
  %v2545 = vunpack.c.h.b16 %v1681
  %v2546 = vunpack.c.l.b16 %v1682
  %v2547 = vunpack.c.h.b16 %v1682
  %v2548 = vunpack.c.l.b16 %v1683
  %v2549 = vunpack.c.h.b16 %v1683
  %v2550 = vunpack.c.l.b16 %v1684
  %v2551 = vunpack.c.h.b16 %v1684
  %v2552 = vunpack.c.l.b16 %v1685
  %v2553 = vunpack.c.h.b16 %v1685
  %v2554 = vunpack.c.l.b16 %v1686
  %v2555 = vunpack.c.h.b16 %v1686
  %v2556 = vunpack.c.l.b16 %v1687
  %v2557 = vunpack.c.h.b16 %v1687
  %v2558 = vunpack.c.l.b16 %v1688
  %v2559 = vunpack.c.h.b16 %v1688
  %v2560 = vunpack.c.l.b16 %v1689
  %v2561 = vunpack.c.h.b16 %v1689
  %v2562 = vunpack.c.l.b16 %v1690
  %v2563 = vunpack.c.h.b16 %v1690
  %v2564 = vunpack.c.l.b16 %v1691
  %v2565 = vunpack.c.h.b16 %v1691
  %v2566 = vunpack.c.l.b16 %v1692
  %v2567 = vunpack.c.h.b16 %v1692
  %v2568 = vunpack.c.l.b16 %v1693
  %v2569 = vunpack.c.l.b16 %v1694
  %v2570 = vunpack.c.h.b16 %v1694
  %v2571 = vunpack.c.l.b16 %v1695
  %v2572 = vunpack.c.h.b16 %v1695
  %v2573 = vunpack.c.l.b16 %v1696
  %v2574 = vunpack.c.h.b16 %v1696
  %v2575 = vunpack.c.l.b16 %v1697
  %v2576 = vunpack.c.h.b16 %v1697
  %v2577 = vunpack.c.l.b16 %v1698
  %v2578 = vunpack.c.h.b16 %v1698
  %v2579 = vunpack.c.l.b16 %v1699
  %v2580 = vunpack.c.h.b16 %v1699
  %v2581 = vunpack.c.l.b16 %v1700
  %v2582 = vunpack.c.h.b16 %v1700
  %v2583 = vunpack.c.l.b16 %v1701
  %v2584 = vunpack.c.h.b16 %v1701
  %v2585 = vunpack.c.l.b16 %v1702
  %v2586 = vunpack.c.h.b16 %v1702
  %v2587 = vunpack.c.l.b16 %v1703
  %v2588 = vunpack.c.h.b16 %v1703
  %v2589 = vunpack.c.l.b16 %v1704
  %v2590 = vunpack.c.h.b16 %v1704
  %v2591 = vunpack.c.l.b16 %v1705
  %v2592 = vunpack.c.h.b16 %v1705
  %v2593 = vunpack.c.l.b16 %v1706
  %v2594 = vunpack.c.h.b16 %v1706
  %v2595 = vunpack.c.l.b16 %v1707
  %v2596 = vunpack.c.h.b16 %v1707
  %v2597 = vunpack.c.l.b16 %v1708
  %v2598 = vunpack.c.h.b16 %v1708
  %v2599 = vunpack.c.l.b16 %v1709
  %v2600 = vunpack.c.h.b16 %v1709
  %v2601 = vunpack.c.l.b16 %v1710
  %v2602 = vunpack.c.h.b16 %v1710
  %v2603 = vunpack.c.l.b16 %v1711
  %v2604 = vunpack.c.h.b16 %v1711
  %v2605 = vunpack.c.l.b16 %v1712
  %v2606 = vunpack.c.l.b16 %v1713
  %v2607 = vunpack.c.h.b16 %v1713
  %v2608 = vunpack.c.l.b16 %v1714
  %v2609 = vunpack.c.h.b16 %v1714
  %v2610 = vunpack.c.l.b16 %v1715
  %v2611 = vunpack.c.h.b16 %v1715
  %v2612 = vunpack.c.l.b16 %v1716
  %v2613 = vunpack.c.h.b16 %v1716
  %v2614 = vunpack.c.l.b16 %v1717
  %v2615 = vunpack.c.h.b16 %v1717
  %v2616 = vunpack.c.l.b16 %v1718
  %v2617 = vunpack.c.h.b16 %v1718
  %v2618 = vunpack.c.l.b16 %v1719
  %v2619 = vunpack.c.h.b16 %v1719
  %v2620 = vunpack.c.l.b16 %v1720
  %v2621 = vunpack.c.h.b16 %v1720
  %v2622 = vunpack.c.l.b16 %v1721
  %v2623 = vunpack.c.h.b16 %v1721
  %v2624 = vunpack.c.l.b16 %v1722
  %v2625 = vunpack.c.h.b16 %v1722
  %v2626 = vunpack.c.l.b16 %v1723
  %v2627 = vunpack.c.h.b16 %v1723
  %v2628 = vunpack.c.l.b16 %v1724
  %v2629 = vunpack.c.h.b16 %v1724
  %v2630 = vunpack.c.l.b16 %v1725
  %v2631 = vunpack.c.h.b16 %v1725
  %v2632 = vunpack.c.l.b16 %v1726
  %v2633 = vunpack.c.h.b16 %v1726
  %v2634 = vunpack.c.l.b16 %v1727
  %v2635 = vunpack.c.h.b16 %v1727
  %v2636 = vunpack.c.l.b16 %v1728
  %v2637 = vunpack.c.h.b16 %v1728
  %v2638 = vunpack.c.l.b16 %v1729
  %v2639 = vunpack.c.h.b16 %v1729
  %v2640 = vunpack.c.l.b16 %v1730
  %v2641 = vunpack.c.h.b16 %v1730
  %v2642 = vunpack.c.l.b16 %v1731
  %v2643 = vunpack.c.l.b16 %v1732
  %v2644 = vunpack.c.h.b16 %v1732
  %v2645 = vunpack.c.l.b16 %v1733
  %v2646 = vunpack.c.h.b16 %v1733
  %v2647 = vunpack.c.l.b16 %v1734
  %v2648 = vunpack.c.h.b16 %v1734
  %v2649 = vunpack.c.l.b16 %v1735
  %v2650 = vunpack.c.h.b16 %v1735
  %v2651 = vunpack.c.l.b16 %v1736
  %v2652 = vunpack.c.h.b16 %v1736
  %v2653 = vunpack.c.l.b16 %v1737
  %v2654 = vunpack.c.h.b16 %v1737
  %v2655 = vunpack.c.l.b16 %v1738
  %v2656 = vunpack.c.h.b16 %v1738
  %v2657 = vunpack.c.l.b16 %v1739
  %v2658 = vunpack.c.h.b16 %v1739
  %v2659 = vunpack.c.l.b16 %v1740
  %v2660 = vunpack.c.h.b16 %v1740
  %v2661 = vunpack.c.l.b16 %v1741
  %v2662 = vunpack.c.h.b16 %v1741
  %v2663 = vunpack.c.l.b16 %v1742
  %v2664 = vunpack.c.h.b16 %v1742
  %v2665 = vunpack.c.l.b16 %v1743
  %v2666 = vunpack.c.h.b16 %v1743
  %v2667 = vunpack.c.l.b16 %v1744
  %v2668 = vunpack.c.h.b16 %v1744
  %v2669 = vunpack.c.l.b16 %v1745
  %v2670 = vunpack.c.h.b16 %v1745
  %v2671 = vunpack.c.l.b16 %v1746
  %v2672 = vunpack.c.h.b16 %v1746
  %v2673 = vunpack.c.l.b16 %v1747
  %v2674 = vunpack.c.h.b16 %v1747
  %v2675 = vunpack.c.l.b16 %v1748
  %v2676 = vunpack.c.h.b16 %v1748
  %v2677 = vunpack.c.l.b16 %v1749
  %v2678 = vunpack.c.h.b16 %v1749
  %v2679 = vunpack.c.l.b16 %v1750
  %v2680 = vunpack.c.l.b16 %v1751
  %v2681 = vunpack.c.h.b16 %v1751
  %v2682 = vunpack.c.l.b16 %v1752
  %v2683 = vunpack.c.h.b16 %v1752
  %v2684 = vunpack.c.l.b16 %v1753
  %v2685 = vunpack.c.h.b16 %v1753
  %v2686 = vunpack.c.l.b16 %v1754
  %v2687 = vunpack.c.h.b16 %v1754
  %v2688 = vunpack.c.l.b16 %v1755
  %v2689 = vunpack.c.h.b16 %v1755
  %v2690 = vunpack.c.l.b16 %v1756
  %v2691 = vunpack.c.h.b16 %v1756
  %v2692 = vunpack.c.l.b16 %v1757
  %v2693 = vunpack.c.h.b16 %v1757
  %v2694 = vunpack.c.l.b16 %v1758
  %v2695 = vunpack.c.h.b16 %v1758
  %v2696 = vunpack.c.l.b16 %v1759
  %v2697 = vunpack.c.h.b16 %v1759
  %v2698 = vunpack.c.l.b16 %v1760
  %v2699 = vunpack.c.h.b16 %v1760
  %v2700 = vunpack.c.l.b16 %v1761
  %v2701 = vunpack.c.h.b16 %v1761
  %v2702 = vunpack.c.l.b16 %v1762
  %v2703 = vunpack.c.h.b16 %v1762
  %v2704 = vunpack.c.l.b16 %v1763
  %v2705 = vunpack.c.h.b16 %v1763
  %v2706 = vunpack.c.l.b16 %v1764
  %v2707 = vunpack.c.h.b16 %v1764
  %v2708 = vunpack.c.l.b16 %v1765
  %v2709 = vunpack.c.h.b16 %v1765
  %v2710 = vunpack.c.l.b16 %v1766
  %v2711 = vunpack.c.h.b16 %v1766
  %v2712 = vunpack.c.l.b16 %v1767
  %v2713 = vunpack.c.h.b16 %v1767
  %v2714 = vunpack.c.l.b16 %v1768
  %v2715 = vunpack.c.h.b16 %v1768
  %v2716 = vunpack.c.l.b16 %v1769
  %v2717 = vunpack.c.l.b16 %v1770
  %v2718 = vunpack.c.h.b16 %v1770
  %v2719 = vunpack.c.l.b16 %v1771
  %v2720 = vunpack.c.h.b16 %v1771
  %v2721 = vunpack.c.l.b16 %v1772
  %v2722 = vunpack.c.h.b16 %v1772
  %v2723 = vunpack.c.l.b16 %v1773
  %v2724 = vunpack.c.h.b16 %v1773
  %v2725 = vunpack.c.l.b16 %v1774
  %v2726 = vunpack.c.h.b16 %v1774
  %v2727 = vunpack.c.l.b16 %v1775
  %v2728 = vunpack.c.h.b16 %v1775
  %v2729 = vunpack.c.l.b16 %v1776
  %v2730 = vunpack.c.h.b16 %v1776
  %v2731 = vunpack.c.l.b16 %v1777
  %v2732 = vunpack.c.h.b16 %v1777
  %v2733 = vunpack.c.l.b16 %v1778
  %v2734 = vunpack.c.h.b16 %v1778
  %v2735 = vunpack.c.l.b16 %v1779
  %v2736 = vunpack.c.h.b16 %v1779
  %v2737 = vunpack.c.l.b16 %v1780
  %v2738 = vunpack.c.h.b16 %v1780
  %v2739 = vunpack.c.l.b16 %v1781
  %v2740 = vunpack.c.h.b16 %v1781
  %v2741 = vunpack.c.l.b16 %v1782
  %v2742 = vunpack.c.h.b16 %v1782
  %v2743 = vunpack.c.l.b16 %v1783
  %v2744 = vunpack.c.h.b16 %v1783
  %v2745 = vunpack.c.l.b16 %v1784
  %v2746 = vunpack.c.h.b16 %v1784
  %v2747 = vunpack.c.l.b16 %v1785
  %v2748 = vunpack.c.h.b16 %v1785
  %v2749 = vunpack.c.l.b16 %v1786
  %v2750 = vunpack.c.h.b16 %v1786
  %v2751 = vunpack.c.l.b16 %v1787
  %v2752 = vunpack.c.h.b16 %v1787
  %v2753 = vunpack.c.l.b16 %v1788
  %v2754 = vunpack.c.l.b16 %v1789
  %v2755 = vunpack.c.h.b16 %v1789
  %v2756 = vunpack.c.l.b16 %v1790
  %v2757 = vunpack.c.h.b16 %v1790
  %v2758 = vunpack.c.l.b16 %v1791
  %v2759 = vunpack.c.h.b16 %v1791
  %v2760 = vunpack.c.l.b16 %v1792
  %v2761 = vunpack.c.h.b16 %v1792
  %v2762 = vunpack.c.l.b16 %v1793
  %v2763 = vunpack.c.h.b16 %v1793
  %v2764 = vunpack.c.l.b16 %v1794
  %v2765 = vunpack.c.h.b16 %v1794
  %v2766 = vunpack.c.l.b16 %v1795
  %v2767 = vunpack.c.h.b16 %v1795
  %v2768 = vunpack.c.l.b16 %v1796
  %v2769 = vunpack.c.h.b16 %v1796
  %v2770 = vunpack.c.l.b16 %v1797
  %v2771 = vunpack.c.h.b16 %v1797
  %v2772 = vunpack.c.l.b16 %v1798
  %v2773 = vunpack.c.h.b16 %v1798
  %v2774 = vunpack.c.l.b16 %v1799
  %v2775 = vunpack.c.h.b16 %v1799
  %v2776 = vunpack.c.l.b16 %v1800
  %v2777 = vunpack.c.h.b16 %v1800
  %v2778 = vunpack.c.l.b16 %v1801
  %v2779 = vunpack.c.h.b16 %v1801
  %v2780 = vunpack.c.l.b16 %v1802
  %v2781 = vunpack.c.h.b16 %v1802
  %v2782 = vunpack.c.l.b16 %v1803
  %v2783 = vunpack.c.h.b16 %v1803
  %v2784 = vunpack.c.l.b16 %v1804
  %v2785 = vunpack.c.h.b16 %v1804
  %v2786 = vunpack.c.l.b16 %v1805
  %v2787 = vunpack.c.h.b16 %v1805
  %v2788 = vunpack.c.l.b16 %v1806
  %v2789 = vunpack.c.h.b16 %v1806
  %v2790 = vunpack.c.l.b16 %v1807
  %v2791 = vunpack.c.l.b16 %v1808
  %v2792 = vunpack.c.h.b16 %v1808
  %v2793 = vunpack.c.l.b16 %v1809
  %v2794 = vunpack.c.h.b16 %v1809
  %v2795 = vunpack.c.l.b16 %v1810
  %v2796 = vunpack.c.h.b16 %v1810
  %v2797 = vunpack.c.l.b16 %v1811
  %v2798 = vunpack.c.h.b16 %v1811
  %v2799 = vunpack.c.l.b16 %v1812
  %v2800 = vunpack.c.h.b16 %v1812
  %v2801 = vunpack.c.l.b16 %v1813
  %v2802 = vunpack.c.h.b16 %v1813
  %v2803 = vunpack.c.l.b16 %v1814
  %v2804 = vunpack.c.h.b16 %v1814
  %v2805 = vunpack.c.l.b16 %v1815
  %v2806 = vunpack.c.h.b16 %v1815
  %v2807 = vunpack.c.l.b16 %v1816
  %v2808 = vunpack.c.h.b16 %v1816
  %v2809 = vunpack.c.l.b16 %v1817
  %v2810 = vunpack.c.h.b16 %v1817
  %v2811 = vunpack.c.l.b16 %v1818
  %v2812 = vunpack.c.h.b16 %v1818
  %v2813 = vunpack.c.l.b16 %v1819
  %v2814 = vunpack.c.h.b16 %v1819
  %v2815 = vunpack.c.l.b16 %v1820
  %v2816 = vunpack.c.h.b16 %v1820
  %v2817 = vunpack.c.l.b16 %v1821
  %v2818 = vunpack.c.h.b16 %v1821
  %v2819 = vunpack.c.l.b16 %v1822
  %v2820 = vunpack.c.h.b16 %v1822
  %v2821 = vunpack.c.l.b16 %v1823
  %v2822 = vunpack.c.h.b16 %v1823
  %v2823 = vunpack.c.l.b16 %v1824
  %v2824 = vunpack.c.h.b16 %v1824
  %v2825 = vunpack.c.l.b16 %v1825
  %v2826 = vunpack.c.h.b16 %v1825
  %v2827 = vunpack.c.l.b16 %v1826
  %v2828 = vunpack.c.l.b16 %v1827
  %v2829 = vunpack.c.h.b16 %v1827
  %v2830 = vunpack.c.l.b16 %v1828
  %v2831 = vunpack.c.h.b16 %v1828
  %v2832 = vunpack.c.l.b16 %v1829
  %v2833 = vunpack.c.h.b16 %v1829
  %v2834 = vunpack.c.l.b16 %v1830
  %v2835 = vunpack.c.h.b16 %v1830
  %v2836 = vunpack.c.l.b16 %v1831
  %v2837 = vunpack.c.h.b16 %v1831
  %v2838 = vunpack.c.l.b16 %v1832
  %v2839 = vunpack.c.h.b16 %v1832
  %v2840 = vunpack.c.l.b16 %v1833
  %v2841 = vunpack.c.h.b16 %v1833
  %v2842 = vunpack.c.l.b16 %v1834
  %v2843 = vunpack.c.h.b16 %v1834
  %v2844 = vunpack.c.l.b16 %v1835
  %v2845 = vunpack.c.h.b16 %v1835
  %v2846 = vunpack.c.l.b16 %v1836
  %v2847 = vunpack.c.h.b16 %v1836
  %v2848 = vunpack.c.l.b16 %v1837
  %v2849 = vunpack.c.h.b16 %v1837
  %v2850 = vunpack.c.l.b16 %v1838
  %v2851 = vunpack.c.h.b16 %v1838
  %v2852 = vunpack.c.l.b16 %v1839
  %v2853 = vunpack.c.h.b16 %v1839
  %v2854 = vunpack.c.l.b16 %v1840
  %v2855 = vunpack.c.h.b16 %v1840
  %v2856 = vunpack.c.l.b16 %v1841
  %v2857 = vunpack.c.h.b16 %v1841
  %v2858 = vunpack.c.l.b16 %v1842
  %v2859 = vunpack.c.h.b16 %v1842
  %v2860 = vunpack.c.l.b16 %v1843
  %v2861 = vunpack.c.h.b16 %v1843
  %v2862 = vunpack.c.l.b16 %v1844
  %v2863 = vunpack.c.h.b16 %v1844
  %v2864 = vunpack.c.l.b16 %v1845
  %v2865 = vunpack.c.l.b16 %v1846
  %v2866 = vunpack.c.h.b16 %v1846
  %v2867 = vunpack.c.l.b16 %v1847
  %v2868 = vunpack.c.h.b16 %v1847
  %v2869 = vunpack.c.l.b16 %v1848
  %v2870 = vunpack.c.h.b16 %v1848
  %v2871 = vunpack.c.l.b16 %v1849
  %v2872 = vunpack.c.h.b16 %v1849
  %v2873 = vunpack.c.l.b16 %v1850
  %v2874 = vunpack.c.h.b16 %v1850
  %v2875 = vunpack.c.l.b16 %v1851
  %v2876 = vunpack.c.h.b16 %v1851
  %v2877 = vunpack.c.l.b16 %v1852
  %v2878 = vunpack.c.h.b16 %v1852
  %v2879 = vunpack.c.l.b16 %v1853
  %v2880 = vunpack.c.h.b16 %v1853
  %v2881 = vunpack.c.l.b16 %v1854
  %v2882 = vunpack.c.h.b16 %v1854
  %v2883 = vunpack.c.l.b16 %v1855
  %v2884 = vunpack.c.h.b16 %v1855
  %v2885 = vunpack.c.l.b16 %v1856
  %v2886 = vunpack.c.h.b16 %v1856
  %v2887 = vunpack.c.l.b16 %v1857
  %v2888 = vunpack.c.h.b16 %v1857
  %v2889 = vunpack.c.l.b16 %v1858
  %v2890 = vunpack.c.h.b16 %v1858
  %v2891 = vunpack.c.l.b16 %v1859
  %v2892 = vunpack.c.h.b16 %v1859
  %v2893 = vunpack.c.l.b16 %v1860
  %v2894 = vunpack.c.h.b16 %v1860
  %v2895 = vunpack.c.l.b16 %v1861
  %v2896 = vunpack.c.h.b16 %v1861
  %v2897 = vunpack.c.l.b16 %v1862
  %v2898 = vunpack.c.h.b16 %v1862
  %v2899 = vunpack.c.l.b16 %v1863
  %v2900 = vunpack.c.h.b16 %v1863
  %v2901 = vunpack.c.l.b16 %v1864
  %v2902 = vunpack.c.l.b16 %v1865
  %v2903 = vunpack.c.h.b16 %v1865
  %v2904 = vunpack.c.l.b16 %v1866
  %v2905 = vunpack.c.h.b16 %v1866
  %v2906 = vunpack.c.l.b16 %v1867
  %v2907 = vunpack.c.h.b16 %v1867
  %v2908 = vunpack.c.l.b16 %v1868
  %v2909 = vunpack.c.h.b16 %v1868
  %v2910 = vunpack.c.l.b16 %v1869
  %v2911 = vunpack.c.h.b16 %v1869
  %v2912 = vunpack.c.l.b16 %v1870
  %v2913 = vunpack.c.h.b16 %v1870
  %v2914 = vunpack.c.l.b16 %v1871
  %v2915 = vunpack.c.h.b16 %v1871
  %v2916 = vunpack.c.l.b16 %v1872
  %v2917 = vunpack.c.h.b16 %v1872
  %v2918 = vunpack.c.l.b16 %v1873
  %v2919 = vunpack.c.h.b16 %v1873
  %v2920 = vunpack.c.l.b16 %v1874
  %v2921 = vunpack.c.h.b16 %v1874
  %v2922 = vunpack.c.l.b16 %v1875
  %v2923 = vunpack.c.h.b16 %v1875
  %v2924 = vunpack.c.l.b16 %v1876
  %v2925 = vunpack.c.h.b16 %v1876
  %v2926 = vunpack.c.l.b16 %v1877
  %v2927 = vunpack.c.h.b16 %v1877
  %v2928 = vunpack.c.l.b16 %v1878
  %v2929 = vunpack.c.h.b16 %v1878
  %v2930 = vunpack.c.l.b16 %v1879
  %v2931 = vunpack.c.h.b16 %v1879
  %v2932 = vunpack.c.l.b16 %v1880
  %v2933 = vunpack.c.h.b16 %v1880
  %v2934 = vunpack.c.l.b16 %v1881
  %v2935 = vunpack.c.h.b16 %v1881
  %v2936 = vunpack.c.l.b16 %v1882
  %v2937 = vunpack.c.h.b16 %v1882
  %v2938 = vunpack.c.l.b16 %v1883
  %v2939 = vunpack.c.l.b16 %v1884
  %v2940 = vunpack.c.h.b16 %v1884
  %v2941 = vunpack.c.l.b16 %v1885
  %v2942 = vunpack.c.h.b16 %v1885
  %v2943 = vunpack.c.l.b16 %v1886
  %v2944 = vunpack.c.h.b16 %v1886
  %v2945 = vunpack.c.l.b16 %v1887
  %v2946 = vunpack.c.h.b16 %v1887
  %v2947 = vunpack.c.l.b16 %v1888
  %v2948 = vunpack.c.h.b16 %v1888
  %v2949 = vunpack.c.l.b16 %v1889
  %v2950 = vunpack.c.h.b16 %v1889
  %v2951 = vunpack.c.l.b16 %v1890
  %v2952 = vunpack.c.h.b16 %v1890
  %v2953 = vunpack.c.l.b16 %v1891
  %v2954 = vunpack.c.h.b16 %v1891
  %v2955 = vunpack.c.l.b16 %v1892
  %v2956 = vunpack.c.h.b16 %v1892
  %v2957 = vunpack.c.l.b16 %v1893
  %v2958 = vunpack.c.h.b16 %v1893
  %v2959 = vunpack.c.l.b16 %v1894
  %v2960 = vunpack.c.h.b16 %v1894
  %v2961 = vunpack.c.l.b16 %v1895
  %v2962 = vunpack.c.h.b16 %v1895
  %v2963 = vunpack.c.l.b16 %v1896
  %v2964 = vunpack.c.h.b16 %v1896
  %v2965 = vunpack.c.l.b16 %v1897
  %v2966 = vunpack.c.h.b16 %v1897
  %v2967 = vunpack.c.l.b16 %v1898
  %v2968 = vunpack.c.h.b16 %v1898
  %v2969 = vunpack.c.l.b16 %v1899
  %v2970 = vunpack.c.h.b16 %v1899
  %v2971 = vunpack.c.l.b16 %v1900
  %v2972 = vunpack.c.h.b16 %v1900
  %v2973 = vunpack.c.l.b16 %v1901
  %v2974 = vunpack.c.h.b16 %v1901
  %v2975 = vunpack.c.l.b16 %v1902
  %v2976 = vunpack.c.l.b16 %v1903
  %v2977 = vunpack.c.h.b16 %v1903
  %v2978 = vunpack.c.l.b16 %v1904
  %v2979 = vunpack.c.h.b16 %v1904
  %v2980 = vunpack.c.l.b16 %v1905
  %v2981 = vunpack.c.h.b16 %v1905
  %v2982 = vunpack.c.l.b16 %v1906
  %v2983 = vunpack.c.h.b16 %v1906
  %v2984 = vunpack.c.l.b16 %v1907
  %v2985 = vunpack.c.h.b16 %v1907
  %v2986 = vunpack.c.l.b16 %v1908
  %v2987 = vunpack.c.h.b16 %v1908
  %v2988 = vunpack.c.l.b16 %v1909
  %v2989 = vunpack.c.h.b16 %v1909
  %v2990 = vunpack.c.l.b16 %v1910
  %v2991 = vunpack.c.h.b16 %v1910
  %v2992 = vunpack.c.l.b16 %v1911
  %v2993 = vunpack.c.h.b16 %v1911
  %v2994 = vunpack.c.l.b16 %v1912
  %v2995 = vunpack.c.h.b16 %v1912
  %v2996 = vunpack.c.l.b16 %v1913
  %v2997 = vunpack.c.h.b16 %v1913
  %v2998 = vunpack.c.l.b16 %v1914
  %v2999 = vunpack.c.h.b16 %v1914
  %v3000 = vunpack.c.l.b16 %v1915
  %v3001 = vunpack.c.h.b16 %v1915
  %v3002 = vunpack.c.l.b16 %v1916
  %v3003 = vunpack.c.h.b16 %v1916
  %v3004 = vunpack.c.l.b16 %v1917
  %v3005 = vunpack.c.h.b16 %v1917
  %v3006 = vunpack.c.l.b16 %v1918
  %v3007 = vunpack.c.h.b16 %v1918
  %v3008 = vunpack.c.l.b16 %v1919
  %v3009 = vunpack.c.h.b16 %v1919
  %v3010 = vunpack.c.l.b16 %v1920
  %v3011 = vunpack.c.h.b16 %v1920
  %v3012 = vunpack.c.l.b16 %v1921
  %v3013 = vpack.c.b16 %v2458, %v2421
  %v3014 = vpack.c.b16 %v2459, %v2422
  %v3015 = vpack.c.b16 %v2460, %v2423
  %v3016 = vpack.c.b16 %v2461, %v2424
  %v3017 = vpack.c.b16 %v2462, %v2425
  %v3018 = vpack.c.b16 %v2463, %v2426
  %v3019 = vpack.c.b16 %v2464, %v2427
  %v3020 = vpack.c.b16 %v2465, %v2428
  %v3021 = vpack.c.b16 %v2466, %v2429
  %v3022 = vpack.c.b16 %v2467, %v2430
  %v3023 = vpack.c.b16 %v2468, %v2431
  %v3024 = vpack.c.b16 %v2469, %v2432
  %v3025 = vpack.c.b16 %v2470, %v2433
  %v3026 = vpack.c.b16 %v2471, %v2434
  %v3027 = vpack.c.b16 %v2472, %v2435
  %v3028 = vpack.c.b16 %v2473, %v2436
  %v3029 = vpack.c.b16 %v2474, %v2437
  %v3030 = vpack.c.b16 %v2475, %v2438
  %v3031 = vpack.c.b16 %v2476, %v2439
  %v3032 = vpack.c.b16 %v2477, %v2440
  %v3033 = vpack.c.b16 %v2478, %v2441
  %v3034 = vpack.c.b16 %v2479, %v2442
  %v3035 = vpack.c.b16 %v2480, %v2443
  %v3036 = vpack.c.b16 %v2481, %v2444
  %v3037 = vpack.c.b16 %v2482, %v2445
  %v3038 = vpack.c.b16 %v2483, %v2446
  %v3039 = vpack.c.b16 %v2484, %v2447
  %v3040 = vpack.c.b16 %v2485, %v2448
  %v3041 = vpack.c.b16 %v2486, %v2449
  %v3042 = vpack.c.b16 %v2487, %v2450
  %v3043 = vpack.c.b16 %v2488, %v2451
  %v3044 = vpack.c.b16 %v2489, %v2452
  %v3045 = vpack.c.b16 %v2490, %v2453
  %v3046 = vpack.c.b16 %v2491, %v2454
  %v3047 = vpack.c.b16 %v2492, %v2455
  %v3048 = vpack.c.b16 %v2493, %v2456
  %v3049 = vpack.c.b16 %v2494, %v2457
  %v3050 = vpack.c.b16 %v2532, %v2495
  %v3051 = vpack.c.b16 %v2533, %v2496
  %v3052 = vpack.c.b16 %v2534, %v2497
  %v3053 = vpack.c.b16 %v2535, %v2498
  %v3054 = vpack.c.b16 %v2536, %v2499
  %v3055 = vpack.c.b16 %v2537, %v2500
  %v3056 = vpack.c.b16 %v2538, %v2501
  %v3057 = vpack.c.b16 %v2539, %v2502
  %v3058 = vpack.c.b16 %v2540, %v2503
  %v3059 = vpack.c.b16 %v2541, %v2504
  %v3060 = vpack.c.b16 %v2542, %v2505
  %v3061 = vpack.c.b16 %v2543, %v2506
  %v3062 = vpack.c.b16 %v2544, %v2507
  %v3063 = vpack.c.b16 %v2545, %v2508
  %v3064 = vpack.c.b16 %v2546, %v2509
  %v3065 = vpack.c.b16 %v2547, %v2510
  %v3066 = vpack.c.b16 %v2548, %v2511
  %v3067 = vpack.c.b16 %v2549, %v2512
  %v3068 = vpack.c.b16 %v2550, %v2513
  %v3069 = vpack.c.b16 %v2551, %v2514
  %v3070 = vpack.c.b16 %v2552, %v2515
  %v3071 = vpack.c.b16 %v2553, %v2516
  %v3072 = vpack.c.b16 %v2554, %v2517
  %v3073 = vpack.c.b16 %v2555, %v2518
  %v3074 = vpack.c.b16 %v2556, %v2519
  %v3075 = vpack.c.b16 %v2557, %v2520
  %v3076 = vpack.c.b16 %v2558, %v2521
  %v3077 = vpack.c.b16 %v2559, %v2522
  %v3078 = vpack.c.b16 %v2560, %v2523
  %v3079 = vpack.c.b16 %v2561, %v2524
  %v3080 = vpack.c.b16 %v2562, %v2525
  %v3081 = vpack.c.b16 %v2563, %v2526
  %v3082 = vpack.c.b16 %v2564, %v2527
  %v3083 = vpack.c.b16 %v2565, %v2528
  %v3084 = vpack.c.b16 %v2566, %v2529
  %v3085 = vpack.c.b16 %v2567, %v2530
  %v3086 = vpack.c.b16 %v2568, %v2531
  %v3087 = vpack.c.b16 %v2606, %v2569
  %v3088 = vpack.c.b16 %v2607, %v2570
  %v3089 = vpack.c.b16 %v2608, %v2571
  %v3090 = vpack.c.b16 %v2609, %v2572
  %v3091 = vpack.c.b16 %v2610, %v2573
  %v3092 = vpack.c.b16 %v2611, %v2574
  %v3093 = vpack.c.b16 %v2612, %v2575
  %v3094 = vpack.c.b16 %v2613, %v2576
  %v3095 = vpack.c.b16 %v2614, %v2577
  %v3096 = vpack.c.b16 %v2615, %v2578
  %v3097 = vpack.c.b16 %v2616, %v2579
  %v3098 = vpack.c.b16 %v2617, %v2580
  %v3099 = vpack.c.b16 %v2618, %v2581
  %v3100 = vpack.c.b16 %v2619, %v2582
  %v3101 = vpack.c.b16 %v2620, %v2583
  %v3102 = vpack.c.b16 %v2621, %v2584
  %v3103 = vpack.c.b16 %v2622, %v2585
  %v3104 = vpack.c.b16 %v2623, %v2586
  %v3105 = vpack.c.b16 %v2624, %v2587
  %v3106 = vpack.c.b16 %v2625, %v2588
  %v3107 = vpack.c.b16 %v2626, %v2589
  %v3108 = vpack.c.b16 %v2627, %v2590
  %v3109 = vpack.c.b16 %v2628, %v2591
  %v3110 = vpack.c.b16 %v2629, %v2592
  %v3111 = vpack.c.b16 %v2630, %v2593
  %v3112 = vpack.c.b16 %v2631, %v2594
  %v3113 = vpack.c.b16 %v2632, %v2595
  %v3114 = vpack.c.b16 %v2633, %v2596
  %v3115 = vpack.c.b16 %v2634, %v2597
  %v3116 = vpack.c.b16 %v2635, %v2598
  %v3117 = vpack.c.b16 %v2636, %v2599
  %v3118 = vpack.c.b16 %v2637, %v2600
  %v3119 = vpack.c.b16 %v2638, %v2601
  %v3120 = vpack.c.b16 %v2639, %v2602
  %v3121 = vpack.c.b16 %v2640, %v2603
  %v3122 = vpack.c.b16 %v2641, %v2604
  %v3123 = vpack.c.b16 %v2642, %v2605
  %v3124 = vpack.c.b16 %v2680, %v2643
  %v3125 = vpack.c.b16 %v2681, %v2644
  %v3126 = vpack.c.b16 %v2682, %v2645
  %v3127 = vpack.c.b16 %v2683, %v2646
  %v3128 = vpack.c.b16 %v2684, %v2647
  %v3129 = vpack.c.b16 %v2685, %v2648
  %v3130 = vpack.c.b16 %v2686, %v2649
  %v3131 = vpack.c.b16 %v2687, %v2650
  %v3132 = vpack.c.b16 %v2688, %v2651
  %v3133 = vpack.c.b16 %v2689, %v2652
  %v3134 = vpack.c.b16 %v2690, %v2653
  %v3135 = vpack.c.b16 %v2691, %v2654
  %v3136 = vpack.c.b16 %v2692, %v2655
  %v3137 = vpack.c.b16 %v2693, %v2656
  %v3138 = vpack.c.b16 %v2694, %v2657
  %v3139 = vpack.c.b16 %v2695, %v2658
  %v3140 = vpack.c.b16 %v2696, %v2659
  %v3141 = vpack.c.b16 %v2697, %v2660
  %v3142 = vpack.c.b16 %v2698, %v2661
  %v3143 = vpack.c.b16 %v2699, %v2662
  %v3144 = vpack.c.b16 %v2700, %v2663
  %v3145 = vpack.c.b16 %v2701, %v2664
  %v3146 = vpack.c.b16 %v2702, %v2665
  %v3147 = vpack.c.b16 %v2703, %v2666
  %v3148 = vpack.c.b16 %v2704, %v2667
  %v3149 = vpack.c.b16 %v2705, %v2668
  %v3150 = vpack.c.b16 %v2706, %v2669
  %v3151 = vpack.c.b16 %v2707, %v2670
  %v3152 = vpack.c.b16 %v2708, %v2671
  %v3153 = vpack.c.b16 %v2709, %v2672
  %v3154 = vpack.c.b16 %v2710, %v2673
  %v3155 = vpack.c.b16 %v2711, %v2674
  %v3156 = vpack.c.b16 %v2712, %v2675
  %v3157 = vpack.c.b16 %v2713, %v2676
  %v3158 = vpack.c.b16 %v2714, %v2677
  %v3159 = vpack.c.b16 %v2715, %v2678
  %v3160 = vpack.c.b16 %v2716, %v2679
  %v3161 = vpack.c.b16 %v2754, %v2717
  %v3162 = vpack.c.b16 %v2755, %v2718
  %v3163 = vpack.c.b16 %v2756, %v2719
  %v3164 = vpack.c.b16 %v2757, %v2720
  %v3165 = vpack.c.b16 %v2758, %v2721
  %v3166 = vpack.c.b16 %v2759, %v2722
  %v3167 = vpack.c.b16 %v2760, %v2723
  %v3168 = vpack.c.b16 %v2761, %v2724
  %v3169 = vpack.c.b16 %v2762, %v2725
  %v3170 = vpack.c.b16 %v2763, %v2726
  %v3171 = vpack.c.b16 %v2764, %v2727
  %v3172 = vpack.c.b16 %v2765, %v2728
  %v3173 = vpack.c.b16 %v2766, %v2729
  %v3174 = vpack.c.b16 %v2767, %v2730
  %v3175 = vpack.c.b16 %v2768, %v2731
  %v3176 = vpack.c.b16 %v2769, %v2732
  %v3177 = vpack.c.b16 %v2770, %v2733
  %v3178 = vpack.c.b16 %v2771, %v2734
  %v3179 = vpack.c.b16 %v2772, %v2735
  %v3180 = vpack.c.b16 %v2773, %v2736
  %v3181 = vpack.c.b16 %v2774, %v2737
  %v3182 = vpack.c.b16 %v2775, %v2738
  %v3183 = vpack.c.b16 %v2776, %v2739
  %v3184 = vpack.c.b16 %v2777, %v2740
  %v3185 = vpack.c.b16 %v2778, %v2741
  %v3186 = vpack.c.b16 %v2779, %v2742
  %v3187 = vpack.c.b16 %v2780, %v2743
  %v3188 = vpack.c.b16 %v2781, %v2744
  %v3189 = vpack.c.b16 %v2782, %v2745
  %v3190 = vpack.c.b16 %v2783, %v2746
  %v3191 = vpack.c.b16 %v2784, %v2747
  %v3192 = vpack.c.b16 %v2785, %v2748
  %v3193 = vpack.c.b16 %v2786, %v2749
  %v3194 = vpack.c.b16 %v2787, %v2750
  %v3195 = vpack.c.b16 %v2788, %v2751
  %v3196 = vpack.c.b16 %v2789, %v2752
  %v3197 = vpack.c.b16 %v2790, %v2753
  %v3198 = vpack.c.b16 %v2828, %v2791
  %v3199 = vpack.c.b16 %v2829, %v2792
  %v3200 = vpack.c.b16 %v2830, %v2793
  %v3201 = vpack.c.b16 %v2831, %v2794
  %v3202 = vpack.c.b16 %v2832, %v2795
  %v3203 = vpack.c.b16 %v2833, %v2796
  %v3204 = vpack.c.b16 %v2834, %v2797
  %v3205 = vpack.c.b16 %v2835, %v2798
  %v3206 = vpack.c.b16 %v2836, %v2799
  %v3207 = vpack.c.b16 %v2837, %v2800
  %v3208 = vpack.c.b16 %v2838, %v2801
  %v3209 = vpack.c.b16 %v2839, %v2802
  %v3210 = vpack.c.b16 %v2840, %v2803
  %v3211 = vpack.c.b16 %v2841, %v2804
  %v3212 = vpack.c.b16 %v2842, %v2805
  %v3213 = vpack.c.b16 %v2843, %v2806
  %v3214 = vpack.c.b16 %v2844, %v2807
  %v3215 = vpack.c.b16 %v2845, %v2808
  %v3216 = vpack.c.b16 %v2846, %v2809
  %v3217 = vpack.c.b16 %v2847, %v2810
  %v3218 = vpack.c.b16 %v2848, %v2811
  %v3219 = vpack.c.b16 %v2849, %v2812
  %v3220 = vpack.c.b16 %v2850, %v2813
  %v3221 = vpack.c.b16 %v2851, %v2814
  %v3222 = vpack.c.b16 %v2852, %v2815
  %v3223 = vpack.c.b16 %v2853, %v2816
  %v3224 = vpack.c.b16 %v2854, %v2817
  %v3225 = vpack.c.b16 %v2855, %v2818
  %v3226 = vpack.c.b16 %v2856, %v2819
  %v3227 = vpack.c.b16 %v2857, %v2820
  %v3228 = vpack.c.b16 %v2858, %v2821
  %v3229 = vpack.c.b16 %v2859, %v2822
  %v3230 = vpack.c.b16 %v2860, %v2823
  %v3231 = vpack.c.b16 %v2861, %v2824
  %v3232 = vpack.c.b16 %v2862, %v2825
  %v3233 = vpack.c.b16 %v2863, %v2826
  %v3234 = vpack.c.b16 %v2864, %v2827
  %v3235 = vpack.c.b16 %v2902, %v2865
  %v3236 = vpack.c.b16 %v2903, %v2866
  %v3237 = vpack.c.b16 %v2904, %v2867
  %v3238 = vpack.c.b16 %v2905, %v2868
  %v3239 = vpack.c.b16 %v2906, %v2869
  %v3240 = vpack.c.b16 %v2907, %v2870
  %v3241 = vpack.c.b16 %v2908, %v2871
  %v3242 = vpack.c.b16 %v2909, %v2872
  %v3243 = vpack.c.b16 %v2910, %v2873
  %v3244 = vpack.c.b16 %v2911, %v2874
  %v3245 = vpack.c.b16 %v2912, %v2875
  %v3246 = vpack.c.b16 %v2913, %v2876
  %v3247 = vpack.c.b16 %v2914, %v2877
  %v3248 = vpack.c.b16 %v2915, %v2878
  %v3249 = vpack.c.b16 %v2916, %v2879
  %v3250 = vpack.c.b16 %v2917, %v2880
  %v3251 = vpack.c.b16 %v2918, %v2881
  %v3252 = vpack.c.b16 %v2919, %v2882
  %v3253 = vpack.c.b16 %v2920, %v2883
  %v3254 = vpack.c.b16 %v2921, %v2884
  %v3255 = vpack.c.b16 %v2922, %v2885
  %v3256 = vpack.c.b16 %v2923, %v2886
  %v3257 = vpack.c.b16 %v2924, %v2887
  %v3258 = vpack.c.b16 %v2925, %v2888
  %v3259 = vpack.c.b16 %v2926, %v2889
  %v3260 = vpack.c.b16 %v2927, %v2890
  %v3261 = vpack.c.b16 %v2928, %v2891
  %v3262 = vpack.c.b16 %v2929, %v2892
  %v3263 = vpack.c.b16 %v2930, %v2893
  %v3264 = vpack.c.b16 %v2931, %v2894
  %v3265 = vpack.c.b16 %v2932, %v2895
  %v3266 = vpack.c.b16 %v2933, %v2896
  %v3267 = vpack.c.b16 %v2934, %v2897
  %v3268 = vpack.c.b16 %v2935, %v2898
  %v3269 = vpack.c.b16 %v2936, %v2899
  %v3270 = vpack.c.b16 %v2937, %v2900
  %v3271 = vpack.c.b16 %v2938, %v2901
  %v3272 = vpack.c.b16 %v2976, %v2939
  %v3273 = vpack.c.b16 %v2977, %v2940
  %v3274 = vpack.c.b16 %v2978, %v2941
  %v3275 = vpack.c.b16 %v2979, %v2942
  %v3276 = vpack.c.b16 %v2980, %v2943
  %v3277 = vpack.c.b16 %v2981, %v2944
  %v3278 = vpack.c.b16 %v2982, %v2945
  %v3279 = vpack.c.b16 %v2983, %v2946
  %v3280 = vpack.c.b16 %v2984, %v2947
  %v3281 = vpack.c.b16 %v2985, %v2948
  %v3282 = vpack.c.b16 %v2986, %v2949
  %v3283 = vpack.c.b16 %v2987, %v2950
  %v3284 = vpack.c.b16 %v2988, %v2951
  %v3285 = vpack.c.b16 %v2989, %v2952
  %v3286 = vpack.c.b16 %v2990, %v2953
  %v3287 = vpack.c.b16 %v2991, %v2954
  %v3288 = vpack.c.b16 %v2992, %v2955
  %v3289 = vpack.c.b16 %v2993, %v2956
  %v3290 = vpack.c.b16 %v2994, %v2957
  %v3291 = vpack.c.b16 %v2995, %v2958
  %v3292 = vpack.c.b16 %v2996, %v2959
  %v3293 = vpack.c.b16 %v2997, %v2960
  %v3294 = vpack.c.b16 %v2998, %v2961
  %v3295 = vpack.c.b16 %v2999, %v2962
  %v3296 = vpack.c.b16 %v3000, %v2963
  %v3297 = vpack.c.b16 %v3001, %v2964
  %v3298 = vpack.c.b16 %v3002, %v2965
  %v3299 = vpack.c.b16 %v3003, %v2966
  %v3300 = vpack.c.b16 %v3004, %v2967
  %v3301 = vpack.c.b16 %v3005, %v2968
  %v3302 = vpack.c.b16 %v3006, %v2969
  %v3303 = vpack.c.b16 %v3007, %v2970
  %v3304 = vpack.c.b16 %v3008, %v2971
  %v3305 = vpack.c.b16 %v3009, %v2972
  %v3306 = vpack.c.b16 %v3010, %v2973
  %v3307 = vpack.c.b16 %v3011, %v2974
  %v3308 = vpack.c.b16 %v3012, %v2975
  %3605 = vmatprep.subr.bf16.mxu0 %v3014
  %3606 = vmatpush1.bf16.msra.mxu0 %v3013
  %3607 = vmatprep.subr.bf16.mxu0 %v3051
  %3608 = vmatpush1.bf16.msra.mxu0 %v3050
  %3609 = vmatprep.subr.bf16.mxu0 %v3088
  %3610 = vmatpush1.bf16.msra.mxu0 %v3087
  %3611 = vmatprep.subr.bf16.mxu0 %v3125
  %3612 = vmatpush1.bf16.msra.mxu0 %v3124
  %3613 = vmatprep.subr.bf16.mxu0 %v3162
  %3614 = vmatpush1.bf16.msra.mxu0 %v3161
  %3615 = vmatprep.subr.bf16.mxu0 %v3199
  %3616 = vmatpush1.bf16.msra.mxu0 %v3198
  %3617 = vmatprep.subr.bf16.mxu0 %v3236
  %3618 = vmatpush1.bf16.msra.mxu0 %v3235
  %3619 = vmatprep.subr.bf16.mxu0 %v3273
  %3620 = vmatpush1.bf16.msra.mxu0 %v3272
  %3621 = vmatprep.subr.bf16.mxu0 0
  %3622 = vmatpush1.bf16.msra.mxu0 0
  %3623 = vmatprep.subr.bf16.mxu0 0
  %3624 = vmatpush1.bf16.msra.mxu0 0
  %3625 = vmatprep.subr.bf16.mxu0 0
  %3626 = vmatpush1.bf16.msra.mxu0 0
  %3627 = vmatprep.subr.bf16.mxu0 0
  %3628 = vmatpush1.bf16.msra.mxu0 0
  %3629 = vmatprep.subr.bf16.mxu0 0
  %3630 = vmatpush1.bf16.msra.mxu0 0
  %3631 = vmatprep.subr.bf16.mxu0 0
  %3632 = vmatpush1.bf16.msra.mxu0 0
  %3633 = vmatprep.subr.bf16.mxu0 0
  %3634 = vmatpush1.bf16.msra.mxu0 0
  %3635 = vmatprep.subr.bf16.mxu0 0
  %3636 = vmatpush1.bf16.msra.mxu0 0
  %3637 = vmatprep.mubr.bf16.mxu0 0
  %3638 = vmatmul.mubr.bf16.gmra.mrb[0].mxu0 %v1616
  %v3639 = vpop.f32.mrb[0].mxu0
  %v3640 = vadd.f32 %v1935, %v3639
  %v3641 = vpop.f32.mrb[0].mxu0
  %v3642 = vadd.f32 %v1939, %v3641
  %v3643 = vpop.f32.mrb[0].mxu0
  %v3644 = vadd.f32 %v1935, %v3643
  %v3645 = vpop.f32.mrb[0].mxu0
  %v3646 = vadd.f32 %v1939, %v3645
  %3647 = vmatprep.mubr.bf16.mxu0 0
  %3648 = vmatmul.mubr.bf16.gmra.mrb[0].mxu0 %v1617
  %v3649 = vpop.f32.mrb[0].mxu0
  %v3650 = vadd.f32 %v1935, %v3649
  %v3651 = vpop.f32.mrb[0].mxu0
  %v3652 = vadd.f32 %v1939, %v3651
  %v3653 = vpop.f32.mrb[0].mxu0
  %v3654 = vadd.f32 %v1935, %v3653
  %v3655 = vpop.f32.mrb[0].mxu0
  %v3656 = vadd.f32 %v1939, %v3655
  %3657 = vdwg.mxu0
  %3658 = vmatprep.subr.bf16.mxu0 %v3016
  %3659 = vmatpush1.bf16.msra.mxu0 %v3015
  %3660 = vmatprep.subr.bf16.mxu0 %v3053
  %3661 = vmatpush1.bf16.msra.mxu0 %v3052
  %3662 = vmatprep.subr.bf16.mxu0 %v3090
  %3663 = vmatpush1.bf16.msra.mxu0 %v3089
  %3664 = vmatprep.subr.bf16.mxu0 %v3127
  %3665 = vmatpush1.bf16.msra.mxu0 %v3126
  %3666 = vmatprep.subr.bf16.mxu0 %v3164
  %3667 = vmatpush1.bf16.msra.mxu0 %v3163
  %3668 = vmatprep.subr.bf16.mxu0 %v3201
  %3669 = vmatpush1.bf16.msra.mxu0 %v3200
  %3670 = vmatprep.subr.bf16.mxu0 %v3238
  %3671 = vmatpush1.bf16.msra.mxu0 %v3237
  %3672 = vmatprep.subr.bf16.mxu0 %v3275
  %3673 = vmatpush1.bf16.msra.mxu0 %v3274
  %3674 = vmatprep.subr.bf16.mxu0 0
  %3675 = vmatpush1.bf16.msra.mxu0 0
  %3676 = vmatprep.subr.bf16.mxu0 0
  %3677 = vmatpush1.bf16.msra.mxu0 0
  %3678 = vmatprep.subr.bf16.mxu0 0
  %3679 = vmatpush1.bf16.msra.mxu0 0
  %3680 = vmatprep.subr.bf16.mxu0 0
  %3681 = vmatpush1.bf16.msra.mxu0 0
  %3682 = vmatprep.subr.bf16.mxu0 0
  %3683 = vmatpush1.bf16.msra.mxu0 0
  %3684 = vmatprep.subr.bf16.mxu0 0
  %3685 = vmatpush1.bf16.msra.mxu0 0
  %3686 = vmatprep.subr.bf16.mxu0 0
  %3687 = vmatpush1.bf16.msra.mxu0 0
  %3688 = vmatprep.subr.bf16.mxu0 0
  %3689 = vmatpush1.bf16.msra.mxu0 0
  %3690 = vmatprep.mubr.bf16.mxu0 0
  %3691 = vmatmul.mubr.bf16.gmra.mrb[0].mxu0 %v1616
  %v3692 = vpop.f32.mrb[0].mxu0
  %v3693 = vadd.f32 %v1943, %v3692
  %v3694 = vpop.f32.mrb[0].mxu0
  %v3695 = vadd.f32 %v1947, %v3694
  %v3696 = vpop.f32.mrb[0].mxu0
  %v3697 = vadd.f32 %v1943, %v3696
  %v3698 = vpop.f32.mrb[0].mxu0
  %v3699 = vadd.f32 %v1947, %v3698
  %3700 = vmatprep.mubr.bf16.mxu0 0
  %3701 = vmatmul.mubr.bf16.gmra.mrb[0].mxu0 %v1617
  %v3702 = vpop.f32.mrb[0].mxu0
  %v3703 = vadd.f32 %v1943, %v3702
  %v3704 = vpop.f32.mrb[0].mxu0
  %v3705 = vadd.f32 %v1947, %v3704
  %v3706 = vpop.f32.mrb[0].mxu0
  %v3707 = vadd.f32 %v1943, %v3706
  %v3708 = vpop.f32.mrb[0].mxu0
  %v3709 = vadd.f32 %v1947, %v3708
  %3710 = vdwg.mxu0
  %3711 = vmatprep.subr.bf16.mxu0 %v3018
  %3712 = vmatpush1.bf16.msra.mxu0 %v3017
  %3713 = vmatprep.subr.bf16.mxu0 %v3055
  %3714 = vmatpush1.bf16.msra.mxu0 %v3054
  %3715 = vmatprep.subr.bf16.mxu0 %v3092
  %3716 = vmatpush1.bf16.msra.mxu0 %v3091
  %3717 = vmatprep.subr.bf16.mxu0 %v3129
  %3718 = vmatpush1.bf16.msra.mxu0 %v3128
  %3719 = vmatprep.subr.bf16.mxu0 %v3166
  %3720 = vmatpush1.bf16.msra.mxu0 %v3165
  %3721 = vmatprep.subr.bf16.mxu0 %v3203
  %3722 = vmatpush1.bf16.msra.mxu0 %v3202
  %3723 = vmatprep.subr.bf16.mxu0 %v3240
  %3724 = vmatpush1.bf16.msra.mxu0 %v3239
  %3725 = vmatprep.subr.bf16.mxu0 %v3277
  %3726 = vmatpush1.bf16.msra.mxu0 %v3276
  %3727 = vmatprep.subr.bf16.mxu0 0
  %3728 = vmatpush1.bf16.msra.mxu0 0
  %3729 = vmatprep.subr.bf16.mxu0 0
  %3730 = vmatpush1.bf16.msra.mxu0 0
  %3731 = vmatprep.subr.bf16.mxu0 0
  %3732 = vmatpush1.bf16.msra.mxu0 0
  %3733 = vmatprep.subr.bf16.mxu0 0
  %3734 = vmatpush1.bf16.msra.mxu0 0
  %3735 = vmatprep.subr.bf16.mxu0 0
  %3736 = vmatpush1.bf16.msra.mxu0 0
  %3737 = vmatprep.subr.bf16.mxu0 0
  %3738 = vmatpush1.bf16.msra.mxu0 0
  %3739 = vmatprep.subr.bf16.mxu0 0
  %3740 = vmatpush1.bf16.msra.mxu0 0
  %3741 = vmatprep.subr.bf16.mxu0 0
  %3742 = vmatpush1.bf16.msra.mxu0 0
  %3743 = vmatprep.mubr.bf16.mxu0 0
  %3744 = vmatmul.mubr.bf16.gmra.mrb[0].mxu0 %v1616
  %v3745 = vpop.f32.mrb[0].mxu0
  %v3746 = vadd.f32 %v1951, %v3745
  %v3747 = vpop.f32.mrb[0].mxu0
  %v3748 = vadd.f32 %v1955, %v3747
  %v3749 = vpop.f32.mrb[0].mxu0
  %v3750 = vadd.f32 %v1951, %v3749
  %v3751 = vpop.f32.mrb[0].mxu0
  %v3752 = vadd.f32 %v1955, %v3751
  %3753 = vmatprep.mubr.bf16.mxu0 0
  %3754 = vmatmul.mubr.bf16.gmra.mrb[0].mxu0 %v1617
  %v3755 = vpop.f32.mrb[0].mxu0
  %v3756 = vadd.f32 %v1951, %v3755
  %v3757 = vpop.f32.mrb[0].mxu0
  %v3758 = vadd.f32 %v1955, %v3757
  %v3759 = vpop.f32.mrb[0].mxu0
  %v3760 = vadd.f32 %v1951, %v3759
  %v3761 = vpop.f32.mrb[0].mxu0
  %v3762 = vadd.f32 %v1955, %v3761
  %3763 = vdwg.mxu0
  %3764 = vmatprep.subr.bf16.mxu0 %v3020
  %3765 = vmatpush1.bf16.msra.mxu0 %v3019
  %3766 = vmatprep.subr.bf16.mxu0 %v3057
  %3767 = vmatpush1.bf16.msra.mxu0 %v3056
  %3768 = vmatprep.subr.bf16.mxu0 %v3094
  %3769 = vmatpush1.bf16.msra.mxu0 %v3093
  %3770 = vmatprep.subr.bf16.mxu0 %v3131
  %3771 = vmatpush1.bf16.msra.mxu0 %v3130
  %3772 = vmatprep.subr.bf16.mxu0 %v3168
  %3773 = vmatpush1.bf16.msra.mxu0 %v3167
  %3774 = vmatprep.subr.bf16.mxu0 %v3205
  %3775 = vmatpush1.bf16.msra.mxu0 %v3204
  %3776 = vmatprep.subr.bf16.mxu0 %v3242
  %3777 = vmatpush1.bf16.msra.mxu0 %v3241
  %3778 = vmatprep.subr.bf16.mxu0 %v3279
  %3779 = vmatpush1.bf16.msra.mxu0 %v3278
  %3780 = vmatprep.subr.bf16.mxu0 0
  %3781 = vmatpush1.bf16.msra.mxu0 0
  %3782 = vmatprep.subr.bf16.mxu0 0
  %3783 = vmatpush1.bf16.msra.mxu0 0
  %3784 = vmatprep.subr.bf16.mxu0 0
  %3785 = vmatpush1.bf16.msra.mxu0 0
  %3786 = vmatprep.subr.bf16.mxu0 0
  %3787 = vmatpush1.bf16.msra.mxu0 0
  %3788 = vmatprep.subr.bf16.mxu0 0
  %3789 = vmatpush1.bf16.msra.mxu0 0
  %3790 = vmatprep.subr.bf16.mxu0 0
  %3791 = vmatpush1.bf16.msra.mxu0 0
  %3792 = vmatprep.subr.bf16.mxu0 0
  %3793 = vmatpush1.bf16.msra.mxu0 0
  %3794 = vmatprep.subr.bf16.mxu0 0
  %3795 = vmatpush1.bf16.msra.mxu0 0
  %3796 = vmatprep.mubr.bf16.mxu0 0
  %3797 = vmatmul.mubr.bf16.gmra.mrb[0].mxu0 %v1616
  %v3798 = vpop.f32.mrb[0].mxu0
  %v3799 = vadd.f32 %v1959, %v3798
  %v3800 = vpop.f32.mrb[0].mxu0
  %v3801 = vadd.f32 %v1963, %v3800
  %v3802 = vpop.f32.mrb[0].mxu0
  %v3803 = vadd.f32 %v1959, %v3802
  %v3804 = vpop.f32.mrb[0].mxu0
  %v3805 = vadd.f32 %v1963, %v3804
  %3806 = vmatprep.mubr.bf16.mxu0 0
  %3807 = vmatmul.mubr.bf16.gmra.mrb[0].mxu0 %v1617
  %v3808 = vpop.f32.mrb[0].mxu0
  %v3809 = vadd.f32 %v1959, %v3808
  %v3810 = vpop.f32.mrb[0].mxu0
  %v3811 = vadd.f32 %v1963, %v3810
  %v3812 = vpop.f32.mrb[0].mxu0
  %v3813 = vadd.f32 %v1959, %v3812
  %v3814 = vpop.f32.mrb[0].mxu0
  %v3815 = vadd.f32 %v1963, %v3814
  %3816 = vdwg.mxu0
  %3817 = vmatprep.subr.bf16.mxu0 %v3022
  %3818 = vmatpush1.bf16.msra.mxu0 %v3021
  %3819 = vmatprep.subr.bf16.mxu0 %v3059
  %3820 = vmatpush1.bf16.msra.mxu0 %v3058
  %3821 = vmatprep.subr.bf16.mxu0 %v3096
  %3822 = vmatpush1.bf16.msra.mxu0 %v3095
  %3823 = vmatprep.subr.bf16.mxu0 %v3133
  %3824 = vmatpush1.bf16.msra.mxu0 %v3132
  %3825 = vmatprep.subr.bf16.mxu0 %v3170
  %3826 = vmatpush1.bf16.msra.mxu0 %v3169
  %3827 = vmatprep.subr.bf16.mxu0 %v3207
  %3828 = vmatpush1.bf16.msra.mxu0 %v3206
  %3829 = vmatprep.subr.bf16.mxu0 %v3244
  %3830 = vmatpush1.bf16.msra.mxu0 %v3243
  %3831 = vmatprep.subr.bf16.mxu0 %v3281
  %3832 = vmatpush1.bf16.msra.mxu0 %v3280
  %3833 = vmatprep.subr.bf16.mxu0 0
  %3834 = vmatpush1.bf16.msra.mxu0 0
  %3835 = vmatprep.subr.bf16.mxu0 0
  %3836 = vmatpush1.bf16.msra.mxu0 0
  %3837 = vmatprep.subr.bf16.mxu0 0
  %3838 = vmatpush1.bf16.msra.mxu0 0
  %3839 = vmatprep.subr.bf16.mxu0 0
  %3840 = vmatpush1.bf16.msra.mxu0 0
  %3841 = vmatprep.subr.bf16.mxu0 0
  %3842 = vmatpush1.bf16.msra.mxu0 0
  %3843 = vmatprep.subr.bf16.mxu0 0
  %3844 = vmatpush1.bf16.msra.mxu0 0
  %3845 = vmatprep.subr.bf16.mxu0 0
  %3846 = vmatpush1.bf16.msra.mxu0 0
  %3847 = vmatprep.subr.bf16.mxu0 0
  %3848 = vmatpush1.bf16.msra.mxu0 0
  %3849 = vmatprep.mubr.bf16.mxu0 0
  %3850 = vmatmul.mubr.bf16.gmra.mrb[0].mxu0 %v1616
  %v3851 = vpop.f32.mrb[0].mxu0
  %v3852 = vadd.f32 %v1967, %v3851
  %v3853 = vpop.f32.mrb[0].mxu0
  %v3854 = vadd.f32 %v1971, %v3853
  %v3855 = vpop.f32.mrb[0].mxu0
  %v3856 = vadd.f32 %v1967, %v3855
  %v3857 = vpop.f32.mrb[0].mxu0
  %v3858 = vadd.f32 %v1971, %v3857
  %3859 = vmatprep.mubr.bf16.mxu0 0
  %3860 = vmatmul.mubr.bf16.gmra.mrb[0].mxu0 %v1617
  %v3861 = vpop.f32.mrb[0].mxu0
  %v3862 = vadd.f32 %v1967, %v3861
  %v3863 = vpop.f32.mrb[0].mxu0
  %v3864 = vadd.f32 %v1971, %v3863
  %v3865 = vpop.f32.mrb[0].mxu0
  %v3866 = vadd.f32 %v1967, %v3865
  %v3867 = vpop.f32.mrb[0].mxu0
  %v3868 = vadd.f32 %v1971, %v3867
  %3869 = vdwg.mxu0
  %3870 = vmatprep.subr.bf16.mxu0 %v3024
  %3871 = vmatpush1.bf16.msra.mxu0 %v3023
  %3872 = vmatprep.subr.bf16.mxu0 %v3061
  %3873 = vmatpush1.bf16.msra.mxu0 %v3060
  %3874 = vmatprep.subr.bf16.mxu0 %v3098
  %3875 = vmatpush1.bf16.msra.mxu0 %v3097
  %3876 = vmatprep.subr.bf16.mxu0 %v3135
  %3877 = vmatpush1.bf16.msra.mxu0 %v3134
  %3878 = vmatprep.subr.bf16.mxu0 %v3172
  %3879 = vmatpush1.bf16.msra.mxu0 %v3171
  %3880 = vmatprep.subr.bf16.mxu0 %v3209
  %3881 = vmatpush1.bf16.msra.mxu0 %v3208
  %3882 = vmatprep.subr.bf16.mxu0 %v3246
  %3883 = vmatpush1.bf16.msra.mxu0 %v3245
  %3884 = vmatprep.subr.bf16.mxu0 %v3283
  %3885 = vmatpush1.bf16.msra.mxu0 %v3282
  %3886 = vmatprep.subr.bf16.mxu0 0
  %3887 = vmatpush1.bf16.msra.mxu0 0
  %3888 = vmatprep.subr.bf16.mxu0 0
  %3889 = vmatpush1.bf16.msra.mxu0 0
  %3890 = vmatprep.subr.bf16.mxu0 0
  %3891 = vmatpush1.bf16.msra.mxu0 0
  %3892 = vmatprep.subr.bf16.mxu0 0
  %3893 = vmatpush1.bf16.msra.mxu0 0
  %3894 = vmatprep.subr.bf16.mxu0 0
  %3895 = vmatpush1.bf16.msra.mxu0 0
  %3896 = vmatprep.subr.bf16.mxu0 0
  %3897 = vmatpush1.bf16.msra.mxu0 0
  %3898 = vmatprep.subr.bf16.mxu0 0
  %3899 = vmatpush1.bf16.msra.mxu0 0
  %3900 = vmatprep.subr.bf16.mxu0 0
  %3901 = vmatpush1.bf16.msra.mxu0 0
  %3902 = vmatprep.mubr.bf16.mxu0 0
  %3903 = vmatmul.mubr.bf16.gmra.mrb[0].mxu0 %v1616
  %v3904 = vpop.f32.mrb[0].mxu0
  %v3905 = vadd.f32 %v1975, %v3904
  %v3906 = vpop.f32.mrb[0].mxu0
  %v3907 = vadd.f32 %v1979, %v3906
  %v3908 = vpop.f32.mrb[0].mxu0
  %v3909 = vadd.f32 %v1975, %v3908
  %v3910 = vpop.f32.mrb[0].mxu0
  %v3911 = vadd.f32 %v1979, %v3910
  %3912 = vmatprep.mubr.bf16.mxu0 0
  %3913 = vmatmul.mubr.bf16.gmra.mrb[0].mxu0 %v1617
  %v3914 = vpop.f32.mrb[0].mxu0
  %v3915 = vadd.f32 %v1975, %v3914
  %v3916 = vpop.f32.mrb[0].mxu0
  %v3917 = vadd.f32 %v1979, %v3916
  %v3918 = vpop.f32.mrb[0].mxu0
  %v3919 = vadd.f32 %v1975, %v3918
  %v3920 = vpop.f32.mrb[0].mxu0
  %v3921 = vadd.f32 %v1979, %v3920
  %3922 = vdwg.mxu0
  %3923 = vmatprep.subr.bf16.mxu0 %v3026
  %3924 = vmatpush1.bf16.msra.mxu0 %v3025
  %3925 = vmatprep.subr.bf16.mxu0 %v3063
  %3926 = vmatpush1.bf16.msra.mxu0 %v3062
  %3927 = vmatprep.subr.bf16.mxu0 %v3100
  %3928 = vmatpush1.bf16.msra.mxu0 %v3099
  %3929 = vmatprep.subr.bf16.mxu0 %v3137
  %3930 = vmatpush1.bf16.msra.mxu0 %v3136
  %3931 = vmatprep.subr.bf16.mxu0 %v3174
  %3932 = vmatpush1.bf16.msra.mxu0 %v3173
  %3933 = vmatprep.subr.bf16.mxu0 %v3211
  %3934 = vmatpush1.bf16.msra.mxu0 %v3210
  %3935 = vmatprep.subr.bf16.mxu0 %v3248
  %3936 = vmatpush1.bf16.msra.mxu0 %v3247
  %3937 = vmatprep.subr.bf16.mxu0 %v3285
  %3938 = vmatpush1.bf16.msra.mxu0 %v3284
  %3939 = vmatprep.subr.bf16.mxu0 0
  %3940 = vmatpush1.bf16.msra.mxu0 0
  %3941 = vmatprep.subr.bf16.mxu0 0
  %3942 = vmatpush1.bf16.msra.mxu0 0
  %3943 = vmatprep.subr.bf16.mxu0 0
  %3944 = vmatpush1.bf16.msra.mxu0 0
  %3945 = vmatprep.subr.bf16.mxu0 0
  %3946 = vmatpush1.bf16.msra.mxu0 0
  %3947 = vmatprep.subr.bf16.mxu0 0
  %3948 = vmatpush1.bf16.msra.mxu0 0
  %3949 = vmatprep.subr.bf16.mxu0 0
  %3950 = vmatpush1.bf16.msra.mxu0 0
  %3951 = vmatprep.subr.bf16.mxu0 0
  %3952 = vmatpush1.bf16.msra.mxu0 0
  %3953 = vmatprep.subr.bf16.mxu0 0
  %3954 = vmatpush1.bf16.msra.mxu0 0
  %3955 = vmatprep.mubr.bf16.mxu0 0
  %3956 = vmatmul.mubr.bf16.gmra.mrb[0].mxu0 %v1616
  %v3957 = vpop.f32.mrb[0].mxu0
  %v3958 = vadd.f32 %v1983, %v3957
  %v3959 = vpop.f32.mrb[0].mxu0
  %v3960 = vadd.f32 %v1987, %v3959
  %v3961 = vpop.f32.mrb[0].mxu0
  %v3962 = vadd.f32 %v1983, %v3961
  %v3963 = vpop.f32.mrb[0].mxu0
  %v3964 = vadd.f32 %v1987, %v3963
  %3965 = vmatprep.mubr.bf16.mxu0 0
  %3966 = vmatmul.mubr.bf16.gmra.mrb[0].mxu0 %v1617
  %v3967 = vpop.f32.mrb[0].mxu0
  %v3968 = vadd.f32 %v1983, %v3967
  %v3969 = vpop.f32.mrb[0].mxu0
  %v3970 = vadd.f32 %v1987, %v3969
  %v3971 = vpop.f32.mrb[0].mxu0
  %v3972 = vadd.f32 %v1983, %v3971
  %v3973 = vpop.f32.mrb[0].mxu0
  %v3974 = vadd.f32 %v1987, %v3973
  %3975 = vdwg.mxu0
  %3976 = vmatprep.subr.bf16.mxu0 %v3028
  %3977 = vmatpush1.bf16.msra.mxu0 %v3027
  %3978 = vmatprep.subr.bf16.mxu0 %v3065
  %3979 = vmatpush1.bf16.msra.mxu0 %v3064
  %3980 = vmatprep.subr.bf16.mxu0 %v3102
  %3981 = vmatpush1.bf16.msra.mxu0 %v3101
  %3982 = vmatprep.subr.bf16.mxu0 %v3139
  %3983 = vmatpush1.bf16.msra.mxu0 %v3138
  %3984 = vmatprep.subr.bf16.mxu0 %v3176
  %3985 = vmatpush1.bf16.msra.mxu0 %v3175
  %3986 = vmatprep.subr.bf16.mxu0 %v3213
  %3987 = vmatpush1.bf16.msra.mxu0 %v3212
  %3988 = vmatprep.subr.bf16.mxu0 %v3250
  %3989 = vmatpush1.bf16.msra.mxu0 %v3249
  %3990 = vmatprep.subr.bf16.mxu0 %v3287
  %3991 = vmatpush1.bf16.msra.mxu0 %v3286
  %3992 = vmatprep.subr.bf16.mxu0 0
  %3993 = vmatpush1.bf16.msra.mxu0 0
  %3994 = vmatprep.subr.bf16.mxu0 0
  %3995 = vmatpush1.bf16.msra.mxu0 0
  %3996 = vmatprep.subr.bf16.mxu0 0
  %3997 = vmatpush1.bf16.msra.mxu0 0
  %3998 = vmatprep.subr.bf16.mxu0 0
  %3999 = vmatpush1.bf16.msra.mxu0 0
  %4000 = vmatprep.subr.bf16.mxu0 0
  %4001 = vmatpush1.bf16.msra.mxu0 0
  %4002 = vmatprep.subr.bf16.mxu0 0
  %4003 = vmatpush1.bf16.msra.mxu0 0
  %4004 = vmatprep.subr.bf16.mxu0 0
  %4005 = vmatpush1.bf16.msra.mxu0 0
  %4006 = vmatprep.subr.bf16.mxu0 0
  %4007 = vmatpush1.bf16.msra.mxu0 0
  %4008 = vmatprep.mubr.bf16.mxu0 0
  %4009 = vmatmul.mubr.bf16.gmra.mrb[0].mxu0 %v1616
  %v4010 = vpop.f32.mrb[0].mxu0
  %v4011 = vadd.f32 %v1991, %v4010
  %v4012 = vpop.f32.mrb[0].mxu0
  %v4013 = vadd.f32 %v1995, %v4012
  %v4014 = vpop.f32.mrb[0].mxu0
  %v4015 = vadd.f32 %v1991, %v4014
  %v4016 = vpop.f32.mrb[0].mxu0
  %v4017 = vadd.f32 %v1995, %v4016
  %4018 = vmatprep.mubr.bf16.mxu0 0
  %4019 = vmatmul.mubr.bf16.gmra.mrb[0].mxu0 %v1617
  %v4020 = vpop.f32.mrb[0].mxu0
  %v4021 = vadd.f32 %v1991, %v4020
  %v4022 = vpop.f32.mrb[0].mxu0
  %v4023 = vadd.f32 %v1995, %v4022
  %v4024 = vpop.f32.mrb[0].mxu0
  %v4025 = vadd.f32 %v1991, %v4024
  %v4026 = vpop.f32.mrb[0].mxu0
  %v4027 = vadd.f32 %v1995, %v4026
  %4028 = vdwg.mxu0
  %4029 = vmatprep.subr.bf16.mxu0 %v3030
  %4030 = vmatpush1.bf16.msra.mxu0 %v3029
  %4031 = vmatprep.subr.bf16.mxu0 %v3067
  %4032 = vmatpush1.bf16.msra.mxu0 %v3066
  %4033 = vmatprep.subr.bf16.mxu0 %v3104
  %4034 = vmatpush1.bf16.msra.mxu0 %v3103
  %4035 = vmatprep.subr.bf16.mxu0 %v3141
  %4036 = vmatpush1.bf16.msra.mxu0 %v3140
  %4037 = vmatprep.subr.bf16.mxu0 %v3178
  %4038 = vmatpush1.bf16.msra.mxu0 %v3177
  %4039 = vmatprep.subr.bf16.mxu0 %v3215
  %4040 = vmatpush1.bf16.msra.mxu0 %v3214
  %4041 = vmatprep.subr.bf16.mxu0 %v3252
  %4042 = vmatpush1.bf16.msra.mxu0 %v3251
  %4043 = vmatprep.subr.bf16.mxu0 %v3289
  %4044 = vmatpush1.bf16.msra.mxu0 %v3288
  %4045 = vmatprep.subr.bf16.mxu0 0
  %4046 = vmatpush1.bf16.msra.mxu0 0
  %4047 = vmatprep.subr.bf16.mxu0 0
  %4048 = vmatpush1.bf16.msra.mxu0 0
  %4049 = vmatprep.subr.bf16.mxu0 0
  %4050 = vmatpush1.bf16.msra.mxu0 0
  %4051 = vmatprep.subr.bf16.mxu0 0
  %4052 = vmatpush1.bf16.msra.mxu0 0
  %4053 = vmatprep.subr.bf16.mxu0 0
  %4054 = vmatpush1.bf16.msra.mxu0 0
  %4055 = vmatprep.subr.bf16.mxu0 0
  %4056 = vmatpush1.bf16.msra.mxu0 0
  %4057 = vmatprep.subr.bf16.mxu0 0
  %4058 = vmatpush1.bf16.msra.mxu0 0
  %4059 = vmatprep.subr.bf16.mxu0 0
  %4060 = vmatpush1.bf16.msra.mxu0 0
  %4061 = vmatprep.mubr.bf16.mxu0 0
  %4062 = vmatmul.mubr.bf16.gmra.mrb[0].mxu0 %v1616
  %v4063 = vpop.f32.mrb[0].mxu0
  %v4064 = vadd.f32 %v1999, %v4063
  %v4065 = vpop.f32.mrb[0].mxu0
  %v4066 = vadd.f32 %v2003, %v4065
  %v4067 = vpop.f32.mrb[0].mxu0
  %v4068 = vadd.f32 %v1999, %v4067
  %v4069 = vpop.f32.mrb[0].mxu0
  %v4070 = vadd.f32 %v2003, %v4069
  %4071 = vmatprep.mubr.bf16.mxu0 0
  %4072 = vmatmul.mubr.bf16.gmra.mrb[0].mxu0 %v1617
  %v4073 = vpop.f32.mrb[0].mxu0
  %v4074 = vadd.f32 %v1999, %v4073
  %v4075 = vpop.f32.mrb[0].mxu0
  %v4076 = vadd.f32 %v2003, %v4075
  %v4077 = vpop.f32.mrb[0].mxu0
  %v4078 = vadd.f32 %v1999, %v4077
  %v4079 = vpop.f32.mrb[0].mxu0
  %v4080 = vadd.f32 %v2003, %v4079
  %4081 = vdwg.mxu0
  %4082 = vmatprep.subr.bf16.mxu0 %v3032
  %4083 = vmatpush1.bf16.msra.mxu0 %v3031
  %4084 = vmatprep.subr.bf16.mxu0 %v3069
  %4085 = vmatpush1.bf16.msra.mxu0 %v3068
  %4086 = vmatprep.subr.bf16.mxu0 %v3106
  %4087 = vmatpush1.bf16.msra.mxu0 %v3105
  %4088 = vmatprep.subr.bf16.mxu0 %v3143
  %4089 = vmatpush1.bf16.msra.mxu0 %v3142
  %4090 = vmatprep.subr.bf16.mxu0 %v3180
  %4091 = vmatpush1.bf16.msra.mxu0 %v3179
  %4092 = vmatprep.subr.bf16.mxu0 %v3217
  %4093 = vmatpush1.bf16.msra.mxu0 %v3216
  %4094 = vmatprep.subr.bf16.mxu0 %v3254
  %4095 = vmatpush1.bf16.msra.mxu0 %v3253
  %4096 = vmatprep.subr.bf16.mxu0 %v3291
  %4097 = vmatpush1.bf16.msra.mxu0 %v3290
  %4098 = vmatprep.subr.bf16.mxu0 0
  %4099 = vmatpush1.bf16.msra.mxu0 0
  %4100 = vmatprep.subr.bf16.mxu0 0
  %4101 = vmatpush1.bf16.msra.mxu0 0
  %4102 = vmatprep.subr.bf16.mxu0 0
  %4103 = vmatpush1.bf16.msra.mxu0 0
  %4104 = vmatprep.subr.bf16.mxu0 0
  %4105 = vmatpush1.bf16.msra.mxu0 0
  %4106 = vmatprep.subr.bf16.mxu0 0
  %4107 = vmatpush1.bf16.msra.mxu0 0
  %4108 = vmatprep.subr.bf16.mxu0 0
  %4109 = vmatpush1.bf16.msra.mxu0 0
  %4110 = vmatprep.subr.bf16.mxu0 0
  %4111 = vmatpush1.bf16.msra.mxu0 0
  %4112 = vmatprep.subr.bf16.mxu0 0
  %4113 = vmatpush1.bf16.msra.mxu0 0
  %4114 = vmatprep.mubr.bf16.mxu0 0
  %4115 = vmatmul.mubr.bf16.gmra.mrb[0].mxu0 %v1616
  %v4116 = vpop.f32.mrb[0].mxu0
  %v4117 = vadd.f32 %v2007, %v4116
  %v4118 = vpop.f32.mrb[0].mxu0
  %v4119 = vadd.f32 %v2011, %v4118
  %v4120 = vpop.f32.mrb[0].mxu0
  %v4121 = vadd.f32 %v2007, %v4120
  %v4122 = vpop.f32.mrb[0].mxu0
  %v4123 = vadd.f32 %v2011, %v4122
  %4124 = vmatprep.mubr.bf16.mxu0 0
  %4125 = vmatmul.mubr.bf16.gmra.mrb[0].mxu0 %v1617
  %v4126 = vpop.f32.mrb[0].mxu0
  %v4127 = vadd.f32 %v2007, %v4126
  %v4128 = vpop.f32.mrb[0].mxu0
  %v4129 = vadd.f32 %v2011, %v4128
  %v4130 = vpop.f32.mrb[0].mxu0
  %v4131 = vadd.f32 %v2007, %v4130
  %v4132 = vpop.f32.mrb[0].mxu0
  %v4133 = vadd.f32 %v2011, %v4132
  %4134 = vdwg.mxu0
  %4135 = vmatprep.subr.bf16.mxu0 %v3034
  %4136 = vmatpush1.bf16.msra.mxu0 %v3033
  %4137 = vmatprep.subr.bf16.mxu0 %v3071
  %4138 = vmatpush1.bf16.msra.mxu0 %v3070
  %4139 = vmatprep.subr.bf16.mxu0 %v3108
  %4140 = vmatpush1.bf16.msra.mxu0 %v3107
  %4141 = vmatprep.subr.bf16.mxu0 %v3145
  %4142 = vmatpush1.bf16.msra.mxu0 %v3144
  %4143 = vmatprep.subr.bf16.mxu0 %v3182
  %4144 = vmatpush1.bf16.msra.mxu0 %v3181
  %4145 = vmatprep.subr.bf16.mxu0 %v3219
  %4146 = vmatpush1.bf16.msra.mxu0 %v3218
  %4147 = vmatprep.subr.bf16.mxu0 %v3256
  %4148 = vmatpush1.bf16.msra.mxu0 %v3255
  %4149 = vmatprep.subr.bf16.mxu0 %v3293
  %4150 = vmatpush1.bf16.msra.mxu0 %v3292
  %4151 = vmatprep.subr.bf16.mxu0 0
  %4152 = vmatpush1.bf16.msra.mxu0 0
  %4153 = vmatprep.subr.bf16.mxu0 0
  %4154 = vmatpush1.bf16.msra.mxu0 0
  %4155 = vmatprep.subr.bf16.mxu0 0
  %4156 = vmatpush1.bf16.msra.mxu0 0
  %4157 = vmatprep.subr.bf16.mxu0 0
  %4158 = vmatpush1.bf16.msra.mxu0 0
  %4159 = vmatprep.subr.bf16.mxu0 0
  %4160 = vmatpush1.bf16.msra.mxu0 0
  %4161 = vmatprep.subr.bf16.mxu0 0
  %4162 = vmatpush1.bf16.msra.mxu0 0
  %4163 = vmatprep.subr.bf16.mxu0 0
  %4164 = vmatpush1.bf16.msra.mxu0 0
  %4165 = vmatprep.subr.bf16.mxu0 0
  %4166 = vmatpush1.bf16.msra.mxu0 0
  %4167 = vmatprep.mubr.bf16.mxu0 0
  %4168 = vmatmul.mubr.bf16.gmra.mrb[0].mxu0 %v1616
  %v4169 = vpop.f32.mrb[0].mxu0
  %v4170 = vadd.f32 %v2015, %v4169
  %v4171 = vpop.f32.mrb[0].mxu0
  %v4172 = vadd.f32 %v2019, %v4171
  %v4173 = vpop.f32.mrb[0].mxu0
  %v4174 = vadd.f32 %v2015, %v4173
  %v4175 = vpop.f32.mrb[0].mxu0
  %v4176 = vadd.f32 %v2019, %v4175
  %4177 = vmatprep.mubr.bf16.mxu0 0
  %4178 = vmatmul.mubr.bf16.gmra.mrb[0].mxu0 %v1617
  %v4179 = vpop.f32.mrb[0].mxu0
  %v4180 = vadd.f32 %v2015, %v4179
  %v4181 = vpop.f32.mrb[0].mxu0
  %v4182 = vadd.f32 %v2019, %v4181
  %v4183 = vpop.f32.mrb[0].mxu0
  %v4184 = vadd.f32 %v2015, %v4183
  %v4185 = vpop.f32.mrb[0].mxu0
  %v4186 = vadd.f32 %v2019, %v4185
  %4187 = vdwg.mxu0
  %4188 = vmatprep.subr.bf16.mxu0 %v3036
  %4189 = vmatpush1.bf16.msra.mxu0 %v3035
  %4190 = vmatprep.subr.bf16.mxu0 %v3073
  %4191 = vmatpush1.bf16.msra.mxu0 %v3072
  %4192 = vmatprep.subr.bf16.mxu0 %v3110
  %4193 = vmatpush1.bf16.msra.mxu0 %v3109
  %4194 = vmatprep.subr.bf16.mxu0 %v3147
  %4195 = vmatpush1.bf16.msra.mxu0 %v3146
  %4196 = vmatprep.subr.bf16.mxu0 %v3184
  %4197 = vmatpush1.bf16.msra.mxu0 %v3183
  %4198 = vmatprep.subr.bf16.mxu0 %v3221
  %4199 = vmatpush1.bf16.msra.mxu0 %v3220
  %4200 = vmatprep.subr.bf16.mxu0 %v3258
  %4201 = vmatpush1.bf16.msra.mxu0 %v3257
  %4202 = vmatprep.subr.bf16.mxu0 %v3295
  %4203 = vmatpush1.bf16.msra.mxu0 %v3294
  %4204 = vmatprep.subr.bf16.mxu0 0
  %4205 = vmatpush1.bf16.msra.mxu0 0
  %4206 = vmatprep.subr.bf16.mxu0 0
  %4207 = vmatpush1.bf16.msra.mxu0 0
  %4208 = vmatprep.subr.bf16.mxu0 0
  %4209 = vmatpush1.bf16.msra.mxu0 0
  %4210 = vmatprep.subr.bf16.mxu0 0
  %4211 = vmatpush1.bf16.msra.mxu0 0
  %4212 = vmatprep.subr.bf16.mxu0 0
  %4213 = vmatpush1.bf16.msra.mxu0 0
  %4214 = vmatprep.subr.bf16.mxu0 0
  %4215 = vmatpush1.bf16.msra.mxu0 0
  %4216 = vmatprep.subr.bf16.mxu0 0
  %4217 = vmatpush1.bf16.msra.mxu0 0
  %4218 = vmatprep.subr.bf16.mxu0 0
  %4219 = vmatpush1.bf16.msra.mxu0 0
  %4220 = vmatprep.mubr.bf16.mxu0 0
  %4221 = vmatmul.mubr.bf16.gmra.mrb[0].mxu0 %v1616
  %v4222 = vpop.f32.mrb[0].mxu0
  %v4223 = vadd.f32 %v2023, %v4222
  %v4224 = vpop.f32.mrb[0].mxu0
  %v4225 = vadd.f32 %v2027, %v4224
  %v4226 = vpop.f32.mrb[0].mxu0
  %v4227 = vadd.f32 %v2023, %v4226
  %v4228 = vpop.f32.mrb[0].mxu0
  %v4229 = vadd.f32 %v2027, %v4228
  %4230 = vmatprep.mubr.bf16.mxu0 0
  %4231 = vmatmul.mubr.bf16.gmra.mrb[0].mxu0 %v1617
  %v4232 = vpop.f32.mrb[0].mxu0
  %v4233 = vadd.f32 %v2023, %v4232
  %v4234 = vpop.f32.mrb[0].mxu0
  %v4235 = vadd.f32 %v2027, %v4234
  %v4236 = vpop.f32.mrb[0].mxu0
  %v4237 = vadd.f32 %v2023, %v4236
  %v4238 = vpop.f32.mrb[0].mxu0
  %v4239 = vadd.f32 %v2027, %v4238
  %4240 = vdwg.mxu0
  %4241 = vmatprep.subr.bf16.mxu0 %v3038
  %4242 = vmatpush1.bf16.msra.mxu0 %v3037
  %4243 = vmatprep.subr.bf16.mxu0 %v3075
  %4244 = vmatpush1.bf16.msra.mxu0 %v3074
  %4245 = vmatprep.subr.bf16.mxu0 %v3112
  %4246 = vmatpush1.bf16.msra.mxu0 %v3111
  %4247 = vmatprep.subr.bf16.mxu0 %v3149
  %4248 = vmatpush1.bf16.msra.mxu0 %v3148
  %4249 = vmatprep.subr.bf16.mxu0 %v3186
  %4250 = vmatpush1.bf16.msra.mxu0 %v3185
  %4251 = vmatprep.subr.bf16.mxu0 %v3223
  %4252 = vmatpush1.bf16.msra.mxu0 %v3222
  %4253 = vmatprep.subr.bf16.mxu0 %v3260
  %4254 = vmatpush1.bf16.msra.mxu0 %v3259
  %4255 = vmatprep.subr.bf16.mxu0 %v3297
  %4256 = vmatpush1.bf16.msra.mxu0 %v3296
  %4257 = vmatprep.subr.bf16.mxu0 0
  %4258 = vmatpush1.bf16.msra.mxu0 0
  %4259 = vmatprep.subr.bf16.mxu0 0
  %4260 = vmatpush1.bf16.msra.mxu0 0
  %4261 = vmatprep.subr.bf16.mxu0 0
  %4262 = vmatpush1.bf16.msra.mxu0 0
  %4263 = vmatprep.subr.bf16.mxu0 0
  %4264 = vmatpush1.bf16.msra.mxu0 0
  %4265 = vmatprep.subr.bf16.mxu0 0
  %4266 = vmatpush1.bf16.msra.mxu0 0
  %4267 = vmatprep.subr.bf16.mxu0 0
  %4268 = vmatpush1.bf16.msra.mxu0 0
  %4269 = vmatprep.subr.bf16.mxu0 0
  %4270 = vmatpush1.bf16.msra.mxu0 0
  %4271 = vmatprep.subr.bf16.mxu0 0
  %4272 = vmatpush1.bf16.msra.mxu0 0
  %4273 = vmatprep.mubr.bf16.mxu0 0
  %4274 = vmatmul.mubr.bf16.gmra.mrb[0].mxu0 %v1616
  %v4275 = vpop.f32.mrb[0].mxu0
  %v4276 = vadd.f32 %v2031, %v4275
  %v4277 = vpop.f32.mrb[0].mxu0
  %v4278 = vadd.f32 %v2035, %v4277
  %v4279 = vpop.f32.mrb[0].mxu0
  %v4280 = vadd.f32 %v2031, %v4279
  %v4281 = vpop.f32.mrb[0].mxu0
  %v4282 = vadd.f32 %v2035, %v4281
  %4283 = vmatprep.mubr.bf16.mxu0 0
  %4284 = vmatmul.mubr.bf16.gmra.mrb[0].mxu0 %v1617
  %v4285 = vpop.f32.mrb[0].mxu0
  %v4286 = vadd.f32 %v2031, %v4285
  %v4287 = vpop.f32.mrb[0].mxu0
  %v4288 = vadd.f32 %v2035, %v4287
  %v4289 = vpop.f32.mrb[0].mxu0
  %v4290 = vadd.f32 %v2031, %v4289
  %v4291 = vpop.f32.mrb[0].mxu0
  %v4292 = vadd.f32 %v2035, %v4291
  %4293 = vdwg.mxu0
  %4294 = vmatprep.subr.bf16.mxu0 %v3040
  %4295 = vmatpush1.bf16.msra.mxu0 %v3039
  %4296 = vmatprep.subr.bf16.mxu0 %v3077
  %4297 = vmatpush1.bf16.msra.mxu0 %v3076
  %4298 = vmatprep.subr.bf16.mxu0 %v3114
  %4299 = vmatpush1.bf16.msra.mxu0 %v3113
  %4300 = vmatprep.subr.bf16.mxu0 %v3151
  %4301 = vmatpush1.bf16.msra.mxu0 %v3150
  %4302 = vmatprep.subr.bf16.mxu0 %v3188
  %4303 = vmatpush1.bf16.msra.mxu0 %v3187
  %4304 = vmatprep.subr.bf16.mxu0 %v3225
  %4305 = vmatpush1.bf16.msra.mxu0 %v3224
  %4306 = vmatprep.subr.bf16.mxu0 %v3262
  %4307 = vmatpush1.bf16.msra.mxu0 %v3261
  %4308 = vmatprep.subr.bf16.mxu0 %v3299
  %4309 = vmatpush1.bf16.msra.mxu0 %v3298
  %4310 = vmatprep.subr.bf16.mxu0 0
  %4311 = vmatpush1.bf16.msra.mxu0 0
  %4312 = vmatprep.subr.bf16.mxu0 0
  %4313 = vmatpush1.bf16.msra.mxu0 0
  %4314 = vmatprep.subr.bf16.mxu0 0
  %4315 = vmatpush1.bf16.msra.mxu0 0
  %4316 = vmatprep.subr.bf16.mxu0 0
  %4317 = vmatpush1.bf16.msra.mxu0 0
  %4318 = vmatprep.subr.bf16.mxu0 0
  %4319 = vmatpush1.bf16.msra.mxu0 0
  %4320 = vmatprep.subr.bf16.mxu0 0
  %4321 = vmatpush1.bf16.msra.mxu0 0
  %4322 = vmatprep.subr.bf16.mxu0 0
  %4323 = vmatpush1.bf16.msra.mxu0 0
  %4324 = vmatprep.subr.bf16.mxu0 0
  %4325 = vmatpush1.bf16.msra.mxu0 0
  %4326 = vmatprep.mubr.bf16.mxu0 0
  %4327 = vmatmul.mubr.bf16.gmra.mrb[0].mxu0 %v1616
  %v4328 = vpop.f32.mrb[0].mxu0
  %v4329 = vadd.f32 %v2039, %v4328
  %v4330 = vpop.f32.mrb[0].mxu0
  %v4331 = vadd.f32 %v2043, %v4330
  %v4332 = vpop.f32.mrb[0].mxu0
  %v4333 = vadd.f32 %v2039, %v4332
  %v4334 = vpop.f32.mrb[0].mxu0
  %v4335 = vadd.f32 %v2043, %v4334
  %4336 = vmatprep.mubr.bf16.mxu0 0
  %4337 = vmatmul.mubr.bf16.gmra.mrb[0].mxu0 %v1617
  %v4338 = vpop.f32.mrb[0].mxu0
  %v4339 = vadd.f32 %v2039, %v4338
  %v4340 = vpop.f32.mrb[0].mxu0
  %v4341 = vadd.f32 %v2043, %v4340
  %v4342 = vpop.f32.mrb[0].mxu0
  %v4343 = vadd.f32 %v2039, %v4342
  %v4344 = vpop.f32.mrb[0].mxu0
  %v4345 = vadd.f32 %v2043, %v4344
  %4346 = vdwg.mxu0
  %4347 = vmatprep.subr.bf16.mxu0 %v3042
  %4348 = vmatpush1.bf16.msra.mxu0 %v3041
  %4349 = vmatprep.subr.bf16.mxu0 %v3079
  %4350 = vmatpush1.bf16.msra.mxu0 %v3078
  %4351 = vmatprep.subr.bf16.mxu0 %v3116
  %4352 = vmatpush1.bf16.msra.mxu0 %v3115
  %4353 = vmatprep.subr.bf16.mxu0 %v3153
  %4354 = vmatpush1.bf16.msra.mxu0 %v3152
  %4355 = vmatprep.subr.bf16.mxu0 %v3190
  %4356 = vmatpush1.bf16.msra.mxu0 %v3189
  %4357 = vmatprep.subr.bf16.mxu0 %v3227
  %4358 = vmatpush1.bf16.msra.mxu0 %v3226
  %4359 = vmatprep.subr.bf16.mxu0 %v3264
  %4360 = vmatpush1.bf16.msra.mxu0 %v3263
  %4361 = vmatprep.subr.bf16.mxu0 %v3301
  %4362 = vmatpush1.bf16.msra.mxu0 %v3300
  %4363 = vmatprep.subr.bf16.mxu0 0
  %4364 = vmatpush1.bf16.msra.mxu0 0
  %4365 = vmatprep.subr.bf16.mxu0 0
  %4366 = vmatpush1.bf16.msra.mxu0 0
  %4367 = vmatprep.subr.bf16.mxu0 0
  %4368 = vmatpush1.bf16.msra.mxu0 0
  %4369 = vmatprep.subr.bf16.mxu0 0
  %4370 = vmatpush1.bf16.msra.mxu0 0
  %4371 = vmatprep.subr.bf16.mxu0 0
  %4372 = vmatpush1.bf16.msra.mxu0 0
  %4373 = vmatprep.subr.bf16.mxu0 0
  %4374 = vmatpush1.bf16.msra.mxu0 0
  %4375 = vmatprep.subr.bf16.mxu0 0
  %4376 = vmatpush1.bf16.msra.mxu0 0
  %4377 = vmatprep.subr.bf16.mxu0 0
  %4378 = vmatpush1.bf16.msra.mxu0 0
  %4379 = vmatprep.mubr.bf16.mxu0 0
  %4380 = vmatmul.mubr.bf16.gmra.mrb[0].mxu0 %v1616
  %v4381 = vpop.f32.mrb[0].mxu0
  %v4382 = vadd.f32 %v2047, %v4381
  %v4383 = vpop.f32.mrb[0].mxu0
  %v4384 = vadd.f32 %v2051, %v4383
  %v4385 = vpop.f32.mrb[0].mxu0
  %v4386 = vadd.f32 %v2047, %v4385
  %v4387 = vpop.f32.mrb[0].mxu0
  %v4388 = vadd.f32 %v2051, %v4387
  %4389 = vmatprep.mubr.bf16.mxu0 0
  %4390 = vmatmul.mubr.bf16.gmra.mrb[0].mxu0 %v1617
  %v4391 = vpop.f32.mrb[0].mxu0
  %v4392 = vadd.f32 %v2047, %v4391
  %v4393 = vpop.f32.mrb[0].mxu0
  %v4394 = vadd.f32 %v2051, %v4393
  %v4395 = vpop.f32.mrb[0].mxu0
  %v4396 = vadd.f32 %v2047, %v4395
  %v4397 = vpop.f32.mrb[0].mxu0
  %v4398 = vadd.f32 %v2051, %v4397
  %4399 = vdwg.mxu0
  %4400 = vmatprep.subr.bf16.mxu0 %v3044
  %4401 = vmatpush1.bf16.msra.mxu0 %v3043
  %4402 = vmatprep.subr.bf16.mxu0 %v3081
  %4403 = vmatpush1.bf16.msra.mxu0 %v3080
  %4404 = vmatprep.subr.bf16.mxu0 %v3118
  %4405 = vmatpush1.bf16.msra.mxu0 %v3117
  %4406 = vmatprep.subr.bf16.mxu0 %v3155
  %4407 = vmatpush1.bf16.msra.mxu0 %v3154
  %4408 = vmatprep.subr.bf16.mxu0 %v3192
  %4409 = vmatpush1.bf16.msra.mxu0 %v3191
  %4410 = vmatprep.subr.bf16.mxu0 %v3229
  %4411 = vmatpush1.bf16.msra.mxu0 %v3228
  %4412 = vmatprep.subr.bf16.mxu0 %v3266
  %4413 = vmatpush1.bf16.msra.mxu0 %v3265
  %4414 = vmatprep.subr.bf16.mxu0 %v3303
  %4415 = vmatpush1.bf16.msra.mxu0 %v3302
  %4416 = vmatprep.subr.bf16.mxu0 0
  %4417 = vmatpush1.bf16.msra.mxu0 0
  %4418 = vmatprep.subr.bf16.mxu0 0
  %4419 = vmatpush1.bf16.msra.mxu0 0
  %4420 = vmatprep.subr.bf16.mxu0 0
  %4421 = vmatpush1.bf16.msra.mxu0 0
  %4422 = vmatprep.subr.bf16.mxu0 0
  %4423 = vmatpush1.bf16.msra.mxu0 0
  %4424 = vmatprep.subr.bf16.mxu0 0
  %4425 = vmatpush1.bf16.msra.mxu0 0
  %4426 = vmatprep.subr.bf16.mxu0 0
  %4427 = vmatpush1.bf16.msra.mxu0 0
  %4428 = vmatprep.subr.bf16.mxu0 0
  %4429 = vmatpush1.bf16.msra.mxu0 0
  %4430 = vmatprep.subr.bf16.mxu0 0
  %4431 = vmatpush1.bf16.msra.mxu0 0
  %4432 = vmatprep.mubr.bf16.mxu0 0
  %4433 = vmatmul.mubr.bf16.gmra.mrb[0].mxu0 %v1616
  %v4434 = vpop.f32.mrb[0].mxu0
  %v4435 = vadd.f32 %v2055, %v4434
  %v4436 = vpop.f32.mrb[0].mxu0
  %v4437 = vadd.f32 %v2059, %v4436
  %v4438 = vpop.f32.mrb[0].mxu0
  %v4439 = vadd.f32 %v2055, %v4438
  %v4440 = vpop.f32.mrb[0].mxu0
  %v4441 = vadd.f32 %v2059, %v4440
  %4442 = vmatprep.mubr.bf16.mxu0 0
  %4443 = vmatmul.mubr.bf16.gmra.mrb[0].mxu0 %v1617
  %v4444 = vpop.f32.mrb[0].mxu0
  %v4445 = vadd.f32 %v2055, %v4444
  %v4446 = vpop.f32.mrb[0].mxu0
  %v4447 = vadd.f32 %v2059, %v4446
  %v4448 = vpop.f32.mrb[0].mxu0
  %v4449 = vadd.f32 %v2055, %v4448
  %v4450 = vpop.f32.mrb[0].mxu0
  %v4451 = vadd.f32 %v2059, %v4450
  %4452 = vdwg.mxu0
  %4453 = vmatprep.subr.bf16.mxu0 %v3046
  %4454 = vmatpush1.bf16.msra.mxu0 %v3045
  %4455 = vmatprep.subr.bf16.mxu0 %v3083
  %4456 = vmatpush1.bf16.msra.mxu0 %v3082
  %4457 = vmatprep.subr.bf16.mxu0 %v3120
  %4458 = vmatpush1.bf16.msra.mxu0 %v3119
  %4459 = vmatprep.subr.bf16.mxu0 %v3157
  %4460 = vmatpush1.bf16.msra.mxu0 %v3156
  %4461 = vmatprep.subr.bf16.mxu0 %v3194
  %4462 = vmatpush1.bf16.msra.mxu0 %v3193
  %4463 = vmatprep.subr.bf16.mxu0 %v3231
  %4464 = vmatpush1.bf16.msra.mxu0 %v3230
  %4465 = vmatprep.subr.bf16.mxu0 %v3268
  %4466 = vmatpush1.bf16.msra.mxu0 %v3267
  %4467 = vmatprep.subr.bf16.mxu0 %v3305
  %4468 = vmatpush1.bf16.msra.mxu0 %v3304
  %4469 = vmatprep.subr.bf16.mxu0 0
  %4470 = vmatpush1.bf16.msra.mxu0 0
  %4471 = vmatprep.subr.bf16.mxu0 0
  %4472 = vmatpush1.bf16.msra.mxu0 0
  %4473 = vmatprep.subr.bf16.mxu0 0
  %4474 = vmatpush1.bf16.msra.mxu0 0
  %4475 = vmatprep.subr.bf16.mxu0 0
  %4476 = vmatpush1.bf16.msra.mxu0 0
  %4477 = vmatprep.subr.bf16.mxu0 0
  %4478 = vmatpush1.bf16.msra.mxu0 0
  %4479 = vmatprep.subr.bf16.mxu0 0
  %4480 = vmatpush1.bf16.msra.mxu0 0
  %4481 = vmatprep.subr.bf16.mxu0 0
  %4482 = vmatpush1.bf16.msra.mxu0 0
  %4483 = vmatprep.subr.bf16.mxu0 0
  %4484 = vmatpush1.bf16.msra.mxu0 0
  %4485 = vmatprep.mubr.bf16.mxu0 0
  %4486 = vmatmul.mubr.bf16.gmra.mrb[0].mxu0 %v1616
  %v4487 = vpop.f32.mrb[0].mxu0
  %v4488 = vadd.f32 %v2063, %v4487
  %v4489 = vpop.f32.mrb[0].mxu0
  %v4490 = vadd.f32 %v2067, %v4489
  %v4491 = vpop.f32.mrb[0].mxu0
  %v4492 = vadd.f32 %v2063, %v4491
  %v4493 = vpop.f32.mrb[0].mxu0
  %v4494 = vadd.f32 %v2067, %v4493
  %4495 = vmatprep.mubr.bf16.mxu0 0
  %4496 = vmatmul.mubr.bf16.gmra.mrb[0].mxu0 %v1617
  %v4497 = vpop.f32.mrb[0].mxu0
  %v4498 = vadd.f32 %v2063, %v4497
  %v4499 = vpop.f32.mrb[0].mxu0
  %v4500 = vadd.f32 %v2067, %v4499
  %v4501 = vpop.f32.mrb[0].mxu0
  %v4502 = vadd.f32 %v2063, %v4501
  %v4503 = vpop.f32.mrb[0].mxu0
  %v4504 = vadd.f32 %v2067, %v4503
  %4505 = vdwg.mxu0
  %4506 = vmatprep.subr.bf16.mxu0 %v3048
  %4507 = vmatpush1.bf16.msra.mxu0 %v3047
  %4508 = vmatprep.subr.bf16.mxu0 %v3085
  %4509 = vmatpush1.bf16.msra.mxu0 %v3084
  %4510 = vmatprep.subr.bf16.mxu0 %v3122
  %4511 = vmatpush1.bf16.msra.mxu0 %v3121
  %4512 = vmatprep.subr.bf16.mxu0 %v3159
  %4513 = vmatpush1.bf16.msra.mxu0 %v3158
  %4514 = vmatprep.subr.bf16.mxu0 %v3196
  %4515 = vmatpush1.bf16.msra.mxu0 %v3195
  %4516 = vmatprep.subr.bf16.mxu0 %v3233
  %4517 = vmatpush1.bf16.msra.mxu0 %v3232
  %4518 = vmatprep.subr.bf16.mxu0 %v3270
  %4519 = vmatpush1.bf16.msra.mxu0 %v3269
  %4520 = vmatprep.subr.bf16.mxu0 %v3307
  %4521 = vmatpush1.bf16.msra.mxu0 %v3306
  %4522 = vmatprep.subr.bf16.mxu0 0
  %4523 = vmatpush1.bf16.msra.mxu0 0
  %4524 = vmatprep.subr.bf16.mxu0 0
  %4525 = vmatpush1.bf16.msra.mxu0 0
  %4526 = vmatprep.subr.bf16.mxu0 0
  %4527 = vmatpush1.bf16.msra.mxu0 0
  %4528 = vmatprep.subr.bf16.mxu0 0
  %4529 = vmatpush1.bf16.msra.mxu0 0
  %4530 = vmatprep.subr.bf16.mxu0 0
  %4531 = vmatpush1.bf16.msra.mxu0 0
  %4532 = vmatprep.subr.bf16.mxu0 0
  %4533 = vmatpush1.bf16.msra.mxu0 0
  %4534 = vmatprep.subr.bf16.mxu0 0
  %4535 = vmatpush1.bf16.msra.mxu0 0
  %4536 = vmatprep.subr.bf16.mxu0 0
  %4537 = vmatpush1.bf16.msra.mxu0 0
  %4538 = vmatprep.mubr.bf16.mxu0 0
  %4539 = vmatmul.mubr.bf16.gmra.mrb[0].mxu0 %v1616
  %v4540 = vpop.f32.mrb[0].mxu0
  %v4541 = vadd.f32 %v2071, %v4540
  %v4542 = vpop.f32.mrb[0].mxu0
  %v4543 = vadd.f32 %v2075, %v4542
  %v4544 = vpop.f32.mrb[0].mxu0
  %v4545 = vadd.f32 %v2071, %v4544
  %v4546 = vpop.f32.mrb[0].mxu0
  %v4547 = vadd.f32 %v2075, %v4546
  %4548 = vmatprep.mubr.bf16.mxu0 0
  %4549 = vmatmul.mubr.bf16.gmra.mrb[0].mxu0 %v1617
  %v4550 = vpop.f32.mrb[0].mxu0
  %v4551 = vadd.f32 %v2071, %v4550
  %v4552 = vpop.f32.mrb[0].mxu0
  %v4553 = vadd.f32 %v2075, %v4552
  %v4554 = vpop.f32.mrb[0].mxu0
  %v4555 = vadd.f32 %v2071, %v4554
  %v4556 = vpop.f32.mrb[0].mxu0
  %v4557 = vadd.f32 %v2075, %v4556
  %4558 = vdwg.mxu0
  %4559 = vmatprep.subr.bf16.mxu0 0
  %4560 = vmatpush1.bf16.msra.mxu0 %v3049
  %4561 = vmatprep.subr.bf16.mxu0 0
  %4562 = vmatpush1.bf16.msra.mxu0 %v3086
  %4563 = vmatprep.subr.bf16.mxu0 0
  %4564 = vmatpush1.bf16.msra.mxu0 %v3123
  %4565 = vmatprep.subr.bf16.mxu0 0
  %4566 = vmatpush1.bf16.msra.mxu0 %v3160
  %4567 = vmatprep.subr.bf16.mxu0 0
  %4568 = vmatpush1.bf16.msra.mxu0 %v3197
  %4569 = vmatprep.subr.bf16.mxu0 0
  %4570 = vmatpush1.bf16.msra.mxu0 %v3234
  %4571 = vmatprep.subr.bf16.mxu0 0
  %4572 = vmatpush1.bf16.msra.mxu0 %v3271
  %4573 = vmatprep.subr.bf16.mxu0 0
  %4574 = vmatpush1.bf16.msra.mxu0 %v3308
  %4575 = vmatprep.subr.bf16.mxu0 0
  %4576 = vmatpush1.bf16.msra.mxu0 0
  %4577 = vmatprep.subr.bf16.mxu0 0
  %4578 = vmatpush1.bf16.msra.mxu0 0
  %4579 = vmatprep.subr.bf16.mxu0 0
  %4580 = vmatpush1.bf16.msra.mxu0 0
  %4581 = vmatprep.subr.bf16.mxu0 0
  %4582 = vmatpush1.bf16.msra.mxu0 0
  %4583 = vmatprep.subr.bf16.mxu0 0
  %4584 = vmatpush1.bf16.msra.mxu0 0
  %4585 = vmatprep.subr.bf16.mxu0 0
  %4586 = vmatpush1.bf16.msra.mxu0 0
  %4587 = vmatprep.subr.bf16.mxu0 0
  %4588 = vmatpush1.bf16.msra.mxu0 0
  %4589 = vmatprep.subr.bf16.mxu0 0
  %4590 = vmatpush1.bf16.msra.mxu0 0
  %4591 = vmatprep.mubr.bf16.mxu0 0
  %4592 = vmatmul.mubr.bf16.gmra.mrb[0].mxu0 %v1616
  %v4593 = vpop.f32.mrb[0].mxu0
  %v4594 = vadd.f32 %v2079, %v4593
  %v4595 = vpop.f32.mrb[0].mxu0
  %v4596 = vpop.f32.mrb[0].mxu0
  %v4597 = vadd.f32 %v2079, %v4596
  %v4598 = vpop.f32.mrb[0].mxu0
  %4599 = vmatprep.mubr.bf16.mxu0 0
  %4600 = vmatmul.mubr.bf16.gmra.mrb[0].mxu0 %v1617
  %v4601 = vpop.f32.mrb[0].mxu0
  %v4602 = vadd.f32 %v2079, %v4601
  %v4603 = vpop.f32.mrb[0].mxu0
  %v4604 = vpop.f32.mrb[0].mxu0
  %v4605 = vadd.f32 %v2079, %v4604
  %v4606 = vpop.f32.mrb[0].mxu0
  %4607 = vdwg.mxu0
  %v4608 = vmax.f32 %v3640, 0.0
  %v4609 = vmax.f32 %v3642, 0.0
  %v4610 = vmax.f32 %v3693, 0.0
  %v4611 = vmax.f32 %v3695, 0.0
  %v4612 = vmax.f32 %v3746, 0.0
  %v4613 = vmax.f32 %v3748, 0.0
  %v4614 = vmax.f32 %v3799, 0.0
  %v4615 = vmax.f32 %v3801, 0.0
  %v4616 = vmax.f32 %v3852, 0.0
  %v4617 = vmax.f32 %v3854, 0.0
  %v4618 = vmax.f32 %v3905, 0.0
  %v4619 = vmax.f32 %v3907, 0.0
  %v4620 = vmax.f32 %v3958, 0.0
  %v4621 = vmax.f32 %v3960, 0.0
  %v4622 = vmax.f32 %v4011, 0.0
  %v4623 = vmax.f32 %v4013, 0.0
  %v4624 = vmax.f32 %v4064, 0.0
  %v4625 = vmax.f32 %v4066, 0.0
  %v4626 = vmax.f32 %v4117, 0.0
  %v4627 = vmax.f32 %v4119, 0.0
  %v4628 = vmax.f32 %v4170, 0.0
  %v4629 = vmax.f32 %v4172, 0.0
  %v4630 = vmax.f32 %v4223, 0.0
  %v4631 = vmax.f32 %v4225, 0.0
  %v4632 = vmax.f32 %v4276, 0.0
  %v4633 = vmax.f32 %v4278, 0.0
  %v4634 = vmax.f32 %v4329, 0.0
  %v4635 = vmax.f32 %v4331, 0.0
  %v4636 = vmax.f32 %v4382, 0.0
  %v4637 = vmax.f32 %v4384, 0.0
  %v4638 = vmax.f32 %v4435, 0.0
  %v4639 = vmax.f32 %v4437, 0.0
  %v4640 = vmax.f32 %v4488, 0.0
  %v4641 = vmax.f32 %v4490, 0.0
  %v4642 = vmax.f32 %v4541, 0.0
  %v4643 = vmax.f32 %v4543, 0.0
  %v4644 = vmax.f32 %v4594, 0.0
  %v4645 = vmax.f32 %v3644, 0.0
  %v4646 = vmax.f32 %v3646, 0.0
  %v4647 = vmax.f32 %v3697, 0.0
  %v4648 = vmax.f32 %v3699, 0.0
  %v4649 = vmax.f32 %v3750, 0.0
  %v4650 = vmax.f32 %v3752, 0.0
  %v4651 = vmax.f32 %v3803, 0.0
  %v4652 = vmax.f32 %v3805, 0.0
  %v4653 = vmax.f32 %v3856, 0.0
  %v4654 = vmax.f32 %v3858, 0.0
  %v4655 = vmax.f32 %v3909, 0.0
  %v4656 = vmax.f32 %v3911, 0.0
  %v4657 = vmax.f32 %v3962, 0.0
  %v4658 = vmax.f32 %v3964, 0.0
  %v4659 = vmax.f32 %v4015, 0.0
  %v4660 = vmax.f32 %v4017, 0.0
  %v4661 = vmax.f32 %v4068, 0.0
  %v4662 = vmax.f32 %v4070, 0.0
  %v4663 = vmax.f32 %v4121, 0.0
  %v4664 = vmax.f32 %v4123, 0.0
  %v4665 = vmax.f32 %v4174, 0.0
  %v4666 = vmax.f32 %v4176, 0.0
  %v4667 = vmax.f32 %v4227, 0.0
  %v4668 = vmax.f32 %v4229, 0.0
  %v4669 = vmax.f32 %v4280, 0.0
  %v4670 = vmax.f32 %v4282, 0.0
  %v4671 = vmax.f32 %v4333, 0.0
  %v4672 = vmax.f32 %v4335, 0.0
  %v4673 = vmax.f32 %v4386, 0.0
  %v4674 = vmax.f32 %v4388, 0.0
  %v4675 = vmax.f32 %v4439, 0.0
  %v4676 = vmax.f32 %v4441, 0.0
  %v4677 = vmax.f32 %v4492, 0.0
  %v4678 = vmax.f32 %v4494, 0.0
  %v4679 = vmax.f32 %v4545, 0.0
  %v4680 = vmax.f32 %v4547, 0.0
  %v4681 = vmax.f32 %v4597, 0.0
  %v4682 = vmax.f32 %v3650, 0.0
  %v4683 = vmax.f32 %v3652, 0.0
  %v4684 = vmax.f32 %v3703, 0.0
  %v4685 = vmax.f32 %v3705, 0.0
  %v4686 = vmax.f32 %v3756, 0.0
  %v4687 = vmax.f32 %v3758, 0.0
  %v4688 = vmax.f32 %v3809, 0.0
  %v4689 = vmax.f32 %v3811, 0.0
  %v4690 = vmax.f32 %v3862, 0.0
  %v4691 = vmax.f32 %v3864, 0.0
  %v4692 = vmax.f32 %v3915, 0.0
  %v4693 = vmax.f32 %v3917, 0.0
  %v4694 = vmax.f32 %v3968, 0.0
  %v4695 = vmax.f32 %v3970, 0.0
  %v4696 = vmax.f32 %v4021, 0.0
  %v4697 = vmax.f32 %v4023, 0.0
  %v4698 = vmax.f32 %v4074, 0.0
  %v4699 = vmax.f32 %v4076, 0.0
  %v4700 = vmax.f32 %v4127, 0.0
  %v4701 = vmax.f32 %v4129, 0.0
  %v4702 = vmax.f32 %v4180, 0.0
  %v4703 = vmax.f32 %v4182, 0.0
  %v4704 = vmax.f32 %v4233, 0.0
  %v4705 = vmax.f32 %v4235, 0.0
  %v4706 = vmax.f32 %v4286, 0.0
  %v4707 = vmax.f32 %v4288, 0.0
  %v4708 = vmax.f32 %v4339, 0.0
  %v4709 = vmax.f32 %v4341, 0.0
  %v4710 = vmax.f32 %v4392, 0.0
  %v4711 = vmax.f32 %v4394, 0.0
  %v4712 = vmax.f32 %v4445, 0.0
  %v4713 = vmax.f32 %v4447, 0.0
  %v4714 = vmax.f32 %v4498, 0.0
  %v4715 = vmax.f32 %v4500, 0.0
  %v4716 = vmax.f32 %v4551, 0.0
  %v4717 = vmax.f32 %v4553, 0.0
  %v4718 = vmax.f32 %v4602, 0.0
  %v4719 = vmax.f32 %v3654, 0.0
  %v4720 = vmax.f32 %v3656, 0.0
  %v4721 = vmax.f32 %v3707, 0.0
  %v4722 = vmax.f32 %v3709, 0.0
  %v4723 = vmax.f32 %v3760, 0.0
  %v4724 = vmax.f32 %v3762, 0.0
  %v4725 = vmax.f32 %v3813, 0.0
  %v4726 = vmax.f32 %v3815, 0.0
  %v4727 = vmax.f32 %v3866, 0.0
  %v4728 = vmax.f32 %v3868, 0.0
  %v4729 = vmax.f32 %v3919, 0.0
  %v4730 = vmax.f32 %v3921, 0.0
  %v4731 = vmax.f32 %v3972, 0.0
  %v4732 = vmax.f32 %v3974, 0.0
  %v4733 = vmax.f32 %v4025, 0.0
  %v4734 = vmax.f32 %v4027, 0.0
  %v4735 = vmax.f32 %v4078, 0.0
  %v4736 = vmax.f32 %v4080, 0.0
  %v4737 = vmax.f32 %v4131, 0.0
  %v4738 = vmax.f32 %v4133, 0.0
  %v4739 = vmax.f32 %v4184, 0.0
  %v4740 = vmax.f32 %v4186, 0.0
  %v4741 = vmax.f32 %v4237, 0.0
  %v4742 = vmax.f32 %v4239, 0.0
  %v4743 = vmax.f32 %v4290, 0.0
  %v4744 = vmax.f32 %v4292, 0.0
  %v4745 = vmax.f32 %v4343, 0.0
  %v4746 = vmax.f32 %v4345, 0.0
  %v4747 = vmax.f32 %v4396, 0.0
  %v4748 = vmax.f32 %v4398, 0.0
  %v4749 = vmax.f32 %v4449, 0.0
  %v4750 = vmax.f32 %v4451, 0.0
  %v4751 = vmax.f32 %v4502, 0.0
  %v4752 = vmax.f32 %v4504, 0.0
  %v4753 = vmax.f32 %v4555, 0.0
  %v4754 = vmax.f32 %v4557, 0.0
  %v4755 = vmax.f32 %v4605, 0.0
  %4756 = vst [vmem:[%s14] sm:$0xff] %v4608
  %4757 = vst [vmem:[%s14 + $0x8] sm:$0xff] %v4609
  %4758 = vst [vmem:[%s14 + $0x10] sm:$0xff] %v4610
  %4759 = vst [vmem:[%s14 + $0x18] sm:$0xff] %v4611
  %4760 = vst [vmem:[%s14 + $0x20] sm:$0xff] %v4612
  %4761 = vst [vmem:[%s14 + $0x28] sm:$0xff] %v4613
  %4762 = vst [vmem:[%s14 + $0x30] sm:$0xff] %v4614
  %4763 = vst [vmem:[%s14 + $0x38] sm:$0xff] %v4615
  %4764 = vst [vmem:[%s14 + $0x40] sm:$0xff] %v4616
  %4765 = vst [vmem:[%s14 + $0x48] sm:$0xff] %v4617
  %4766 = vst [vmem:[%s14 + $0x50] sm:$0xff] %v4618
  %4767 = vst [vmem:[%s14 + $0x58] sm:$0xff] %v4619
  %4768 = vst [vmem:[%s14 + $0x60] sm:$0xff] %v4620
  %4769 = vst [vmem:[%s14 + $0x68] sm:$0xff] %v4621
  %4770 = vst [vmem:[%s14 + $0x70] sm:$0xff] %v4622
  %4771 = vst [vmem:[%s14 + $0x78] sm:$0xff] %v4623
  %4772 = vst [vmem:[%s14 + $0x80] sm:$0xff] %v4624
  %4773 = vst [vmem:[%s14 + $0x88] sm:$0xff] %v4625
  %4774 = vst [vmem:[%s14 + $0x90] sm:$0xff] %v4626
  %4775 = vst [vmem:[%s14 + $0x98] sm:$0xff] %v4627
  %4776 = vst [vmem:[%s14 + $0xa0] sm:$0xff] %v4628
  %4777 = vst [vmem:[%s14 + $0xa8] sm:$0xff] %v4629
  %4778 = vst [vmem:[%s14 + $0xb0] sm:$0xff] %v4630
  %4779 = vst [vmem:[%s14 + $0xb8] sm:$0xff] %v4631
  %4780 = vst [vmem:[%s14 + $0xc0] sm:$0xff] %v4632
  %4781 = vst [vmem:[%s14 + $0xc8] sm:$0xff] %v4633
  %4782 = vst [vmem:[%s14 + $0xd0] sm:$0xff] %v4634
  %4783 = vst [vmem:[%s14 + $0xd8] sm:$0xff] %v4635
  %4784 = vst [vmem:[%s14 + $0xe0] sm:$0xff] %v4636
  %4785 = vst [vmem:[%s14 + $0xe8] sm:$0xff] %v4637
  %4786 = vst [vmem:[%s14 + $0xf0] sm:$0xff] %v4638
  %4787 = vst [vmem:[%s14 + $0xf8] sm:$0xff] %v4639
  %4788 = vst [vmem:[%s14 + $0x100] sm:$0xff] %v4640
  %4789 = vst [vmem:[%s14 + $0x108] sm:$0xff] %v4641
  %4790 = vst [vmem:[%s14 + $0x110] sm:$0xff] %v4642
  %4791 = vst [vmem:[%s14 + $0x118] sm:$0xff] %v4643
  %4792 = vst.msk [vmem:[%s14 + $0x120] sm:$0xff] %vm442, %v4644
  %4793 = vst [vmem:[%s14 + $0x128] sm:$0xff] %v4645
  %4794 = vst [vmem:[%s14 + $0x130] sm:$0xff] %v4646
  %4795 = vst [vmem:[%s14 + $0x138] sm:$0xff] %v4647
  %4796 = vst [vmem:[%s14 + $0x140] sm:$0xff] %v4648
  %4797 = vst [vmem:[%s14 + $0x148] sm:$0xff] %v4649
  %4798 = vst [vmem:[%s14 + $0x150] sm:$0xff] %v4650
  %4799 = vst [vmem:[%s14 + $0x158] sm:$0xff] %v4651
  %4800 = vst [vmem:[%s14 + $0x160] sm:$0xff] %v4652
  %4801 = vst [vmem:[%s14 + $0x168] sm:$0xff] %v4653
  %4802 = vst [vmem:[%s14 + $0x170] sm:$0xff] %v4654
  %4803 = vst [vmem:[%s14 + $0x178] sm:$0xff] %v4655
  %4804 = vst [vmem:[%s14 + $0x180] sm:$0xff] %v4656
  %4805 = vst [vmem:[%s14 + $0x188] sm:$0xff] %v4657
  %4806 = vst [vmem:[%s14 + $0x190] sm:$0xff] %v4658
  %4807 = vst [vmem:[%s14 + $0x198] sm:$0xff] %v4659
  %4808 = vst [vmem:[%s14 + $0x1a0] sm:$0xff] %v4660
  %4809 = vst [vmem:[%s14 + $0x1a8] sm:$0xff] %v4661
  %4810 = vst [vmem:[%s14 + $0x1b0] sm:$0xff] %v4662
  %4811 = vst [vmem:[%s14 + $0x1b8] sm:$0xff] %v4663
  %4812 = vst [vmem:[%s14 + $0x1c0] sm:$0xff] %v4664
  %4813 = vst [vmem:[%s14 + $0x1c8] sm:$0xff] %v4665
  %4814 = vst [vmem:[%s14 + $0x1d0] sm:$0xff] %v4666
  %4815 = vst [vmem:[%s14 + $0x1d8] sm:$0xff] %v4667
  %4816 = vst [vmem:[%s14 + $0x1e0] sm:$0xff] %v4668
  %4817 = vst [vmem:[%s14 + $0x1e8] sm:$0xff] %v4669
  %4818 = vst [vmem:[%s14 + $0x1f0] sm:$0xff] %v4670
  %4819 = vst [vmem:[%s14 + $0x1f8] sm:$0xff] %v4671
  %4820 = vst [vmem:[%s14 + $0x200] sm:$0xff] %v4672
  %4821 = vst [vmem:[%s14 + $0x208] sm:$0xff] %v4673
  %4822 = vst [vmem:[%s14 + $0x210] sm:$0xff] %v4674
  %4823 = vst [vmem:[%s14 + $0x218] sm:$0xff] %v4675
  %4824 = vst [vmem:[%s14 + $0x220] sm:$0xff] %v4676
  %4825 = vst [vmem:[%s14 + $0x228] sm:$0xff] %v4677
  %4826 = vst [vmem:[%s14 + $0x230] sm:$0xff] %v4678
  %4827 = vst [vmem:[%s14 + $0x238] sm:$0xff] %v4679
  %4828 = vst [vmem:[%s14 + $0x240] sm:$0xff] %v4680
  %4829 = vst.msk [vmem:[%s14 + $0x248] sm:$0xff] %vm442, %v4681
  %4830 = vst [vmem:[%s14 + $0x250] sm:$0xff] %v4682
  %4831 = vst [vmem:[%s14 + $0x258] sm:$0xff] %v4683
  %4832 = vst [vmem:[%s14 + $0x260] sm:$0xff] %v4684
  %4833 = vst [vmem:[%s14 + $0x268] sm:$0xff] %v4685
  %4834 = vst [vmem:[%s14 + $0x270] sm:$0xff] %v4686
  %4835 = vst [vmem:[%s14 + $0x278] sm:$0xff] %v4687
  %4836 = vst [vmem:[%s14 + $0x280] sm:$0xff] %v4688
  %4837 = vst [vmem:[%s14 + $0x288] sm:$0xff] %v4689
  %4838 = vst [vmem:[%s14 + $0x290] sm:$0xff] %v4690
  %4839 = vst [vmem:[%s14 + $0x298] sm:$0xff] %v4691
  %4840 = vst [vmem:[%s14 + $0x2a0] sm:$0xff] %v4692
  %4841 = vst [vmem:[%s14 + $0x2a8] sm:$0xff] %v4693
  %4842 = vst [vmem:[%s14 + $0x2b0] sm:$0xff] %v4694
  %4843 = vst [vmem:[%s14 + $0x2b8] sm:$0xff] %v4695
  %4844 = vst [vmem:[%s14 + $0x2c0] sm:$0xff] %v4696
  %4845 = vst [vmem:[%s14 + $0x2c8] sm:$0xff] %v4697
  %4846 = vst [vmem:[%s14 + $0x2d0] sm:$0xff] %v4698
  %4847 = vst [vmem:[%s14 + $0x2d8] sm:$0xff] %v4699
  %4848 = vst [vmem:[%s14 + $0x2e0] sm:$0xff] %v4700
  %4849 = vst [vmem:[%s14 + $0x2e8] sm:$0xff] %v4701
  %4850 = vst [vmem:[%s14 + $0x2f0] sm:$0xff] %v4702
  %4851 = vst [vmem:[%s14 + $0x2f8] sm:$0xff] %v4703
  %4852 = vst [vmem:[%s14 + $0x300] sm:$0xff] %v4704
  %4853 = vst [vmem:[%s14 + $0x308] sm:$0xff] %v4705
  %4854 = vst [vmem:[%s14 + $0x310] sm:$0xff] %v4706
  %4855 = vst [vmem:[%s14 + $0x318] sm:$0xff] %v4707
  %4856 = vst [vmem:[%s14 + $0x320] sm:$0xff] %v4708
  %4857 = vst [vmem:[%s14 + $0x328] sm:$0xff] %v4709
  %4858 = vst [vmem:[%s14 + $0x330] sm:$0xff] %v4710
  %4859 = vst [vmem:[%s14 + $0x338] sm:$0xff] %v4711
  %4860 = vst [vmem:[%s14 + $0x340] sm:$0xff] %v4712
  %4861 = vst [vmem:[%s14 + $0x348] sm:$0xff] %v4713
  %4862 = vst [vmem:[%s14 + $0x350] sm:$0xff] %v4714
  %4863 = vst [vmem:[%s14 + $0x358] sm:$0xff] %v4715
  %4864 = vst [vmem:[%s14 + $0x360] sm:$0xff] %v4716
  %4865 = vst [vmem:[%s14 + $0x368] sm:$0xff] %v4717
  %4866 = vst.msk [vmem:[%s14 + $0x370] sm:$0xff] %vm442, %v4718
  %4867 = vst [vmem:[%s14 + $0x378] sm:$0xff] %v4719
  %4868 = vst [vmem:[%s14 + $0x380] sm:$0xff] %v4720
  %4869 = vst [vmem:[%s14 + $0x388] sm:$0xff] %v4721
  %4870 = vst [vmem:[%s14 + $0x390] sm:$0xff] %v4722
  %4871 = vst [vmem:[%s14 + $0x398] sm:$0xff] %v4723
  %4872 = vst [vmem:[%s14 + $0x3a0] sm:$0xff] %v4724
  %4873 = vst [vmem:[%s14 + $0x3a8] sm:$0xff] %v4725
  %4874 = vst [vmem:[%s14 + $0x3b0] sm:$0xff] %v4726
  %4875 = vst [vmem:[%s14 + $0x3b8] sm:$0xff] %v4727
  %4876 = vst [vmem:[%s14 + $0x3c0] sm:$0xff] %v4728
  %4877 = vst [vmem:[%s14 + $0x3c8] sm:$0xff] %v4729
  %4878 = vst [vmem:[%s14 + $0x3d0] sm:$0xff] %v4730
  %4879 = vst [vmem:[%s14 + $0x3d8] sm:$0xff] %v4731
  %4880 = vst [vmem:[%s14 + $0x3e0] sm:$0xff] %v4732
  %4881 = vst [vmem:[%s14 + $0x3e8] sm:$0xff] %v4733
  %4882 = vst [vmem:[%s14 + $0x3f0] sm:$0xff] %v4734
  %4883 = vst [vmem:[%s14 + $0x3f8] sm:$0xff] %v4735
  %4884 = vst [vmem:[%s14 + $0x400] sm:$0xff] %v4736
  %4885 = vst [vmem:[%s14 + $0x408] sm:$0xff] %v4737
  %4886 = vst [vmem:[%s14 + $0x410] sm:$0xff] %v4738
  %4887 = vst [vmem:[%s14 + $0x418] sm:$0xff] %v4739
  %4888 = vst [vmem:[%s14 + $0x420] sm:$0xff] %v4740
  %4889 = vst [vmem:[%s14 + $0x428] sm:$0xff] %v4741
  %4890 = vst [vmem:[%s14 + $0x430] sm:$0xff] %v4742
  %4891 = vst [vmem:[%s14 + $0x438] sm:$0xff] %v4743
  %4892 = vst [vmem:[%s14 + $0x440] sm:$0xff] %v4744
  %4893 = vst [vmem:[%s14 + $0x448] sm:$0xff] %v4745
  %4894 = vst [vmem:[%s14 + $0x450] sm:$0xff] %v4746
  %4895 = vst [vmem:[%s14 + $0x458] sm:$0xff] %v4747
  %4896 = vst [vmem:[%s14 + $0x460] sm:$0xff] %v4748
  %4897 = vst [vmem:[%s14 + $0x468] sm:$0xff] %v4749
  %4898 = vst [vmem:[%s14 + $0x470] sm:$0xff] %v4750
  %4899 = vst [vmem:[%s14 + $0x478] sm:$0xff] %v4751
  %4900 = vst [vmem:[%s14 + $0x480] sm:$0xff] %v4752
  %4901 = vst [vmem:[%s14 + $0x488] sm:$0xff] %v4753
  %4902 = vst [vmem:[%s14 + $0x490] sm:$0xff] %v4754
  %4903 = vst.msk [vmem:[%s14 + $0x498] sm:$0xff] %vm442, %v4755
  // Predicated region
  $region58: #{decoder_forward.2} parent=0 // pred_check
    _
  $region59: #{decoder_forward.2} parent=0 // pred_check_branch
    %4905 = sbr.rel (0) target = $region61
  $region60: #{decoder_forward.2} parent=0 // pred_region
    _
  $region61: #{decoder_forward.2} parent=0 // pred_fallthru
    _
  // Predicated region
  $region62: #{decoder_forward.2} parent=0 // pred_check
    _
  $region63: #{decoder_forward.2} parent=0 // pred_check_branch
    %4907 = sbr.rel (0) target = $region65
  $region64: #{decoder_forward.2} parent=0 // pred_region
    _
  $region65: #{decoder_forward.2} parent=0 // pred_fallthru
    _

// kernel: decoder_forward.3
$region0: #{decoder_forward.3}
  #allocation0 [shape = 'u32[]', space=smem, size = 0x4, offset = 0x4, fixed_abs, tag = 'smem constant byte address 0x4 - core index']
  #allocation1 [shape = 'u32[144,128]{1,0:T(1,128)}', space=vmem, size = 0x12000, scoped, tag = 'internal scratch']
  %s0 = inlined_call_operand.vmem [shape: bf16[36,16], index: 0, kind: input, shape index: {}]
  %s1 = inlined_call_operand.vmem [shape: bf16[2,16,4356], index: 1, kind: input, shape index: {}]
  %s2 = inlined_call_operand.vmem [shape: f32[2,36,4356], index: 2, kind: output, shape index: {}]
  %s3 = sld [smem:[#allocation0]]
  $region41: #{decoder_forward.3} parent=0
    _
  %s5 = ssub.s32 1, %s3
  %s6 = scalar_select 0, %s5, %s3
  loop: start=0, step=1, limit=4
  $region2: #{decoder_forward.3} parent=0 // loop_pre_header
    _
  $region3: #{decoder_forward.3} parent=0 // loop_header
    %s8 = sphi 0, %s12
    %p9 = scmp.ge.s32.totalorder %s8, 4
    %s16 = sphi 0, %s16
    %s18 = sphi 0, %s16
    %s19 = sphi 0, %s18
    %s33 = sphi 0, %s19
    %s39 = sphi 0, %s41
    %s42 = sphi 0, %s39
    %s43 = sphi 0, %s42
    %s59 = sphi 0, %s43
    %s65 = sphi 0, %s67
    %s68 = sphi 0, %s65
    %s69 = sphi 0, %s68
    %s85 = sphi 0, %s69
  $region4: #{decoder_forward.3} parent=0 // loop_header_branch
    %11 = sbr.rel (%p9) target = $region8
  $region5: #{decoder_forward.3} parent=0 // loop_body
    %s13 = ssub.s32 %s8, 1
    %s14 = ssub.s32 %s8, 2
    %s15 = sadd.s32 %s8, 1
    %s17 = sadd.s32 %s16, 1
    %p20 = scmp.eq.s32.totalorder %s8, 1
    %p21 = scmp.ne.s32.totalorder %s16, %s18
    %p22 = scmp.eq.s32.totalorder %s8, 0
    %p23 = por %p21, %p22
    %p24 = scmp.ne.s32.totalorder %s16, %s18
    %p25 = scmp.eq.s32.totalorder %s13, 1
    %p26 = por %p24, %p25
    %p27 = scmp.ne.s32.totalorder %s18, %s19
    %p28 = scmp.eq.s32.totalorder %s13, 0
    %p29 = por %p27, %p28
    %p30 = scmp.ne.s32.totalorder %s18, %s19
    %p31 = scmp.eq.s32.totalorder %s14, 1
    %p32 = por %p30, %p31
    %p34 = scmp.ne.s32.totalorder %s19, %s33
    %p35 = scmp.eq.s32.totalorder %s14, 0
    %p36 = por %p34, %p35
    %s37 = ssub.s32 %s8, %s15
    %p38 = scmp.eq.s32.totalorder %s37, 0
    %s40 = sadd.s32 %s39, 1
    %s41 = scalar_select %p38, %s39, %s40
    %p44 = pneg %p38
    %p45 = scmp.eq.s32.totalorder %s8, 1
    %p46 = por %p44, %p45
    %p47 = scmp.ne.s32.totalorder %s39, %s42
    %p48 = scmp.eq.s32.totalorder %s8, 0
    %p49 = por %p47, %p48
    %p50 = scmp.ne.s32.totalorder %s39, %s42
    %p51 = scmp.eq.s32.totalorder %s13, 1
    %p52 = por %p50, %p51
    %p53 = scmp.ne.s32.totalorder %s42, %s43
    %p54 = scmp.eq.s32.totalorder %s13, 0
    %p55 = por %p53, %p54
    %p56 = scmp.ne.s32.totalorder %s42, %s43
    %p57 = scmp.eq.s32.totalorder %s14, 1
    %p58 = por %p56, %p57
    %p60 = scmp.ne.s32.totalorder %s43, %s59
    %p61 = scmp.eq.s32.totalorder %s14, 0
    %p62 = por %p60, %p61
    %s63 = ssub.s32 %s8, %s15
    %p64 = scmp.eq.s32.totalorder %s63, 0
    %s66 = sadd.s32 %s65, 1
    %s67 = scalar_select %p64, %s65, %s66
    %p70 = pneg %p64
    %p71 = scmp.eq.s32.totalorder %s8, 1
    %p72 = por %p70, %p71
    %p73 = scmp.ne.s32.totalorder %s65, %s68
    %p74 = scmp.eq.s32.totalorder %s8, 0
    %p75 = por %p73, %p74
    %p76 = scmp.ne.s32.totalorder %s65, %s68
    %p77 = scmp.eq.s32.totalorder %s13, 1
    %p78 = por %p76, %p77
    %p79 = scmp.ne.s32.totalorder %s68, %s69
    %p80 = scmp.eq.s32.totalorder %s13, 0
    %p81 = por %p79, %p80
    %p82 = scmp.ne.s32.totalorder %s68, %s69
    %p83 = scmp.eq.s32.totalorder %s14, 1
    %p84 = por %p82, %p83
    %p86 = scmp.ne.s32.totalorder %s69, %s85
    %p87 = scmp.eq.s32.totalorder %s14, 0
    %p88 = por %p86, %p87
    %p89 = scmp.le.s32.totalorder 1, %s8
    %p90 = scmp.lt.s32.totalorder %s8, 3
    %p91 = pnand %p89, %p90
    %p92 = pneg %p91
    // Predicated region
    $region9: #{decoder_forward.3} parent=5 // pred_check
      _
    $region10: #{decoder_forward.3} parent=5 // pred_check_branch
      %94 = sbr.rel (%p91) target = $region12
    $region11: #{decoder_forward.3} parent=5 // pred_region
      %s95 = ssub.s32 %s8, 1
      // Predicated region
      $region13: #{decoder_forward.3} parent=11 // pred_check
        %p96 = pneg %p29
      $region14: #{decoder_forward.3} parent=11 // pred_check_branch
        %98 = sbr.rel (%p96) target = $region16
      $region15: #{decoder_forward.3} parent=11 // pred_region
        _
      $region16: #{decoder_forward.3} parent=11 // pred_fallthru
        _
    $region12: #{decoder_forward.3} parent=5 // pred_fallthru
      _
    %p99 = scmp.lt.s32.totalorder %s8, 2
    // Predicated region
    $region17: #{decoder_forward.3} parent=5 // pred_check
      %p100 = pneg %p99
    $region18: #{decoder_forward.3} parent=5 // pred_check_branch
      %102 = sbr.rel (%p100) target = $region20
    $region19: #{decoder_forward.3} parent=5 // pred_region
      // Predicated region
      $region21: #{decoder_forward.3} parent=19 // pred_check
        %p103 = pneg %p49
      $region22: #{decoder_forward.3} parent=19 // pred_check_branch
        %105 = sbr.rel (%p103) target = $region24
      $region23: #{decoder_forward.3} parent=19 // pred_region
        %p106 = scmp.lt.s32.totalorder %s8, 1
        %s107 = scalar_select %p106, %s8, 1
        %s108 = smul.addr %s107, 70
        %s109 = smul.addr %s108, 4
        %s110 = scalar_lea.vmem %s1, %s109
      $region24: #{decoder_forward.3} parent=19 // pred_fallthru
        _
    $region20: #{decoder_forward.3} parent=5 // pred_fallthru
      _
    %p111 = scmp.le.s32.totalorder 1, %s8
    %p112 = scmp.lt.s32.totalorder %s8, 3
    %p113 = pnand %p111, %p112
    %p114 = pneg %p113
    // Predicated region
    $region25: #{decoder_forward.3} parent=5 // pred_check
      _
    $region26: #{decoder_forward.3} parent=5 // pred_check_branch
      %116 = sbr.rel (%p113) target = $region28
    $region27: #{decoder_forward.3} parent=5 // pred_region
      %s117 = ssub.s32 %s8, 1
      %p118 = pneg %p29
      %p119 = pneg %p26
      %p120 = scmp.lt.s32.totalorder %s13, 1
      %s121 = scalar_select %p120, %s13, 1
      %s122 = smul.addr %s121, 70
      %s123 = smul.addr %s122, 4
      %s124 = scalar_lea.vmem %s1, %s123
      %p125 = pneg %p55
      %p126 = pneg %p52
      %p127 = pneg %p81
      %p128 = pneg %p78
      %p129 = scmp.lt.s32.totalorder %s13, 1
      %s130 = scalar_select %p129, %s13, 1
      %s131 = smul.addr %s130, 175
      %s132 = smul.addr %s131, 8
      %s133 = scalar_lea.vmem %s2, %s132
      %p134 = scmp.lt.s32.totalorder %s13, 1
      %s135 = scalar_select %p134, %s13, 1
      %s136 = smul.addr %s135, 70
      %s137 = smul.addr %s136, 4
      %s138 = scalar_lea.vmem %s1, %s137
      %p139 = scmp.lt.s32.totalorder %s13, 1
      %s140 = scalar_select %p139, %s13, 1
      %s141 = smul.addr %s140, 175
      %s142 = smul.addr %s141, 8
      %s143 = scalar_lea.vmem %s2, %s142
      %v145 = vld [vmem:[%s0] sm:$0xf]
      %v146 = vld [vmem:[%s0 + $0x4] sm:$0xf]
      %v147 = vld [vmem:[%s0 + $0x8] sm:$0xf]
      %v148 = vld [vmem:[%s0 + $0xc] sm:$0xf]
      %v149 = vld [vmem:[%s0 + $0x10] sm:$0x3]
      %v150 = vld [vmem:[%s138] sm:$0xff]
      %v151 = vld [vmem:[%s138 + $0x8] sm:$0xff]
      %v152 = vld [vmem:[%s138 + $0x10] sm:$0xff]
      %v153 = vld [vmem:[%s138 + $0x18] sm:$0xff]
      %v154 = vld [vmem:[%s138 + $0x20] sm:$0xff]
      %v155 = vld [vmem:[%s138 + $0x28] sm:$0xff]
      %v156 = vld [vmem:[%s138 + $0x30] sm:$0xff]
      %v157 = vld [vmem:[%s138 + $0x38] sm:$0xff]
      %v158 = vld [vmem:[%s138 + $0x40] sm:$0xff]
      %v159 = vld [vmem:[%s138 + $0x48] sm:$0xff]
      %v160 = vld [vmem:[%s138 + $0x50] sm:$0xff]
      %v161 = vld [vmem:[%s138 + $0x58] sm:$0xff]
      %v162 = vld [vmem:[%s138 + $0x60] sm:$0xff]
      %v163 = vld [vmem:[%s138 + $0x68] sm:$0xff]
      %v164 = vld [vmem:[%s138 + $0x70] sm:$0xff]
      %v165 = vld [vmem:[%s138 + $0x78] sm:$0xff]
      %v166 = vld [vmem:[%s138 + $0x80] sm:$0xff]
      %v167 = vld [vmem:[%s138 + $0x88] sm:$0xf]
      %v168 = vld [vmem:[%s138 + $0x8c] sm:$0xff]
      %v169 = vld [vmem:[%s138 + $0x94] sm:$0xff]
      %v170 = vld [vmem:[%s138 + $0x9c] sm:$0xff]
      %v171 = vld [vmem:[%s138 + $0xa4] sm:$0xff]
      %v172 = vld [vmem:[%s138 + $0xac] sm:$0xff]
      %v173 = vld [vmem:[%s138 + $0xb4] sm:$0xff]
      %v174 = vld [vmem:[%s138 + $0xbc] sm:$0xff]
      %v175 = vld [vmem:[%s138 + $0xc4] sm:$0xff]
      %v176 = vld [vmem:[%s138 + $0xcc] sm:$0xff]
      %v177 = vld [vmem:[%s138 + $0xd4] sm:$0xff]
      %v178 = vld [vmem:[%s138 + $0xdc] sm:$0xff]
      %v179 = vld [vmem:[%s138 + $0xe4] sm:$0xff]
      %v180 = vld [vmem:[%s138 + $0xec] sm:$0xff]
      %v181 = vld [vmem:[%s138 + $0xf4] sm:$0xff]
      %v182 = vld [vmem:[%s138 + $0xfc] sm:$0xff]
      %v183 = vld [vmem:[%s138 + $0x104] sm:$0xff]
      %v184 = vld [vmem:[%s138 + $0x10c] sm:$0xff]
      %v185 = vld [vmem:[%s138 + $0x114] sm:$0xf]
      %v191 = vunpack.c.l.b16 %v145
      %v192 = vunpack.c.l.b16 %v146
      %v193 = vunpack.c.l.b16 %v147
      %v194 = vunpack.c.l.b16 %v148
      %v195 = vunpack.c.l.b16 %v149
      %v196 = vpack.c.b16 %v192, %v191
      %v197 = vpack.c.b16 %v194, %v193
      %v198 = vpack.c.b16 %v195, %v195
      %v235 = vunpack.c.l.b16 %v150
      %v236 = vunpack.c.h.b16 %v150
      %v237 = vunpack.c.l.b16 %v151
      %v238 = vunpack.c.h.b16 %v151
      %v239 = vunpack.c.l.b16 %v152
      %v240 = vunpack.c.h.b16 %v152
      %v241 = vunpack.c.l.b16 %v153
      %v242 = vunpack.c.h.b16 %v153
      %v243 = vunpack.c.l.b16 %v154
      %v244 = vunpack.c.h.b16 %v154
      %v245 = vunpack.c.l.b16 %v155
      %v246 = vunpack.c.h.b16 %v155
      %v247 = vunpack.c.l.b16 %v156
      %v248 = vunpack.c.h.b16 %v156
      %v249 = vunpack.c.l.b16 %v157
      %v250 = vunpack.c.h.b16 %v157
      %v251 = vunpack.c.l.b16 %v158
      %v252 = vunpack.c.h.b16 %v158
      %v253 = vunpack.c.l.b16 %v159
      %v254 = vunpack.c.h.b16 %v159
      %v255 = vunpack.c.l.b16 %v160
      %v256 = vunpack.c.h.b16 %v160
      %v257 = vunpack.c.l.b16 %v161
      %v258 = vunpack.c.h.b16 %v161
      %v259 = vunpack.c.l.b16 %v162
      %v260 = vunpack.c.h.b16 %v162
      %v261 = vunpack.c.l.b16 %v163
      %v262 = vunpack.c.h.b16 %v163
      %v263 = vunpack.c.l.b16 %v164
      %v264 = vunpack.c.h.b16 %v164
      %v265 = vunpack.c.l.b16 %v165
      %v266 = vunpack.c.h.b16 %v165
      %v267 = vunpack.c.l.b16 %v166
      %v268 = vunpack.c.h.b16 %v166
      %v269 = vunpack.c.l.b16 %v167
      %v270 = vunpack.c.l.b16 %v168
      %v271 = vunpack.c.h.b16 %v168
      %v272 = vunpack.c.l.b16 %v169
      %v273 = vunpack.c.h.b16 %v169
      %v274 = vunpack.c.l.b16 %v170
      %v275 = vunpack.c.h.b16 %v170
      %v276 = vunpack.c.l.b16 %v171
      %v277 = vunpack.c.h.b16 %v171
      %v278 = vunpack.c.l.b16 %v172
      %v279 = vunpack.c.h.b16 %v172
      %v280 = vunpack.c.l.b16 %v173
      %v281 = vunpack.c.h.b16 %v173
      %v282 = vunpack.c.l.b16 %v174
      %v283 = vunpack.c.h.b16 %v174
      %v284 = vunpack.c.l.b16 %v175
      %v285 = vunpack.c.h.b16 %v175
      %v286 = vunpack.c.l.b16 %v176
      %v287 = vunpack.c.h.b16 %v176
      %v288 = vunpack.c.l.b16 %v177
      %v289 = vunpack.c.h.b16 %v177
      %v290 = vunpack.c.l.b16 %v178
      %v291 = vunpack.c.h.b16 %v178
      %v292 = vunpack.c.l.b16 %v179
      %v293 = vunpack.c.h.b16 %v179
      %v294 = vunpack.c.l.b16 %v180
      %v295 = vunpack.c.h.b16 %v180
      %v296 = vunpack.c.l.b16 %v181
      %v297 = vunpack.c.h.b16 %v181
      %v298 = vunpack.c.l.b16 %v182
      %v299 = vunpack.c.h.b16 %v182
      %v300 = vunpack.c.l.b16 %v183
      %v301 = vunpack.c.h.b16 %v183
      %v302 = vunpack.c.l.b16 %v184
      %v303 = vunpack.c.h.b16 %v184
      %v304 = vunpack.c.l.b16 %v185
      %v305 = vpack.c.b16 %v270, %v235
      %v306 = vpack.c.b16 %v271, %v236
      %v307 = vpack.c.b16 %v272, %v237
      %v308 = vpack.c.b16 %v273, %v238
      %v309 = vpack.c.b16 %v274, %v239
      %v310 = vpack.c.b16 %v275, %v240
      %v311 = vpack.c.b16 %v276, %v241
      %v312 = vpack.c.b16 %v277, %v242
      %v313 = vpack.c.b16 %v278, %v243
      %v314 = vpack.c.b16 %v279, %v244
      %v315 = vpack.c.b16 %v280, %v245
      %v316 = vpack.c.b16 %v281, %v246
      %v317 = vpack.c.b16 %v282, %v247
      %v318 = vpack.c.b16 %v283, %v248
      %v319 = vpack.c.b16 %v284, %v249
      %v320 = vpack.c.b16 %v285, %v250
      %v321 = vpack.c.b16 %v286, %v251
      %v322 = vpack.c.b16 %v287, %v252
      %v323 = vpack.c.b16 %v288, %v253
      %v324 = vpack.c.b16 %v289, %v254
      %v325 = vpack.c.b16 %v290, %v255
      %v326 = vpack.c.b16 %v291, %v256
      %v327 = vpack.c.b16 %v292, %v257
      %v328 = vpack.c.b16 %v293, %v258
      %v329 = vpack.c.b16 %v294, %v259
      %v330 = vpack.c.b16 %v295, %v260
      %v331 = vpack.c.b16 %v296, %v261
      %v332 = vpack.c.b16 %v297, %v262
      %v333 = vpack.c.b16 %v298, %v263
      %v334 = vpack.c.b16 %v299, %v264
      %v335 = vpack.c.b16 %v300, %v265
      %v336 = vpack.c.b16 %v301, %v266
      %v337 = vpack.c.b16 %v302, %v267
      %v338 = vpack.c.b16 %v303, %v268
      %v339 = vpack.c.b16 %v304, %v269
      %vm375 = vcmask 130048
      %v377 = vsel %vm375, %v196, 0
      %v380 = vsel %vm375, %v197, 0
      %v383 = vsel %vm375, %v198, 0
      %385 = vmatprep.subr.bf16.mxu0 %v306
      %386 = vmatpush1.bf16.msra.mxu0 %v305
      %387 = vmatprep.subr.bf16.mxu0 0
      %388 = vmatpush1.bf16.msra.mxu0 0
      %389 = vmatprep.subr.bf16.mxu0 0
      %390 = vmatpush1.bf16.msra.mxu0 0
      %391 = vmatprep.subr.bf16.mxu0 0
      %392 = vmatpush1.bf16.msra.mxu0 0
      %393 = vmatprep.subr.bf16.mxu0 0
      %394 = vmatpush1.bf16.msra.mxu0 0
      %395 = vmatprep.subr.bf16.mxu0 0
      %396 = vmatpush1.bf16.msra.mxu0 0
      %397 = vmatprep.subr.bf16.mxu0 0
      %398 = vmatpush1.bf16.msra.mxu0 0
      %399 = vmatprep.subr.bf16.mxu0 0
      %400 = vmatpush1.bf16.msra.mxu0 0
      %401 = vmatprep.subr.bf16.mxu0 0
      %402 = vmatpush1.bf16.msra.mxu0 0
      %403 = vmatprep.subr.bf16.mxu0 0
      %404 = vmatpush1.bf16.msra.mxu0 0
      %405 = vmatprep.subr.bf16.mxu0 0
      %406 = vmatpush1.bf16.msra.mxu0 0
      %407 = vmatprep.subr.bf16.mxu0 0
      %408 = vmatpush1.bf16.msra.mxu0 0
      %409 = vmatprep.subr.bf16.mxu0 0
      %410 = vmatpush1.bf16.msra.mxu0 0
      %411 = vmatprep.subr.bf16.mxu0 0
      %412 = vmatpush1.bf16.msra.mxu0 0
      %413 = vmatprep.subr.bf16.mxu0 0
      %414 = vmatpush1.bf16.msra.mxu0 0
      %415 = vmatprep.subr.bf16.mxu0 0
      %416 = vmatpush1.bf16.msra.mxu0 0
      %417 = vmatprep.mubr.bf16.mxu0 0
      %418 = vmatmul.mubr.bf16.gmra.mrb[0].mxu0 %v377
      %v419 = vpop.f32.mrb[0].mxu0
      %v420 = vadd.f32 0.0, %v419
      %v421 = vpop.f32.mrb[0].mxu0
      %v422 = vadd.f32 0.0, %v421
      %v423 = vpop.f32.mrb[0].mxu0
      %v424 = vadd.f32 0.0, %v423
      %v425 = vpop.f32.mrb[0].mxu0
      %v426 = vadd.f32 0.0, %v425
      %427 = vmatprep.mubr.bf16.mxu0 0
      %428 = vmatmul.mubr.bf16.gmra.mrb[0].mxu0 %v380
      %v429 = vpop.f32.mrb[0].mxu0
      %v430 = vadd.f32 0.0, %v429
      %v431 = vpop.f32.mrb[0].mxu0
      %v432 = vadd.f32 0.0, %v431
      %v433 = vpop.f32.mrb[0].mxu0
      %v434 = vadd.f32 0.0, %v433
      %v435 = vpop.f32.mrb[0].mxu0
      %v436 = vadd.f32 0.0, %v435
      %437 = vmatprep.mubr.bf16.mxu0 0
      %438 = vmatmul.mubr.bf16.gmra.mrb[0].mxu0 %v383
      %v439 = vpop.f32.mrb[0].mxu0
      %v440 = vadd.f32 0.0, %v439
      %v441 = vpop.f32.mrb[0].mxu0
      %v442 = vadd.f32 0.0, %v441
      %v443 = vpop.f32.mrb[0].mxu0
      %v444 = vpop.f32.mrb[0].mxu0
      %445 = vdwg.mxu0
      %446 = vmatprep.subr.bf16.mxu0 %v308
      %447 = vmatpush1.bf16.msra.mxu0 %v307
      %448 = vmatprep.subr.bf16.mxu0 0
      %449 = vmatpush1.bf16.msra.mxu0 0
      %450 = vmatprep.subr.bf16.mxu0 0
      %451 = vmatpush1.bf16.msra.mxu0 0
      %452 = vmatprep.subr.bf16.mxu0 0
      %453 = vmatpush1.bf16.msra.mxu0 0
      %454 = vmatprep.subr.bf16.mxu0 0
      %455 = vmatpush1.bf16.msra.mxu0 0
      %456 = vmatprep.subr.bf16.mxu0 0
      %457 = vmatpush1.bf16.msra.mxu0 0
      %458 = vmatprep.subr.bf16.mxu0 0
      %459 = vmatpush1.bf16.msra.mxu0 0
      %460 = vmatprep.subr.bf16.mxu0 0
      %461 = vmatpush1.bf16.msra.mxu0 0
      %462 = vmatprep.subr.bf16.mxu0 0
      %463 = vmatpush1.bf16.msra.mxu0 0
      %464 = vmatprep.subr.bf16.mxu0 0
      %465 = vmatpush1.bf16.msra.mxu0 0
      %466 = vmatprep.subr.bf16.mxu0 0
      %467 = vmatpush1.bf16.msra.mxu0 0
      %468 = vmatprep.subr.bf16.mxu0 0
      %469 = vmatpush1.bf16.msra.mxu0 0
      %470 = vmatprep.subr.bf16.mxu0 0
      %471 = vmatpush1.bf16.msra.mxu0 0
      %472 = vmatprep.subr.bf16.mxu0 0
      %473 = vmatpush1.bf16.msra.mxu0 0
      %474 = vmatprep.subr.bf16.mxu0 0
      %475 = vmatpush1.bf16.msra.mxu0 0
      %476 = vmatprep.subr.bf16.mxu0 0
      %477 = vmatpush1.bf16.msra.mxu0 0
      %478 = vmatprep.mubr.bf16.mxu0 0
      %479 = vmatmul.mubr.bf16.gmra.mrb[0].mxu0 %v377
      %v480 = vpop.f32.mrb[0].mxu0
      %v481 = vadd.f32 0.0, %v480
      %v482 = vpop.f32.mrb[0].mxu0
      %v483 = vadd.f32 0.0, %v482
      %v484 = vpop.f32.mrb[0].mxu0
      %v485 = vadd.f32 0.0, %v484
      %v486 = vpop.f32.mrb[0].mxu0
      %v487 = vadd.f32 0.0, %v486
      %488 = vmatprep.mubr.bf16.mxu0 0
      %489 = vmatmul.mubr.bf16.gmra.mrb[0].mxu0 %v380
      %v490 = vpop.f32.mrb[0].mxu0
      %v491 = vadd.f32 0.0, %v490
      %v492 = vpop.f32.mrb[0].mxu0
      %v493 = vadd.f32 0.0, %v492
      %v494 = vpop.f32.mrb[0].mxu0
      %v495 = vadd.f32 0.0, %v494
      %v496 = vpop.f32.mrb[0].mxu0
      %v497 = vadd.f32 0.0, %v496
      %498 = vmatprep.mubr.bf16.mxu0 0
      %499 = vmatmul.mubr.bf16.gmra.mrb[0].mxu0 %v383
      %v500 = vpop.f32.mrb[0].mxu0
      %v501 = vadd.f32 0.0, %v500
      %v502 = vpop.f32.mrb[0].mxu0
      %v503 = vadd.f32 0.0, %v502
      %v504 = vpop.f32.mrb[0].mxu0
      %v505 = vpop.f32.mrb[0].mxu0
      %506 = vdwg.mxu0
      %507 = vmatprep.subr.bf16.mxu0 %v310
      %508 = vmatpush1.bf16.msra.mxu0 %v309
      %509 = vmatprep.subr.bf16.mxu0 0
      %510 = vmatpush1.bf16.msra.mxu0 0
      %511 = vmatprep.subr.bf16.mxu0 0
      %512 = vmatpush1.bf16.msra.mxu0 0
      %513 = vmatprep.subr.bf16.mxu0 0
      %514 = vmatpush1.bf16.msra.mxu0 0
      %515 = vmatprep.subr.bf16.mxu0 0
      %516 = vmatpush1.bf16.msra.mxu0 0
      %517 = vmatprep.subr.bf16.mxu0 0
      %518 = vmatpush1.bf16.msra.mxu0 0
      %519 = vmatprep.subr.bf16.mxu0 0
      %520 = vmatpush1.bf16.msra.mxu0 0
      %521 = vmatprep.subr.bf16.mxu0 0
      %522 = vmatpush1.bf16.msra.mxu0 0
      %523 = vmatprep.subr.bf16.mxu0 0
      %524 = vmatpush1.bf16.msra.mxu0 0
      %525 = vmatprep.subr.bf16.mxu0 0
      %526 = vmatpush1.bf16.msra.mxu0 0
      %527 = vmatprep.subr.bf16.mxu0 0
      %528 = vmatpush1.bf16.msra.mxu0 0
      %529 = vmatprep.subr.bf16.mxu0 0
      %530 = vmatpush1.bf16.msra.mxu0 0
      %531 = vmatprep.subr.bf16.mxu0 0
      %532 = vmatpush1.bf16.msra.mxu0 0
      %533 = vmatprep.subr.bf16.mxu0 0
      %534 = vmatpush1.bf16.msra.mxu0 0
      %535 = vmatprep.subr.bf16.mxu0 0
      %536 = vmatpush1.bf16.msra.mxu0 0
      %537 = vmatprep.subr.bf16.mxu0 0
      %538 = vmatpush1.bf16.msra.mxu0 0
      %539 = vmatprep.mubr.bf16.mxu0 0
      %540 = vmatmul.mubr.bf16.gmra.mrb[0].mxu0 %v377
      %v541 = vpop.f32.mrb[0].mxu0
      %v542 = vadd.f32 0.0, %v541
      %v543 = vpop.f32.mrb[0].mxu0
      %v544 = vadd.f32 0.0, %v543
      %v545 = vpop.f32.mrb[0].mxu0
      %v546 = vadd.f32 0.0, %v545
      %v547 = vpop.f32.mrb[0].mxu0
      %v548 = vadd.f32 0.0, %v547
      %549 = vmatprep.mubr.bf16.mxu0 0
      %550 = vmatmul.mubr.bf16.gmra.mrb[0].mxu0 %v380
      %v551 = vpop.f32.mrb[0].mxu0
      %v552 = vadd.f32 0.0, %v551
      %v553 = vpop.f32.mrb[0].mxu0
      %v554 = vadd.f32 0.0, %v553
      %v555 = vpop.f32.mrb[0].mxu0
      %v556 = vadd.f32 0.0, %v555
      %v557 = vpop.f32.mrb[0].mxu0
      %v558 = vadd.f32 0.0, %v557
      %559 = vmatprep.mubr.bf16.mxu0 0
      %560 = vmatmul.mubr.bf16.gmra.mrb[0].mxu0 %v383
      %v561 = vpop.f32.mrb[0].mxu0
      %v562 = vadd.f32 0.0, %v561
      %v563 = vpop.f32.mrb[0].mxu0
      %v564 = vadd.f32 0.0, %v563
      %v565 = vpop.f32.mrb[0].mxu0
      %v566 = vpop.f32.mrb[0].mxu0
      %567 = vdwg.mxu0
      %568 = vmatprep.subr.bf16.mxu0 %v312
      %569 = vmatpush1.bf16.msra.mxu0 %v311
      %570 = vmatprep.subr.bf16.mxu0 0
      %571 = vmatpush1.bf16.msra.mxu0 0
      %572 = vmatprep.subr.bf16.mxu0 0
      %573 = vmatpush1.bf16.msra.mxu0 0
      %574 = vmatprep.subr.bf16.mxu0 0
      %575 = vmatpush1.bf16.msra.mxu0 0
      %576 = vmatprep.subr.bf16.mxu0 0
      %577 = vmatpush1.bf16.msra.mxu0 0
      %578 = vmatprep.subr.bf16.mxu0 0
      %579 = vmatpush1.bf16.msra.mxu0 0
      %580 = vmatprep.subr.bf16.mxu0 0
      %581 = vmatpush1.bf16.msra.mxu0 0
      %582 = vmatprep.subr.bf16.mxu0 0
      %583 = vmatpush1.bf16.msra.mxu0 0
      %584 = vmatprep.subr.bf16.mxu0 0
      %585 = vmatpush1.bf16.msra.mxu0 0
      %586 = vmatprep.subr.bf16.mxu0 0
      %587 = vmatpush1.bf16.msra.mxu0 0
      %588 = vmatprep.subr.bf16.mxu0 0
      %589 = vmatpush1.bf16.msra.mxu0 0
      %590 = vmatprep.subr.bf16.mxu0 0
      %591 = vmatpush1.bf16.msra.mxu0 0
      %592 = vmatprep.subr.bf16.mxu0 0
      %593 = vmatpush1.bf16.msra.mxu0 0
      %594 = vmatprep.subr.bf16.mxu0 0
      %595 = vmatpush1.bf16.msra.mxu0 0
      %596 = vmatprep.subr.bf16.mxu0 0
      %597 = vmatpush1.bf16.msra.mxu0 0
      %598 = vmatprep.subr.bf16.mxu0 0
      %599 = vmatpush1.bf16.msra.mxu0 0
      %600 = vmatprep.mubr.bf16.mxu0 0
      %601 = vmatmul.mubr.bf16.gmra.mrb[0].mxu0 %v377
      %v602 = vpop.f32.mrb[0].mxu0
      %v603 = vadd.f32 0.0, %v602
      %v604 = vpop.f32.mrb[0].mxu0
      %v605 = vadd.f32 0.0, %v604
      %v606 = vpop.f32.mrb[0].mxu0
      %v607 = vadd.f32 0.0, %v606
      %v608 = vpop.f32.mrb[0].mxu0
      %v609 = vadd.f32 0.0, %v608
      %610 = vmatprep.mubr.bf16.mxu0 0
      %611 = vmatmul.mubr.bf16.gmra.mrb[0].mxu0 %v380
      %v612 = vpop.f32.mrb[0].mxu0
      %v613 = vadd.f32 0.0, %v612
      %v614 = vpop.f32.mrb[0].mxu0
      %v615 = vadd.f32 0.0, %v614
      %v616 = vpop.f32.mrb[0].mxu0
      %v617 = vadd.f32 0.0, %v616
      %v618 = vpop.f32.mrb[0].mxu0
      %v619 = vadd.f32 0.0, %v618
      %620 = vmatprep.mubr.bf16.mxu0 0
      %621 = vmatmul.mubr.bf16.gmra.mrb[0].mxu0 %v383
      %v622 = vpop.f32.mrb[0].mxu0
      %v623 = vadd.f32 0.0, %v622
      %v624 = vpop.f32.mrb[0].mxu0
      %v625 = vadd.f32 0.0, %v624
      %v626 = vpop.f32.mrb[0].mxu0
      %v627 = vpop.f32.mrb[0].mxu0
      %628 = vdwg.mxu0
      %629 = vmatprep.subr.bf16.mxu0 %v314
      %630 = vmatpush1.bf16.msra.mxu0 %v313
      %631 = vmatprep.subr.bf16.mxu0 0
      %632 = vmatpush1.bf16.msra.mxu0 0
      %633 = vmatprep.subr.bf16.mxu0 0
      %634 = vmatpush1.bf16.msra.mxu0 0
      %635 = vmatprep.subr.bf16.mxu0 0
      %636 = vmatpush1.bf16.msra.mxu0 0
      %637 = vmatprep.subr.bf16.mxu0 0
      %638 = vmatpush1.bf16.msra.mxu0 0
      %639 = vmatprep.subr.bf16.mxu0 0
      %640 = vmatpush1.bf16.msra.mxu0 0
      %641 = vmatprep.subr.bf16.mxu0 0
      %642 = vmatpush1.bf16.msra.mxu0 0
      %643 = vmatprep.subr.bf16.mxu0 0
      %644 = vmatpush1.bf16.msra.mxu0 0
      %645 = vmatprep.subr.bf16.mxu0 0
      %646 = vmatpush1.bf16.msra.mxu0 0
      %647 = vmatprep.subr.bf16.mxu0 0
      %648 = vmatpush1.bf16.msra.mxu0 0
      %649 = vmatprep.subr.bf16.mxu0 0
      %650 = vmatpush1.bf16.msra.mxu0 0
      %651 = vmatprep.subr.bf16.mxu0 0
      %652 = vmatpush1.bf16.msra.mxu0 0
      %653 = vmatprep.subr.bf16.mxu0 0
      %654 = vmatpush1.bf16.msra.mxu0 0
      %655 = vmatprep.subr.bf16.mxu0 0
      %656 = vmatpush1.bf16.msra.mxu0 0
      %657 = vmatprep.subr.bf16.mxu0 0
      %658 = vmatpush1.bf16.msra.mxu0 0
      %659 = vmatprep.subr.bf16.mxu0 0
      %660 = vmatpush1.bf16.msra.mxu0 0
      %661 = vmatprep.mubr.bf16.mxu0 0
      %662 = vmatmul.mubr.bf16.gmra.mrb[0].mxu0 %v377
      %v663 = vpop.f32.mrb[0].mxu0
      %v664 = vadd.f32 0.0, %v663
      %v665 = vpop.f32.mrb[0].mxu0
      %v666 = vadd.f32 0.0, %v665
      %v667 = vpop.f32.mrb[0].mxu0
      %v668 = vadd.f32 0.0, %v667
      %v669 = vpop.f32.mrb[0].mxu0
      %v670 = vadd.f32 0.0, %v669
      %671 = vmatprep.mubr.bf16.mxu0 0
      %672 = vmatmul.mubr.bf16.gmra.mrb[0].mxu0 %v380
      %v673 = vpop.f32.mrb[0].mxu0
      %v674 = vadd.f32 0.0, %v673
      %v675 = vpop.f32.mrb[0].mxu0
      %v676 = vadd.f32 0.0, %v675
      %v677 = vpop.f32.mrb[0].mxu0
      %v678 = vadd.f32 0.0, %v677
      %v679 = vpop.f32.mrb[0].mxu0
      %v680 = vadd.f32 0.0, %v679
      %681 = vmatprep.mubr.bf16.mxu0 0
      %682 = vmatmul.mubr.bf16.gmra.mrb[0].mxu0 %v383
      %v683 = vpop.f32.mrb[0].mxu0
      %v684 = vadd.f32 0.0, %v683
      %v685 = vpop.f32.mrb[0].mxu0
      %v686 = vadd.f32 0.0, %v685
      %v687 = vpop.f32.mrb[0].mxu0
      %v688 = vpop.f32.mrb[0].mxu0
      %689 = vdwg.mxu0
      %690 = vmatprep.subr.bf16.mxu0 %v316
      %691 = vmatpush1.bf16.msra.mxu0 %v315
      %692 = vmatprep.subr.bf16.mxu0 0
      %693 = vmatpush1.bf16.msra.mxu0 0
      %694 = vmatprep.subr.bf16.mxu0 0
      %695 = vmatpush1.bf16.msra.mxu0 0
      %696 = vmatprep.subr.bf16.mxu0 0
      %697 = vmatpush1.bf16.msra.mxu0 0
      %698 = vmatprep.subr.bf16.mxu0 0
      %699 = vmatpush1.bf16.msra.mxu0 0
      %700 = vmatprep.subr.bf16.mxu0 0
      %701 = vmatpush1.bf16.msra.mxu0 0
      %702 = vmatprep.subr.bf16.mxu0 0
      %703 = vmatpush1.bf16.msra.mxu0 0
      %704 = vmatprep.subr.bf16.mxu0 0
      %705 = vmatpush1.bf16.msra.mxu0 0
      %706 = vmatprep.subr.bf16.mxu0 0
      %707 = vmatpush1.bf16.msra.mxu0 0
      %708 = vmatprep.subr.bf16.mxu0 0
      %709 = vmatpush1.bf16.msra.mxu0 0
      %710 = vmatprep.subr.bf16.mxu0 0
      %711 = vmatpush1.bf16.msra.mxu0 0
      %712 = vmatprep.subr.bf16.mxu0 0
      %713 = vmatpush1.bf16.msra.mxu0 0
      %714 = vmatprep.subr.bf16.mxu0 0
      %715 = vmatpush1.bf16.msra.mxu0 0
      %716 = vmatprep.subr.bf16.mxu0 0
      %717 = vmatpush1.bf16.msra.mxu0 0
      %718 = vmatprep.subr.bf16.mxu0 0
      %719 = vmatpush1.bf16.msra.mxu0 0
      %720 = vmatprep.subr.bf16.mxu0 0
      %721 = vmatpush1.bf16.msra.mxu0 0
      %722 = vmatprep.mubr.bf16.mxu0 0
      %723 = vmatmul.mubr.bf16.gmra.mrb[0].mxu0 %v377
      %v724 = vpop.f32.mrb[0].mxu0
      %v725 = vadd.f32 0.0, %v724
      %v726 = vpop.f32.mrb[0].mxu0
      %v727 = vadd.f32 0.0, %v726
      %v728 = vpop.f32.mrb[0].mxu0
      %v729 = vadd.f32 0.0, %v728
      %v730 = vpop.f32.mrb[0].mxu0
      %v731 = vadd.f32 0.0, %v730
      %732 = vmatprep.mubr.bf16.mxu0 0
      %733 = vmatmul.mubr.bf16.gmra.mrb[0].mxu0 %v380
      %v734 = vpop.f32.mrb[0].mxu0
      %v735 = vadd.f32 0.0, %v734
      %v736 = vpop.f32.mrb[0].mxu0
      %v737 = vadd.f32 0.0, %v736
      %v738 = vpop.f32.mrb[0].mxu0
      %v739 = vadd.f32 0.0, %v738
      %v740 = vpop.f32.mrb[0].mxu0
      %v741 = vadd.f32 0.0, %v740
      %742 = vmatprep.mubr.bf16.mxu0 0
      %743 = vmatmul.mubr.bf16.gmra.mrb[0].mxu0 %v383
      %v744 = vpop.f32.mrb[0].mxu0
      %v745 = vadd.f32 0.0, %v744
      %v746 = vpop.f32.mrb[0].mxu0
      %v747 = vadd.f32 0.0, %v746
      %v748 = vpop.f32.mrb[0].mxu0
      %v749 = vpop.f32.mrb[0].mxu0
      %750 = vdwg.mxu0
      %751 = vmatprep.subr.bf16.mxu0 %v318
      %752 = vmatpush1.bf16.msra.mxu0 %v317
      %753 = vmatprep.subr.bf16.mxu0 0
      %754 = vmatpush1.bf16.msra.mxu0 0
      %755 = vmatprep.subr.bf16.mxu0 0
      %756 = vmatpush1.bf16.msra.mxu0 0
      %757 = vmatprep.subr.bf16.mxu0 0
      %758 = vmatpush1.bf16.msra.mxu0 0
      %759 = vmatprep.subr.bf16.mxu0 0
      %760 = vmatpush1.bf16.msra.mxu0 0
      %761 = vmatprep.subr.bf16.mxu0 0
      %762 = vmatpush1.bf16.msra.mxu0 0
      %763 = vmatprep.subr.bf16.mxu0 0
      %764 = vmatpush1.bf16.msra.mxu0 0
      %765 = vmatprep.subr.bf16.mxu0 0
      %766 = vmatpush1.bf16.msra.mxu0 0
      %767 = vmatprep.subr.bf16.mxu0 0
      %768 = vmatpush1.bf16.msra.mxu0 0
      %769 = vmatprep.subr.bf16.mxu0 0
      %770 = vmatpush1.bf16.msra.mxu0 0
      %771 = vmatprep.subr.bf16.mxu0 0
      %772 = vmatpush1.bf16.msra.mxu0 0
      %773 = vmatprep.subr.bf16.mxu0 0
      %774 = vmatpush1.bf16.msra.mxu0 0
      %775 = vmatprep.subr.bf16.mxu0 0
      %776 = vmatpush1.bf16.msra.mxu0 0
      %777 = vmatprep.subr.bf16.mxu0 0
      %778 = vmatpush1.bf16.msra.mxu0 0
      %779 = vmatprep.subr.bf16.mxu0 0
      %780 = vmatpush1.bf16.msra.mxu0 0
      %781 = vmatprep.subr.bf16.mxu0 0
      %782 = vmatpush1.bf16.msra.mxu0 0
      %783 = vmatprep.mubr.bf16.mxu0 0
      %784 = vmatmul.mubr.bf16.gmra.mrb[0].mxu0 %v377
      %v785 = vpop.f32.mrb[0].mxu0
      %v786 = vadd.f32 0.0, %v785
      %v787 = vpop.f32.mrb[0].mxu0
      %v788 = vadd.f32 0.0, %v787
      %v789 = vpop.f32.mrb[0].mxu0
      %v790 = vadd.f32 0.0, %v789
      %v791 = vpop.f32.mrb[0].mxu0
      %v792 = vadd.f32 0.0, %v791
      %793 = vmatprep.mubr.bf16.mxu0 0
      %794 = vmatmul.mubr.bf16.gmra.mrb[0].mxu0 %v380
      %v795 = vpop.f32.mrb[0].mxu0
      %v796 = vadd.f32 0.0, %v795
      %v797 = vpop.f32.mrb[0].mxu0
      %v798 = vadd.f32 0.0, %v797
      %v799 = vpop.f32.mrb[0].mxu0
      %v800 = vadd.f32 0.0, %v799
      %v801 = vpop.f32.mrb[0].mxu0
      %v802 = vadd.f32 0.0, %v801
      %803 = vmatprep.mubr.bf16.mxu0 0
      %804 = vmatmul.mubr.bf16.gmra.mrb[0].mxu0 %v383
      %v805 = vpop.f32.mrb[0].mxu0
      %v806 = vadd.f32 0.0, %v805
      %v807 = vpop.f32.mrb[0].mxu0
      %v808 = vadd.f32 0.0, %v807
      %v809 = vpop.f32.mrb[0].mxu0
      %v810 = vpop.f32.mrb[0].mxu0
      %811 = vdwg.mxu0
      %812 = vmatprep.subr.bf16.mxu0 %v320
      %813 = vmatpush1.bf16.msra.mxu0 %v319
      %814 = vmatprep.subr.bf16.mxu0 0
      %815 = vmatpush1.bf16.msra.mxu0 0
      %816 = vmatprep.subr.bf16.mxu0 0
      %817 = vmatpush1.bf16.msra.mxu0 0
      %818 = vmatprep.subr.bf16.mxu0 0
      %819 = vmatpush1.bf16.msra.mxu0 0
      %820 = vmatprep.subr.bf16.mxu0 0
      %821 = vmatpush1.bf16.msra.mxu0 0
      %822 = vmatprep.subr.bf16.mxu0 0
      %823 = vmatpush1.bf16.msra.mxu0 0
      %824 = vmatprep.subr.bf16.mxu0 0
      %825 = vmatpush1.bf16.msra.mxu0 0
      %826 = vmatprep.subr.bf16.mxu0 0
      %827 = vmatpush1.bf16.msra.mxu0 0
      %828 = vmatprep.subr.bf16.mxu0 0
      %829 = vmatpush1.bf16.msra.mxu0 0
      %830 = vmatprep.subr.bf16.mxu0 0
      %831 = vmatpush1.bf16.msra.mxu0 0
      %832 = vmatprep.subr.bf16.mxu0 0
      %833 = vmatpush1.bf16.msra.mxu0 0
      %834 = vmatprep.subr.bf16.mxu0 0
      %835 = vmatpush1.bf16.msra.mxu0 0
      %836 = vmatprep.subr.bf16.mxu0 0
      %837 = vmatpush1.bf16.msra.mxu0 0
      %838 = vmatprep.subr.bf16.mxu0 0
      %839 = vmatpush1.bf16.msra.mxu0 0
      %840 = vmatprep.subr.bf16.mxu0 0
      %841 = vmatpush1.bf16.msra.mxu0 0
      %842 = vmatprep.subr.bf16.mxu0 0
      %843 = vmatpush1.bf16.msra.mxu0 0
      %844 = vmatprep.mubr.bf16.mxu0 0
      %845 = vmatmul.mubr.bf16.gmra.mrb[0].mxu0 %v377
      %v846 = vpop.f32.mrb[0].mxu0
      %v847 = vadd.f32 0.0, %v846
      %v848 = vpop.f32.mrb[0].mxu0
      %v849 = vadd.f32 0.0, %v848
      %v850 = vpop.f32.mrb[0].mxu0
      %v851 = vadd.f32 0.0, %v850
      %v852 = vpop.f32.mrb[0].mxu0
      %v853 = vadd.f32 0.0, %v852
      %854 = vmatprep.mubr.bf16.mxu0 0
      %855 = vmatmul.mubr.bf16.gmra.mrb[0].mxu0 %v380
      %v856 = vpop.f32.mrb[0].mxu0
      %v857 = vadd.f32 0.0, %v856
      %v858 = vpop.f32.mrb[0].mxu0
      %v859 = vadd.f32 0.0, %v858
      %v860 = vpop.f32.mrb[0].mxu0
      %v861 = vadd.f32 0.0, %v860
      %v862 = vpop.f32.mrb[0].mxu0
      %v863 = vadd.f32 0.0, %v862
      %864 = vmatprep.mubr.bf16.mxu0 0
      %865 = vmatmul.mubr.bf16.gmra.mrb[0].mxu0 %v383
      %v866 = vpop.f32.mrb[0].mxu0
      %v867 = vadd.f32 0.0, %v866
      %v868 = vpop.f32.mrb[0].mxu0
      %v869 = vadd.f32 0.0, %v868
      %v870 = vpop.f32.mrb[0].mxu0
      %v871 = vpop.f32.mrb[0].mxu0
      %872 = vdwg.mxu0
      %873 = vmatprep.subr.bf16.mxu0 %v322
      %874 = vmatpush1.bf16.msra.mxu0 %v321
      %875 = vmatprep.subr.bf16.mxu0 0
      %876 = vmatpush1.bf16.msra.mxu0 0
      %877 = vmatprep.subr.bf16.mxu0 0
      %878 = vmatpush1.bf16.msra.mxu0 0
      %879 = vmatprep.subr.bf16.mxu0 0
      %880 = vmatpush1.bf16.msra.mxu0 0
      %881 = vmatprep.subr.bf16.mxu0 0
      %882 = vmatpush1.bf16.msra.mxu0 0
      %883 = vmatprep.subr.bf16.mxu0 0
      %884 = vmatpush1.bf16.msra.mxu0 0
      %885 = vmatprep.subr.bf16.mxu0 0
      %886 = vmatpush1.bf16.msra.mxu0 0
      %887 = vmatprep.subr.bf16.mxu0 0
      %888 = vmatpush1.bf16.msra.mxu0 0
      %889 = vmatprep.subr.bf16.mxu0 0
      %890 = vmatpush1.bf16.msra.mxu0 0
      %891 = vmatprep.subr.bf16.mxu0 0
      %892 = vmatpush1.bf16.msra.mxu0 0
      %893 = vmatprep.subr.bf16.mxu0 0
      %894 = vmatpush1.bf16.msra.mxu0 0
      %895 = vmatprep.subr.bf16.mxu0 0
      %896 = vmatpush1.bf16.msra.mxu0 0
      %897 = vmatprep.subr.bf16.mxu0 0
      %898 = vmatpush1.bf16.msra.mxu0 0
      %899 = vmatprep.subr.bf16.mxu0 0
      %900 = vmatpush1.bf16.msra.mxu0 0
      %901 = vmatprep.subr.bf16.mxu0 0
      %902 = vmatpush1.bf16.msra.mxu0 0
      %903 = vmatprep.subr.bf16.mxu0 0
      %904 = vmatpush1.bf16.msra.mxu0 0
      %905 = vmatprep.mubr.bf16.mxu0 0
      %906 = vmatmul.mubr.bf16.gmra.mrb[0].mxu0 %v377
      %v907 = vpop.f32.mrb[0].mxu0
      %v908 = vadd.f32 0.0, %v907
      %v909 = vpop.f32.mrb[0].mxu0
      %v910 = vadd.f32 0.0, %v909
      %v911 = vpop.f32.mrb[0].mxu0
      %v912 = vadd.f32 0.0, %v911
      %v913 = vpop.f32.mrb[0].mxu0
      %v914 = vadd.f32 0.0, %v913
      %915 = vmatprep.mubr.bf16.mxu0 0
      %916 = vmatmul.mubr.bf16.gmra.mrb[0].mxu0 %v380
      %v917 = vpop.f32.mrb[0].mxu0
      %v918 = vadd.f32 0.0, %v917
      %v919 = vpop.f32.mrb[0].mxu0
      %v920 = vadd.f32 0.0, %v919
      %v921 = vpop.f32.mrb[0].mxu0
      %v922 = vadd.f32 0.0, %v921
      %v923 = vpop.f32.mrb[0].mxu0
      %v924 = vadd.f32 0.0, %v923
      %925 = vmatprep.mubr.bf16.mxu0 0
      %926 = vmatmul.mubr.bf16.gmra.mrb[0].mxu0 %v383
      %v927 = vpop.f32.mrb[0].mxu0
      %v928 = vadd.f32 0.0, %v927
      %v929 = vpop.f32.mrb[0].mxu0
      %v930 = vadd.f32 0.0, %v929
      %v931 = vpop.f32.mrb[0].mxu0
      %v932 = vpop.f32.mrb[0].mxu0
      %933 = vdwg.mxu0
      %934 = vmatprep.subr.bf16.mxu0 %v324
      %935 = vmatpush1.bf16.msra.mxu0 %v323
      %936 = vmatprep.subr.bf16.mxu0 0
      %937 = vmatpush1.bf16.msra.mxu0 0
      %938 = vmatprep.subr.bf16.mxu0 0
      %939 = vmatpush1.bf16.msra.mxu0 0
      %940 = vmatprep.subr.bf16.mxu0 0
      %941 = vmatpush1.bf16.msra.mxu0 0
      %942 = vmatprep.subr.bf16.mxu0 0
      %943 = vmatpush1.bf16.msra.mxu0 0
      %944 = vmatprep.subr.bf16.mxu0 0
      %945 = vmatpush1.bf16.msra.mxu0 0
      %946 = vmatprep.subr.bf16.mxu0 0
      %947 = vmatpush1.bf16.msra.mxu0 0
      %948 = vmatprep.subr.bf16.mxu0 0
      %949 = vmatpush1.bf16.msra.mxu0 0
      %950 = vmatprep.subr.bf16.mxu0 0
      %951 = vmatpush1.bf16.msra.mxu0 0
      %952 = vmatprep.subr.bf16.mxu0 0
      %953 = vmatpush1.bf16.msra.mxu0 0
      %954 = vmatprep.subr.bf16.mxu0 0
      %955 = vmatpush1.bf16.msra.mxu0 0
      %956 = vmatprep.subr.bf16.mxu0 0
      %957 = vmatpush1.bf16.msra.mxu0 0
      %958 = vmatprep.subr.bf16.mxu0 0
      %959 = vmatpush1.bf16.msra.mxu0 0
      %960 = vmatprep.subr.bf16.mxu0 0
      %961 = vmatpush1.bf16.msra.mxu0 0
      %962 = vmatprep.subr.bf16.mxu0 0
      %963 = vmatpush1.bf16.msra.mxu0 0
      %964 = vmatprep.subr.bf16.mxu0 0
      %965 = vmatpush1.bf16.msra.mxu0 0
      %966 = vmatprep.mubr.bf16.mxu0 0
      %967 = vmatmul.mubr.bf16.gmra.mrb[0].mxu0 %v377
      %v968 = vpop.f32.mrb[0].mxu0
      %v969 = vadd.f32 0.0, %v968
      %v970 = vpop.f32.mrb[0].mxu0
      %v971 = vadd.f32 0.0, %v970
      %v972 = vpop.f32.mrb[0].mxu0
      %v973 = vadd.f32 0.0, %v972
      %v974 = vpop.f32.mrb[0].mxu0
      %v975 = vadd.f32 0.0, %v974
      %976 = vmatprep.mubr.bf16.mxu0 0
      %977 = vmatmul.mubr.bf16.gmra.mrb[0].mxu0 %v380
      %v978 = vpop.f32.mrb[0].mxu0
      %v979 = vadd.f32 0.0, %v978
      %v980 = vpop.f32.mrb[0].mxu0
      %v981 = vadd.f32 0.0, %v980
      %v982 = vpop.f32.mrb[0].mxu0
      %v983 = vadd.f32 0.0, %v982
      %v984 = vpop.f32.mrb[0].mxu0
      %v985 = vadd.f32 0.0, %v984
      %986 = vmatprep.mubr.bf16.mxu0 0
      %987 = vmatmul.mubr.bf16.gmra.mrb[0].mxu0 %v383
      %v988 = vpop.f32.mrb[0].mxu0
      %v989 = vadd.f32 0.0, %v988
      %v990 = vpop.f32.mrb[0].mxu0
      %v991 = vadd.f32 0.0, %v990
      %v992 = vpop.f32.mrb[0].mxu0
      %v993 = vpop.f32.mrb[0].mxu0
      %994 = vdwg.mxu0
      %995 = vmatprep.subr.bf16.mxu0 %v326
      %996 = vmatpush1.bf16.msra.mxu0 %v325
      %997 = vmatprep.subr.bf16.mxu0 0
      %998 = vmatpush1.bf16.msra.mxu0 0
      %999 = vmatprep.subr.bf16.mxu0 0
      %1000 = vmatpush1.bf16.msra.mxu0 0
      %1001 = vmatprep.subr.bf16.mxu0 0
      %1002 = vmatpush1.bf16.msra.mxu0 0
      %1003 = vmatprep.subr.bf16.mxu0 0
      %1004 = vmatpush1.bf16.msra.mxu0 0
      %1005 = vmatprep.subr.bf16.mxu0 0
      %1006 = vmatpush1.bf16.msra.mxu0 0
      %1007 = vmatprep.subr.bf16.mxu0 0
      %1008 = vmatpush1.bf16.msra.mxu0 0
      %1009 = vmatprep.subr.bf16.mxu0 0
      %1010 = vmatpush1.bf16.msra.mxu0 0
      %1011 = vmatprep.subr.bf16.mxu0 0
      %1012 = vmatpush1.bf16.msra.mxu0 0
      %1013 = vmatprep.subr.bf16.mxu0 0
      %1014 = vmatpush1.bf16.msra.mxu0 0
      %1015 = vmatprep.subr.bf16.mxu0 0
      %1016 = vmatpush1.bf16.msra.mxu0 0
      %1017 = vmatprep.subr.bf16.mxu0 0
      %1018 = vmatpush1.bf16.msra.mxu0 0
      %1019 = vmatprep.subr.bf16.mxu0 0
      %1020 = vmatpush1.bf16.msra.mxu0 0
      %1021 = vmatprep.subr.bf16.mxu0 0
      %1022 = vmatpush1.bf16.msra.mxu0 0
      %1023 = vmatprep.subr.bf16.mxu0 0
      %1024 = vmatpush1.bf16.msra.mxu0 0
      %1025 = vmatprep.subr.bf16.mxu0 0
      %1026 = vmatpush1.bf16.msra.mxu0 0
      %1027 = vmatprep.mubr.bf16.mxu0 0
      %1028 = vmatmul.mubr.bf16.gmra.mrb[0].mxu0 %v377
      %v1029 = vpop.f32.mrb[0].mxu0
      %v1030 = vadd.f32 0.0, %v1029
      %v1031 = vpop.f32.mrb[0].mxu0
      %v1032 = vadd.f32 0.0, %v1031
      %v1033 = vpop.f32.mrb[0].mxu0
      %v1034 = vadd.f32 0.0, %v1033
      %v1035 = vpop.f32.mrb[0].mxu0
      %v1036 = vadd.f32 0.0, %v1035
      %1037 = vmatprep.mubr.bf16.mxu0 0
      %1038 = vmatmul.mubr.bf16.gmra.mrb[0].mxu0 %v380
      %v1039 = vpop.f32.mrb[0].mxu0
      %v1040 = vadd.f32 0.0, %v1039
      %v1041 = vpop.f32.mrb[0].mxu0
      %v1042 = vadd.f32 0.0, %v1041
      %v1043 = vpop.f32.mrb[0].mxu0
      %v1044 = vadd.f32 0.0, %v1043
      %v1045 = vpop.f32.mrb[0].mxu0
      %v1046 = vadd.f32 0.0, %v1045
      %1047 = vmatprep.mubr.bf16.mxu0 0
      %1048 = vmatmul.mubr.bf16.gmra.mrb[0].mxu0 %v383
      %v1049 = vpop.f32.mrb[0].mxu0
      %v1050 = vadd.f32 0.0, %v1049
      %v1051 = vpop.f32.mrb[0].mxu0
      %v1052 = vadd.f32 0.0, %v1051
      %v1053 = vpop.f32.mrb[0].mxu0
      %v1054 = vpop.f32.mrb[0].mxu0
      %1055 = vdwg.mxu0
      %1056 = vmatprep.subr.bf16.mxu0 %v328
      %1057 = vmatpush1.bf16.msra.mxu0 %v327
      %1058 = vmatprep.subr.bf16.mxu0 0
      %1059 = vmatpush1.bf16.msra.mxu0 0
      %1060 = vmatprep.subr.bf16.mxu0 0
      %1061 = vmatpush1.bf16.msra.mxu0 0
      %1062 = vmatprep.subr.bf16.mxu0 0
      %1063 = vmatpush1.bf16.msra.mxu0 0
      %1064 = vmatprep.subr.bf16.mxu0 0
      %1065 = vmatpush1.bf16.msra.mxu0 0
      %1066 = vmatprep.subr.bf16.mxu0 0
      %1067 = vmatpush1.bf16.msra.mxu0 0
      %1068 = vmatprep.subr.bf16.mxu0 0
      %1069 = vmatpush1.bf16.msra.mxu0 0
      %1070 = vmatprep.subr.bf16.mxu0 0
      %1071 = vmatpush1.bf16.msra.mxu0 0
      %1072 = vmatprep.subr.bf16.mxu0 0
      %1073 = vmatpush1.bf16.msra.mxu0 0
      %1074 = vmatprep.subr.bf16.mxu0 0
      %1075 = vmatpush1.bf16.msra.mxu0 0
      %1076 = vmatprep.subr.bf16.mxu0 0
      %1077 = vmatpush1.bf16.msra.mxu0 0
      %1078 = vmatprep.subr.bf16.mxu0 0
      %1079 = vmatpush1.bf16.msra.mxu0 0
      %1080 = vmatprep.subr.bf16.mxu0 0
      %1081 = vmatpush1.bf16.msra.mxu0 0
      %1082 = vmatprep.subr.bf16.mxu0 0
      %1083 = vmatpush1.bf16.msra.mxu0 0
      %1084 = vmatprep.subr.bf16.mxu0 0
      %1085 = vmatpush1.bf16.msra.mxu0 0
      %1086 = vmatprep.subr.bf16.mxu0 0
      %1087 = vmatpush1.bf16.msra.mxu0 0
      %1088 = vmatprep.mubr.bf16.mxu0 0
      %1089 = vmatmul.mubr.bf16.gmra.mrb[0].mxu0 %v377
      %v1090 = vpop.f32.mrb[0].mxu0
      %v1091 = vadd.f32 0.0, %v1090
      %v1092 = vpop.f32.mrb[0].mxu0
      %v1093 = vadd.f32 0.0, %v1092
      %v1094 = vpop.f32.mrb[0].mxu0
      %v1095 = vadd.f32 0.0, %v1094
      %v1096 = vpop.f32.mrb[0].mxu0
      %v1097 = vadd.f32 0.0, %v1096
      %1098 = vmatprep.mubr.bf16.mxu0 0
      %1099 = vmatmul.mubr.bf16.gmra.mrb[0].mxu0 %v380
      %v1100 = vpop.f32.mrb[0].mxu0
      %v1101 = vadd.f32 0.0, %v1100
      %v1102 = vpop.f32.mrb[0].mxu0
      %v1103 = vadd.f32 0.0, %v1102
      %v1104 = vpop.f32.mrb[0].mxu0
      %v1105 = vadd.f32 0.0, %v1104
      %v1106 = vpop.f32.mrb[0].mxu0
      %v1107 = vadd.f32 0.0, %v1106
      %1108 = vmatprep.mubr.bf16.mxu0 0
      %1109 = vmatmul.mubr.bf16.gmra.mrb[0].mxu0 %v383
      %v1110 = vpop.f32.mrb[0].mxu0
      %v1111 = vadd.f32 0.0, %v1110
      %v1112 = vpop.f32.mrb[0].mxu0
      %v1113 = vadd.f32 0.0, %v1112
      %v1114 = vpop.f32.mrb[0].mxu0
      %v1115 = vpop.f32.mrb[0].mxu0
      %1116 = vdwg.mxu0
      %1117 = vmatprep.subr.bf16.mxu0 %v330
      %1118 = vmatpush1.bf16.msra.mxu0 %v329
      %1119 = vmatprep.subr.bf16.mxu0 0
      %1120 = vmatpush1.bf16.msra.mxu0 0
      %1121 = vmatprep.subr.bf16.mxu0 0
      %1122 = vmatpush1.bf16.msra.mxu0 0
      %1123 = vmatprep.subr.bf16.mxu0 0
      %1124 = vmatpush1.bf16.msra.mxu0 0
      %1125 = vmatprep.subr.bf16.mxu0 0
      %1126 = vmatpush1.bf16.msra.mxu0 0
      %1127 = vmatprep.subr.bf16.mxu0 0
      %1128 = vmatpush1.bf16.msra.mxu0 0
      %1129 = vmatprep.subr.bf16.mxu0 0
      %1130 = vmatpush1.bf16.msra.mxu0 0
      %1131 = vmatprep.subr.bf16.mxu0 0
      %1132 = vmatpush1.bf16.msra.mxu0 0
      %1133 = vmatprep.subr.bf16.mxu0 0
      %1134 = vmatpush1.bf16.msra.mxu0 0
      %1135 = vmatprep.subr.bf16.mxu0 0
      %1136 = vmatpush1.bf16.msra.mxu0 0
      %1137 = vmatprep.subr.bf16.mxu0 0
      %1138 = vmatpush1.bf16.msra.mxu0 0
      %1139 = vmatprep.subr.bf16.mxu0 0
      %1140 = vmatpush1.bf16.msra.mxu0 0
      %1141 = vmatprep.subr.bf16.mxu0 0
      %1142 = vmatpush1.bf16.msra.mxu0 0
      %1143 = vmatprep.subr.bf16.mxu0 0
      %1144 = vmatpush1.bf16.msra.mxu0 0
      %1145 = vmatprep.subr.bf16.mxu0 0
      %1146 = vmatpush1.bf16.msra.mxu0 0
      %1147 = vmatprep.subr.bf16.mxu0 0
      %1148 = vmatpush1.bf16.msra.mxu0 0
      %1149 = vmatprep.mubr.bf16.mxu0 0
      %1150 = vmatmul.mubr.bf16.gmra.mrb[0].mxu0 %v377
      %v1151 = vpop.f32.mrb[0].mxu0
      %v1152 = vadd.f32 0.0, %v1151
      %v1153 = vpop.f32.mrb[0].mxu0
      %v1154 = vadd.f32 0.0, %v1153
      %v1155 = vpop.f32.mrb[0].mxu0
      %v1156 = vadd.f32 0.0, %v1155
      %v1157 = vpop.f32.mrb[0].mxu0
      %v1158 = vadd.f32 0.0, %v1157
      %1159 = vmatprep.mubr.bf16.mxu0 0
      %1160 = vmatmul.mubr.bf16.gmra.mrb[0].mxu0 %v380
      %v1161 = vpop.f32.mrb[0].mxu0
      %v1162 = vadd.f32 0.0, %v1161
      %v1163 = vpop.f32.mrb[0].mxu0
      %v1164 = vadd.f32 0.0, %v1163
      %v1165 = vpop.f32.mrb[0].mxu0
      %v1166 = vadd.f32 0.0, %v1165
      %v1167 = vpop.f32.mrb[0].mxu0
      %v1168 = vadd.f32 0.0, %v1167
      %1169 = vmatprep.mubr.bf16.mxu0 0
      %1170 = vmatmul.mubr.bf16.gmra.mrb[0].mxu0 %v383
      %v1171 = vpop.f32.mrb[0].mxu0
      %v1172 = vadd.f32 0.0, %v1171
      %v1173 = vpop.f32.mrb[0].mxu0
      %v1174 = vadd.f32 0.0, %v1173
      %v1175 = vpop.f32.mrb[0].mxu0
      %v1176 = vpop.f32.mrb[0].mxu0
      %1177 = vdwg.mxu0
      %1178 = vmatprep.subr.bf16.mxu0 %v332
      %1179 = vmatpush1.bf16.msra.mxu0 %v331
      %1180 = vmatprep.subr.bf16.mxu0 0
      %1181 = vmatpush1.bf16.msra.mxu0 0
      %1182 = vmatprep.subr.bf16.mxu0 0
      %1183 = vmatpush1.bf16.msra.mxu0 0
      %1184 = vmatprep.subr.bf16.mxu0 0
      %1185 = vmatpush1.bf16.msra.mxu0 0
      %1186 = vmatprep.subr.bf16.mxu0 0
      %1187 = vmatpush1.bf16.msra.mxu0 0
      %1188 = vmatprep.subr.bf16.mxu0 0
      %1189 = vmatpush1.bf16.msra.mxu0 0
      %1190 = vmatprep.subr.bf16.mxu0 0
      %1191 = vmatpush1.bf16.msra.mxu0 0
      %1192 = vmatprep.subr.bf16.mxu0 0
      %1193 = vmatpush1.bf16.msra.mxu0 0
      %1194 = vmatprep.subr.bf16.mxu0 0
      %1195 = vmatpush1.bf16.msra.mxu0 0
      %1196 = vmatprep.subr.bf16.mxu0 0
      %1197 = vmatpush1.bf16.msra.mxu0 0
      %1198 = vmatprep.subr.bf16.mxu0 0
      %1199 = vmatpush1.bf16.msra.mxu0 0
      %1200 = vmatprep.subr.bf16.mxu0 0
      %1201 = vmatpush1.bf16.msra.mxu0 0
      %1202 = vmatprep.subr.bf16.mxu0 0
      %1203 = vmatpush1.bf16.msra.mxu0 0
      %1204 = vmatprep.subr.bf16.mxu0 0
      %1205 = vmatpush1.bf16.msra.mxu0 0
      %1206 = vmatprep.subr.bf16.mxu0 0
      %1207 = vmatpush1.bf16.msra.mxu0 0
      %1208 = vmatprep.subr.bf16.mxu0 0
      %1209 = vmatpush1.bf16.msra.mxu0 0
      %1210 = vmatprep.mubr.bf16.mxu0 0
      %1211 = vmatmul.mubr.bf16.gmra.mrb[0].mxu0 %v377
      %v1212 = vpop.f32.mrb[0].mxu0
      %v1213 = vadd.f32 0.0, %v1212
      %v1214 = vpop.f32.mrb[0].mxu0
      %v1215 = vadd.f32 0.0, %v1214
      %v1216 = vpop.f32.mrb[0].mxu0
      %v1217 = vadd.f32 0.0, %v1216
      %v1218 = vpop.f32.mrb[0].mxu0
      %v1219 = vadd.f32 0.0, %v1218
      %1220 = vmatprep.mubr.bf16.mxu0 0
      %1221 = vmatmul.mubr.bf16.gmra.mrb[0].mxu0 %v380
      %v1222 = vpop.f32.mrb[0].mxu0
      %v1223 = vadd.f32 0.0, %v1222
      %v1224 = vpop.f32.mrb[0].mxu0
      %v1225 = vadd.f32 0.0, %v1224
      %v1226 = vpop.f32.mrb[0].mxu0
      %v1227 = vadd.f32 0.0, %v1226
      %v1228 = vpop.f32.mrb[0].mxu0
      %v1229 = vadd.f32 0.0, %v1228
      %1230 = vmatprep.mubr.bf16.mxu0 0
      %1231 = vmatmul.mubr.bf16.gmra.mrb[0].mxu0 %v383
      %v1232 = vpop.f32.mrb[0].mxu0
      %v1233 = vadd.f32 0.0, %v1232
      %v1234 = vpop.f32.mrb[0].mxu0
      %v1235 = vadd.f32 0.0, %v1234
      %v1236 = vpop.f32.mrb[0].mxu0
      %v1237 = vpop.f32.mrb[0].mxu0
      %1238 = vdwg.mxu0
      %1239 = vmatprep.subr.bf16.mxu0 %v334
      %1240 = vmatpush1.bf16.msra.mxu0 %v333
      %1241 = vmatprep.subr.bf16.mxu0 0
      %1242 = vmatpush1.bf16.msra.mxu0 0
      %1243 = vmatprep.subr.bf16.mxu0 0
      %1244 = vmatpush1.bf16.msra.mxu0 0
      %1245 = vmatprep.subr.bf16.mxu0 0
      %1246 = vmatpush1.bf16.msra.mxu0 0
      %1247 = vmatprep.subr.bf16.mxu0 0
      %1248 = vmatpush1.bf16.msra.mxu0 0
      %1249 = vmatprep.subr.bf16.mxu0 0
      %1250 = vmatpush1.bf16.msra.mxu0 0
      %1251 = vmatprep.subr.bf16.mxu0 0
      %1252 = vmatpush1.bf16.msra.mxu0 0
      %1253 = vmatprep.subr.bf16.mxu0 0
      %1254 = vmatpush1.bf16.msra.mxu0 0
      %1255 = vmatprep.subr.bf16.mxu0 0
      %1256 = vmatpush1.bf16.msra.mxu0 0
      %1257 = vmatprep.subr.bf16.mxu0 0
      %1258 = vmatpush1.bf16.msra.mxu0 0
      %1259 = vmatprep.subr.bf16.mxu0 0
      %1260 = vmatpush1.bf16.msra.mxu0 0
      %1261 = vmatprep.subr.bf16.mxu0 0
      %1262 = vmatpush1.bf16.msra.mxu0 0
      %1263 = vmatprep.subr.bf16.mxu0 0
      %1264 = vmatpush1.bf16.msra.mxu0 0
      %1265 = vmatprep.subr.bf16.mxu0 0
      %1266 = vmatpush1.bf16.msra.mxu0 0
      %1267 = vmatprep.subr.bf16.mxu0 0
      %1268 = vmatpush1.bf16.msra.mxu0 0
      %1269 = vmatprep.subr.bf16.mxu0 0
      %1270 = vmatpush1.bf16.msra.mxu0 0
      %1271 = vmatprep.mubr.bf16.mxu0 0
      %1272 = vmatmul.mubr.bf16.gmra.mrb[0].mxu0 %v377
      %v1273 = vpop.f32.mrb[0].mxu0
      %v1274 = vadd.f32 0.0, %v1273
      %v1275 = vpop.f32.mrb[0].mxu0
      %v1276 = vadd.f32 0.0, %v1275
      %v1277 = vpop.f32.mrb[0].mxu0
      %v1278 = vadd.f32 0.0, %v1277
      %v1279 = vpop.f32.mrb[0].mxu0
      %v1280 = vadd.f32 0.0, %v1279
      %1281 = vmatprep.mubr.bf16.mxu0 0
      %1282 = vmatmul.mubr.bf16.gmra.mrb[0].mxu0 %v380
      %v1283 = vpop.f32.mrb[0].mxu0
      %v1284 = vadd.f32 0.0, %v1283
      %v1285 = vpop.f32.mrb[0].mxu0
      %v1286 = vadd.f32 0.0, %v1285
      %v1287 = vpop.f32.mrb[0].mxu0
      %v1288 = vadd.f32 0.0, %v1287
      %v1289 = vpop.f32.mrb[0].mxu0
      %v1290 = vadd.f32 0.0, %v1289
      %1291 = vmatprep.mubr.bf16.mxu0 0
      %1292 = vmatmul.mubr.bf16.gmra.mrb[0].mxu0 %v383
      %v1293 = vpop.f32.mrb[0].mxu0
      %v1294 = vadd.f32 0.0, %v1293
      %v1295 = vpop.f32.mrb[0].mxu0
      %v1296 = vadd.f32 0.0, %v1295
      %v1297 = vpop.f32.mrb[0].mxu0
      %v1298 = vpop.f32.mrb[0].mxu0
      %1299 = vdwg.mxu0
      %1300 = vmatprep.subr.bf16.mxu0 %v336
      %1301 = vmatpush1.bf16.msra.mxu0 %v335
      %1302 = vmatprep.subr.bf16.mxu0 0
      %1303 = vmatpush1.bf16.msra.mxu0 0
      %1304 = vmatprep.subr.bf16.mxu0 0
      %1305 = vmatpush1.bf16.msra.mxu0 0
      %1306 = vmatprep.subr.bf16.mxu0 0
      %1307 = vmatpush1.bf16.msra.mxu0 0
      %1308 = vmatprep.subr.bf16.mxu0 0
      %1309 = vmatpush1.bf16.msra.mxu0 0
      %1310 = vmatprep.subr.bf16.mxu0 0
      %1311 = vmatpush1.bf16.msra.mxu0 0
      %1312 = vmatprep.subr.bf16.mxu0 0
      %1313 = vmatpush1.bf16.msra.mxu0 0
      %1314 = vmatprep.subr.bf16.mxu0 0
      %1315 = vmatpush1.bf16.msra.mxu0 0
      %1316 = vmatprep.subr.bf16.mxu0 0
      %1317 = vmatpush1.bf16.msra.mxu0 0
      %1318 = vmatprep.subr.bf16.mxu0 0
      %1319 = vmatpush1.bf16.msra.mxu0 0
      %1320 = vmatprep.subr.bf16.mxu0 0
      %1321 = vmatpush1.bf16.msra.mxu0 0
      %1322 = vmatprep.subr.bf16.mxu0 0
      %1323 = vmatpush1.bf16.msra.mxu0 0
      %1324 = vmatprep.subr.bf16.mxu0 0
      %1325 = vmatpush1.bf16.msra.mxu0 0
      %1326 = vmatprep.subr.bf16.mxu0 0
      %1327 = vmatpush1.bf16.msra.mxu0 0
      %1328 = vmatprep.subr.bf16.mxu0 0
      %1329 = vmatpush1.bf16.msra.mxu0 0
      %1330 = vmatprep.subr.bf16.mxu0 0
      %1331 = vmatpush1.bf16.msra.mxu0 0
      %1332 = vmatprep.mubr.bf16.mxu0 0
      %1333 = vmatmul.mubr.bf16.gmra.mrb[0].mxu0 %v377
      %v1334 = vpop.f32.mrb[0].mxu0
      %v1335 = vadd.f32 0.0, %v1334
      %v1336 = vpop.f32.mrb[0].mxu0
      %v1337 = vadd.f32 0.0, %v1336
      %v1338 = vpop.f32.mrb[0].mxu0
      %v1339 = vadd.f32 0.0, %v1338
      %v1340 = vpop.f32.mrb[0].mxu0
      %v1341 = vadd.f32 0.0, %v1340
      %1342 = vmatprep.mubr.bf16.mxu0 0
      %1343 = vmatmul.mubr.bf16.gmra.mrb[0].mxu0 %v380
      %v1344 = vpop.f32.mrb[0].mxu0
      %v1345 = vadd.f32 0.0, %v1344
      %v1346 = vpop.f32.mrb[0].mxu0
      %v1347 = vadd.f32 0.0, %v1346
      %v1348 = vpop.f32.mrb[0].mxu0
      %v1349 = vadd.f32 0.0, %v1348
      %v1350 = vpop.f32.mrb[0].mxu0
      %v1351 = vadd.f32 0.0, %v1350
      %1352 = vmatprep.mubr.bf16.mxu0 0
      %1353 = vmatmul.mubr.bf16.gmra.mrb[0].mxu0 %v383
      %v1354 = vpop.f32.mrb[0].mxu0
      %v1355 = vadd.f32 0.0, %v1354
      %v1356 = vpop.f32.mrb[0].mxu0
      %v1357 = vadd.f32 0.0, %v1356
      %v1358 = vpop.f32.mrb[0].mxu0
      %v1359 = vpop.f32.mrb[0].mxu0
      %1360 = vdwg.mxu0
      %1361 = vmatprep.subr.bf16.mxu0 %v338
      %1362 = vmatpush1.bf16.msra.mxu0 %v337
      %1363 = vmatprep.subr.bf16.mxu0 0
      %1364 = vmatpush1.bf16.msra.mxu0 0
      %1365 = vmatprep.subr.bf16.mxu0 0
      %1366 = vmatpush1.bf16.msra.mxu0 0
      %1367 = vmatprep.subr.bf16.mxu0 0
      %1368 = vmatpush1.bf16.msra.mxu0 0
      %1369 = vmatprep.subr.bf16.mxu0 0
      %1370 = vmatpush1.bf16.msra.mxu0 0
      %1371 = vmatprep.subr.bf16.mxu0 0
      %1372 = vmatpush1.bf16.msra.mxu0 0
      %1373 = vmatprep.subr.bf16.mxu0 0
      %1374 = vmatpush1.bf16.msra.mxu0 0
      %1375 = vmatprep.subr.bf16.mxu0 0
      %1376 = vmatpush1.bf16.msra.mxu0 0
      %1377 = vmatprep.subr.bf16.mxu0 0
      %1378 = vmatpush1.bf16.msra.mxu0 0
      %1379 = vmatprep.subr.bf16.mxu0 0
      %1380 = vmatpush1.bf16.msra.mxu0 0
      %1381 = vmatprep.subr.bf16.mxu0 0
      %1382 = vmatpush1.bf16.msra.mxu0 0
      %1383 = vmatprep.subr.bf16.mxu0 0
      %1384 = vmatpush1.bf16.msra.mxu0 0
      %1385 = vmatprep.subr.bf16.mxu0 0
      %1386 = vmatpush1.bf16.msra.mxu0 0
      %1387 = vmatprep.subr.bf16.mxu0 0
      %1388 = vmatpush1.bf16.msra.mxu0 0
      %1389 = vmatprep.subr.bf16.mxu0 0
      %1390 = vmatpush1.bf16.msra.mxu0 0
      %1391 = vmatprep.subr.bf16.mxu0 0
      %1392 = vmatpush1.bf16.msra.mxu0 0
      %1393 = vmatprep.mubr.bf16.mxu0 0
      %1394 = vmatmul.mubr.bf16.gmra.mrb[0].mxu0 %v377
      %v1395 = vpop.f32.mrb[0].mxu0
      %v1396 = vadd.f32 0.0, %v1395
      %v1397 = vpop.f32.mrb[0].mxu0
      %v1398 = vadd.f32 0.0, %v1397
      %v1399 = vpop.f32.mrb[0].mxu0
      %v1400 = vadd.f32 0.0, %v1399
      %v1401 = vpop.f32.mrb[0].mxu0
      %v1402 = vadd.f32 0.0, %v1401
      %1403 = vmatprep.mubr.bf16.mxu0 0
      %1404 = vmatmul.mubr.bf16.gmra.mrb[0].mxu0 %v380
      %v1405 = vpop.f32.mrb[0].mxu0
      %v1406 = vadd.f32 0.0, %v1405
      %v1407 = vpop.f32.mrb[0].mxu0
      %v1408 = vadd.f32 0.0, %v1407
      %v1409 = vpop.f32.mrb[0].mxu0
      %v1410 = vadd.f32 0.0, %v1409
      %v1411 = vpop.f32.mrb[0].mxu0
      %v1412 = vadd.f32 0.0, %v1411
      %1413 = vmatprep.mubr.bf16.mxu0 0
      %1414 = vmatmul.mubr.bf16.gmra.mrb[0].mxu0 %v383
      %v1415 = vpop.f32.mrb[0].mxu0
      %v1416 = vadd.f32 0.0, %v1415
      %v1417 = vpop.f32.mrb[0].mxu0
      %v1418 = vadd.f32 0.0, %v1417
      %v1419 = vpop.f32.mrb[0].mxu0
      %v1420 = vpop.f32.mrb[0].mxu0
      %1421 = vdwg.mxu0
      %1422 = vmatprep.subr.bf16.mxu0 0
      %1423 = vmatpush1.bf16.msra.mxu0 %v339
      %1424 = vmatprep.subr.bf16.mxu0 0
      %1425 = vmatpush1.bf16.msra.mxu0 0
      %1426 = vmatprep.subr.bf16.mxu0 0
      %1427 = vmatpush1.bf16.msra.mxu0 0
      %1428 = vmatprep.subr.bf16.mxu0 0
      %1429 = vmatpush1.bf16.msra.mxu0 0
      %1430 = vmatprep.subr.bf16.mxu0 0
      %1431 = vmatpush1.bf16.msra.mxu0 0
      %1432 = vmatprep.subr.bf16.mxu0 0
      %1433 = vmatpush1.bf16.msra.mxu0 0
      %1434 = vmatprep.subr.bf16.mxu0 0
      %1435 = vmatpush1.bf16.msra.mxu0 0
      %1436 = vmatprep.subr.bf16.mxu0 0
      %1437 = vmatpush1.bf16.msra.mxu0 0
      %1438 = vmatprep.subr.bf16.mxu0 0
      %1439 = vmatpush1.bf16.msra.mxu0 0
      %1440 = vmatprep.subr.bf16.mxu0 0
      %1441 = vmatpush1.bf16.msra.mxu0 0
      %1442 = vmatprep.subr.bf16.mxu0 0
      %1443 = vmatpush1.bf16.msra.mxu0 0
      %1444 = vmatprep.subr.bf16.mxu0 0
      %1445 = vmatpush1.bf16.msra.mxu0 0
      %1446 = vmatprep.subr.bf16.mxu0 0
      %1447 = vmatpush1.bf16.msra.mxu0 0
      %1448 = vmatprep.subr.bf16.mxu0 0
      %1449 = vmatpush1.bf16.msra.mxu0 0
      %1450 = vmatprep.subr.bf16.mxu0 0
      %1451 = vmatpush1.bf16.msra.mxu0 0
      %1452 = vmatprep.subr.bf16.mxu0 0
      %1453 = vmatpush1.bf16.msra.mxu0 0
      %1454 = vmatprep.mubr.bf16.mxu0 0
      %1455 = vmatmul.mubr.bf16.gmra.mrb[0].mxu0 %v377
      %v1456 = vpop.f32.mrb[0].mxu0
      %v1457 = vadd.f32 0.0, %v1456
      %v1458 = vpop.f32.mrb[0].mxu0
      %v1459 = vpop.f32.mrb[0].mxu0
      %v1460 = vadd.f32 0.0, %v1459
      %v1461 = vpop.f32.mrb[0].mxu0
      %1462 = vmatprep.mubr.bf16.mxu0 0
      %1463 = vmatmul.mubr.bf16.gmra.mrb[0].mxu0 %v380
      %v1464 = vpop.f32.mrb[0].mxu0
      %v1465 = vadd.f32 0.0, %v1464
      %v1466 = vpop.f32.mrb[0].mxu0
      %v1467 = vpop.f32.mrb[0].mxu0
      %v1468 = vadd.f32 0.0, %v1467
      %v1469 = vpop.f32.mrb[0].mxu0
      %1470 = vmatprep.mubr.bf16.mxu0 0
      %1471 = vmatmul.mubr.bf16.gmra.mrb[0].mxu0 %v383
      %v1472 = vpop.f32.mrb[0].mxu0
      %v1473 = vadd.f32 0.0, %v1472
      %v1474 = vpop.f32.mrb[0].mxu0
      %v1475 = vpop.f32.mrb[0].mxu0
      %v1476 = vpop.f32.mrb[0].mxu0
      %1477 = vdwg.mxu0
      %v1478 = vxor.u32 %v420, 2147483648
      %v1479 = vxor.u32 %v422, 2147483648
      %v1480 = vxor.u32 %v481, 2147483648
      %v1481 = vxor.u32 %v483, 2147483648
      %v1482 = vxor.u32 %v542, 2147483648
      %v1483 = vxor.u32 %v544, 2147483648
      %v1484 = vxor.u32 %v603, 2147483648
      %v1485 = vxor.u32 %v605, 2147483648
      %v1486 = vxor.u32 %v664, 2147483648
      %v1487 = vxor.u32 %v666, 2147483648
      %v1488 = vxor.u32 %v725, 2147483648
      %v1489 = vxor.u32 %v727, 2147483648
      %v1490 = vxor.u32 %v786, 2147483648
      %v1491 = vxor.u32 %v788, 2147483648
      %v1492 = vxor.u32 %v847, 2147483648
      %v1493 = vxor.u32 %v849, 2147483648
      %v1494 = vxor.u32 %v908, 2147483648
      %v1495 = vxor.u32 %v910, 2147483648
      %v1496 = vxor.u32 %v969, 2147483648
      %v1497 = vxor.u32 %v971, 2147483648
      %v1498 = vxor.u32 %v1030, 2147483648
      %v1499 = vxor.u32 %v1032, 2147483648
      %v1500 = vxor.u32 %v1091, 2147483648
      %v1501 = vxor.u32 %v1093, 2147483648
      %v1502 = vxor.u32 %v1152, 2147483648
      %v1503 = vxor.u32 %v1154, 2147483648
      %v1504 = vxor.u32 %v1213, 2147483648
      %v1505 = vxor.u32 %v1215, 2147483648
      %v1506 = vxor.u32 %v1274, 2147483648
      %v1507 = vxor.u32 %v1276, 2147483648
      %v1508 = vxor.u32 %v1335, 2147483648
      %v1509 = vxor.u32 %v1337, 2147483648
      %v1510 = vxor.u32 %v1396, 2147483648
      %v1511 = vxor.u32 %v1398, 2147483648
      %v1512 = vxor.u32 %v1457, 2147483648
      %v1513 = vxor.u32 %v424, 2147483648
      %v1514 = vxor.u32 %v426, 2147483648
      %v1515 = vxor.u32 %v485, 2147483648
      %v1516 = vxor.u32 %v487, 2147483648
      %v1517 = vxor.u32 %v546, 2147483648
      %v1518 = vxor.u32 %v548, 2147483648
      %v1519 = vxor.u32 %v607, 2147483648
      %v1520 = vxor.u32 %v609, 2147483648
      %v1521 = vxor.u32 %v668, 2147483648
      %v1522 = vxor.u32 %v670, 2147483648
      %v1523 = vxor.u32 %v729, 2147483648
      %v1524 = vxor.u32 %v731, 2147483648
      %v1525 = vxor.u32 %v790, 2147483648
      %v1526 = vxor.u32 %v792, 2147483648
      %v1527 = vxor.u32 %v851, 2147483648
      %v1528 = vxor.u32 %v853, 2147483648
      %v1529 = vxor.u32 %v912, 2147483648
      %v1530 = vxor.u32 %v914, 2147483648
      %v1531 = vxor.u32 %v973, 2147483648
      %v1532 = vxor.u32 %v975, 2147483648
      %v1533 = vxor.u32 %v1034, 2147483648
      %v1534 = vxor.u32 %v1036, 2147483648
      %v1535 = vxor.u32 %v1095, 2147483648
      %v1536 = vxor.u32 %v1097, 2147483648
      %v1537 = vxor.u32 %v1156, 2147483648
      %v1538 = vxor.u32 %v1158, 2147483648
      %v1539 = vxor.u32 %v1217, 2147483648
      %v1540 = vxor.u32 %v1219, 2147483648
      %v1541 = vxor.u32 %v1278, 2147483648
      %v1542 = vxor.u32 %v1280, 2147483648
      %v1543 = vxor.u32 %v1339, 2147483648
      %v1544 = vxor.u32 %v1341, 2147483648
      %v1545 = vxor.u32 %v1400, 2147483648
      %v1546 = vxor.u32 %v1402, 2147483648
      %v1547 = vxor.u32 %v1460, 2147483648
      %v1548 = vxor.u32 %v430, 2147483648
      %v1549 = vxor.u32 %v432, 2147483648
      %v1550 = vxor.u32 %v491, 2147483648
      %v1551 = vxor.u32 %v493, 2147483648
      %v1552 = vxor.u32 %v552, 2147483648
      %v1553 = vxor.u32 %v554, 2147483648
      %v1554 = vxor.u32 %v613, 2147483648
      %v1555 = vxor.u32 %v615, 2147483648
      %v1556 = vxor.u32 %v674, 2147483648
      %v1557 = vxor.u32 %v676, 2147483648
      %v1558 = vxor.u32 %v735, 2147483648
      %v1559 = vxor.u32 %v737, 2147483648
      %v1560 = vxor.u32 %v796, 2147483648
      %v1561 = vxor.u32 %v798, 2147483648
      %v1562 = vxor.u32 %v857, 2147483648
      %v1563 = vxor.u32 %v859, 2147483648
      %v1564 = vxor.u32 %v918, 2147483648
      %v1565 = vxor.u32 %v920, 2147483648
      %v1566 = vxor.u32 %v979, 2147483648
      %v1567 = vxor.u32 %v981, 2147483648
      %v1568 = vxor.u32 %v1040, 2147483648
      %v1569 = vxor.u32 %v1042, 2147483648
      %v1570 = vxor.u32 %v1101, 2147483648
      %v1571 = vxor.u32 %v1103, 2147483648
      %v1572 = vxor.u32 %v1162, 2147483648
      %v1573 = vxor.u32 %v1164, 2147483648
      %v1574 = vxor.u32 %v1223, 2147483648
      %v1575 = vxor.u32 %v1225, 2147483648
      %v1576 = vxor.u32 %v1284, 2147483648
      %v1577 = vxor.u32 %v1286, 2147483648
      %v1578 = vxor.u32 %v1345, 2147483648
      %v1579 = vxor.u32 %v1347, 2147483648
      %v1580 = vxor.u32 %v1406, 2147483648
      %v1581 = vxor.u32 %v1408, 2147483648
      %v1582 = vxor.u32 %v1465, 2147483648
      %v1583 = vxor.u32 %v434, 2147483648
      %v1584 = vxor.u32 %v436, 2147483648
      %v1585 = vxor.u32 %v495, 2147483648
      %v1586 = vxor.u32 %v497, 2147483648
      %v1587 = vxor.u32 %v556, 2147483648
      %v1588 = vxor.u32 %v558, 2147483648
      %v1589 = vxor.u32 %v617, 2147483648
      %v1590 = vxor.u32 %v619, 2147483648
      %v1591 = vxor.u32 %v678, 2147483648
      %v1592 = vxor.u32 %v680, 2147483648
      %v1593 = vxor.u32 %v739, 2147483648
      %v1594 = vxor.u32 %v741, 2147483648
      %v1595 = vxor.u32 %v800, 2147483648
      %v1596 = vxor.u32 %v802, 2147483648
      %v1597 = vxor.u32 %v861, 2147483648
      %v1598 = vxor.u32 %v863, 2147483648
      %v1599 = vxor.u32 %v922, 2147483648
      %v1600 = vxor.u32 %v924, 2147483648
      %v1601 = vxor.u32 %v983, 2147483648
      %v1602 = vxor.u32 %v985, 2147483648
      %v1603 = vxor.u32 %v1044, 2147483648
      %v1604 = vxor.u32 %v1046, 2147483648
      %v1605 = vxor.u32 %v1105, 2147483648
      %v1606 = vxor.u32 %v1107, 2147483648
      %v1607 = vxor.u32 %v1166, 2147483648
      %v1608 = vxor.u32 %v1168, 2147483648
      %v1609 = vxor.u32 %v1227, 2147483648
      %v1610 = vxor.u32 %v1229, 2147483648
      %v1611 = vxor.u32 %v1288, 2147483648
      %v1612 = vxor.u32 %v1290, 2147483648
      %v1613 = vxor.u32 %v1349, 2147483648
      %v1614 = vxor.u32 %v1351, 2147483648
      %v1615 = vxor.u32 %v1410, 2147483648
      %v1616 = vxor.u32 %v1412, 2147483648
      %v1617 = vxor.u32 %v1468, 2147483648
      %v1618 = vxor.u32 %v440, 2147483648
      %v1619 = vxor.u32 %v442, 2147483648
      %v1620 = vxor.u32 %v501, 2147483648
      %v1621 = vxor.u32 %v503, 2147483648
      %v1622 = vxor.u32 %v562, 2147483648
      %v1623 = vxor.u32 %v564, 2147483648
      %v1624 = vxor.u32 %v623, 2147483648
      %v1625 = vxor.u32 %v625, 2147483648
      %v1626 = vxor.u32 %v684, 2147483648
      %v1627 = vxor.u32 %v686, 2147483648
      %v1628 = vxor.u32 %v745, 2147483648
      %v1629 = vxor.u32 %v747, 2147483648
      %v1630 = vxor.u32 %v806, 2147483648
      %v1631 = vxor.u32 %v808, 2147483648
      %v1632 = vxor.u32 %v867, 2147483648
      %v1633 = vxor.u32 %v869, 2147483648
      %v1634 = vxor.u32 %v928, 2147483648
      %v1635 = vxor.u32 %v930, 2147483648
      %v1636 = vxor.u32 %v989, 2147483648
      %v1637 = vxor.u32 %v991, 2147483648
      %v1638 = vxor.u32 %v1050, 2147483648
      %v1639 = vxor.u32 %v1052, 2147483648
      %v1640 = vxor.u32 %v1111, 2147483648
      %v1641 = vxor.u32 %v1113, 2147483648
      %v1642 = vxor.u32 %v1172, 2147483648
      %v1643 = vxor.u32 %v1174, 2147483648
      %v1644 = vxor.u32 %v1233, 2147483648
      %v1645 = vxor.u32 %v1235, 2147483648
      %v1646 = vxor.u32 %v1294, 2147483648
      %v1647 = vxor.u32 %v1296, 2147483648
      %v1648 = vxor.u32 %v1355, 2147483648
      %v1649 = vxor.u32 %v1357, 2147483648
      %v1650 = vxor.u32 %v1416, 2147483648
      %v1651 = vxor.u32 %v1418, 2147483648
      %v1652 = vxor.u32 %v1473, 2147483648
      %v1653 = vmul.f32 %v1478, 1.442695
      %v1654 = vpow.pop %v1653
      %v1655 = vmul.f32 %v1479, 1.442695
      %v1656 = vpow.pop %v1655
      %v1657 = vmul.f32 %v1480, 1.442695
      %v1658 = vpow.pop %v1657
      %v1659 = vmul.f32 %v1481, 1.442695
      %v1660 = vpow.pop %v1659
      %v1661 = vmul.f32 %v1482, 1.442695
      %v1662 = vpow.pop %v1661
      %v1663 = vmul.f32 %v1483, 1.442695
      %v1664 = vpow.pop %v1663
      %v1665 = vmul.f32 %v1484, 1.442695
      %v1666 = vpow.pop %v1665
      %v1667 = vmul.f32 %v1485, 1.442695
      %v1668 = vpow.pop %v1667
      %v1669 = vmul.f32 %v1486, 1.442695
      %v1670 = vpow.pop %v1669
      %v1671 = vmul.f32 %v1487, 1.442695
      %v1672 = vpow.pop %v1671
      %v1673 = vmul.f32 %v1488, 1.442695
      %v1674 = vpow.pop %v1673
      %v1675 = vmul.f32 %v1489, 1.442695
      %v1676 = vpow.pop %v1675
      %v1677 = vmul.f32 %v1490, 1.442695
      %v1678 = vpow.pop %v1677
      %v1679 = vmul.f32 %v1491, 1.442695
      %v1680 = vpow.pop %v1679
      %v1681 = vmul.f32 %v1492, 1.442695
      %v1682 = vpow.pop %v1681
      %v1683 = vmul.f32 %v1493, 1.442695
      %v1684 = vpow.pop %v1683
      %v1685 = vmul.f32 %v1494, 1.442695
      %v1686 = vpow.pop %v1685
      %v1687 = vmul.f32 %v1495, 1.442695
      %v1688 = vpow.pop %v1687
      %v1689 = vmul.f32 %v1496, 1.442695
      %v1690 = vpow.pop %v1689
      %v1691 = vmul.f32 %v1497, 1.442695
      %v1692 = vpow.pop %v1691
      %v1693 = vmul.f32 %v1498, 1.442695
      %v1694 = vpow.pop %v1693
      %v1695 = vmul.f32 %v1499, 1.442695
      %v1696 = vpow.pop %v1695
      %v1697 = vmul.f32 %v1500, 1.442695
      %v1698 = vpow.pop %v1697
      %v1699 = vmul.f32 %v1501, 1.442695
      %v1700 = vpow.pop %v1699
      %v1701 = vmul.f32 %v1502, 1.442695
      %v1702 = vpow.pop %v1701
      %v1703 = vmul.f32 %v1503, 1.442695
      %v1704 = vpow.pop %v1703
      %v1705 = vmul.f32 %v1504, 1.442695
      %v1706 = vpow.pop %v1705
      %v1707 = vmul.f32 %v1505, 1.442695
      %v1708 = vpow.pop %v1707
      %v1709 = vmul.f32 %v1506, 1.442695
      %v1710 = vpow.pop %v1709
      %v1711 = vmul.f32 %v1507, 1.442695
      %v1712 = vpow.pop %v1711
      %v1713 = vmul.f32 %v1508, 1.442695
      %v1714 = vpow.pop %v1713
      %v1715 = vmul.f32 %v1509, 1.442695
      %v1716 = vpow.pop %v1715
      %v1717 = vmul.f32 %v1510, 1.442695
      %v1718 = vpow.pop %v1717
      %v1719 = vmul.f32 %v1511, 1.442695
      %v1720 = vpow.pop %v1719
      %v1721 = vmul.f32 %v1512, 1.442695
      %v1722 = vpow.pop %v1721
      %v1723 = vmul.f32 %v1513, 1.442695
      %v1724 = vpow.pop %v1723
      %v1725 = vmul.f32 %v1514, 1.442695
      %v1726 = vpow.pop %v1725
      %v1727 = vmul.f32 %v1515, 1.442695
      %v1728 = vpow.pop %v1727
      %v1729 = vmul.f32 %v1516, 1.442695
      %v1730 = vpow.pop %v1729
      %v1731 = vmul.f32 %v1517, 1.442695
      %v1732 = vpow.pop %v1731
      %v1733 = vmul.f32 %v1518, 1.442695
      %v1734 = vpow.pop %v1733
      %v1735 = vmul.f32 %v1519, 1.442695
      %v1736 = vpow.pop %v1735
      %v1737 = vmul.f32 %v1520, 1.442695
      %v1738 = vpow.pop %v1737
      %v1739 = vmul.f32 %v1521, 1.442695
      %v1740 = vpow.pop %v1739
      %v1741 = vmul.f32 %v1522, 1.442695
      %v1742 = vpow.pop %v1741
      %v1743 = vmul.f32 %v1523, 1.442695
      %v1744 = vpow.pop %v1743
      %v1745 = vmul.f32 %v1524, 1.442695
      %v1746 = vpow.pop %v1745
      %v1747 = vmul.f32 %v1525, 1.442695
      %v1748 = vpow.pop %v1747
      %v1749 = vmul.f32 %v1526, 1.442695
      %v1750 = vpow.pop %v1749
      %v1751 = vmul.f32 %v1527, 1.442695
      %v1752 = vpow.pop %v1751
      %v1753 = vmul.f32 %v1528, 1.442695
      %v1754 = vpow.pop %v1753
      %v1755 = vmul.f32 %v1529, 1.442695
      %v1756 = vpow.pop %v1755
      %v1757 = vmul.f32 %v1530, 1.442695
      %v1758 = vpow.pop %v1757
      %v1759 = vmul.f32 %v1531, 1.442695
      %v1760 = vpow.pop %v1759
      %v1761 = vmul.f32 %v1532, 1.442695
      %v1762 = vpow.pop %v1761
      %v1763 = vmul.f32 %v1533, 1.442695
      %v1764 = vpow.pop %v1763
      %v1765 = vmul.f32 %v1534, 1.442695
      %v1766 = vpow.pop %v1765
      %v1767 = vmul.f32 %v1535, 1.442695
      %v1768 = vpow.pop %v1767
      %v1769 = vmul.f32 %v1536, 1.442695
      %v1770 = vpow.pop %v1769
      %v1771 = vmul.f32 %v1537, 1.442695
      %v1772 = vpow.pop %v1771
      %v1773 = vmul.f32 %v1538, 1.442695
      %v1774 = vpow.pop %v1773
      %v1775 = vmul.f32 %v1539, 1.442695
      %v1776 = vpow.pop %v1775
      %v1777 = vmul.f32 %v1540, 1.442695
      %v1778 = vpow.pop %v1777
      %v1779 = vmul.f32 %v1541, 1.442695
      %v1780 = vpow.pop %v1779
      %v1781 = vmul.f32 %v1542, 1.442695
      %v1782 = vpow.pop %v1781
      %v1783 = vmul.f32 %v1543, 1.442695
      %v1784 = vpow.pop %v1783
      %v1785 = vmul.f32 %v1544, 1.442695
      %v1786 = vpow.pop %v1785
      %v1787 = vmul.f32 %v1545, 1.442695
      %v1788 = vpow.pop %v1787
      %v1789 = vmul.f32 %v1546, 1.442695
      %v1790 = vpow.pop %v1789
      %v1791 = vmul.f32 %v1547, 1.442695
      %v1792 = vpow.pop %v1791
      %v1793 = vmul.f32 %v1548, 1.442695
      %v1794 = vpow.pop %v1793
      %v1795 = vmul.f32 %v1549, 1.442695
      %v1796 = vpow.pop %v1795
      %v1797 = vmul.f32 %v1550, 1.442695
      %v1798 = vpow.pop %v1797
      %v1799 = vmul.f32 %v1551, 1.442695
      %v1800 = vpow.pop %v1799
      %v1801 = vmul.f32 %v1552, 1.442695
      %v1802 = vpow.pop %v1801
      %v1803 = vmul.f32 %v1553, 1.442695
      %v1804 = vpow.pop %v1803
      %v1805 = vmul.f32 %v1554, 1.442695
      %v1806 = vpow.pop %v1805
      %v1807 = vmul.f32 %v1555, 1.442695
      %v1808 = vpow.pop %v1807
      %v1809 = vmul.f32 %v1556, 1.442695
      %v1810 = vpow.pop %v1809
      %v1811 = vmul.f32 %v1557, 1.442695
      %v1812 = vpow.pop %v1811
      %v1813 = vmul.f32 %v1558, 1.442695
      %v1814 = vpow.pop %v1813
      %v1815 = vmul.f32 %v1559, 1.442695
      %v1816 = vpow.pop %v1815
      %v1817 = vmul.f32 %v1560, 1.442695
      %v1818 = vpow.pop %v1817
      %v1819 = vmul.f32 %v1561, 1.442695
      %v1820 = vpow.pop %v1819
      %v1821 = vmul.f32 %v1562, 1.442695
      %v1822 = vpow.pop %v1821
      %v1823 = vmul.f32 %v1563, 1.442695
      %v1824 = vpow.pop %v1823
      %v1825 = vmul.f32 %v1564, 1.442695
      %v1826 = vpow.pop %v1825
      %v1827 = vmul.f32 %v1565, 1.442695
      %v1828 = vpow.pop %v1827
      %v1829 = vmul.f32 %v1566, 1.442695
      %v1830 = vpow.pop %v1829
      %v1831 = vmul.f32 %v1567, 1.442695
      %v1832 = vpow.pop %v1831
      %v1833 = vmul.f32 %v1568, 1.442695
      %v1834 = vpow.pop %v1833
      %v1835 = vmul.f32 %v1569, 1.442695
      %v1836 = vpow.pop %v1835
      %v1837 = vmul.f32 %v1570, 1.442695
      %v1838 = vpow.pop %v1837
      %v1839 = vmul.f32 %v1571, 1.442695
      %v1840 = vpow.pop %v1839
      %v1841 = vmul.f32 %v1572, 1.442695
      %v1842 = vpow.pop %v1841
      %v1843 = vmul.f32 %v1573, 1.442695
      %v1844 = vpow.pop %v1843
      %v1845 = vmul.f32 %v1574, 1.442695
      %v1846 = vpow.pop %v1845
      %v1847 = vmul.f32 %v1575, 1.442695
      %v1848 = vpow.pop %v1847
      %v1849 = vmul.f32 %v1576, 1.442695
      %v1850 = vpow.pop %v1849
      %v1851 = vmul.f32 %v1577, 1.442695
      %v1852 = vpow.pop %v1851
      %v1853 = vmul.f32 %v1578, 1.442695
      %v1854 = vpow.pop %v1853
      %v1855 = vmul.f32 %v1579, 1.442695
      %v1856 = vpow.pop %v1855
      %v1857 = vmul.f32 %v1580, 1.442695
      %v1858 = vpow.pop %v1857
      %v1859 = vmul.f32 %v1581, 1.442695
      %v1860 = vpow.pop %v1859
      %v1861 = vmul.f32 %v1582, 1.442695
      %v1862 = vpow.pop %v1861
      %v1863 = vmul.f32 %v1583, 1.442695
      %v1864 = vpow.pop %v1863
      %v1865 = vmul.f32 %v1584, 1.442695
      %v1866 = vpow.pop %v1865
      %v1867 = vmul.f32 %v1585, 1.442695
      %v1868 = vpow.pop %v1867
      %v1869 = vmul.f32 %v1586, 1.442695
      %v1870 = vpow.pop %v1869
      %v1871 = vmul.f32 %v1587, 1.442695
      %v1872 = vpow.pop %v1871
      %v1873 = vmul.f32 %v1588, 1.442695
      %v1874 = vpow.pop %v1873
      %v1875 = vmul.f32 %v1589, 1.442695
      %v1876 = vpow.pop %v1875
      %v1877 = vmul.f32 %v1590, 1.442695
      %v1878 = vpow.pop %v1877
      %v1879 = vmul.f32 %v1591, 1.442695
      %v1880 = vpow.pop %v1879
      %v1881 = vmul.f32 %v1592, 1.442695
      %v1882 = vpow.pop %v1881
      %v1883 = vmul.f32 %v1593, 1.442695
      %v1884 = vpow.pop %v1883
      %v1885 = vmul.f32 %v1594, 1.442695
      %v1886 = vpow.pop %v1885
      %v1887 = vmul.f32 %v1595, 1.442695
      %v1888 = vpow.pop %v1887
      %v1889 = vmul.f32 %v1596, 1.442695
      %v1890 = vpow.pop %v1889
      %v1891 = vmul.f32 %v1597, 1.442695
      %v1892 = vpow.pop %v1891
      %v1893 = vmul.f32 %v1598, 1.442695
      %v1894 = vpow.pop %v1893
      %v1895 = vmul.f32 %v1599, 1.442695
      %v1896 = vpow.pop %v1895
      %v1897 = vmul.f32 %v1600, 1.442695
      %v1898 = vpow.pop %v1897
      %v1899 = vmul.f32 %v1601, 1.442695
      %v1900 = vpow.pop %v1899
      %v1901 = vmul.f32 %v1602, 1.442695
      %v1902 = vpow.pop %v1901
      %v1903 = vmul.f32 %v1603, 1.442695
      %v1904 = vpow.pop %v1903
      %v1905 = vmul.f32 %v1604, 1.442695
      %v1906 = vpow.pop %v1905
      %v1907 = vmul.f32 %v1605, 1.442695
      %v1908 = vpow.pop %v1907
      %v1909 = vmul.f32 %v1606, 1.442695
      %v1910 = vpow.pop %v1909
      %v1911 = vmul.f32 %v1607, 1.442695
      %v1912 = vpow.pop %v1911
      %v1913 = vmul.f32 %v1608, 1.442695
      %v1914 = vpow.pop %v1913
      %v1915 = vmul.f32 %v1609, 1.442695
      %v1916 = vpow.pop %v1915
      %v1917 = vmul.f32 %v1610, 1.442695
      %v1918 = vpow.pop %v1917
      %v1919 = vmul.f32 %v1611, 1.442695
      %v1920 = vpow.pop %v1919
      %v1921 = vmul.f32 %v1612, 1.442695
      %v1922 = vpow.pop %v1921
      %v1923 = vmul.f32 %v1613, 1.442695
      %v1924 = vpow.pop %v1923
      %v1925 = vmul.f32 %v1614, 1.442695
      %v1926 = vpow.pop %v1925
      %v1927 = vmul.f32 %v1615, 1.442695
      %v1928 = vpow.pop %v1927
      %v1929 = vmul.f32 %v1616, 1.442695
      %v1930 = vpow.pop %v1929
      %v1931 = vmul.f32 %v1617, 1.442695
      %v1932 = vpow.pop %v1931
      %v1933 = vmul.f32 %v1618, 1.442695
      %v1934 = vpow.pop %v1933
      %v1935 = vmul.f32 %v1619, 1.442695
      %v1936 = vpow.pop %v1935
      %v1937 = vmul.f32 %v1620, 1.442695
      %v1938 = vpow.pop %v1937
      %v1939 = vmul.f32 %v1621, 1.442695
      %v1940 = vpow.pop %v1939
      %v1941 = vmul.f32 %v1622, 1.442695
      %v1942 = vpow.pop %v1941
      %v1943 = vmul.f32 %v1623, 1.442695
      %v1944 = vpow.pop %v1943
      %v1945 = vmul.f32 %v1624, 1.442695
      %v1946 = vpow.pop %v1945
      %v1947 = vmul.f32 %v1625, 1.442695
      %v1948 = vpow.pop %v1947
      %v1949 = vmul.f32 %v1626, 1.442695
      %v1950 = vpow.pop %v1949
      %v1951 = vmul.f32 %v1627, 1.442695
      %v1952 = vpow.pop %v1951
      %v1953 = vmul.f32 %v1628, 1.442695
      %v1954 = vpow.pop %v1953
      %v1955 = vmul.f32 %v1629, 1.442695
      %v1956 = vpow.pop %v1955
      %v1957 = vmul.f32 %v1630, 1.442695
      %v1958 = vpow.pop %v1957
      %v1959 = vmul.f32 %v1631, 1.442695
      %v1960 = vpow.pop %v1959
      %v1961 = vmul.f32 %v1632, 1.442695
      %v1962 = vpow.pop %v1961
      %v1963 = vmul.f32 %v1633, 1.442695
      %v1964 = vpow.pop %v1963
      %v1965 = vmul.f32 %v1634, 1.442695
      %v1966 = vpow.pop %v1965
      %v1967 = vmul.f32 %v1635, 1.442695
      %v1968 = vpow.pop %v1967
      %v1969 = vmul.f32 %v1636, 1.442695
      %v1970 = vpow.pop %v1969
      %v1971 = vmul.f32 %v1637, 1.442695
      %v1972 = vpow.pop %v1971
      %v1973 = vmul.f32 %v1638, 1.442695
      %v1974 = vpow.pop %v1973
      %v1975 = vmul.f32 %v1639, 1.442695
      %v1976 = vpow.pop %v1975
      %v1977 = vmul.f32 %v1640, 1.442695
      %v1978 = vpow.pop %v1977
      %v1979 = vmul.f32 %v1641, 1.442695
      %v1980 = vpow.pop %v1979
      %v1981 = vmul.f32 %v1642, 1.442695
      %v1982 = vpow.pop %v1981
      %v1983 = vmul.f32 %v1643, 1.442695
      %v1984 = vpow.pop %v1983
      %v1985 = vmul.f32 %v1644, 1.442695
      %v1986 = vpow.pop %v1985
      %v1987 = vmul.f32 %v1645, 1.442695
      %v1988 = vpow.pop %v1987
      %v1989 = vmul.f32 %v1646, 1.442695
      %v1990 = vpow.pop %v1989
      %v1991 = vmul.f32 %v1647, 1.442695
      %v1992 = vpow.pop %v1991
      %v1993 = vmul.f32 %v1648, 1.442695
      %v1994 = vpow.pop %v1993
      %v1995 = vmul.f32 %v1649, 1.442695
      %v1996 = vpow.pop %v1995
      %v1997 = vmul.f32 %v1650, 1.442695
      %v1998 = vpow.pop %v1997
      %v1999 = vmul.f32 %v1651, 1.442695
      %v2000 = vpow.pop %v1999
      %v2001 = vmul.f32 %v1652, 1.442695
      %v2002 = vpow.pop %v2001
      %v2003 = vadd.f32 %v1654, 1.0
      %v2004 = vadd.f32 %v1656, 1.0
      %v2005 = vadd.f32 %v1658, 1.0
      %v2006 = vadd.f32 %v1660, 1.0
      %v2007 = vadd.f32 %v1662, 1.0
      %v2008 = vadd.f32 %v1664, 1.0
      %v2009 = vadd.f32 %v1666, 1.0
      %v2010 = vadd.f32 %v1668, 1.0
      %v2011 = vadd.f32 %v1670, 1.0
      %v2012 = vadd.f32 %v1672, 1.0
      %v2013 = vadd.f32 %v1674, 1.0
      %v2014 = vadd.f32 %v1676, 1.0
      %v2015 = vadd.f32 %v1678, 1.0
      %v2016 = vadd.f32 %v1680, 1.0
      %v2017 = vadd.f32 %v1682, 1.0
      %v2018 = vadd.f32 %v1684, 1.0
      %v2019 = vadd.f32 %v1686, 1.0
      %v2020 = vadd.f32 %v1688, 1.0
      %v2021 = vadd.f32 %v1690, 1.0
      %v2022 = vadd.f32 %v1692, 1.0
      %v2023 = vadd.f32 %v1694, 1.0
      %v2024 = vadd.f32 %v1696, 1.0
      %v2025 = vadd.f32 %v1698, 1.0
      %v2026 = vadd.f32 %v1700, 1.0
      %v2027 = vadd.f32 %v1702, 1.0
      %v2028 = vadd.f32 %v1704, 1.0
      %v2029 = vadd.f32 %v1706, 1.0
      %v2030 = vadd.f32 %v1708, 1.0
      %v2031 = vadd.f32 %v1710, 1.0
      %v2032 = vadd.f32 %v1712, 1.0
      %v2033 = vadd.f32 %v1714, 1.0
      %v2034 = vadd.f32 %v1716, 1.0
      %v2035 = vadd.f32 %v1718, 1.0
      %v2036 = vadd.f32 %v1720, 1.0
      %v2037 = vadd.f32 %v1722, 1.0
      %v2038 = vadd.f32 %v1724, 1.0
      %v2039 = vadd.f32 %v1726, 1.0
      %v2040 = vadd.f32 %v1728, 1.0
      %v2041 = vadd.f32 %v1730, 1.0
      %v2042 = vadd.f32 %v1732, 1.0
      %v2043 = vadd.f32 %v1734, 1.0
      %v2044 = vadd.f32 %v1736, 1.0
      %v2045 = vadd.f32 %v1738, 1.0
      %v2046 = vadd.f32 %v1740, 1.0
      %v2047 = vadd.f32 %v1742, 1.0
      %v2048 = vadd.f32 %v1744, 1.0
      %v2049 = vadd.f32 %v1746, 1.0
      %v2050 = vadd.f32 %v1748, 1.0
      %v2051 = vadd.f32 %v1750, 1.0
      %v2052 = vadd.f32 %v1752, 1.0
      %v2053 = vadd.f32 %v1754, 1.0
      %v2054 = vadd.f32 %v1756, 1.0
      %v2055 = vadd.f32 %v1758, 1.0
      %v2056 = vadd.f32 %v1760, 1.0
      %v2057 = vadd.f32 %v1762, 1.0
      %v2058 = vadd.f32 %v1764, 1.0
      %v2059 = vadd.f32 %v1766, 1.0
      %v2060 = vadd.f32 %v1768, 1.0
      %v2061 = vadd.f32 %v1770, 1.0
      %v2062 = vadd.f32 %v1772, 1.0
      %v2063 = vadd.f32 %v1774, 1.0
      %v2064 = vadd.f32 %v1776, 1.0
      %v2065 = vadd.f32 %v1778, 1.0
      %v2066 = vadd.f32 %v1780, 1.0
      %v2067 = vadd.f32 %v1782, 1.0
      %v2068 = vadd.f32 %v1784, 1.0
      %v2069 = vadd.f32 %v1786, 1.0
      %v2070 = vadd.f32 %v1788, 1.0
      %v2071 = vadd.f32 %v1790, 1.0
      %v2072 = vadd.f32 %v1792, 1.0
      %v2073 = vadd.f32 %v1794, 1.0
      %v2074 = vadd.f32 %v1796, 1.0
      %v2075 = vadd.f32 %v1798, 1.0
      %v2076 = vadd.f32 %v1800, 1.0
      %v2077 = vadd.f32 %v1802, 1.0
      %v2078 = vadd.f32 %v1804, 1.0
      %v2079 = vadd.f32 %v1806, 1.0
      %v2080 = vadd.f32 %v1808, 1.0
      %v2081 = vadd.f32 %v1810, 1.0
      %v2082 = vadd.f32 %v1812, 1.0
      %v2083 = vadd.f32 %v1814, 1.0
      %v2084 = vadd.f32 %v1816, 1.0
      %v2085 = vadd.f32 %v1818, 1.0
      %v2086 = vadd.f32 %v1820, 1.0
      %v2087 = vadd.f32 %v1822, 1.0
      %v2088 = vadd.f32 %v1824, 1.0
      %v2089 = vadd.f32 %v1826, 1.0
      %v2090 = vadd.f32 %v1828, 1.0
      %v2091 = vadd.f32 %v1830, 1.0
      %v2092 = vadd.f32 %v1832, 1.0
      %v2093 = vadd.f32 %v1834, 1.0
      %v2094 = vadd.f32 %v1836, 1.0
      %v2095 = vadd.f32 %v1838, 1.0
      %v2096 = vadd.f32 %v1840, 1.0
      %v2097 = vadd.f32 %v1842, 1.0
      %v2098 = vadd.f32 %v1844, 1.0
      %v2099 = vadd.f32 %v1846, 1.0
      %v2100 = vadd.f32 %v1848, 1.0
      %v2101 = vadd.f32 %v1850, 1.0
      %v2102 = vadd.f32 %v1852, 1.0
      %v2103 = vadd.f32 %v1854, 1.0
      %v2104 = vadd.f32 %v1856, 1.0
      %v2105 = vadd.f32 %v1858, 1.0
      %v2106 = vadd.f32 %v1860, 1.0
      %v2107 = vadd.f32 %v1862, 1.0
      %v2108 = vadd.f32 %v1864, 1.0
      %v2109 = vadd.f32 %v1866, 1.0
      %v2110 = vadd.f32 %v1868, 1.0
      %v2111 = vadd.f32 %v1870, 1.0
      %v2112 = vadd.f32 %v1872, 1.0
      %v2113 = vadd.f32 %v1874, 1.0
      %v2114 = vadd.f32 %v1876, 1.0
      %v2115 = vadd.f32 %v1878, 1.0
      %v2116 = vadd.f32 %v1880, 1.0
      %v2117 = vadd.f32 %v1882, 1.0
      %v2118 = vadd.f32 %v1884, 1.0
      %v2119 = vadd.f32 %v1886, 1.0
      %v2120 = vadd.f32 %v1888, 1.0
      %v2121 = vadd.f32 %v1890, 1.0
      %v2122 = vadd.f32 %v1892, 1.0
      %v2123 = vadd.f32 %v1894, 1.0
      %v2124 = vadd.f32 %v1896, 1.0
      %v2125 = vadd.f32 %v1898, 1.0
      %v2126 = vadd.f32 %v1900, 1.0
      %v2127 = vadd.f32 %v1902, 1.0
      %v2128 = vadd.f32 %v1904, 1.0
      %v2129 = vadd.f32 %v1906, 1.0
      %v2130 = vadd.f32 %v1908, 1.0
      %v2131 = vadd.f32 %v1910, 1.0
      %v2132 = vadd.f32 %v1912, 1.0
      %v2133 = vadd.f32 %v1914, 1.0
      %v2134 = vadd.f32 %v1916, 1.0
      %v2135 = vadd.f32 %v1918, 1.0
      %v2136 = vadd.f32 %v1920, 1.0
      %v2137 = vadd.f32 %v1922, 1.0
      %v2138 = vadd.f32 %v1924, 1.0
      %v2139 = vadd.f32 %v1926, 1.0
      %v2140 = vadd.f32 %v1928, 1.0
      %v2141 = vadd.f32 %v1930, 1.0
      %v2142 = vadd.f32 %v1932, 1.0
      %v2143 = vadd.f32 %v1934, 1.0
      %v2144 = vadd.f32 %v1936, 1.0
      %v2145 = vadd.f32 %v1938, 1.0
      %v2146 = vadd.f32 %v1940, 1.0
      %v2147 = vadd.f32 %v1942, 1.0
      %v2148 = vadd.f32 %v1944, 1.0
      %v2149 = vadd.f32 %v1946, 1.0
      %v2150 = vadd.f32 %v1948, 1.0
      %v2151 = vadd.f32 %v1950, 1.0
      %v2152 = vadd.f32 %v1952, 1.0
      %v2153 = vadd.f32 %v1954, 1.0
      %v2154 = vadd.f32 %v1956, 1.0
      %v2155 = vadd.f32 %v1958, 1.0
      %v2156 = vadd.f32 %v1960, 1.0
      %v2157 = vadd.f32 %v1962, 1.0
      %v2158 = vadd.f32 %v1964, 1.0
      %v2159 = vadd.f32 %v1966, 1.0
      %v2160 = vadd.f32 %v1968, 1.0
      %v2161 = vadd.f32 %v1970, 1.0
      %v2162 = vadd.f32 %v1972, 1.0
      %v2163 = vadd.f32 %v1974, 1.0
      %v2164 = vadd.f32 %v1976, 1.0
      %v2165 = vadd.f32 %v1978, 1.0
      %v2166 = vadd.f32 %v1980, 1.0
      %v2167 = vadd.f32 %v1982, 1.0
      %v2168 = vadd.f32 %v1984, 1.0
      %v2169 = vadd.f32 %v1986, 1.0
      %v2170 = vadd.f32 %v1988, 1.0
      %v2171 = vadd.f32 %v1990, 1.0
      %v2172 = vadd.f32 %v1992, 1.0
      %v2173 = vadd.f32 %v1994, 1.0
      %v2174 = vadd.f32 %v1996, 1.0
      %v2175 = vadd.f32 %v1998, 1.0
      %v2176 = vadd.f32 %v2000, 1.0
      %v2177 = vadd.f32 %v2002, 1.0
      %v2178 = vrcp.pop %v2003
      %v2179 = vmul.f32 1.0, %v2178
      %v2180 = vrcp.pop %v2004
      %v2181 = vmul.f32 1.0, %v2180
      %v2182 = vrcp.pop %v2005
      %v2183 = vmul.f32 1.0, %v2182
      %v2184 = vrcp.pop %v2006
      %v2185 = vmul.f32 1.0, %v2184
      %v2186 = vrcp.pop %v2007
      %v2187 = vmul.f32 1.0, %v2186
      %v2188 = vrcp.pop %v2008
      %v2189 = vmul.f32 1.0, %v2188
      %v2190 = vrcp.pop %v2009
      %v2191 = vmul.f32 1.0, %v2190
      %v2192 = vrcp.pop %v2010
      %v2193 = vmul.f32 1.0, %v2192
      %v2194 = vrcp.pop %v2011
      %v2195 = vmul.f32 1.0, %v2194
      %v2196 = vrcp.pop %v2012
      %v2197 = vmul.f32 1.0, %v2196
      %v2198 = vrcp.pop %v2013
      %v2199 = vmul.f32 1.0, %v2198
      %v2200 = vrcp.pop %v2014
      %v2201 = vmul.f32 1.0, %v2200
      %v2202 = vrcp.pop %v2015
      %v2203 = vmul.f32 1.0, %v2202
      %v2204 = vrcp.pop %v2016
      %v2205 = vmul.f32 1.0, %v2204
      %v2206 = vrcp.pop %v2017
      %v2207 = vmul.f32 1.0, %v2206
      %v2208 = vrcp.pop %v2018
      %v2209 = vmul.f32 1.0, %v2208
      %v2210 = vrcp.pop %v2019
      %v2211 = vmul.f32 1.0, %v2210
      %v2212 = vrcp.pop %v2020
      %v2213 = vmul.f32 1.0, %v2212
      %v2214 = vrcp.pop %v2021
      %v2215 = vmul.f32 1.0, %v2214
      %v2216 = vrcp.pop %v2022
      %v2217 = vmul.f32 1.0, %v2216
      %v2218 = vrcp.pop %v2023
      %v2219 = vmul.f32 1.0, %v2218
      %v2220 = vrcp.pop %v2024
      %v2221 = vmul.f32 1.0, %v2220
      %v2222 = vrcp.pop %v2025
      %v2223 = vmul.f32 1.0, %v2222
      %v2224 = vrcp.pop %v2026
      %v2225 = vmul.f32 1.0, %v2224
      %v2226 = vrcp.pop %v2027
      %v2227 = vmul.f32 1.0, %v2226
      %v2228 = vrcp.pop %v2028
      %v2229 = vmul.f32 1.0, %v2228
      %v2230 = vrcp.pop %v2029
      %v2231 = vmul.f32 1.0, %v2230
      %v2232 = vrcp.pop %v2030
      %v2233 = vmul.f32 1.0, %v2232
      %v2234 = vrcp.pop %v2031
      %v2235 = vmul.f32 1.0, %v2234
      %v2236 = vrcp.pop %v2032
      %v2237 = vmul.f32 1.0, %v2236
      %v2238 = vrcp.pop %v2033
      %v2239 = vmul.f32 1.0, %v2238
      %v2240 = vrcp.pop %v2034
      %v2241 = vmul.f32 1.0, %v2240
      %v2242 = vrcp.pop %v2035
      %v2243 = vmul.f32 1.0, %v2242
      %v2244 = vrcp.pop %v2036
      %v2245 = vmul.f32 1.0, %v2244
      %v2246 = vrcp.pop %v2037
      %v2247 = vmul.f32 1.0, %v2246
      %v2248 = vrcp.pop %v2038
      %v2249 = vmul.f32 1.0, %v2248
      %v2250 = vrcp.pop %v2039
      %v2251 = vmul.f32 1.0, %v2250
      %v2252 = vrcp.pop %v2040
      %v2253 = vmul.f32 1.0, %v2252
      %v2254 = vrcp.pop %v2041
      %v2255 = vmul.f32 1.0, %v2254
      %v2256 = vrcp.pop %v2042
      %v2257 = vmul.f32 1.0, %v2256
      %v2258 = vrcp.pop %v2043
      %v2259 = vmul.f32 1.0, %v2258
      %v2260 = vrcp.pop %v2044
      %v2261 = vmul.f32 1.0, %v2260
      %v2262 = vrcp.pop %v2045
      %v2263 = vmul.f32 1.0, %v2262
      %v2264 = vrcp.pop %v2046
      %v2265 = vmul.f32 1.0, %v2264
      %v2266 = vrcp.pop %v2047
      %v2267 = vmul.f32 1.0, %v2266
      %v2268 = vrcp.pop %v2048
      %v2269 = vmul.f32 1.0, %v2268
      %v2270 = vrcp.pop %v2049
      %v2271 = vmul.f32 1.0, %v2270
      %v2272 = vrcp.pop %v2050
      %v2273 = vmul.f32 1.0, %v2272
      %v2274 = vrcp.pop %v2051
      %v2275 = vmul.f32 1.0, %v2274
      %v2276 = vrcp.pop %v2052
      %v2277 = vmul.f32 1.0, %v2276
      %v2278 = vrcp.pop %v2053
      %v2279 = vmul.f32 1.0, %v2278
      %v2280 = vrcp.pop %v2054
      %v2281 = vmul.f32 1.0, %v2280
      %v2282 = vrcp.pop %v2055
      %v2283 = vmul.f32 1.0, %v2282
      %v2284 = vrcp.pop %v2056
      %v2285 = vmul.f32 1.0, %v2284
      %v2286 = vrcp.pop %v2057
      %v2287 = vmul.f32 1.0, %v2286
      %v2288 = vrcp.pop %v2058
      %v2289 = vmul.f32 1.0, %v2288
      %v2290 = vrcp.pop %v2059
      %v2291 = vmul.f32 1.0, %v2290
      %v2292 = vrcp.pop %v2060
      %v2293 = vmul.f32 1.0, %v2292
      %v2294 = vrcp.pop %v2061
      %v2295 = vmul.f32 1.0, %v2294
      %v2296 = vrcp.pop %v2062
      %v2297 = vmul.f32 1.0, %v2296
      %v2298 = vrcp.pop %v2063
      %v2299 = vmul.f32 1.0, %v2298
      %v2300 = vrcp.pop %v2064
      %v2301 = vmul.f32 1.0, %v2300
      %v2302 = vrcp.pop %v2065
      %v2303 = vmul.f32 1.0, %v2302
      %v2304 = vrcp.pop %v2066
      %v2305 = vmul.f32 1.0, %v2304
      %v2306 = vrcp.pop %v2067
      %v2307 = vmul.f32 1.0, %v2306
      %v2308 = vrcp.pop %v2068
      %v2309 = vmul.f32 1.0, %v2308
      %v2310 = vrcp.pop %v2069
      %v2311 = vmul.f32 1.0, %v2310
      %v2312 = vrcp.pop %v2070
      %v2313 = vmul.f32 1.0, %v2312
      %v2314 = vrcp.pop %v2071
      %v2315 = vmul.f32 1.0, %v2314
      %v2316 = vrcp.pop %v2072
      %v2317 = vmul.f32 1.0, %v2316
      %v2318 = vrcp.pop %v2073
      %v2319 = vmul.f32 1.0, %v2318
      %v2320 = vrcp.pop %v2074
      %v2321 = vmul.f32 1.0, %v2320
      %v2322 = vrcp.pop %v2075
      %v2323 = vmul.f32 1.0, %v2322
      %v2324 = vrcp.pop %v2076
      %v2325 = vmul.f32 1.0, %v2324
      %v2326 = vrcp.pop %v2077
      %v2327 = vmul.f32 1.0, %v2326
      %v2328 = vrcp.pop %v2078
      %v2329 = vmul.f32 1.0, %v2328
      %v2330 = vrcp.pop %v2079
      %v2331 = vmul.f32 1.0, %v2330
      %v2332 = vrcp.pop %v2080
      %v2333 = vmul.f32 1.0, %v2332
      %v2334 = vrcp.pop %v2081
      %v2335 = vmul.f32 1.0, %v2334
      %v2336 = vrcp.pop %v2082
      %v2337 = vmul.f32 1.0, %v2336
      %v2338 = vrcp.pop %v2083
      %v2339 = vmul.f32 1.0, %v2338
      %v2340 = vrcp.pop %v2084
      %v2341 = vmul.f32 1.0, %v2340
      %v2342 = vrcp.pop %v2085
      %v2343 = vmul.f32 1.0, %v2342
      %v2344 = vrcp.pop %v2086
      %v2345 = vmul.f32 1.0, %v2344
      %v2346 = vrcp.pop %v2087
      %v2347 = vmul.f32 1.0, %v2346
      %v2348 = vrcp.pop %v2088
      %v2349 = vmul.f32 1.0, %v2348
      %v2350 = vrcp.pop %v2089
      %v2351 = vmul.f32 1.0, %v2350
      %v2352 = vrcp.pop %v2090
      %v2353 = vmul.f32 1.0, %v2352
      %v2354 = vrcp.pop %v2091
      %v2355 = vmul.f32 1.0, %v2354
      %v2356 = vrcp.pop %v2092
      %v2357 = vmul.f32 1.0, %v2356
      %v2358 = vrcp.pop %v2093
      %v2359 = vmul.f32 1.0, %v2358
      %v2360 = vrcp.pop %v2094
      %v2361 = vmul.f32 1.0, %v2360
      %v2362 = vrcp.pop %v2095
      %v2363 = vmul.f32 1.0, %v2362
      %v2364 = vrcp.pop %v2096
      %v2365 = vmul.f32 1.0, %v2364
      %v2366 = vrcp.pop %v2097
      %v2367 = vmul.f32 1.0, %v2366
      %v2368 = vrcp.pop %v2098
      %v2369 = vmul.f32 1.0, %v2368
      %v2370 = vrcp.pop %v2099
      %v2371 = vmul.f32 1.0, %v2370
      %v2372 = vrcp.pop %v2100
      %v2373 = vmul.f32 1.0, %v2372
      %v2374 = vrcp.pop %v2101
      %v2375 = vmul.f32 1.0, %v2374
      %v2376 = vrcp.pop %v2102
      %v2377 = vmul.f32 1.0, %v2376
      %v2378 = vrcp.pop %v2103
      %v2379 = vmul.f32 1.0, %v2378
      %v2380 = vrcp.pop %v2104
      %v2381 = vmul.f32 1.0, %v2380
      %v2382 = vrcp.pop %v2105
      %v2383 = vmul.f32 1.0, %v2382
      %v2384 = vrcp.pop %v2106
      %v2385 = vmul.f32 1.0, %v2384
      %v2386 = vrcp.pop %v2107
      %v2387 = vmul.f32 1.0, %v2386
      %v2388 = vrcp.pop %v2108
      %v2389 = vmul.f32 1.0, %v2388
      %v2390 = vrcp.pop %v2109
      %v2391 = vmul.f32 1.0, %v2390
      %v2392 = vrcp.pop %v2110
      %v2393 = vmul.f32 1.0, %v2392
      %v2394 = vrcp.pop %v2111
      %v2395 = vmul.f32 1.0, %v2394
      %v2396 = vrcp.pop %v2112
      %v2397 = vmul.f32 1.0, %v2396
      %v2398 = vrcp.pop %v2113
      %v2399 = vmul.f32 1.0, %v2398
      %v2400 = vrcp.pop %v2114
      %v2401 = vmul.f32 1.0, %v2400
      %v2402 = vrcp.pop %v2115
      %v2403 = vmul.f32 1.0, %v2402
      %v2404 = vrcp.pop %v2116
      %v2405 = vmul.f32 1.0, %v2404
      %v2406 = vrcp.pop %v2117
      %v2407 = vmul.f32 1.0, %v2406
      %v2408 = vrcp.pop %v2118
      %v2409 = vmul.f32 1.0, %v2408
      %v2410 = vrcp.pop %v2119
      %v2411 = vmul.f32 1.0, %v2410
      %v2412 = vrcp.pop %v2120
      %v2413 = vmul.f32 1.0, %v2412
      %v2414 = vrcp.pop %v2121
      %v2415 = vmul.f32 1.0, %v2414
      %v2416 = vrcp.pop %v2122
      %v2417 = vmul.f32 1.0, %v2416
      %v2418 = vrcp.pop %v2123
      %v2419 = vmul.f32 1.0, %v2418
      %v2420 = vrcp.pop %v2124
      %v2421 = vmul.f32 1.0, %v2420
      %v2422 = vrcp.pop %v2125
      %v2423 = vmul.f32 1.0, %v2422
      %v2424 = vrcp.pop %v2126
      %v2425 = vmul.f32 1.0, %v2424
      %v2426 = vrcp.pop %v2127
      %v2427 = vmul.f32 1.0, %v2426
      %v2428 = vrcp.pop %v2128
      %v2429 = vmul.f32 1.0, %v2428
      %v2430 = vrcp.pop %v2129
      %v2431 = vmul.f32 1.0, %v2430
      %v2432 = vrcp.pop %v2130
      %v2433 = vmul.f32 1.0, %v2432
      %v2434 = vrcp.pop %v2131
      %v2435 = vmul.f32 1.0, %v2434
      %v2436 = vrcp.pop %v2132
      %v2437 = vmul.f32 1.0, %v2436
      %v2438 = vrcp.pop %v2133
      %v2439 = vmul.f32 1.0, %v2438
      %v2440 = vrcp.pop %v2134
      %v2441 = vmul.f32 1.0, %v2440
      %v2442 = vrcp.pop %v2135
      %v2443 = vmul.f32 1.0, %v2442
      %v2444 = vrcp.pop %v2136
      %v2445 = vmul.f32 1.0, %v2444
      %v2446 = vrcp.pop %v2137
      %v2447 = vmul.f32 1.0, %v2446
      %v2448 = vrcp.pop %v2138
      %v2449 = vmul.f32 1.0, %v2448
      %v2450 = vrcp.pop %v2139
      %v2451 = vmul.f32 1.0, %v2450
      %v2452 = vrcp.pop %v2140
      %v2453 = vmul.f32 1.0, %v2452
      %v2454 = vrcp.pop %v2141
      %v2455 = vmul.f32 1.0, %v2454
      %v2456 = vrcp.pop %v2142
      %v2457 = vmul.f32 1.0, %v2456
      %v2458 = vrcp.pop %v2143
      %v2459 = vmul.f32 1.0, %v2458
      %v2460 = vrcp.pop %v2144
      %v2461 = vmul.f32 1.0, %v2460
      %v2462 = vrcp.pop %v2145
      %v2463 = vmul.f32 1.0, %v2462
      %v2464 = vrcp.pop %v2146
      %v2465 = vmul.f32 1.0, %v2464
      %v2466 = vrcp.pop %v2147
      %v2467 = vmul.f32 1.0, %v2466
      %v2468 = vrcp.pop %v2148
      %v2469 = vmul.f32 1.0, %v2468
      %v2470 = vrcp.pop %v2149
      %v2471 = vmul.f32 1.0, %v2470
      %v2472 = vrcp.pop %v2150
      %v2473 = vmul.f32 1.0, %v2472
      %v2474 = vrcp.pop %v2151
      %v2475 = vmul.f32 1.0, %v2474
      %v2476 = vrcp.pop %v2152
      %v2477 = vmul.f32 1.0, %v2476
      %v2478 = vrcp.pop %v2153
      %v2479 = vmul.f32 1.0, %v2478
      %v2480 = vrcp.pop %v2154
      %v2481 = vmul.f32 1.0, %v2480
      %v2482 = vrcp.pop %v2155
      %v2483 = vmul.f32 1.0, %v2482
      %v2484 = vrcp.pop %v2156
      %v2485 = vmul.f32 1.0, %v2484
      %v2486 = vrcp.pop %v2157
      %v2487 = vmul.f32 1.0, %v2486
      %v2488 = vrcp.pop %v2158
      %v2489 = vmul.f32 1.0, %v2488
      %v2490 = vrcp.pop %v2159
      %v2491 = vmul.f32 1.0, %v2490
      %v2492 = vrcp.pop %v2160
      %v2493 = vmul.f32 1.0, %v2492
      %v2494 = vrcp.pop %v2161
      %v2495 = vmul.f32 1.0, %v2494
      %v2496 = vrcp.pop %v2162
      %v2497 = vmul.f32 1.0, %v2496
      %v2498 = vrcp.pop %v2163
      %v2499 = vmul.f32 1.0, %v2498
      %v2500 = vrcp.pop %v2164
      %v2501 = vmul.f32 1.0, %v2500
      %v2502 = vrcp.pop %v2165
      %v2503 = vmul.f32 1.0, %v2502
      %v2504 = vrcp.pop %v2166
      %v2505 = vmul.f32 1.0, %v2504
      %v2506 = vrcp.pop %v2167
      %v2507 = vmul.f32 1.0, %v2506
      %v2508 = vrcp.pop %v2168
      %v2509 = vmul.f32 1.0, %v2508
      %v2510 = vrcp.pop %v2169
      %v2511 = vmul.f32 1.0, %v2510
      %v2512 = vrcp.pop %v2170
      %v2513 = vmul.f32 1.0, %v2512
      %v2514 = vrcp.pop %v2171
      %v2515 = vmul.f32 1.0, %v2514
      %v2516 = vrcp.pop %v2172
      %v2517 = vmul.f32 1.0, %v2516
      %v2518 = vrcp.pop %v2173
      %v2519 = vmul.f32 1.0, %v2518
      %v2520 = vrcp.pop %v2174
      %v2521 = vmul.f32 1.0, %v2520
      %v2522 = vrcp.pop %v2175
      %v2523 = vmul.f32 1.0, %v2522
      %v2524 = vrcp.pop %v2176
      %v2525 = vmul.f32 1.0, %v2524
      %v2526 = vrcp.pop %v2177
      %v2527 = vmul.f32 1.0, %v2526
      %2528 = vst [vmem:[%s143] sm:$0xff] %v2179
      %2529 = vst [vmem:[%s143 + $0x8] sm:$0xff] %v2181
      %2530 = vst [vmem:[%s143 + $0x10] sm:$0xff] %v2183
      %2531 = vst [vmem:[%s143 + $0x18] sm:$0xff] %v2185
      %2532 = vst [vmem:[%s143 + $0x20] sm:$0xff] %v2187
      %2533 = vst [vmem:[%s143 + $0x28] sm:$0xff] %v2189
      %2534 = vst [vmem:[%s143 + $0x30] sm:$0xff] %v2191
      %2535 = vst [vmem:[%s143 + $0x38] sm:$0xff] %v2193
      %2536 = vst [vmem:[%s143 + $0x40] sm:$0xff] %v2195
      %2537 = vst [vmem:[%s143 + $0x48] sm:$0xff] %v2197
      %2538 = vst [vmem:[%s143 + $0x50] sm:$0xff] %v2199
      %2539 = vst [vmem:[%s143 + $0x58] sm:$0xff] %v2201
      %2540 = vst [vmem:[%s143 + $0x60] sm:$0xff] %v2203
      %2541 = vst [vmem:[%s143 + $0x68] sm:$0xff] %v2205
      %2542 = vst [vmem:[%s143 + $0x70] sm:$0xff] %v2207
      %2543 = vst [vmem:[%s143 + $0x78] sm:$0xff] %v2209
      %2544 = vst [vmem:[%s143 + $0x80] sm:$0xff] %v2211
      %2545 = vst [vmem:[%s143 + $0x88] sm:$0xff] %v2213
      %2546 = vst [vmem:[%s143 + $0x90] sm:$0xff] %v2215
      %2547 = vst [vmem:[%s143 + $0x98] sm:$0xff] %v2217
      %2548 = vst [vmem:[%s143 + $0xa0] sm:$0xff] %v2219
      %2549 = vst [vmem:[%s143 + $0xa8] sm:$0xff] %v2221
      %2550 = vst [vmem:[%s143 + $0xb0] sm:$0xff] %v2223
      %2551 = vst [vmem:[%s143 + $0xb8] sm:$0xff] %v2225
      %2552 = vst [vmem:[%s143 + $0xc0] sm:$0xff] %v2227
      %2553 = vst [vmem:[%s143 + $0xc8] sm:$0xff] %v2229
      %2554 = vst [vmem:[%s143 + $0xd0] sm:$0xff] %v2231
      %2555 = vst [vmem:[%s143 + $0xd8] sm:$0xff] %v2233
      %2556 = vst [vmem:[%s143 + $0xe0] sm:$0xff] %v2235
      %2557 = vst [vmem:[%s143 + $0xe8] sm:$0xff] %v2237
      %2558 = vst [vmem:[%s143 + $0xf0] sm:$0xff] %v2239
      %2559 = vst [vmem:[%s143 + $0xf8] sm:$0xff] %v2241
      %2560 = vst [vmem:[%s143 + $0x100] sm:$0xff] %v2243
      %2561 = vst [vmem:[%s143 + $0x108] sm:$0xff] %v2245
      %vm2562 = vcmask 31744
      %2563 = vst.msk [vmem:[%s143 + $0x110] sm:$0xff] %vm2562, %v2247
      %2564 = vst [vmem:[%s143 + $0x118] sm:$0xff] %v2249
      %2565 = vst [vmem:[%s143 + $0x120] sm:$0xff] %v2251
      %2566 = vst [vmem:[%s143 + $0x128] sm:$0xff] %v2253
      %2567 = vst [vmem:[%s143 + $0x130] sm:$0xff] %v2255
      %2568 = vst [vmem:[%s143 + $0x138] sm:$0xff] %v2257
      %2569 = vst [vmem:[%s143 + $0x140] sm:$0xff] %v2259
      %2570 = vst [vmem:[%s143 + $0x148] sm:$0xff] %v2261
      %2571 = vst [vmem:[%s143 + $0x150] sm:$0xff] %v2263
      %2572 = vst [vmem:[%s143 + $0x158] sm:$0xff] %v2265
      %2573 = vst [vmem:[%s143 + $0x160] sm:$0xff] %v2267
      %2574 = vst [vmem:[%s143 + $0x168] sm:$0xff] %v2269
      %2575 = vst [vmem:[%s143 + $0x170] sm:$0xff] %v2271
      %2576 = vst [vmem:[%s143 + $0x178] sm:$0xff] %v2273
      %2577 = vst [vmem:[%s143 + $0x180] sm:$0xff] %v2275
      %2578 = vst [vmem:[%s143 + $0x188] sm:$0xff] %v2277
      %2579 = vst [vmem:[%s143 + $0x190] sm:$0xff] %v2279
      %2580 = vst [vmem:[%s143 + $0x198] sm:$0xff] %v2281
      %2581 = vst [vmem:[%s143 + $0x1a0] sm:$0xff] %v2283
      %2582 = vst [vmem:[%s143 + $0x1a8] sm:$0xff] %v2285
      %2583 = vst [vmem:[%s143 + $0x1b0] sm:$0xff] %v2287
      %2584 = vst [vmem:[%s143 + $0x1b8] sm:$0xff] %v2289
      %2585 = vst [vmem:[%s143 + $0x1c0] sm:$0xff] %v2291
      %2586 = vst [vmem:[%s143 + $0x1c8] sm:$0xff] %v2293
      %2587 = vst [vmem:[%s143 + $0x1d0] sm:$0xff] %v2295
      %2588 = vst [vmem:[%s143 + $0x1d8] sm:$0xff] %v2297
      %2589 = vst [vmem:[%s143 + $0x1e0] sm:$0xff] %v2299
      %2590 = vst [vmem:[%s143 + $0x1e8] sm:$0xff] %v2301
      %2591 = vst [vmem:[%s143 + $0x1f0] sm:$0xff] %v2303
      %2592 = vst [vmem:[%s143 + $0x1f8] sm:$0xff] %v2305
      %2593 = vst [vmem:[%s143 + $0x200] sm:$0xff] %v2307
      %2594 = vst [vmem:[%s143 + $0x208] sm:$0xff] %v2309
      %2595 = vst [vmem:[%s143 + $0x210] sm:$0xff] %v2311
      %2596 = vst [vmem:[%s143 + $0x218] sm:$0xff] %v2313
      %2597 = vst [vmem:[%s143 + $0x220] sm:$0xff] %v2315
      %2598 = vst.msk [vmem:[%s143 + $0x228] sm:$0xff] %vm2562, %v2317
      %2599 = vst [vmem:[%s143 + $0x230] sm:$0xff] %v2319
      %2600 = vst [vmem:[%s143 + $0x238] sm:$0xff] %v2321
      %2601 = vst [vmem:[%s143 + $0x240] sm:$0xff] %v2323
      %2602 = vst [vmem:[%s143 + $0x248] sm:$0xff] %v2325
      %2603 = vst [vmem:[%s143 + $0x250] sm:$0xff] %v2327
      %2604 = vst [vmem:[%s143 + $0x258] sm:$0xff] %v2329
      %2605 = vst [vmem:[%s143 + $0x260] sm:$0xff] %v2331
      %2606 = vst [vmem:[%s143 + $0x268] sm:$0xff] %v2333
      %2607 = vst [vmem:[%s143 + $0x270] sm:$0xff] %v2335
      %2608 = vst [vmem:[%s143 + $0x278] sm:$0xff] %v2337
      %2609 = vst [vmem:[%s143 + $0x280] sm:$0xff] %v2339
      %2610 = vst [vmem:[%s143 + $0x288] sm:$0xff] %v2341
      %2611 = vst [vmem:[%s143 + $0x290] sm:$0xff] %v2343
      %2612 = vst [vmem:[%s143 + $0x298] sm:$0xff] %v2345
      %2613 = vst [vmem:[%s143 + $0x2a0] sm:$0xff] %v2347
      %2614 = vst [vmem:[%s143 + $0x2a8] sm:$0xff] %v2349
      %2615 = vst [vmem:[%s143 + $0x2b0] sm:$0xff] %v2351
      %2616 = vst [vmem:[%s143 + $0x2b8] sm:$0xff] %v2353
      %2617 = vst [vmem:[%s143 + $0x2c0] sm:$0xff] %v2355
      %2618 = vst [vmem:[%s143 + $0x2c8] sm:$0xff] %v2357
      %2619 = vst [vmem:[%s143 + $0x2d0] sm:$0xff] %v2359
      %2620 = vst [vmem:[%s143 + $0x2d8] sm:$0xff] %v2361
      %2621 = vst [vmem:[%s143 + $0x2e0] sm:$0xff] %v2363
      %2622 = vst [vmem:[%s143 + $0x2e8] sm:$0xff] %v2365
      %2623 = vst [vmem:[%s143 + $0x2f0] sm:$0xff] %v2367
      %2624 = vst [vmem:[%s143 + $0x2f8] sm:$0xff] %v2369
      %2625 = vst [vmem:[%s143 + $0x300] sm:$0xff] %v2371
      %2626 = vst [vmem:[%s143 + $0x308] sm:$0xff] %v2373
      %2627 = vst [vmem:[%s143 + $0x310] sm:$0xff] %v2375
      %2628 = vst [vmem:[%s143 + $0x318] sm:$0xff] %v2377
      %2629 = vst [vmem:[%s143 + $0x320] sm:$0xff] %v2379
      %2630 = vst [vmem:[%s143 + $0x328] sm:$0xff] %v2381
      %2631 = vst [vmem:[%s143 + $0x330] sm:$0xff] %v2383
      %2632 = vst [vmem:[%s143 + $0x338] sm:$0xff] %v2385
      %2633 = vst.msk [vmem:[%s143 + $0x340] sm:$0xff] %vm2562, %v2387
      %2634 = vst [vmem:[%s143 + $0x348] sm:$0xff] %v2389
      %2635 = vst [vmem:[%s143 + $0x350] sm:$0xff] %v2391
      %2636 = vst [vmem:[%s143 + $0x358] sm:$0xff] %v2393
      %2637 = vst [vmem:[%s143 + $0x360] sm:$0xff] %v2395
      %2638 = vst [vmem:[%s143 + $0x368] sm:$0xff] %v2397
      %2639 = vst [vmem:[%s143 + $0x370] sm:$0xff] %v2399
      %2640 = vst [vmem:[%s143 + $0x378] sm:$0xff] %v2401
      %2641 = vst [vmem:[%s143 + $0x380] sm:$0xff] %v2403
      %2642 = vst [vmem:[%s143 + $0x388] sm:$0xff] %v2405
      %2643 = vst [vmem:[%s143 + $0x390] sm:$0xff] %v2407
      %2644 = vst [vmem:[%s143 + $0x398] sm:$0xff] %v2409
      %2645 = vst [vmem:[%s143 + $0x3a0] sm:$0xff] %v2411
      %2646 = vst [vmem:[%s143 + $0x3a8] sm:$0xff] %v2413
      %2647 = vst [vmem:[%s143 + $0x3b0] sm:$0xff] %v2415
      %2648 = vst [vmem:[%s143 + $0x3b8] sm:$0xff] %v2417
      %2649 = vst [vmem:[%s143 + $0x3c0] sm:$0xff] %v2419
      %2650 = vst [vmem:[%s143 + $0x3c8] sm:$0xff] %v2421
      %2651 = vst [vmem:[%s143 + $0x3d0] sm:$0xff] %v2423
      %2652 = vst [vmem:[%s143 + $0x3d8] sm:$0xff] %v2425
      %2653 = vst [vmem:[%s143 + $0x3e0] sm:$0xff] %v2427
      %2654 = vst [vmem:[%s143 + $0x3e8] sm:$0xff] %v2429
      %2655 = vst [vmem:[%s143 + $0x3f0] sm:$0xff] %v2431
      %2656 = vst [vmem:[%s143 + $0x3f8] sm:$0xff] %v2433
      %2657 = vst [vmem:[%s143 + $0x400] sm:$0xff] %v2435
      %2658 = vst [vmem:[%s143 + $0x408] sm:$0xff] %v2437
      %2659 = vst [vmem:[%s143 + $0x410] sm:$0xff] %v2439
      %2660 = vst [vmem:[%s143 + $0x418] sm:$0xff] %v2441
      %2661 = vst [vmem:[%s143 + $0x420] sm:$0xff] %v2443
      %2662 = vst [vmem:[%s143 + $0x428] sm:$0xff] %v2445
      %2663 = vst [vmem:[%s143 + $0x430] sm:$0xff] %v2447
      %2664 = vst [vmem:[%s143 + $0x438] sm:$0xff] %v2449
      %2665 = vst [vmem:[%s143 + $0x440] sm:$0xff] %v2451
      %2666 = vst [vmem:[%s143 + $0x448] sm:$0xff] %v2453
      %2667 = vst [vmem:[%s143 + $0x450] sm:$0xff] %v2455
      %2668 = vst.msk [vmem:[%s143 + $0x458] sm:$0xff] %vm2562, %v2457
      %2669 = vst [vmem:[%s143 + $0x460] sm:$0xf] %v2459
      %2670 = vst [vmem:[%s143 + $0x468] sm:$0xf] %v2461
      %2671 = vst [vmem:[%s143 + $0x470] sm:$0xf] %v2463
      %2672 = vst [vmem:[%s143 + $0x478] sm:$0xf] %v2465
      %2673 = vst [vmem:[%s143 + $0x480] sm:$0xf] %v2467
      %2674 = vst [vmem:[%s143 + $0x488] sm:$0xf] %v2469
      %2675 = vst [vmem:[%s143 + $0x490] sm:$0xf] %v2471
      %2676 = vst [vmem:[%s143 + $0x498] sm:$0xf] %v2473
      %2677 = vst [vmem:[%s143 + $0x4a0] sm:$0xf] %v2475
      %2678 = vst [vmem:[%s143 + $0x4a8] sm:$0xf] %v2477
      %2679 = vst [vmem:[%s143 + $0x4b0] sm:$0xf] %v2479
      %2680 = vst [vmem:[%s143 + $0x4b8] sm:$0xf] %v2481
      %2681 = vst [vmem:[%s143 + $0x4c0] sm:$0xf] %v2483
      %2682 = vst [vmem:[%s143 + $0x4c8] sm:$0xf] %v2485
      %2683 = vst [vmem:[%s143 + $0x4d0] sm:$0xf] %v2487
      %2684 = vst [vmem:[%s143 + $0x4d8] sm:$0xf] %v2489
      %2685 = vst [vmem:[%s143 + $0x4e0] sm:$0xf] %v2491
      %2686 = vst [vmem:[%s143 + $0x4e8] sm:$0xf] %v2493
      %2687 = vst [vmem:[%s143 + $0x4f0] sm:$0xf] %v2495
      %2688 = vst [vmem:[%s143 + $0x4f8] sm:$0xf] %v2497
      %2689 = vst [vmem:[%s143 + $0x500] sm:$0xf] %v2499
      %2690 = vst [vmem:[%s143 + $0x508] sm:$0xf] %v2501
      %2691 = vst [vmem:[%s143 + $0x510] sm:$0xf] %v2503
      %2692 = vst [vmem:[%s143 + $0x518] sm:$0xf] %v2505
      %2693 = vst [vmem:[%s143 + $0x520] sm:$0xf] %v2507
      %2694 = vst [vmem:[%s143 + $0x528] sm:$0xf] %v2509
      %2695 = vst [vmem:[%s143 + $0x530] sm:$0xf] %v2511
      %2696 = vst [vmem:[%s143 + $0x538] sm:$0xf] %v2513
      %2697 = vst [vmem:[%s143 + $0x540] sm:$0xf] %v2515
      %2698 = vst [vmem:[%s143 + $0x548] sm:$0xf] %v2517
      %2699 = vst [vmem:[%s143 + $0x550] sm:$0xf] %v2519
      %2700 = vst [vmem:[%s143 + $0x558] sm:$0xf] %v2521
      %2701 = vst [vmem:[%s143 + $0x560] sm:$0xf] %v2523
      %2702 = vst [vmem:[%s143 + $0x568] sm:$0xf] %v2525
      %vm2703 = vcmask 27648
      %2704 = vst.msk [vmem:[%s143 + $0x570] sm:$0xf] %vm2703, %v2527
      %p2705 = scmp.lt.s32.totalorder %s13, 1
      %s2706 = scalar_select %p2705, %s13, 1
      %s2707 = smul.addr %s2706, 175
      %s2708 = smul.addr %s2707, 8
      %s2709 = scalar_lea.vmem %s2, %s2708
      // Predicated region
      $region29: #{decoder_forward.3} parent=27 // pred_check
        %p2710 = pneg %p78
      $region30: #{decoder_forward.3} parent=27 // pred_check_branch
        %2712 = sbr.rel (%p2710) target = $region32
      $region31: #{decoder_forward.3} parent=27 // pred_region
        _
      $region32: #{decoder_forward.3} parent=27 // pred_fallthru
        _
    $region28: #{decoder_forward.3} parent=5 // pred_fallthru
      _
    %p2713 = scmp.le.s32.totalorder 2, %s8
    // Predicated region
    $region33: #{decoder_forward.3} parent=5 // pred_check
      %p2714 = pneg %p2713
    $region34: #{decoder_forward.3} parent=5 // pred_check_branch
      %2716 = sbr.rel (%p2714) target = $region36
    $region35: #{decoder_forward.3} parent=5 // pred_region
      %s2717 = ssub.s32 %s8, 2
      // Predicated region
      $region37: #{decoder_forward.3} parent=35 // pred_check
        %p2718 = pneg %p84
      $region38: #{decoder_forward.3} parent=35 // pred_check_branch
        %2720 = sbr.rel (%p2718) target = $region40
      $region39: #{decoder_forward.3} parent=35 // pred_region
        %p2721 = scmp.lt.s32.totalorder %s14, 1
        %s2722 = scalar_select %p2721, %s14, 1
        %s2723 = smul.addr %s2722, 175
        %s2724 = smul.addr %s2723, 8
        %s2725 = scalar_lea.vmem %s2, %s2724
      $region40: #{decoder_forward.3} parent=35 // pred_fallthru
        _
    $region36: #{decoder_forward.3} parent=5 // pred_fallthru
      _
  $region6: #{decoder_forward.3} parent=0 // loop_footer
    %s12 = sadd.s32 1, %s8
  $region7: #{decoder_forward.3} parent=0 // loop_footer_branch
    %7 = sbr.rel target = $region3
  $region8: #{decoder_forward.3} parent=0 // loop_exit
    _

</llo_original>
